<compile_context>
chip_gen: v5e
topology: v5e:2x2
jax: 0.10.0
libtpu: 0.0.40
codegen_flags: <defaults>
</compile_context>

<pallas_src>
import functools

import jax
import jax.numpy as jnp
import numpy as np
from jax.experimental import pallas as pl
from jax.experimental.pallas import tpu as pltpu

BN_EPS = 1e-5
NEG_SLOPE = 0.01
LANE = 128


def _round_up(v, m):
    return ((v + m - 1) // m) * m


def _conv_layer_kernel(x_ref, affine_ref, w_ref, conv_ref, stats_ref, xg_ref, *,
                       apply_prologue):
    """One fused ConvDropoutNormNonlin step for a single batch image.

    x_ref     : (H, W, Cin_p)   bf16  raw input (layer 0) or previous layer's pre-BN
                                      conv output (layers > 0)
    affine_ref: (2, Cin_p)      f32   previous layer's BN (scale, shift); ignored for
                                      layer 0
    w_ref     : (9*Cin_p, Cout_p) bf16 conv weights, 3x3 taps grouped on K
    conv_ref  : (H, W, Cout_p)  bf16  this layer's pre-BN conv output (bias-free)
    stats_ref : (2, Cout_p)     f32   per-batch partial (sum, sum of squares)
    xg_ref    : (H, W, 9*Cin_p) f32   VMEM scratch: zero-padded taps grouped on K
    """
    h, w, cin_p = x_ref.shape

    # ---- fused prologue: previous layer's BatchNorm + LeakyReLU (in vregs) ----------
    if apply_prologue:
        scale = jnp.reshape(affine_ref[0:1, :], (1, 1, cin_p))
        shift = jnp.reshape(affine_ref[1:2, :], (1, 1, cin_p))
        y = x_ref[...].astype(jnp.float32) * scale + shift
        a = jnp.where(y >= 0.0, y, NEG_SLOPE * y)
    else:
        a = x_ref[...].astype(jnp.float32)

    # ---- build the zero-padded, 9-tap-grouped matmul operand in VMEM ----------------
    # xg[y, u, t*Cin_p + c] = padded_input[y + kh, u + kw, c],  t = kh*3 + kw
    xg_ref[...] = jnp.zeros(xg_ref.shape, xg_ref.dtype)
    for kh in range(3):
        ys, ye = max(0, 1 - kh), min(h, h + 1 - kh)
        for kw in range(3):
            us, ue = max(0, 1 - kw), min(w, w + 1 - kw)
            t = kh * 3 + kw
            xg_ref[ys:ye, us:ue, t * cin_p:(t + 1) * cin_p] = \
                a[ys + kh - 1:ye + kh - 1, us + kw - 1:ue + kw - 1, :]

    # ---- single MXU matmul: K = 9*Cin_p (lane-aligned), f32 accumulation ------------
    lhs = xg_ref[...].reshape(h * w, 9 * cin_p).astype(jnp.bfloat16)
    acc = jnp.dot(lhs, w_ref[...], preferred_element_type=jnp.float32)

    # NOTE: the Conv2d bias is intentionally omitted -- training-mode BatchNorm subtracts
    # the batch mean right after the conv, so the bias cancels exactly.

    # Per-batch partial BN statistics (f32, from the un-rounded accumulator).
    stats_ref[0:1, :] = jnp.sum(acc, axis=0, keepdims=True)
    stats_ref[1:2, :] = jnp.sum(acc * acc, axis=0, keepdims=True)

    # bf16 inter-layer intermediate (halves the dominant HBM stream).
    conv_ref[...] = acc.reshape(h, w, conv_ref.shape[-1]).astype(conv_ref.dtype)


def _final_bn_lrelu_kernel(conv_ref, affine_ref, o_ref):
    """Standalone BatchNorm + LeakyReLU for the last layer; writes only true channels."""
    _, _, cout = o_ref.shape
    cout_p = conv_ref.shape[-1]
    scale = jnp.reshape(affine_ref[0:1, :], (1, 1, cout_p))
    shift = jnp.reshape(affine_ref[1:2, :], (1, 1, cout_p))
    y = conv_ref[...].astype(jnp.float32) * scale + shift
    y = jnp.where(y >= 0.0, y, NEG_SLOPE * y)
    o_ref[...] = y[:, :, :cout]


def _conv_layer(x_pad, affine_prev, w_mat, cout_p, *, apply_prologue):
    n, h, w, cin_p = x_pad.shape
    # VMEM footprint: double-buffered in/out tiles + weights + tap scratch + headroom.
    need = (2 * h * w * cin_p * 2            # input tile (bf16) x2 buffers
            + 2 * h * w * cout_p * 2         # output tile (bf16) x2 buffers
            + 2 * 9 * cin_p * cout_p * 2     # weights (bf16) x2 buffers
            + h * w * 9 * cin_p * 4          # tap scratch (f32)
            + h * w * cout_p * 4)            # f32 accumulator headroom
    vmem_limit = int(min(max(2 * need, 16 * 1024 * 1024), 48 * 1024 * 1024))

    return pl.pallas_call(
        functools.partial(_conv_layer_kernel, apply_prologue=apply_prologue),
        grid_spec=pltpu.PrefetchScalarGridSpec(
            num_scalar_prefetch=0,
            grid=(n,),
            in_specs=[
                pl.BlockSpec((None, h, w, cin_p), lambda ni: (ni, 0, 0, 0)),
                pl.BlockSpec((2, cin_p), lambda ni: (0, 0)),
                pl.BlockSpec((9 * cin_p, cout_p), lambda ni: (0, 0)),
            ],
            out_specs=(
                pl.BlockSpec((None, h, w, cout_p), lambda ni: (ni, 0, 0, 0)),
                pl.BlockSpec((None, 2, cout_p), lambda ni: (ni, 0, 0)),
            ),
            scratch_shapes=[pltpu.VMEM((h, w, 9 * cin_p), jnp.float32)],
        ),
        out_shape=(
            jax.ShapeDtypeStruct((n, h, w, cout_p), jnp.bfloat16),
            jax.ShapeDtypeStruct((n, 2, cout_p), jnp.float32),
        ),
        compiler_params=pltpu.CompilerParams(
            # Per-batch partial stats -> batch axis is safe to shard across TCs (v7x).
            dimension_semantics=("parallel",),
            vmem_limit_bytes=vmem_limit,
        ),
        cost_estimate=pl.CostEstimate(
            flops=2 * n * h * w * 9 * cin_p * cout_p,
            transcendentals=0,
            bytes_accessed=(x_pad.size * 2 + w_mat.size * 2 + affine_prev.size * 4
                            + n * h * w * cout_p * 2 + n * 2 * cout_p * 4),
        ),
    )(x_pad, affine_prev, w_mat)


def _final_pass(conv, affine, cout):
    n, h, w, cout_p = conv.shape
    vmem_limit = int(min(max(8 * h * w * cout_p * 4, 16 * 1024 * 1024),
                         48 * 1024 * 1024))
    return pl.pallas_call(
        _final_bn_lrelu_kernel,
        grid_spec=pltpu.PrefetchScalarGridSpec(
            num_scalar_prefetch=0,
            grid=(n,),
            in_specs=[
                pl.BlockSpec((None, h, w, cout_p), lambda ni: (ni, 0, 0, 0)),
                pl.BlockSpec((2, cout_p), lambda ni: (0, 0)),
            ],
            out_specs=pl.BlockSpec((None, h, w, cout), lambda ni: (ni, 0, 0, 0)),
        ),
        out_shape=jax.ShapeDtypeStruct((n, h, w, cout), jnp.float32),
        compiler_params=pltpu.CompilerParams(
            dimension_semantics=("parallel",),
            vmem_limit_bytes=vmem_limit,
        ),
        cost_estimate=pl.CostEstimate(
            flops=4 * n * h * w * cout_p,
            transcendentals=0,
            bytes_accessed=n * h * w * (cout_p * 2 + cout * 4) + 2 * cout_p * 4,
        ),
    )(conv, affine)


@jax.jit
def stacked_conv_layers_forward(x_nchw, params):
    """params: list of (conv_weight_OIHW, conv_bias, bn_gamma, bn_beta) per block."""
    x = jnp.transpose(x_nchw, (0, 2, 3, 1))                       # NCHW -> NHWC
    n, h, w, cin = x.shape
    m = n * h * w

    cin_p = _round_up(cin, LANE)
    cur = jnp.pad(x, ((0, 0), (0, 0), (0, 0), (0, cin_p - cin))).astype(jnp.bfloat16)
    affine = jnp.zeros((2, cin_p), jnp.float32)   # dummy; layer 0 skips the prologue

    cout = cin
    for l, (w_oihw, _bias, gamma, beta) in enumerate(params):
        cout, cin_l = w_oihw.shape[0], w_oihw.shape[1]
        cout_p = _round_up(cout, LANE)

        # Weights: (O, I, 3, 3) -> (kh, kw, I, O) -> (9*Cin_p, Cout_p), zero-padded, bf16.
        wt = jnp.transpose(w_oihw, (2, 3, 1, 0)).reshape(9, cin_l, cout)
        wt = jnp.pad(wt, ((0, 0), (0, cin_p - cin_l), (0, cout_p - cout)))
        w_mat = wt.reshape(9 * cin_p, cout_p).astype(jnp.bfloat16)

        conv, pstats = _conv_layer(cur, affine, w_mat, cout_p,
                                   apply_prologue=(l > 0))

        # Reduce per-batch partial stats (tiny) and fold gamma/beta into (scale, shift)
        # for the next layer's fused prologue / the final standalone pass.
        stats = jnp.sum(pstats, axis=0)                            # (2, Cout_p)
        mean = stats[0] * (1.0 / m)
        var = jnp.maximum(stats[1] * (1.0 / m) - mean * mean, 0.0)
        gamma_p = jnp.pad(gamma, (0, cout_p - cout))
        beta_p = jnp.pad(beta, (0, cout_p - cout))
        scale = gamma_p * jax.lax.rsqrt(var + BN_EPS)
        shift = beta_p - mean * scale
        affine = jnp.stack([scale, shift], axis=0)

        cur, cin_p = conv, cout_p

    out_nhwc = _final_pass(cur, affine, cout)                      # (n, h, w, cout) f32
    return jnp.transpose(out_nhwc, (0, 3, 1, 2))                   # NHWC -> NCHW


def _reference(x_nchw, params, matmul_dtype=None):
    """Pure-JAX reference mirroring the PyTorch forward (optionally bf16 conv inputs)."""
    x = x_nchw
    for (w_oihw, b, gamma, beta) in params:
        lhs = x.astype(matmul_dtype) if matmul_dtype is not None else x
        rhs = w_oihw.astype(matmul_dtype) if matmul_dtype is not None else w_oihw
        y = jax.lax.conv_general_dilated(
            lhs, rhs, window_strides=(1, 1), padding=((1, 1), (1, 1)),
            dimension_numbers=("NCHW", "OIHW", "NCHW"),
            preferred_element_type=jnp.float32)
        y = y + b[None, :, None, None]
        mean = jnp.mean(y, axis=(0, 2, 3), keepdims=True)
        var = jnp.mean((y - mean) ** 2, axis=(0, 2, 3), keepdims=True)
        z = (y - mean) / jnp.sqrt(var + BN_EPS) * gamma[None, :, None, None] \
            + beta[None, :, None, None]
        x = jnp.where(z >= 0, z, NEG_SLOPE * z)
    return x


def make_params(key, input_channels, output_channels, num_convs):
    """Deterministic init; shapes match nn.Conv2d / nn.BatchNorm2d in the module."""
    params = []
    cin = input_channels
    for _ in range(num_convs):
        key, kw_, kb = jax.random.split(key, 3)
        fan_in = cin * 9
        bound = 1.0 / np.sqrt(fan_in)
        wgt = jax.random.uniform(kw_, (output_channels, cin, 3, 3),
                                 jnp.float32, -bound, bound)   # Conv2d weight (O,I,3,3)
        b = jax.random.uniform(kb, (output_channels,),
                               jnp.float32, -bound, bound)     # Conv2d bias
        gamma = jnp.ones((output_channels,), jnp.float32)      # BatchNorm2d weight
        beta = jnp.zeros((output_channels,), jnp.float32)      # BatchNorm2d bias
        params.append((wgt, b, gamma, beta))
        cin = output_channels
    return params


if __name__ == "__main__":
    key = jax.random.PRNGKey(0)
    key, kx = jax.random.split(key)

    # StackedConvLayers(input_feature_channels=4, output_feature_channels=8, num_convs=2)
    N, C_IN, C_OUT, H, W, NUM_CONVS = 2, 4, 8, 16, 16, 2
    x = jax.random.normal(kx, (N, C_IN, H, W), jnp.float32)
    params = make_params(key, C_IN, C_OUT, NUM_CONVS)

    out = jax.block_until_ready(stacked_conv_layers_forward(x, params))
    assert out.shape == (N, C_OUT, H, W)

    # Algorithmic check: reference with bf16 matmul operands (MXU-native path); the
    # small extra gap comes from the bf16 inter-layer intermediate.
    ref_bf16 = jax.block_until_ready(_reference(x, params, matmul_dtype=jnp.bfloat16))
    np.testing.assert_allclose(np.asarray(out), np.asarray(ref_bf16),
                               rtol=3e-2, atol=3e-2)

    # Semantic sanity vs the pure-f32 PyTorch-equivalent forward.
    ref_f32 = jax.block_until_ready(_reference(x, params))
    np.testing.assert_allclose(np.asarray(out), np.asarray(ref_f32),
                               rtol=1e-1, atol=1e-1)

    print("KERNEL_OK")
</pallas_src>

<mosaic_0001>
module attributes {stable_mosaic.version = 11 : i64} {
  func.func @_conv_layer_kernel(%arg0: i32, %arg1: memref<1x16x16x128xbf16, #tpu.memory_space<vmem>>, %arg2: memref<2x128xf32, #tpu.memory_space<vmem>>, %arg3: memref<1152x128xbf16, #tpu.memory_space<vmem>>, %arg4: memref<1x16x16x128xbf16, #tpu.memory_space<vmem>>, %arg5: memref<1x2x128xf32, #tpu.memory_space<vmem>>, %arg6: memref<16x16x1152xf32, #tpu.memory_space<vmem>>) attributes {dimension_semantics = [#tpu.dimension_semantics<parallel>], iteration_bounds = array<i64: 2>, scalar_prefetch = 0 : i64, scratch_operands = 1 : i64, tpu.core_type = #tpu.core_type<tc>, window_params = [{transform_indices = @transform_0, window_bounds = array<i64: 1, 16, 16, 128>}, {pipeline_mode = #tpu.pipeline_mode<synchronous>, transform_indices = @transform_1, window_bounds = array<i64: 2, 128>}, {pipeline_mode = #tpu.pipeline_mode<synchronous>, transform_indices = @transform_2, window_bounds = array<i64: 1152, 128>}, {transform_indices = @transform_3, window_bounds = array<i64: 1, 16, 16, 128>}, {transform_indices = @transform_4, window_bounds = array<i64: 1, 2, 128>}]} {
    %c0 = arith.constant 0 : index
    %c0_0 = arith.constant 0 : index
    %c0_1 = arith.constant 0 : index
    %c0_2 = arith.constant 0 : index
    %0 = vector.load %arg1[%c0, %c0_0, %c0_1, %c0_2] : memref<1x16x16x128xbf16, #tpu.memory_space<vmem>>, vector<1x16x16x128xbf16>
    %1 = vector.shape_cast %0 : vector<1x16x16x128xbf16> to vector<16x16x128xbf16>
    %2 = arith.extf %1 : vector<16x16x128xbf16> to vector<16x16x128xf32>
    %cst = arith.constant 0.000000e+00 : f32
    %3 = vector.broadcast %cst : f32 to vector<16x16x1152xf32>
    %c0_3 = arith.constant 0 : index
    %c0_4 = arith.constant 0 : index
    %c0_5 = arith.constant 0 : index
    %4 = vector.load %arg6[%c0_3, %c0_4, %c0_5] : memref<16x16x1152xf32, #tpu.memory_space<vmem>>, vector<16x16x1152xf32>
    tpu.vector_store %arg6[%c0_3, %c0_4, %c0_5], %3 {strides = array<i32>} : memref<16x16x1152xf32, #tpu.memory_space<vmem>>, vector<16x16x1152xf32>,
    %5 = vector.extract_strided_slice %2 {offsets = [0, 0, 0], sizes = [15, 15, 128], strides = [1, 1, 1]} : vector<16x16x128xf32> to vector<15x15x128xf32>
    %c1 = arith.constant 1 : index
    %c1_6 = arith.constant 1 : index
    %c0_7 = arith.constant 0 : index
    %6 = vector.load %arg6[%c1, %c1_6, %c0_7] : memref<16x16x1152xf32, #tpu.memory_space<vmem>>, vector<15x15x128xf32>
    tpu.vector_store %arg6[%c1, %c1_6, %c0_7], %5 {strides = array<i32>} : memref<16x16x1152xf32, #tpu.memory_space<vmem>>, vector<15x15x128xf32>,
    %7 = vector.extract_strided_slice %2 {offsets = [0, 0, 0], sizes = [15, 16, 128], strides = [1, 1, 1]} : vector<16x16x128xf32> to vector<15x16x128xf32>
    %c1_8 = arith.constant 1 : index
    %c0_9 = arith.constant 0 : index
    %c128 = arith.constant 128 : index
    %8 = vector.load %arg6[%c1_8, %c0_9, %c128] : memref<16x16x1152xf32, #tpu.memory_space<vmem>>, vector<15x16x128xf32>
    tpu.vector_store %arg6[%c1_8, %c0_9, %c128], %7 {strides = array<i32>} : memref<16x16x1152xf32, #tpu.memory_space<vmem>>, vector<15x16x128xf32>,
    %9 = vector.extract_strided_slice %2 {offsets = [0, 1, 0], sizes = [15, 15, 128], strides = [1, 1, 1]} : vector<16x16x128xf32> to vector<15x15x128xf32>
    %c1_10 = arith.constant 1 : index
    %c0_11 = arith.constant 0 : index
    %c256 = arith.constant 256 : index
    %10 = vector.load %arg6[%c1_10, %c0_11, %c256] : memref<16x16x1152xf32, #tpu.memory_space<vmem>>, vector<15x15x128xf32>
    tpu.vector_store %arg6[%c1_10, %c0_11, %c256], %9 {strides = array<i32>} : memref<16x16x1152xf32, #tpu.memory_space<vmem>>, vector<15x15x128xf32>,
    %11 = vector.extract_strided_slice %2 {offsets = [0, 0, 0], sizes = [16, 15, 128], strides = [1, 1, 1]} : vector<16x16x128xf32> to vector<16x15x128xf32>
    %c0_12 = arith.constant 0 : index
    %c1_13 = arith.constant 1 : index
    %c384 = arith.constant 384 : index
    %12 = vector.load %arg6[%c0_12, %c1_13, %c384] : memref<16x16x1152xf32, #tpu.memory_space<vmem>>, vector<16x15x128xf32>
    tpu.vector_store %arg6[%c0_12, %c1_13, %c384], %11 {strides = array<i32>} : memref<16x16x1152xf32, #tpu.memory_space<vmem>>, vector<16x15x128xf32>,
    %c0_14 = arith.constant 0 : index
    %c0_15 = arith.constant 0 : index
    %c512 = arith.constant 512 : index
    %13 = vector.load %arg6[%c0_14, %c0_15, %c512] : memref<16x16x1152xf32, #tpu.memory_space<vmem>>, vector<16x16x128xf32>
    tpu.vector_store %arg6[%c0_14, %c0_15, %c512], %2 {strides = array<i32>} : memref<16x16x1152xf32, #tpu.memory_space<vmem>>, vector<16x16x128xf32>,
    %14 = vector.extract_strided_slice %2 {offsets = [0, 1, 0], sizes = [16, 15, 128], strides = [1, 1, 1]} : vector<16x16x128xf32> to vector<16x15x128xf32>
    %c0_16 = arith.constant 0 : index
    %c0_17 = arith.constant 0 : index
    %c640 = arith.constant 640 : index
    %15 = vector.load %arg6[%c0_16, %c0_17, %c640] : memref<16x16x1152xf32, #tpu.memory_space<vmem>>, vector<16x15x128xf32>
    tpu.vector_store %arg6[%c0_16, %c0_17, %c640], %14 {strides = array<i32>} : memref<16x16x1152xf32, #tpu.memory_space<vmem>>, vector<16x15x128xf32>,
    %16 = vector.extract_strided_slice %2 {offsets = [1, 0, 0], sizes = [15, 15, 128], strides = [1, 1, 1]} : vector<16x16x128xf32> to vector<15x15x128xf32>
    %c0_18 = arith.constant 0 : index
    %c1_19 = arith.constant 1 : index
    %c768 = arith.constant 768 : index
    %17 = vector.load %arg6[%c0_18, %c1_19, %c768] : memref<16x16x1152xf32, #tpu.memory_space<vmem>>, vector<15x15x128xf32>
    tpu.vector_store %arg6[%c0_18, %c1_19, %c768], %16 {strides = array<i32>} : memref<16x16x1152xf32, #tpu.memory_space<vmem>>, vector<15x15x128xf32>,
    %18 = vector.extract_strided_slice %2 {offsets = [1, 0, 0], sizes = [15, 16, 128], strides = [1, 1, 1]} : vector<16x16x128xf32> to vector<15x16x128xf32>
    %c0_20 = arith.constant 0 : index
    %c0_21 = arith.constant 0 : index
    %c896 = arith.constant 896 : index
    %19 = vector.load %arg6[%c0_20, %c0_21, %c896] : memref<16x16x1152xf32, #tpu.memory_space<vmem>>, vector<15x16x128xf32>
    tpu.vector_store %arg6[%c0_20, %c0_21, %c896], %18 {strides = array<i32>} : memref<16x16x1152xf32, #tpu.memory_space<vmem>>, vector<15x16x128xf32>,
    %20 = vector.extract_strided_slice %2 {offsets = [1, 1, 0], sizes = [15, 15, 128], strides = [1, 1, 1]} : vector<16x16x128xf32> to vector<15x15x128xf32>
    %c0_22 = arith.constant 0 : index
    %c0_23 = arith.constant 0 : index
    %c1024 = arith.constant 1024 : index
    %21 = vector.load %arg6[%c0_22, %c0_23, %c1024] : memref<16x16x1152xf32, #tpu.memory_space<vmem>>, vector<15x15x128xf32>
    tpu.vector_store %arg6[%c0_22, %c0_23, %c1024], %20 {strides = array<i32>} : memref<16x16x1152xf32, #tpu.memory_space<vmem>>, vector<15x15x128xf32>,
    %c0_24 = arith.constant 0 : index
    %c0_25 = arith.constant 0 : index
    %c0_26 = arith.constant 0 : index
    %22 = vector.load %arg6[%c0_24, %c0_25, %c0_26] : memref<16x16x1152xf32, #tpu.memory_space<vmem>>, vector<16x16x1152xf32>
    %23 = vector.shape_cast %22 : vector<16x16x1152xf32> to vector<256x1152xf32>
    %24 = arith.truncf %23 : vector<256x1152xf32> to vector<256x1152xbf16>
    %c0_27 = arith.constant 0 : index
    %c0_28 = arith.constant 0 : index
    %25 = vector.load %arg3[%c0_27, %c0_28] : memref<1152x128xbf16, #tpu.memory_space<vmem>>, vector<1152x128xbf16>
    %cst_29 = arith.constant dense<0.000000e+00> : vector<256x128xf32>
    %26 = tpu.matmul %24, %25, %cst_29 {dimension_numbers = #tpu.dot_dimension_numbers<[1], [0], [0], [1], [0, 0, 1, 1], [], []>} : vector<256x1152xbf16>, vector<1152x128xbf16>, vector<256x128xf32> -> vector<256x128xf32>
    %cst_30 = arith.constant dense<0.000000e+00> : vector<128xf32>
    %27 = vector.multi_reduction <add>, %26, %cst_30 [0] : vector<256x128xf32> to vector<128xf32>
    %28 = vector.shape_cast %27 : vector<128xf32> to vector<1x128xf32>
    %c0_31 = arith.constant 0 : index
    %c0_32 = arith.constant 0 : index
    %c0_33 = arith.constant 0 : index
    %29 = vector.load %arg5[%c0_31, %c0_32, %c0_33] : memref<1x2x128xf32, #tpu.memory_space<vmem>>, vector<1x1x128xf32>
    %30 = vector.shape_cast %29 : vector<1x1x128xf32> to vector<1x128xf32>
    %31 = vector.shape_cast %28 : vector<1x128xf32> to vector<1x1x128xf32>
    tpu.vector_store %arg5[%c0_31, %c0_32, %c0_33], %31 {strides = array<i32>} : memref<1x2x128xf32, #tpu.memory_space<vmem>>, vector<1x1x128xf32>,
    %32 = arith.mulf %26, %26 : vector<256x128xf32>
    %cst_34 = arith.constant dense<0.000000e+00> : vector<128xf32>
    %33 = vector.multi_reduction <add>, %32, %cst_34 [0] : vector<256x128xf32> to vector<128xf32>
    %34 = vector.shape_cast %33 : vector<128xf32> to vector<1x128xf32>
    %c0_35 = arith.constant 0 : index
    %c1_36 = arith.constant 1 : index
    %c0_37 = arith.constant 0 : index
    %35 = vector.load %arg5[%c0_35, %c1_36, %c0_37] : memref<1x2x128xf32, #tpu.memory_space<vmem>>, vector<1x1x128xf32>
    %36 = vector.shape_cast %35 : vector<1x1x128xf32> to vector<1x128xf32>
    %37 = vector.shape_cast %34 : vector<1x128xf32> to vector<1x1x128xf32>
    tpu.vector_store %arg5[%c0_35, %c1_36, %c0_37], %37 {strides = array<i32>} : memref<1x2x128xf32, #tpu.memory_space<vmem>>, vector<1x1x128xf32>,
    %38 = vector.shape_cast %26 : vector<256x128xf32> to vector<16x16x128xf32>
    %39 = arith.truncf %38 : vector<16x16x128xf32> to vector<16x16x128xbf16>
    %c0_38 = arith.constant 0 : index
    %c0_39 = arith.constant 0 : index
    %c0_40 = arith.constant 0 : index
    %c0_41 = arith.constant 0 : index
    %40 = vector.load %arg4[%c0_38, %c0_39, %c0_40, %c0_41] : memref<1x16x16x128xbf16, #tpu.memory_space<vmem>>, vector<1x16x16x128xbf16>
    %41 = vector.shape_cast %40 : vector<1x16x16x128xbf16> to vector<16x16x128xbf16>
    %42 = vector.shape_cast %39 : vector<16x16x128xbf16> to vector<1x16x16x128xbf16>
    tpu.vector_store %arg4[%c0_38, %c0_39, %c0_40, %c0_41], %42 {strides = array<i32>} : memref<1x16x16x128xbf16, #tpu.memory_space<vmem>>, vector<1x16x16x128xbf16>,
    return
  }
  func.func @transform_0(%arg0: i32) -> (i32, i32, i32, i32) {
    %c0_i32 = arith.constant 0 : i32
    %c0_i32_0 = arith.constant 0 : i32
    %c0_i32_1 = arith.constant 0 : i32
    %c0_i32_2 = arith.constant 0 : i32
    return %arg0, %c0_i32, %c0_i32_0, %c0_i32_1 : i32, i32, i32, i32
  }
  func.func @transform_1(%arg0: i32) -> (i32, i32) {
    %c0_i32 = arith.constant 0 : i32
    %c0_i32_0 = arith.constant 0 : i32
    %c0_i32_1 = arith.constant 0 : i32
    return %c0_i32, %c0_i32_0 : i32, i32
  }
  func.func @transform_2(%arg0: i32) -> (i32, i32) {
    %c0_i32 = arith.constant 0 : i32
    %c0_i32_0 = arith.constant 0 : i32
    %c0_i32_1 = arith.constant 0 : i32
    return %c0_i32, %c0_i32_0 : i32, i32
  }
  func.func @transform_3(%arg0: i32) -> (i32, i32, i32, i32) {
    %c0_i32 = arith.constant 0 : i32
    %c0_i32_0 = arith.constant 0 : i32
    %c0_i32_1 = arith.constant 0 : i32
    %c0_i32_2 = arith.constant 0 : i32
    return %arg0, %c0_i32, %c0_i32_0, %c0_i32_1 : i32, i32, i32, i32
  }
  func.func @transform_4(%arg0: i32) -> (i32, i32, i32) {
    %c0_i32 = arith.constant 0 : i32
    %c0_i32_0 = arith.constant 0 : i32
    %c0_i32_1 = arith.constant 0 : i32
    return %arg0, %c0_i32, %c0_i32_0 : i32, i32, i32
  }
}

module attributes {stable_mosaic.version = 11 : i64} {
  func.func @_final_bn_lrelu_kernel(%arg0: i32, %arg1: memref<1x16x16x128xbf16, #tpu.memory_space<vmem>>, %arg2: memref<2x128xf32, #tpu.memory_space<vmem>>, %arg3: memref<1x16x16x8xf32, #tpu.memory_space<vmem>>) attributes {dimension_semantics = [#tpu.dimension_semantics<parallel>], iteration_bounds = array<i64: 2>, scalar_prefetch = 0 : i64, scratch_operands = 0 : i64, tpu.core_type = #tpu.core_type<tc>, window_params = [{transform_indices = @transform_0, window_bounds = array<i64: 1, 16, 16, 128>}, {pipeline_mode = #tpu.pipeline_mode<synchronous>, transform_indices = @transform_1, window_bounds = array<i64: 2, 128>}, {transform_indices = @transform_2, window_bounds = array<i64: 1, 16, 16, 8>}]} {
    %c0 = arith.constant 0 : index
    %c0_0 = arith.constant 0 : index
    %0 = vector.load %arg2[%c0, %c0_0] : memref<2x128xf32, #tpu.memory_space<vmem>>, vector<1x128xf32>
    %1 = vector.shape_cast %0 : vector<1x128xf32> to vector<1x1x128xf32>
    %c1 = arith.constant 1 : index
    %c0_1 = arith.constant 0 : index
    %2 = vector.load %arg2[%c1, %c0_1] : memref<2x128xf32, #tpu.memory_space<vmem>>, vector<1x128xf32>
    %3 = vector.shape_cast %2 : vector<1x128xf32> to vector<1x1x128xf32>
    %c0_2 = arith.constant 0 : index
    %c0_3 = arith.constant 0 : index
    %c0_4 = arith.constant 0 : index
    %c0_5 = arith.constant 0 : index
    %4 = vector.load %arg1[%c0_2, %c0_3, %c0_4, %c0_5] : memref<1x16x16x128xbf16, #tpu.memory_space<vmem>>, vector<1x16x16x128xbf16>
    %5 = vector.shape_cast %4 : vector<1x16x16x128xbf16> to vector<16x16x128xbf16>
    %6 = arith.extf %5 : vector<16x16x128xbf16> to vector<16x16x128xf32>
    %7 = vector.broadcast %1 : vector<1x1x128xf32> to vector<16x16x128xf32>
    %8 = arith.mulf %6, %7 : vector<16x16x128xf32>
    %9 = vector.broadcast %3 : vector<1x1x128xf32> to vector<16x16x128xf32>
    %10 = arith.addf %8, %9 : vector<16x16x128xf32>
    %cst = arith.constant 0.000000e+00 : f32
    %11 = vector.broadcast %cst : f32 to vector<16x16x128xf32>
    %12 = arith.cmpf oge, %10, %11 : vector<16x16x128xf32>
    %cst_6 = arith.constant 0.00999999977 : f32
    %13 = vector.broadcast %cst_6 : f32 to vector<16x16x128xf32>
    %14 = arith.mulf %13, %10 : vector<16x16x128xf32>
    %15 = arith.select %12, %10, %14 : vector<16x16x128xi1>, vector<16x16x128xf32>
    %16 = vector.extract_strided_slice %15 {offsets = [0, 0, 0], sizes = [16, 16, 8], strides = [1, 1, 1]} : vector<16x16x128xf32> to vector<16x16x8xf32>
    %c0_7 = arith.constant 0 : index
    %c0_8 = arith.constant 0 : index
    %c0_9 = arith.constant 0 : index
    %c0_10 = arith.constant 0 : index
    %17 = vector.load %arg3[%c0_7, %c0_8, %c0_9, %c0_10] : memref<1x16x16x8xf32, #tpu.memory_space<vmem>>, vector<1x16x16x8xf32>
    %18 = vector.shape_cast %17 : vector<1x16x16x8xf32> to vector<16x16x8xf32>
    %19 = vector.shape_cast %16 : vector<16x16x8xf32> to vector<1x16x16x8xf32>
    tpu.vector_store %arg3[%c0_7, %c0_8, %c0_9, %c0_10], %19 {strides = array<i32>} : memref<1x16x16x8xf32, #tpu.memory_space<vmem>>, vector<1x16x16x8xf32>,
    return
  }
  func.func @transform_0(%arg0: i32) -> (i32, i32, i32, i32) {
    %c0_i32 = arith.constant 0 : i32
    %c0_i32_0 = arith.constant 0 : i32
    %c0_i32_1 = arith.constant 0 : i32
    %c0_i32_2 = arith.constant 0 : i32
    return %arg0, %c0_i32, %c0_i32_0, %c0_i32_1 : i32, i32, i32, i32
  }
  func.func @transform_1(%arg0: i32) -> (i32, i32) {
    %c0_i32 = arith.constant 0 : i32
    %c0_i32_0 = arith.constant 0 : i32
    %c0_i32_1 = arith.constant 0 : i32
    return %c0_i32, %c0_i32_0 : i32, i32
  }
  func.func @transform_2(%arg0: i32) -> (i32, i32, i32, i32) {
    %c0_i32 = arith.constant 0 : i32
    %c0_i32_0 = arith.constant 0 : i32
    %c0_i32_1 = arith.constant 0 : i32
    %c0_i32_2 = arith.constant 0 : i32
    return %arg0, %c0_i32, %c0_i32_0, %c0_i32_1 : i32, i32, i32, i32
  }
}

module attributes {stable_mosaic.version = 11 : i64} {
  func.func @_conv_layer_kernel(%arg0: i32, %arg1: memref<1x16x16x128xbf16, #tpu.memory_space<vmem>>, %arg2: memref<2x128xf32, #tpu.memory_space<vmem>>, %arg3: memref<1152x128xbf16, #tpu.memory_space<vmem>>, %arg4: memref<1x16x16x128xbf16, #tpu.memory_space<vmem>>, %arg5: memref<1x2x128xf32, #tpu.memory_space<vmem>>, %arg6: memref<16x16x1152xf32, #tpu.memory_space<vmem>>) attributes {dimension_semantics = [#tpu.dimension_semantics<parallel>], iteration_bounds = array<i64: 2>, scalar_prefetch = 0 : i64, scratch_operands = 1 : i64, tpu.core_type = #tpu.core_type<tc>, window_params = [{transform_indices = @transform_0, window_bounds = array<i64: 1, 16, 16, 128>}, {pipeline_mode = #tpu.pipeline_mode<synchronous>, transform_indices = @transform_1, window_bounds = array<i64: 2, 128>}, {pipeline_mode = #tpu.pipeline_mode<synchronous>, transform_indices = @transform_2, window_bounds = array<i64: 1152, 128>}, {transform_indices = @transform_3, window_bounds = array<i64: 1, 16, 16, 128>}, {transform_indices = @transform_4, window_bounds = array<i64: 1, 2, 128>}]} {
    %c0 = arith.constant 0 : index
    %c0_0 = arith.constant 0 : index
    %0 = vector.load %arg2[%c0, %c0_0] : memref<2x128xf32, #tpu.memory_space<vmem>>, vector<1x128xf32>
    %1 = vector.shape_cast %0 : vector<1x128xf32> to vector<1x1x128xf32>
    %c1 = arith.constant 1 : index
    %c0_1 = arith.constant 0 : index
    %2 = vector.load %arg2[%c1, %c0_1] : memref<2x128xf32, #tpu.memory_space<vmem>>, vector<1x128xf32>
    %3 = vector.shape_cast %2 : vector<1x128xf32> to vector<1x1x128xf32>
    %c0_2 = arith.constant 0 : index
    %c0_3 = arith.constant 0 : index
    %c0_4 = arith.constant 0 : index
    %c0_5 = arith.constant 0 : index
    %4 = vector.load %arg1[%c0_2, %c0_3, %c0_4, %c0_5] : memref<1x16x16x128xbf16, #tpu.memory_space<vmem>>, vector<1x16x16x128xbf16>
    %5 = vector.shape_cast %4 : vector<1x16x16x128xbf16> to vector<16x16x128xbf16>
    %6 = arith.extf %5 : vector<16x16x128xbf16> to vector<16x16x128xf32>
    %7 = vector.broadcast %1 : vector<1x1x128xf32> to vector<16x16x128xf32>
    %8 = arith.mulf %6, %7 : vector<16x16x128xf32>
    %9 = vector.broadcast %3 : vector<1x1x128xf32> to vector<16x16x128xf32>
    %10 = arith.addf %8, %9 : vector<16x16x128xf32>
    %cst = arith.constant 0.000000e+00 : f32
    %11 = vector.broadcast %cst : f32 to vector<16x16x128xf32>
    %12 = arith.cmpf oge, %10, %11 : vector<16x16x128xf32>
    %cst_6 = arith.constant 0.00999999977 : f32
    %13 = vector.broadcast %cst_6 : f32 to vector<16x16x128xf32>
    %14 = arith.mulf %13, %10 : vector<16x16x128xf32>
    %15 = arith.select %12, %10, %14 : vector<16x16x128xi1>, vector<16x16x128xf32>
    %cst_7 = arith.constant 0.000000e+00 : f32
    %16 = vector.broadcast %cst_7 : f32 to vector<16x16x1152xf32>
    %c0_8 = arith.constant 0 : index
    %c0_9 = arith.constant 0 : index
    %c0_10 = arith.constant 0 : index
    %17 = vector.load %arg6[%c0_8, %c0_9, %c0_10] : memref<16x16x1152xf32, #tpu.memory_space<vmem>>, vector<16x16x1152xf32>
    tpu.vector_store %arg6[%c0_8, %c0_9, %c0_10], %16 {strides = array<i32>} : memref<16x16x1152xf32, #tpu.memory_space<vmem>>, vector<16x16x1152xf32>,
    %18 = vector.extract_strided_slice %15 {offsets = [0, 0, 0], sizes = [15, 15, 128], strides = [1, 1, 1]} : vector<16x16x128xf32> to vector<15x15x128xf32>
    %c1_11 = arith.constant 1 : index
    %c1_12 = arith.constant 1 : index
    %c0_13 = arith.constant 0 : index
    %19 = vector.load %arg6[%c1_11, %c1_12, %c0_13] : memref<16x16x1152xf32, #tpu.memory_space<vmem>>, vector<15x15x128xf32>
    tpu.vector_store %arg6[%c1_11, %c1_12, %c0_13], %18 {strides = array<i32>} : memref<16x16x1152xf32, #tpu.memory_space<vmem>>, vector<15x15x128xf32>,
    %20 = vector.extract_strided_slice %15 {offsets = [0, 0, 0], sizes = [15, 16, 128], strides = [1, 1, 1]} : vector<16x16x128xf32> to vector<15x16x128xf32>
    %c1_14 = arith.constant 1 : index
    %c0_15 = arith.constant 0 : index
    %c128 = arith.constant 128 : index
    %21 = vector.load %arg6[%c1_14, %c0_15, %c128] : memref<16x16x1152xf32, #tpu.memory_space<vmem>>, vector<15x16x128xf32>
    tpu.vector_store %arg6[%c1_14, %c0_15, %c128], %20 {strides = array<i32>} : memref<16x16x1152xf32, #tpu.memory_space<vmem>>, vector<15x16x128xf32>,
    %22 = vector.extract_strided_slice %15 {offsets = [0, 1, 0], sizes = [15, 15, 128], strides = [1, 1, 1]} : vector<16x16x128xf32> to vector<15x15x128xf32>
    %c1_16 = arith.constant 1 : index
    %c0_17 = arith.constant 0 : index
    %c256 = arith.constant 256 : index
    %23 = vector.load %arg6[%c1_16, %c0_17, %c256] : memref<16x16x1152xf32, #tpu.memory_space<vmem>>, vector<15x15x128xf32>
    tpu.vector_store %arg6[%c1_16, %c0_17, %c256], %22 {strides = array<i32>} : memref<16x16x1152xf32, #tpu.memory_space<vmem>>, vector<15x15x128xf32>,
    %24 = vector.extract_strided_slice %15 {offsets = [0, 0, 0], sizes = [16, 15, 128], strides = [1, 1, 1]} : vector<16x16x128xf32> to vector<16x15x128xf32>
    %c0_18 = arith.constant 0 : index
    %c1_19 = arith.constant 1 : index
    %c384 = arith.constant 384 : index
    %25 = vector.load %arg6[%c0_18, %c1_19, %c384] : memref<16x16x1152xf32, #tpu.memory_space<vmem>>, vector<16x15x128xf32>
    tpu.vector_store %arg6[%c0_18, %c1_19, %c384], %24 {strides = array<i32>} : memref<16x16x1152xf32, #tpu.memory_space<vmem>>, vector<16x15x128xf32>,
    %c0_20 = arith.constant 0 : index
    %c0_21 = arith.constant 0 : index
    %c512 = arith.constant 512 : index
    %26 = vector.load %arg6[%c0_20, %c0_21, %c512] : memref<16x16x1152xf32, #tpu.memory_space<vmem>>, vector<16x16x128xf32>
    tpu.vector_store %arg6[%c0_20, %c0_21, %c512], %15 {strides = array<i32>} : memref<16x16x1152xf32, #tpu.memory_space<vmem>>, vector<16x16x128xf32>,
    %27 = vector.extract_strided_slice %15 {offsets = [0, 1, 0], sizes = [16, 15, 128], strides = [1, 1, 1]} : vector<16x16x128xf32> to vector<16x15x128xf32>
    %c0_22 = arith.constant 0 : index
    %c0_23 = arith.constant 0 : index
    %c640 = arith.constant 640 : index
    %28 = vector.load %arg6[%c0_22, %c0_23, %c640] : memref<16x16x1152xf32, #tpu.memory_space<vmem>>, vector<16x15x128xf32>
    tpu.vector_store %arg6[%c0_22, %c0_23, %c640], %27 {strides = array<i32>} : memref<16x16x1152xf32, #tpu.memory_space<vmem>>, vector<16x15x128xf32>,
    %29 = vector.extract_strided_slice %15 {offsets = [1, 0, 0], sizes = [15, 15, 128], strides = [1, 1, 1]} : vector<16x16x128xf32> to vector<15x15x128xf32>
    %c0_24 = arith.constant 0 : index
    %c1_25 = arith.constant 1 : index
    %c768 = arith.constant 768 : index
    %30 = vector.load %arg6[%c0_24, %c1_25, %c768] : memref<16x16x1152xf32, #tpu.memory_space<vmem>>, vector<15x15x128xf32>
    tpu.vector_store %arg6[%c0_24, %c1_25, %c768], %29 {strides = array<i32>} : memref<16x16x1152xf32, #tpu.memory_space<vmem>>, vector<15x15x128xf32>,
    %31 = vector.extract_strided_slice %15 {offsets = [1, 0, 0], sizes = [15, 16, 128], strides = [1, 1, 1]} : vector<16x16x128xf32> to vector<15x16x128xf32>
    %c0_26 = arith.constant 0 : index
    %c0_27 = arith.constant 0 : index
    %c896 = arith.constant 896 : index
    %32 = vector.load %arg6[%c0_26, %c0_27, %c896] : memref<16x16x1152xf32, #tpu.memory_space<vmem>>, vector<15x16x128xf32>
    tpu.vector_store %arg6[%c0_26, %c0_27, %c896], %31 {strides = array<i32>} : memref<16x16x1152xf32, #tpu.memory_space<vmem>>, vector<15x16x128xf32>,
    %33 = vector.extract_strided_slice %15 {offsets = [1, 1, 0], sizes = [15, 15, 128], strides = [1, 1, 1]} : vector<16x16x128xf32> to vector<15x15x128xf32>
    %c0_28 = arith.constant 0 : index
    %c0_29 = arith.constant 0 : index
    %c1024 = arith.constant 1024 : index
    %34 = vector.load %arg6[%c0_28, %c0_29, %c1024] : memref<16x16x1152xf32, #tpu.memory_space<vmem>>, vector<15x15x128xf32>
    tpu.vector_store %arg6[%c0_28, %c0_29, %c1024], %33 {strides = array<i32>} : memref<16x16x1152xf32, #tpu.memory_space<vmem>>, vector<15x15x128xf32>,
    %c0_30 = arith.constant 0 : index
    %c0_31 = arith.constant 0 : index
    %c0_32 = arith.constant 0 : index
    %35 = vector.load %arg6[%c0_30, %c0_31, %c0_32] : memref<16x16x1152xf32, #tpu.memory_space<vmem>>, vector<16x16x1152xf32>
    %36 = vector.shape_cast %35 : vector<16x16x1152xf32> to vector<256x1152xf32>
    %37 = arith.truncf %36 : vector<256x1152xf32> to vector<256x1152xbf16>
    %c0_33 = arith.constant 0 : index
    %c0_34 = arith.constant 0 : index
    %38 = vector.load %arg3[%c0_33, %c0_34] : memref<1152x128xbf16, #tpu.memory_space<vmem>>, vector<1152x128xbf16>
    %cst_35 = arith.constant dense<0.000000e+00> : vector<256x128xf32>
    %39 = tpu.matmul %37, %38, %cst_35 {dimension_numbers = #tpu.dot_dimension_numbers<[1], [0], [0], [1], [0, 0, 1, 1], [], []>} : vector<256x1152xbf16>, vector<1152x128xbf16>, vector<256x128xf32> -> vector<256x128xf32>
    %cst_36 = arith.constant dense<0.000000e+00> : vector<128xf32>
    %40 = vector.multi_reduction <add>, %39, %cst_36 [0] : vector<256x128xf32> to vector<128xf32>
    %41 = vector.shape_cast %40 : vector<128xf32> to vector<1x128xf32>
    %c0_37 = arith.constant 0 : index
    %c0_38 = arith.constant 0 : index
    %c0_39 = arith.constant 0 : index
    %42 = vector.load %arg5[%c0_37, %c0_38, %c0_39] : memref<1x2x128xf32, #tpu.memory_space<vmem>>, vector<1x1x128xf32>
    %43 = vector.shape_cast %42 : vector<1x1x128xf32> to vector<1x128xf32>
    %44 = vector.shape_cast %41 : vector<1x128xf32> to vector<1x1x128xf32>
    tpu.vector_store %arg5[%c0_37, %c0_38, %c0_39], %44 {strides = array<i32>} : memref<1x2x128xf32, #tpu.memory_space<vmem>>, vector<1x1x128xf32>,
    %45 = arith.mulf %39, %39 : vector<256x128xf32>
    %cst_40 = arith.constant dense<0.000000e+00> : vector<128xf32>
    %46 = vector.multi_reduction <add>, %45, %cst_40 [0] : vector<256x128xf32> to vector<128xf32>
    %47 = vector.shape_cast %46 : vector<128xf32> to vector<1x128xf32>
    %c0_41 = arith.constant 0 : index
    %c1_42 = arith.constant 1 : index
    %c0_43 = arith.constant 0 : index
    %48 = vector.load %arg5[%c0_41, %c1_42, %c0_43] : memref<1x2x128xf32, #tpu.memory_space<vmem>>, vector<1x1x128xf32>
    %49 = vector.shape_cast %48 : vector<1x1x128xf32> to vector<1x128xf32>
    %50 = vector.shape_cast %47 : vector<1x128xf32> to vector<1x1x128xf32>
    tpu.vector_store %arg5[%c0_41, %c1_42, %c0_43], %50 {strides = array<i32>} : memref<1x2x128xf32, #tpu.memory_space<vmem>>, vector<1x1x128xf32>,
    %51 = vector.shape_cast %39 : vector<256x128xf32> to vector<16x16x128xf32>
    %52 = arith.truncf %51 : vector<16x16x128xf32> to vector<16x16x128xbf16>
    %c0_44 = arith.constant 0 : index
    %c0_45 = arith.constant 0 : index
    %c0_46 = arith.constant 0 : index
    %c0_47 = arith.constant 0 : index
    %53 = vector.load %arg4[%c0_44, %c0_45, %c0_46, %c0_47] : memref<1x16x16x128xbf16, #tpu.memory_space<vmem>>, vector<1x16x16x128xbf16>
    %54 = vector.shape_cast %53 : vector<1x16x16x128xbf16> to vector<16x16x128xbf16>
    %55 = vector.shape_cast %52 : vector<16x16x128xbf16> to vector<1x16x16x128xbf16>
    tpu.vector_store %arg4[%c0_44, %c0_45, %c0_46, %c0_47], %55 {strides = array<i32>} : memref<1x16x16x128xbf16, #tpu.memory_space<vmem>>, vector<1x16x16x128xbf16>,
    return
  }
  func.func @transform_0(%arg0: i32) -> (i32, i32, i32, i32) {
    %c0_i32 = arith.constant 0 : i32
    %c0_i32_0 = arith.constant 0 : i32
    %c0_i32_1 = arith.constant 0 : i32
    %c0_i32_2 = arith.constant 0 : i32
    return %arg0, %c0_i32, %c0_i32_0, %c0_i32_1 : i32, i32, i32, i32
  }
  func.func @transform_1(%arg0: i32) -> (i32, i32) {
    %c0_i32 = arith.constant 0 : i32
    %c0_i32_0 = arith.constant 0 : i32
    %c0_i32_1 = arith.constant 0 : i32
    return %c0_i32, %c0_i32_0 : i32, i32
  }
  func.func @transform_2(%arg0: i32) -> (i32, i32) {
    %c0_i32 = arith.constant 0 : i32
    %c0_i32_0 = arith.constant 0 : i32
    %c0_i32_1 = arith.constant 0 : i32
    return %c0_i32, %c0_i32_0 : i32, i32
  }
  func.func @transform_3(%arg0: i32) -> (i32, i32, i32, i32) {
    %c0_i32 = arith.constant 0 : i32
    %c0_i32_0 = arith.constant 0 : i32
    %c0_i32_1 = arith.constant 0 : i32
    %c0_i32_2 = arith.constant 0 : i32
    return %arg0, %c0_i32, %c0_i32_0, %c0_i32_1 : i32, i32, i32, i32
  }
  func.func @transform_4(%arg0: i32) -> (i32, i32, i32) {
    %c0_i32 = arith.constant 0 : i32
    %c0_i32_0 = arith.constant 0 : i32
    %c0_i32_1 = arith.constant 0 : i32
    return %arg0, %c0_i32, %c0_i32_0 : i32, i32, i32
  }
}

</mosaic_0001>

<llo_original>
// kernel: stacked_conv_layers_forward.5
$region0: #{stacked_conv_layers_forward.5}
  #allocation0 [shape = 'u32[]', space=smem, size = 0x4, offset = 0x4, fixed_abs, tag = 'smem constant byte address 0x4 - core index']
  #allocation1 [shape = 'u32[72,128]{1,0:T(1,128)}', space=vmem, size = 0x9000, scoped, tag = 'internal scratch']
  %s0 = inlined_call_operand.vmem [shape: bf16[2,16,16,128], index: 0, kind: input, shape index: {}]
  %s1 = inlined_call_operand.vmem [shape: f32[2,128], index: 1, kind: input, shape index: {}]
  %s2 = inlined_call_operand.vmem [shape: f32[2,16,16,8], index: 2, kind: output, shape index: {}]
  %s3 = sld [smem:[#allocation0]]
  $region41: #{stacked_conv_layers_forward.5} parent=0
    _
  %s5 = ssub.s32 1, %s3
  %s6 = scalar_select 0, %s5, %s3
  loop: start=0, step=1, limit=4
  $region2: #{stacked_conv_layers_forward.5} parent=0 // loop_pre_header
    _
  $region3: #{stacked_conv_layers_forward.5} parent=0 // loop_header
    %s8 = sphi 0, %s12
    %p9 = scmp.ge.s32.totalorder %s8, 4
    %s18 = sphi 0, %s20
    %s21 = sphi 0, %s18
    %s22 = sphi 0, %s21
    %s38 = sphi 0, %s22
    %s42 = sphi 0, %s42
    %s44 = sphi 0, %s42
    %s45 = sphi 0, %s44
    %s59 = sphi 0, %s45
    %s65 = sphi 0, %s67
    %s68 = sphi 0, %s65
    %s69 = sphi 0, %s68
    %s85 = sphi 0, %s69
  $region4: #{stacked_conv_layers_forward.5} parent=0 // loop_header_branch
    %11 = sbr.rel (%p9) target = $region8
  $region5: #{stacked_conv_layers_forward.5} parent=0 // loop_body
    %s13 = ssub.s32 %s8, 1
    %s14 = ssub.s32 %s8, 2
    %s15 = sadd.s32 %s8, 1
    %s16 = ssub.s32 %s8, %s15
    %p17 = scmp.eq.s32.totalorder %s16, 0
    %s19 = sadd.s32 %s18, 1
    %s20 = scalar_select %p17, %s18, %s19
    %p23 = pneg %p17
    %p24 = scmp.eq.s32.totalorder %s8, 1
    %p25 = por %p23, %p24
    %p26 = scmp.ne.s32.totalorder %s18, %s21
    %p27 = scmp.eq.s32.totalorder %s8, 0
    %p28 = por %p26, %p27
    %p29 = scmp.ne.s32.totalorder %s18, %s21
    %p30 = scmp.eq.s32.totalorder %s13, 1
    %p31 = por %p29, %p30
    %p32 = scmp.ne.s32.totalorder %s21, %s22
    %p33 = scmp.eq.s32.totalorder %s13, 0
    %p34 = por %p32, %p33
    %p35 = scmp.ne.s32.totalorder %s21, %s22
    %p36 = scmp.eq.s32.totalorder %s14, 1
    %p37 = por %p35, %p36
    %p39 = scmp.ne.s32.totalorder %s22, %s38
    %p40 = scmp.eq.s32.totalorder %s14, 0
    %p41 = por %p39, %p40
    %s43 = sadd.s32 %s42, 1
    %p46 = scmp.eq.s32.totalorder %s8, 1
    %p47 = scmp.ne.s32.totalorder %s42, %s44
    %p48 = scmp.eq.s32.totalorder %s8, 0
    %p49 = por %p47, %p48
    %p50 = scmp.ne.s32.totalorder %s42, %s44
    %p51 = scmp.eq.s32.totalorder %s13, 1
    %p52 = por %p50, %p51
    %p53 = scmp.ne.s32.totalorder %s44, %s45
    %p54 = scmp.eq.s32.totalorder %s13, 0
    %p55 = por %p53, %p54
    %p56 = scmp.ne.s32.totalorder %s44, %s45
    %p57 = scmp.eq.s32.totalorder %s14, 1
    %p58 = por %p56, %p57
    %p60 = scmp.ne.s32.totalorder %s45, %s59
    %p61 = scmp.eq.s32.totalorder %s14, 0
    %p62 = por %p60, %p61
    %s63 = ssub.s32 %s8, %s15
    %p64 = scmp.eq.s32.totalorder %s63, 0
    %s66 = sadd.s32 %s65, 1
    %s67 = scalar_select %p64, %s65, %s66
    %p70 = pneg %p64
    %p71 = scmp.eq.s32.totalorder %s8, 1
    %p72 = por %p70, %p71
    %p73 = scmp.ne.s32.totalorder %s65, %s68
    %p74 = scmp.eq.s32.totalorder %s8, 0
    %p75 = por %p73, %p74
    %p76 = scmp.ne.s32.totalorder %s65, %s68
    %p77 = scmp.eq.s32.totalorder %s13, 1
    %p78 = por %p76, %p77
    %p79 = scmp.ne.s32.totalorder %s68, %s69
    %p80 = scmp.eq.s32.totalorder %s13, 0
    %p81 = por %p79, %p80
    %p82 = scmp.ne.s32.totalorder %s68, %s69
    %p83 = scmp.eq.s32.totalorder %s14, 1
    %p84 = por %p82, %p83
    %p86 = scmp.ne.s32.totalorder %s69, %s85
    %p87 = scmp.eq.s32.totalorder %s14, 0
    %p88 = por %p86, %p87
    %p89 = scmp.le.s32.totalorder 1, %s8
    %p90 = scmp.lt.s32.totalorder %s8, 3
    %p91 = pnand %p89, %p90
    %p92 = pneg %p91
    // Predicated region
    $region9: #{stacked_conv_layers_forward.5} parent=5 // pred_check
      _
    $region10: #{stacked_conv_layers_forward.5} parent=5 // pred_check_branch
      %94 = sbr.rel (%p91) target = $region12
    $region11: #{stacked_conv_layers_forward.5} parent=5 // pred_region
      %s95 = ssub.s32 %s8, 1
      // Predicated region
      $region13: #{stacked_conv_layers_forward.5} parent=11 // pred_check
        %p96 = pneg %p55
      $region14: #{stacked_conv_layers_forward.5} parent=11 // pred_check_branch
        %98 = sbr.rel (%p96) target = $region16
      $region15: #{stacked_conv_layers_forward.5} parent=11 // pred_region
        _
      $region16: #{stacked_conv_layers_forward.5} parent=11 // pred_fallthru
        _
    $region12: #{stacked_conv_layers_forward.5} parent=5 // pred_fallthru
      _
    %p99 = scmp.lt.s32.totalorder %s8, 2
    // Predicated region
    $region17: #{stacked_conv_layers_forward.5} parent=5 // pred_check
      %p100 = pneg %p99
    $region18: #{stacked_conv_layers_forward.5} parent=5 // pred_check_branch
      %102 = sbr.rel (%p100) target = $region20
    $region19: #{stacked_conv_layers_forward.5} parent=5 // pred_region
      // Predicated region
      $region21: #{stacked_conv_layers_forward.5} parent=19 // pred_check
        %p103 = pneg %p28
      $region22: #{stacked_conv_layers_forward.5} parent=19 // pred_check_branch
        %105 = sbr.rel (%p103) target = $region24
      $region23: #{stacked_conv_layers_forward.5} parent=19 // pred_region
        %p106 = scmp.lt.s32.totalorder %s8, 1
        %s107 = scalar_select %p106, %s8, 1
        %s108 = smul.addr %s107, 32
        %s109 = smul.addr %s108, 4
        %s110 = scalar_lea.vmem %s0, %s109
      $region24: #{stacked_conv_layers_forward.5} parent=19 // pred_fallthru
        _
    $region20: #{stacked_conv_layers_forward.5} parent=5 // pred_fallthru
      _
    %p111 = scmp.le.s32.totalorder 1, %s8
    %p112 = scmp.lt.s32.totalorder %s8, 3
    %p113 = pnand %p111, %p112
    %p114 = pneg %p113
    // Predicated region
    $region25: #{stacked_conv_layers_forward.5} parent=5 // pred_check
      _
    $region26: #{stacked_conv_layers_forward.5} parent=5 // pred_check_branch
      %116 = sbr.rel (%p113) target = $region28
    $region27: #{stacked_conv_layers_forward.5} parent=5 // pred_region
      %s117 = ssub.s32 %s8, 1
      %p118 = scmp.lt.s32.totalorder %s13, 1
      %s119 = scalar_select %p118, %s13, 1
      %s120 = smul.addr %s119, 32
      %s121 = smul.addr %s120, 4
      %s122 = scalar_lea.vmem %s0, %s121
      %p123 = pneg %p34
      %p124 = pneg %p31
      %p125 = pneg %p55
      %p126 = pneg %p52
      %p127 = pneg %p81
      %p128 = pneg %p78
      %p129 = scmp.lt.s32.totalorder %s13, 1
      %s130 = scalar_select %p129, %s13, 1
      %s131 = smul.addr %s130, 32
      %s132 = smul.addr %s131, 8
      %s133 = scalar_lea.vmem %s2, %s132
      %p134 = scmp.lt.s32.totalorder %s13, 1
      %s135 = scalar_select %p134, %s13, 1
      %s136 = smul.addr %s135, 32
      %s137 = smul.addr %s136, 4
      %s138 = scalar_lea.vmem %s0, %s137
      %p139 = scmp.lt.s32.totalorder %s13, 1
      %s140 = scalar_select %p139, %s13, 1
      %s141 = smul.addr %s140, 32
      %s142 = smul.addr %s141, 8
      %s143 = scalar_lea.vmem %s2, %s142
      %v144 = vld [vmem:[%s1] sm:$0x1]
      %v145 = vld [vmem:[%s1 + $0x1] sm:$0x1]
      %v146 = vld [vmem:[%s138] sm:$0xf]
      %v147 = vld [vmem:[%s138 + $0x4] sm:$0xf]
      %v148 = vld [vmem:[%s138 + $0x8] sm:$0xf]
      %v149 = vld [vmem:[%s138 + $0xc] sm:$0xf]
      %v150 = vld [vmem:[%s138 + $0x10] sm:$0xf]
      %v151 = vld [vmem:[%s138 + $0x14] sm:$0xf]
      %v152 = vld [vmem:[%s138 + $0x18] sm:$0xf]
      %v153 = vld [vmem:[%s138 + $0x1c] sm:$0xf]
      %v154 = vld [vmem:[%s138 + $0x20] sm:$0xf]
      %v155 = vld [vmem:[%s138 + $0x24] sm:$0xf]
      %v156 = vld [vmem:[%s138 + $0x28] sm:$0xf]
      %v157 = vld [vmem:[%s138 + $0x2c] sm:$0xf]
      %v158 = vld [vmem:[%s138 + $0x30] sm:$0xf]
      %v159 = vld [vmem:[%s138 + $0x34] sm:$0xf]
      %v160 = vld [vmem:[%s138 + $0x38] sm:$0xf]
      %v161 = vld [vmem:[%s138 + $0x3c] sm:$0xf]
      %v162 = vld [vmem:[%s138 + $0x40] sm:$0xf]
      %v163 = vld [vmem:[%s138 + $0x44] sm:$0xf]
      %v164 = vld [vmem:[%s138 + $0x48] sm:$0xf]
      %v165 = vld [vmem:[%s138 + $0x4c] sm:$0xf]
      %v166 = vld [vmem:[%s138 + $0x50] sm:$0xf]
      %v167 = vld [vmem:[%s138 + $0x54] sm:$0xf]
      %v168 = vld [vmem:[%s138 + $0x58] sm:$0xf]
      %v169 = vld [vmem:[%s138 + $0x5c] sm:$0xf]
      %v170 = vld [vmem:[%s138 + $0x60] sm:$0xf]
      %v171 = vld [vmem:[%s138 + $0x64] sm:$0xf]
      %v172 = vld [vmem:[%s138 + $0x68] sm:$0xf]
      %v173 = vld [vmem:[%s138 + $0x6c] sm:$0xf]
      %v174 = vld [vmem:[%s138 + $0x70] sm:$0xf]
      %v175 = vld [vmem:[%s138 + $0x74] sm:$0xf]
      %v176 = vld [vmem:[%s138 + $0x78] sm:$0xf]
      %v177 = vld [vmem:[%s138 + $0x7c] sm:$0xf]
      %v178 = vunpack.c.l.bf16 %v146
      %v179 = vunpack.c.l.bf16 %v147
      %v180 = vunpack.c.l.bf16 %v148
      %v181 = vunpack.c.l.bf16 %v149
      %v182 = vunpack.c.l.bf16 %v150
      %v183 = vunpack.c.l.bf16 %v151
      %v184 = vunpack.c.l.bf16 %v152
      %v185 = vunpack.c.l.bf16 %v153
      %v186 = vunpack.c.l.bf16 %v154
      %v187 = vunpack.c.l.bf16 %v155
      %v188 = vunpack.c.l.bf16 %v156
      %v189 = vunpack.c.l.bf16 %v157
      %v190 = vunpack.c.l.bf16 %v158
      %v191 = vunpack.c.l.bf16 %v159
      %v192 = vunpack.c.l.bf16 %v160
      %v193 = vunpack.c.l.bf16 %v161
      %v194 = vunpack.c.l.bf16 %v162
      %v195 = vunpack.c.l.bf16 %v163
      %v196 = vunpack.c.l.bf16 %v164
      %v197 = vunpack.c.l.bf16 %v165
      %v198 = vunpack.c.l.bf16 %v166
      %v199 = vunpack.c.l.bf16 %v167
      %v200 = vunpack.c.l.bf16 %v168
      %v201 = vunpack.c.l.bf16 %v169
      %v202 = vunpack.c.l.bf16 %v170
      %v203 = vunpack.c.l.bf16 %v171
      %v204 = vunpack.c.l.bf16 %v172
      %v205 = vunpack.c.l.bf16 %v173
      %v206 = vunpack.c.l.bf16 %v174
      %v207 = vunpack.c.l.bf16 %v175
      %v208 = vunpack.c.l.bf16 %v176
      %v209 = vunpack.c.l.bf16 %v177
      %v210 = vperm.slane %v144, 0
      %v211 = vmul.f32 %v178, %v210
      %v212 = vmul.f32 %v179, %v210
      %v213 = vmul.f32 %v180, %v210
      %v214 = vmul.f32 %v181, %v210
      %v215 = vmul.f32 %v182, %v210
      %v216 = vmul.f32 %v183, %v210
      %v217 = vmul.f32 %v184, %v210
      %v218 = vmul.f32 %v185, %v210
      %v219 = vmul.f32 %v186, %v210
      %v220 = vmul.f32 %v187, %v210
      %v221 = vmul.f32 %v188, %v210
      %v222 = vmul.f32 %v189, %v210
      %v223 = vmul.f32 %v190, %v210
      %v224 = vmul.f32 %v191, %v210
      %v225 = vmul.f32 %v192, %v210
      %v226 = vmul.f32 %v193, %v210
      %v227 = vmul.f32 %v194, %v210
      %v228 = vmul.f32 %v195, %v210
      %v229 = vmul.f32 %v196, %v210
      %v230 = vmul.f32 %v197, %v210
      %v231 = vmul.f32 %v198, %v210
      %v232 = vmul.f32 %v199, %v210
      %v233 = vmul.f32 %v200, %v210
      %v234 = vmul.f32 %v201, %v210
      %v235 = vmul.f32 %v202, %v210
      %v236 = vmul.f32 %v203, %v210
      %v237 = vmul.f32 %v204, %v210
      %v238 = vmul.f32 %v205, %v210
      %v239 = vmul.f32 %v206, %v210
      %v240 = vmul.f32 %v207, %v210
      %v241 = vmul.f32 %v208, %v210
      %v242 = vmul.f32 %v209, %v210
      %v243 = vperm.slane %v145, 0
      %v244 = vadd.f32 %v211, %v243
      %v245 = vadd.f32 %v212, %v243
      %v246 = vadd.f32 %v213, %v243
      %v247 = vadd.f32 %v214, %v243
      %v248 = vadd.f32 %v215, %v243
      %v249 = vadd.f32 %v216, %v243
      %v250 = vadd.f32 %v217, %v243
      %v251 = vadd.f32 %v218, %v243
      %v252 = vadd.f32 %v219, %v243
      %v253 = vadd.f32 %v220, %v243
      %v254 = vadd.f32 %v221, %v243
      %v255 = vadd.f32 %v222, %v243
      %v256 = vadd.f32 %v223, %v243
      %v257 = vadd.f32 %v224, %v243
      %v258 = vadd.f32 %v225, %v243
      %v259 = vadd.f32 %v226, %v243
      %v260 = vadd.f32 %v227, %v243
      %v261 = vadd.f32 %v228, %v243
      %v262 = vadd.f32 %v229, %v243
      %v263 = vadd.f32 %v230, %v243
      %v264 = vadd.f32 %v231, %v243
      %v265 = vadd.f32 %v232, %v243
      %v266 = vadd.f32 %v233, %v243
      %v267 = vadd.f32 %v234, %v243
      %v268 = vadd.f32 %v235, %v243
      %v269 = vadd.f32 %v236, %v243
      %v270 = vadd.f32 %v237, %v243
      %v271 = vadd.f32 %v238, %v243
      %v272 = vadd.f32 %v239, %v243
      %v273 = vadd.f32 %v240, %v243
      %v274 = vadd.f32 %v241, %v243
      %v275 = vadd.f32 %v242, %v243
      %vm276 = vcmp.ge.f32.partialorder %v244, 0.0
      %vm277 = vcmp.ge.f32.partialorder %v245, 0.0
      %vm278 = vcmp.ge.f32.partialorder %v246, 0.0
      %vm279 = vcmp.ge.f32.partialorder %v247, 0.0
      %vm280 = vcmp.ge.f32.partialorder %v248, 0.0
      %vm281 = vcmp.ge.f32.partialorder %v249, 0.0
      %vm282 = vcmp.ge.f32.partialorder %v250, 0.0
      %vm283 = vcmp.ge.f32.partialorder %v251, 0.0
      %vm284 = vcmp.ge.f32.partialorder %v252, 0.0
      %vm285 = vcmp.ge.f32.partialorder %v253, 0.0
      %vm286 = vcmp.ge.f32.partialorder %v254, 0.0
      %vm287 = vcmp.ge.f32.partialorder %v255, 0.0
      %vm288 = vcmp.ge.f32.partialorder %v256, 0.0
      %vm289 = vcmp.ge.f32.partialorder %v257, 0.0
      %vm290 = vcmp.ge.f32.partialorder %v258, 0.0
      %vm291 = vcmp.ge.f32.partialorder %v259, 0.0
      %vm292 = vcmp.ge.f32.partialorder %v260, 0.0
      %vm293 = vcmp.ge.f32.partialorder %v261, 0.0
      %vm294 = vcmp.ge.f32.partialorder %v262, 0.0
      %vm295 = vcmp.ge.f32.partialorder %v263, 0.0
      %vm296 = vcmp.ge.f32.partialorder %v264, 0.0
      %vm297 = vcmp.ge.f32.partialorder %v265, 0.0
      %vm298 = vcmp.ge.f32.partialorder %v266, 0.0
      %vm299 = vcmp.ge.f32.partialorder %v267, 0.0
      %vm300 = vcmp.ge.f32.partialorder %v268, 0.0
      %vm301 = vcmp.ge.f32.partialorder %v269, 0.0
      %vm302 = vcmp.ge.f32.partialorder %v270, 0.0
      %vm303 = vcmp.ge.f32.partialorder %v271, 0.0
      %vm304 = vcmp.ge.f32.partialorder %v272, 0.0
      %vm305 = vcmp.ge.f32.partialorder %v273, 0.0
      %vm306 = vcmp.ge.f32.partialorder %v274, 0.0
      %vm307 = vcmp.ge.f32.partialorder %v275, 0.0
      %v308 = vmul.f32 %v244, 0.01
      %v309 = vmul.f32 %v245, 0.01
      %v310 = vmul.f32 %v246, 0.01
      %v311 = vmul.f32 %v247, 0.01
      %v312 = vmul.f32 %v248, 0.01
      %v313 = vmul.f32 %v249, 0.01
      %v314 = vmul.f32 %v250, 0.01
      %v315 = vmul.f32 %v251, 0.01
      %v316 = vmul.f32 %v252, 0.01
      %v317 = vmul.f32 %v253, 0.01
      %v318 = vmul.f32 %v254, 0.01
      %v319 = vmul.f32 %v255, 0.01
      %v320 = vmul.f32 %v256, 0.01
      %v321 = vmul.f32 %v257, 0.01
      %v322 = vmul.f32 %v258, 0.01
      %v323 = vmul.f32 %v259, 0.01
      %v324 = vmul.f32 %v260, 0.01
      %v325 = vmul.f32 %v261, 0.01
      %v326 = vmul.f32 %v262, 0.01
      %v327 = vmul.f32 %v263, 0.01
      %v328 = vmul.f32 %v264, 0.01
      %v329 = vmul.f32 %v265, 0.01
      %v330 = vmul.f32 %v266, 0.01
      %v331 = vmul.f32 %v267, 0.01
      %v332 = vmul.f32 %v268, 0.01
      %v333 = vmul.f32 %v269, 0.01
      %v334 = vmul.f32 %v270, 0.01
      %v335 = vmul.f32 %v271, 0.01
      %v336 = vmul.f32 %v272, 0.01
      %v337 = vmul.f32 %v273, 0.01
      %v338 = vmul.f32 %v274, 0.01
      %v339 = vmul.f32 %v275, 0.01
      %v340 = vsel %vm276, %v244, %v308
      %v341 = vsel %vm277, %v245, %v309
      %v342 = vsel %vm278, %v246, %v310
      %v343 = vsel %vm279, %v247, %v311
      %v344 = vsel %vm280, %v248, %v312
      %v345 = vsel %vm281, %v249, %v313
      %v346 = vsel %vm282, %v250, %v314
      %v347 = vsel %vm283, %v251, %v315
      %v348 = vsel %vm284, %v252, %v316
      %v349 = vsel %vm285, %v253, %v317
      %v350 = vsel %vm286, %v254, %v318
      %v351 = vsel %vm287, %v255, %v319
      %v352 = vsel %vm288, %v256, %v320
      %v353 = vsel %vm289, %v257, %v321
      %v354 = vsel %vm290, %v258, %v322
      %v355 = vsel %vm291, %v259, %v323
      %v356 = vsel %vm292, %v260, %v324
      %v357 = vsel %vm293, %v261, %v325
      %v358 = vsel %vm294, %v262, %v326
      %v359 = vsel %vm295, %v263, %v327
      %v360 = vsel %vm296, %v264, %v328
      %v361 = vsel %vm297, %v265, %v329
      %v362 = vsel %vm298, %v266, %v330
      %v363 = vsel %vm299, %v267, %v331
      %v364 = vsel %vm300, %v268, %v332
      %v365 = vsel %vm301, %v269, %v333
      %v366 = vsel %vm302, %v270, %v334
      %v367 = vsel %vm303, %v271, %v335
      %v368 = vsel %vm304, %v272, %v336
      %v369 = vsel %vm305, %v273, %v337
      %v370 = vsel %vm306, %v274, %v338
      %v371 = vsel %vm307, %v275, %v339
      %vm372 = vcmask 64512
      %373 = vst.msk [vmem:[%s143] sm:$0xff] %vm372, %v340
      %374 = vst.msk [vmem:[%s143 + $0x8] sm:$0xff] %vm372, %v341
      %375 = vst.msk [vmem:[%s143 + $0x10] sm:$0xff] %vm372, %v342
      %376 = vst.msk [vmem:[%s143 + $0x18] sm:$0xff] %vm372, %v343
      %377 = vst.msk [vmem:[%s143 + $0x20] sm:$0xff] %vm372, %v344
      %378 = vst.msk [vmem:[%s143 + $0x28] sm:$0xff] %vm372, %v345
      %379 = vst.msk [vmem:[%s143 + $0x30] sm:$0xff] %vm372, %v346
      %380 = vst.msk [vmem:[%s143 + $0x38] sm:$0xff] %vm372, %v347
      %381 = vst.msk [vmem:[%s143 + $0x40] sm:$0xff] %vm372, %v348
      %382 = vst.msk [vmem:[%s143 + $0x48] sm:$0xff] %vm372, %v349
      %383 = vst.msk [vmem:[%s143 + $0x50] sm:$0xff] %vm372, %v350
      %384 = vst.msk [vmem:[%s143 + $0x58] sm:$0xff] %vm372, %v351
      %385 = vst.msk [vmem:[%s143 + $0x60] sm:$0xff] %vm372, %v352
      %386 = vst.msk [vmem:[%s143 + $0x68] sm:$0xff] %vm372, %v353
      %387 = vst.msk [vmem:[%s143 + $0x70] sm:$0xff] %vm372, %v354
      %388 = vst.msk [vmem:[%s143 + $0x78] sm:$0xff] %vm372, %v355
      %389 = vst.msk [vmem:[%s143 + $0x80] sm:$0xff] %vm372, %v356
      %390 = vst.msk [vmem:[%s143 + $0x88] sm:$0xff] %vm372, %v357
      %391 = vst.msk [vmem:[%s143 + $0x90] sm:$0xff] %vm372, %v358
      %392 = vst.msk [vmem:[%s143 + $0x98] sm:$0xff] %vm372, %v359
      %393 = vst.msk [vmem:[%s143 + $0xa0] sm:$0xff] %vm372, %v360
      %394 = vst.msk [vmem:[%s143 + $0xa8] sm:$0xff] %vm372, %v361
      %395 = vst.msk [vmem:[%s143 + $0xb0] sm:$0xff] %vm372, %v362
      %396 = vst.msk [vmem:[%s143 + $0xb8] sm:$0xff] %vm372, %v363
      %397 = vst.msk [vmem:[%s143 + $0xc0] sm:$0xff] %vm372, %v364
      %398 = vst.msk [vmem:[%s143 + $0xc8] sm:$0xff] %vm372, %v365
      %399 = vst.msk [vmem:[%s143 + $0xd0] sm:$0xff] %vm372, %v366
      %400 = vst.msk [vmem:[%s143 + $0xd8] sm:$0xff] %vm372, %v367
      %401 = vst.msk [vmem:[%s143 + $0xe0] sm:$0xff] %vm372, %v368
      %402 = vst.msk [vmem:[%s143 + $0xe8] sm:$0xff] %vm372, %v369
      %403 = vst.msk [vmem:[%s143 + $0xf0] sm:$0xff] %vm372, %v370
      %404 = vst.msk [vmem:[%s143 + $0xf8] sm:$0xff] %vm372, %v371
      %p405 = scmp.lt.s32.totalorder %s13, 1
      %s406 = scalar_select %p405, %s13, 1
      %s407 = smul.addr %s406, 32
      %s408 = smul.addr %s407, 8
      %s409 = scalar_lea.vmem %s2, %s408
      // Predicated region
      $region29: #{stacked_conv_layers_forward.5} parent=27 // pred_check
        %p410 = pneg %p78
      $region30: #{stacked_conv_layers_forward.5} parent=27 // pred_check_branch
        %412 = sbr.rel (%p410) target = $region32
      $region31: #{stacked_conv_layers_forward.5} parent=27 // pred_region
        _
      $region32: #{stacked_conv_layers_forward.5} parent=27 // pred_fallthru
        _
    $region28: #{stacked_conv_layers_forward.5} parent=5 // pred_fallthru
      _
    %p413 = scmp.le.s32.totalorder 2, %s8
    // Predicated region
    $region33: #{stacked_conv_layers_forward.5} parent=5 // pred_check
      %p414 = pneg %p413
    $region34: #{stacked_conv_layers_forward.5} parent=5 // pred_check_branch
      %416 = sbr.rel (%p414) target = $region36
    $region35: #{stacked_conv_layers_forward.5} parent=5 // pred_region
      %s417 = ssub.s32 %s8, 2
      // Predicated region
      $region37: #{stacked_conv_layers_forward.5} parent=35 // pred_check
        %p418 = pneg %p84
      $region38: #{stacked_conv_layers_forward.5} parent=35 // pred_check_branch
        %420 = sbr.rel (%p418) target = $region40
      $region39: #{stacked_conv_layers_forward.5} parent=35 // pred_region
        %p421 = scmp.lt.s32.totalorder %s14, 1
        %s422 = scalar_select %p421, %s14, 1
        %s423 = smul.addr %s422, 32
        %s424 = smul.addr %s423, 8
        %s425 = scalar_lea.vmem %s2, %s424
      $region40: #{stacked_conv_layers_forward.5} parent=35 // pred_fallthru
        _
    $region36: #{stacked_conv_layers_forward.5} parent=5 // pred_fallthru
      _
  $region6: #{stacked_conv_layers_forward.5} parent=0 // loop_footer
    %s12 = sadd.s32 1, %s8
  $region7: #{stacked_conv_layers_forward.5} parent=0 // loop_footer_branch
    %7 = sbr.rel target = $region3
  $region8: #{stacked_conv_layers_forward.5} parent=0 // loop_exit
    _

// kernel: stacked_conv_layers_forward.3
$region0: #{stacked_conv_layers_forward.3}
  #allocation0 [shape = 'u32[]', space=smem, size = 0x4, offset = 0x4, fixed_abs, tag = 'smem constant byte address 0x4 - core index']
  #allocation1 [shape = 'u32[72,128]{1,0:T(1,128)}', space=vmem, size = 0x9000, scoped, tag = 'internal scratch']
  #allocation2 [shape = 'f32[16,16,1152]{2,1,0:T(8,128)}', space=vmem, size = 0x120000, scoped, tag = 'scratch operand']
  %s0 = inlined_call_operand.vmem [shape: bf16[2,16,16,128], index: 0, kind: input, shape index: {}]
  %s1 = inlined_call_operand.vmem [shape: f32[2,128], index: 1, kind: input, shape index: {}]
  %s2 = inlined_call_operand.vmem [shape: bf16[1152,128], index: 2, kind: input, shape index: {}]
  %s3 = inlined_call_operand.vmem [shape: bf16[2,16,16,128], index: 3, kind: output, shape index: {0}]
  %s4 = inlined_call_operand.vmem [shape: f32[2,2,128], index: 4, kind: output, shape index: {1}]
  %5 = xla_tuple %s3, %s4
  %s6 = sld [smem:[#allocation0]]
  $region53: #{stacked_conv_layers_forward.3} parent=0
    _
  %s8 = ssub.s32 1, %s6
  %s9 = scalar_select 0, %s8, %s6
  loop: start=0, step=1, limit=4
  $region2: #{stacked_conv_layers_forward.3} parent=0 // loop_pre_header
    _
  $region3: #{stacked_conv_layers_forward.3} parent=0 // loop_header
    %s11 = sphi 0, %s15
    %p12 = scmp.ge.s32.totalorder %s11, 4
    %s21 = sphi 0, %s23
    %s24 = sphi 0, %s21
    %s25 = sphi 0, %s24
    %s41 = sphi 0, %s25
    %s45 = sphi 0, %s45
    %s47 = sphi 0, %s45
    %s48 = sphi 0, %s47
    %s62 = sphi 0, %s48
    %s66 = sphi 0, %s66
    %s68 = sphi 0, %s66
    %s69 = sphi 0, %s68
    %s83 = sphi 0, %s69
    %s89 = sphi 0, %s91
    %s92 = sphi 0, %s89
    %s93 = sphi 0, %s92
    %s109 = sphi 0, %s93
    %s115 = sphi 0, %s117
    %s118 = sphi 0, %s115
    %s119 = sphi 0, %s118
    %s135 = sphi 0, %s119
  $region4: #{stacked_conv_layers_forward.3} parent=0 // loop_header_branch
    %14 = sbr.rel (%p12) target = $region8
  $region5: #{stacked_conv_layers_forward.3} parent=0 // loop_body
    %s16 = ssub.s32 %s11, 1
    %s17 = ssub.s32 %s11, 2
    %s18 = sadd.s32 %s11, 1
    %s19 = ssub.s32 %s11, %s18
    %p20 = scmp.eq.s32.totalorder %s19, 0
    %s22 = sadd.s32 %s21, 1
    %s23 = scalar_select %p20, %s21, %s22
    %p26 = pneg %p20
    %p27 = scmp.eq.s32.totalorder %s11, 1
    %p28 = por %p26, %p27
    %p29 = scmp.ne.s32.totalorder %s21, %s24
    %p30 = scmp.eq.s32.totalorder %s11, 0
    %p31 = por %p29, %p30
    %p32 = scmp.ne.s32.totalorder %s21, %s24
    %p33 = scmp.eq.s32.totalorder %s16, 1
    %p34 = por %p32, %p33
    %p35 = scmp.ne.s32.totalorder %s24, %s25
    %p36 = scmp.eq.s32.totalorder %s16, 0
    %p37 = por %p35, %p36
    %p38 = scmp.ne.s32.totalorder %s24, %s25
    %p39 = scmp.eq.s32.totalorder %s17, 1
    %p40 = por %p38, %p39
    %p42 = scmp.ne.s32.totalorder %s25, %s41
    %p43 = scmp.eq.s32.totalorder %s17, 0
    %p44 = por %p42, %p43
    %s46 = sadd.s32 %s45, 1
    %p49 = scmp.eq.s32.totalorder %s11, 1
    %p50 = scmp.ne.s32.totalorder %s45, %s47
    %p51 = scmp.eq.s32.totalorder %s11, 0
    %p52 = por %p50, %p51
    %p53 = scmp.ne.s32.totalorder %s45, %s47
    %p54 = scmp.eq.s32.totalorder %s16, 1
    %p55 = por %p53, %p54
    %p56 = scmp.ne.s32.totalorder %s47, %s48
    %p57 = scmp.eq.s32.totalorder %s16, 0
    %p58 = por %p56, %p57
    %p59 = scmp.ne.s32.totalorder %s47, %s48
    %p60 = scmp.eq.s32.totalorder %s17, 1
    %p61 = por %p59, %p60
    %p63 = scmp.ne.s32.totalorder %s48, %s62
    %p64 = scmp.eq.s32.totalorder %s17, 0
    %p65 = por %p63, %p64
    %s67 = sadd.s32 %s66, 1
    %p70 = scmp.eq.s32.totalorder %s11, 1
    %p71 = scmp.ne.s32.totalorder %s66, %s68
    %p72 = scmp.eq.s32.totalorder %s11, 0
    %p73 = por %p71, %p72
    %p74 = scmp.ne.s32.totalorder %s66, %s68
    %p75 = scmp.eq.s32.totalorder %s16, 1
    %p76 = por %p74, %p75
    %p77 = scmp.ne.s32.totalorder %s68, %s69
    %p78 = scmp.eq.s32.totalorder %s16, 0
    %p79 = por %p77, %p78
    %p80 = scmp.ne.s32.totalorder %s68, %s69
    %p81 = scmp.eq.s32.totalorder %s17, 1
    %p82 = por %p80, %p81
    %p84 = scmp.ne.s32.totalorder %s69, %s83
    %p85 = scmp.eq.s32.totalorder %s17, 0
    %p86 = por %p84, %p85
    %s87 = ssub.s32 %s11, %s18
    %p88 = scmp.eq.s32.totalorder %s87, 0
    %s90 = sadd.s32 %s89, 1
    %s91 = scalar_select %p88, %s89, %s90
    %p94 = pneg %p88
    %p95 = scmp.eq.s32.totalorder %s11, 1
    %p96 = por %p94, %p95
    %p97 = scmp.ne.s32.totalorder %s89, %s92
    %p98 = scmp.eq.s32.totalorder %s11, 0
    %p99 = por %p97, %p98
    %p100 = scmp.ne.s32.totalorder %s89, %s92
    %p101 = scmp.eq.s32.totalorder %s16, 1
    %p102 = por %p100, %p101
    %p103 = scmp.ne.s32.totalorder %s92, %s93
    %p104 = scmp.eq.s32.totalorder %s16, 0
    %p105 = por %p103, %p104
    %p106 = scmp.ne.s32.totalorder %s92, %s93
    %p107 = scmp.eq.s32.totalorder %s17, 1
    %p108 = por %p106, %p107
    %p110 = scmp.ne.s32.totalorder %s93, %s109
    %p111 = scmp.eq.s32.totalorder %s17, 0
    %p112 = por %p110, %p111
    %s113 = ssub.s32 %s11, %s18
    %p114 = scmp.eq.s32.totalorder %s113, 0
    %s116 = sadd.s32 %s115, 1
    %s117 = scalar_select %p114, %s115, %s116
    %p120 = pneg %p114
    %p121 = scmp.eq.s32.totalorder %s11, 1
    %p122 = por %p120, %p121
    %p123 = scmp.ne.s32.totalorder %s115, %s118
    %p124 = scmp.eq.s32.totalorder %s11, 0
    %p125 = por %p123, %p124
    %p126 = scmp.ne.s32.totalorder %s115, %s118
    %p127 = scmp.eq.s32.totalorder %s16, 1
    %p128 = por %p126, %p127
    %p129 = scmp.ne.s32.totalorder %s118, %s119
    %p130 = scmp.eq.s32.totalorder %s16, 0
    %p131 = por %p129, %p130
    %p132 = scmp.ne.s32.totalorder %s118, %s119
    %p133 = scmp.eq.s32.totalorder %s17, 1
    %p134 = por %p132, %p133
    %p136 = scmp.ne.s32.totalorder %s119, %s135
    %p137 = scmp.eq.s32.totalorder %s17, 0
    %p138 = por %p136, %p137
    %p139 = scmp.le.s32.totalorder 1, %s11
    %p140 = scmp.lt.s32.totalorder %s11, 3
    %p141 = pnand %p139, %p140
    %p142 = pneg %p141
    // Predicated region
    $region9: #{stacked_conv_layers_forward.3} parent=5 // pred_check
      _
    $region10: #{stacked_conv_layers_forward.3} parent=5 // pred_check_branch
      %144 = sbr.rel (%p141) target = $region12
    $region11: #{stacked_conv_layers_forward.3} parent=5 // pred_region
      %s145 = ssub.s32 %s11, 1
      // Predicated region
      $region13: #{stacked_conv_layers_forward.3} parent=11 // pred_check
        %p146 = pneg %p58
      $region14: #{stacked_conv_layers_forward.3} parent=11 // pred_check_branch
        %148 = sbr.rel (%p146) target = $region16
      $region15: #{stacked_conv_layers_forward.3} parent=11 // pred_region
        _
      $region16: #{stacked_conv_layers_forward.3} parent=11 // pred_fallthru
        _
      // Predicated region
      $region17: #{stacked_conv_layers_forward.3} parent=11 // pred_check
        %p149 = pneg %p79
      $region18: #{stacked_conv_layers_forward.3} parent=11 // pred_check_branch
        %151 = sbr.rel (%p149) target = $region20
      $region19: #{stacked_conv_layers_forward.3} parent=11 // pred_region
        _
      $region20: #{stacked_conv_layers_forward.3} parent=11 // pred_fallthru
        _
    $region12: #{stacked_conv_layers_forward.3} parent=5 // pred_fallthru
      _
    %p152 = scmp.lt.s32.totalorder %s11, 2
    // Predicated region
    $region21: #{stacked_conv_layers_forward.3} parent=5 // pred_check
      %p153 = pneg %p152
    $region22: #{stacked_conv_layers_forward.3} parent=5 // pred_check_branch
      %155 = sbr.rel (%p153) target = $region24
    $region23: #{stacked_conv_layers_forward.3} parent=5 // pred_region
      // Predicated region
      $region25: #{stacked_conv_layers_forward.3} parent=23 // pred_check
        %p156 = pneg %p31
      $region26: #{stacked_conv_layers_forward.3} parent=23 // pred_check_branch
        %158 = sbr.rel (%p156) target = $region28
      $region27: #{stacked_conv_layers_forward.3} parent=23 // pred_region
        %p159 = scmp.lt.s32.totalorder %s11, 1
        %s160 = scalar_select %p159, %s11, 1
        %s161 = smul.addr %s160, 32
        %s162 = smul.addr %s161, 4
        %s163 = scalar_lea.vmem %s0, %s162
      $region28: #{stacked_conv_layers_forward.3} parent=23 // pred_fallthru
        _
    $region24: #{stacked_conv_layers_forward.3} parent=5 // pred_fallthru
      _
    %p164 = scmp.le.s32.totalorder 1, %s11
    %p165 = scmp.lt.s32.totalorder %s11, 3
    %p166 = pnand %p164, %p165
    %p167 = pneg %p166
    // Predicated region
    $region29: #{stacked_conv_layers_forward.3} parent=5 // pred_check
      _
    $region30: #{stacked_conv_layers_forward.3} parent=5 // pred_check_branch
      %169 = sbr.rel (%p166) target = $region32
    $region31: #{stacked_conv_layers_forward.3} parent=5 // pred_region
      %s170 = ssub.s32 %s11, 1
      %p171 = scmp.lt.s32.totalorder %s16, 1
      %s172 = scalar_select %p171, %s16, 1
      %s173 = smul.addr %s172, 32
      %s174 = smul.addr %s173, 4
      %s175 = scalar_lea.vmem %s0, %s174
      %p176 = pneg %p37
      %p177 = pneg %p34
      %p178 = pneg %p58
      %p179 = pneg %p55
      %p180 = pneg %p79
      %p181 = pneg %p76
      %p182 = pneg %p105
      %p183 = pneg %p102
      %p184 = scmp.lt.s32.totalorder %s16, 1
      %s185 = scalar_select %p184, %s16, 1
      %s186 = smul.addr %s185, 32
      %s187 = smul.addr %s186, 4
      %s188 = scalar_lea.vmem %s3, %s187
      %p189 = pneg %p131
      %p190 = pneg %p128
      %p191 = scmp.lt.s32.totalorder %s16, 1
      %s192 = scalar_select %p191, %s16, 1
      %s193 = smul.addr %s192, 2
      %s194 = scalar_lea.vmem %s4, %s193
      %p195 = scmp.lt.s32.totalorder %s16, 1
      %s196 = scalar_select %p195, %s16, 1
      %s197 = smul.addr %s196, 32
      %s198 = smul.addr %s197, 4
      %s199 = scalar_lea.vmem %s0, %s198
      %p200 = scmp.lt.s32.totalorder %s16, 1
      %s201 = scalar_select %p200, %s16, 1
      %s202 = smul.addr %s201, 32
      %s203 = smul.addr %s202, 4
      %s204 = scalar_lea.vmem %s3, %s203
      %p205 = scmp.lt.s32.totalorder %s16, 1
      %s206 = scalar_select %p205, %s16, 1
      %s207 = smul.addr %s206, 2
      %s208 = scalar_lea.vmem %s4, %s207
      %v209 = vld [vmem:[%s199] sm:$0xf]
      %v210 = vld [vmem:[%s199 + $0x4] sm:$0xf]
      %v211 = vld [vmem:[%s199 + $0x8] sm:$0xf]
      %v212 = vld [vmem:[%s199 + $0xc] sm:$0xf]
      %v213 = vld [vmem:[%s199 + $0x10] sm:$0xf]
      %v214 = vld [vmem:[%s199 + $0x14] sm:$0xf]
      %v215 = vld [vmem:[%s199 + $0x18] sm:$0xf]
      %v216 = vld [vmem:[%s199 + $0x1c] sm:$0xf]
      %v217 = vld [vmem:[%s199 + $0x20] sm:$0xf]
      %v218 = vld [vmem:[%s199 + $0x24] sm:$0xf]
      %v219 = vld [vmem:[%s199 + $0x28] sm:$0xf]
      %v220 = vld [vmem:[%s199 + $0x2c] sm:$0xf]
      %v221 = vld [vmem:[%s199 + $0x30] sm:$0xf]
      %v222 = vld [vmem:[%s199 + $0x34] sm:$0xf]
      %v223 = vld [vmem:[%s199 + $0x38] sm:$0xf]
      %v224 = vld [vmem:[%s199 + $0x3c] sm:$0xf]
      %v225 = vld [vmem:[%s199 + $0x40] sm:$0xf]
      %v226 = vld [vmem:[%s199 + $0x44] sm:$0xf]
      %v227 = vld [vmem:[%s199 + $0x48] sm:$0xf]
      %v228 = vld [vmem:[%s199 + $0x4c] sm:$0xf]
      %v229 = vld [vmem:[%s199 + $0x50] sm:$0xf]
      %v230 = vld [vmem:[%s199 + $0x54] sm:$0xf]
      %v231 = vld [vmem:[%s199 + $0x58] sm:$0xf]
      %v232 = vld [vmem:[%s199 + $0x5c] sm:$0xf]
      %v233 = vld [vmem:[%s199 + $0x60] sm:$0xf]
      %v234 = vld [vmem:[%s199 + $0x64] sm:$0xf]
      %v235 = vld [vmem:[%s199 + $0x68] sm:$0xf]
      %v236 = vld [vmem:[%s199 + $0x6c] sm:$0xf]
      %v237 = vld [vmem:[%s199 + $0x70] sm:$0xf]
      %v238 = vld [vmem:[%s199 + $0x74] sm:$0xf]
      %v239 = vld [vmem:[%s199 + $0x78] sm:$0xf]
      %v240 = vld [vmem:[%s199 + $0x7c] sm:$0xf]
      %v241 = vunpack.c.l.bf16 %v209
      %v242 = vunpack.c.l.bf16 %v210
      %v243 = vunpack.c.l.bf16 %v211
      %v244 = vunpack.c.l.bf16 %v212
      %v245 = vunpack.c.l.bf16 %v213
      %v246 = vunpack.c.l.bf16 %v214
      %v247 = vunpack.c.l.bf16 %v215
      %v248 = vunpack.c.l.bf16 %v216
      %v249 = vunpack.c.l.bf16 %v217
      %v250 = vunpack.c.l.bf16 %v218
      %v251 = vunpack.c.l.bf16 %v219
      %v252 = vunpack.c.l.bf16 %v220
      %v253 = vunpack.c.l.bf16 %v221
      %v254 = vunpack.c.l.bf16 %v222
      %v255 = vunpack.c.l.bf16 %v223
      %v256 = vunpack.c.l.bf16 %v224
      %v257 = vunpack.c.l.bf16 %v225
      %v258 = vunpack.c.l.bf16 %v226
      %v259 = vunpack.c.l.bf16 %v227
      %v260 = vunpack.c.l.bf16 %v228
      %v261 = vunpack.c.l.bf16 %v229
      %v262 = vunpack.c.l.bf16 %v230
      %v263 = vunpack.c.l.bf16 %v231
      %v264 = vunpack.c.l.bf16 %v232
      %v265 = vunpack.c.l.bf16 %v233
      %v266 = vunpack.c.l.bf16 %v234
      %v267 = vunpack.c.l.bf16 %v235
      %v268 = vunpack.c.l.bf16 %v236
      %v269 = vunpack.c.l.bf16 %v237
      %v270 = vunpack.c.l.bf16 %v238
      %v271 = vunpack.c.l.bf16 %v239
      %v272 = vunpack.c.l.bf16 %v240
      %273 = vst [vmem:[#allocation2] sm:$0xff] 0.0
      %274 = vst [vmem:[#allocation2 + $0x8] sm:$0xff] 0.0
      %275 = vst [vmem:[#allocation2 + $0x10] sm:$0xff] 0.0
      %276 = vst [vmem:[#allocation2 + $0x18] sm:$0xff] 0.0
      %277 = vst [vmem:[#allocation2 + $0x20] sm:$0xff] 0.0
      %278 = vst [vmem:[#allocation2 + $0x28] sm:$0xff] 0.0
      %279 = vst [vmem:[#allocation2 + $0x30] sm:$0xff] 0.0
      %280 = vst [vmem:[#allocation2 + $0x38] sm:$0xff] 0.0
      %281 = vst [vmem:[#allocation2 + $0x40] sm:$0xff] 0.0
      %282 = vst [vmem:[#allocation2 + $0x48] sm:$0xff] 0.0
      %283 = vst [vmem:[#allocation2 + $0x50] sm:$0xff] 0.0
      %284 = vst [vmem:[#allocation2 + $0x58] sm:$0xff] 0.0
      %285 = vst [vmem:[#allocation2 + $0x60] sm:$0xff] 0.0
      %286 = vst [vmem:[#allocation2 + $0x68] sm:$0xff] 0.0
      %287 = vst [vmem:[#allocation2 + $0x70] sm:$0xff] 0.0
      %288 = vst [vmem:[#allocation2 + $0x78] sm:$0xff] 0.0
      %289 = vst [vmem:[#allocation2 + $0x80] sm:$0xff] 0.0
      %290 = vst [vmem:[#allocation2 + $0x88] sm:$0xff] 0.0
      %291 = vst [vmem:[#allocation2 + $0x90] sm:$0xff] 0.0
      %292 = vst [vmem:[#allocation2 + $0x98] sm:$0xff] 0.0
      %293 = vst [vmem:[#allocation2 + $0xa0] sm:$0xff] 0.0
      %294 = vst [vmem:[#allocation2 + $0xa8] sm:$0xff] 0.0
      %295 = vst [vmem:[#allocation2 + $0xb0] sm:$0xff] 0.0
      %296 = vst [vmem:[#allocation2 + $0xb8] sm:$0xff] 0.0
      %297 = vst [vmem:[#allocation2 + $0xc0] sm:$0xff] 0.0
      %298 = vst [vmem:[#allocation2 + $0xc8] sm:$0xff] 0.0
      %299 = vst [vmem:[#allocation2 + $0xd0] sm:$0xff] 0.0
      %300 = vst [vmem:[#allocation2 + $0xd8] sm:$0xff] 0.0
      %301 = vst [vmem:[#allocation2 + $0xe0] sm:$0xff] 0.0
      %302 = vst [vmem:[#allocation2 + $0xe8] sm:$0xff] 0.0
      %303 = vst [vmem:[#allocation2 + $0xf0] sm:$0xff] 0.0
      %304 = vst [vmem:[#allocation2 + $0xf8] sm:$0xff] 0.0
      %305 = vst [vmem:[#allocation2 + $0x100] sm:$0xff] 0.0
      %306 = vst [vmem:[#allocation2 + $0x108] sm:$0xff] 0.0
      %307 = vst [vmem:[#allocation2 + $0x110] sm:$0xff] 0.0
      %308 = vst [vmem:[#allocation2 + $0x118] sm:$0xff] 0.0
      %309 = vst [vmem:[#allocation2 + $0x120] sm:$0xff] 0.0
      %310 = vst [vmem:[#allocation2 + $0x128] sm:$0xff] 0.0
      %311 = vst [vmem:[#allocation2 + $0x130] sm:$0xff] 0.0
      %312 = vst [vmem:[#allocation2 + $0x138] sm:$0xff] 0.0
      %313 = vst [vmem:[#allocation2 + $0x140] sm:$0xff] 0.0
      %314 = vst [vmem:[#allocation2 + $0x148] sm:$0xff] 0.0
      %315 = vst [vmem:[#allocation2 + $0x150] sm:$0xff] 0.0
      %316 = vst [vmem:[#allocation2 + $0x158] sm:$0xff] 0.0
      %317 = vst [vmem:[#allocation2 + $0x160] sm:$0xff] 0.0
      %318 = vst [vmem:[#allocation2 + $0x168] sm:$0xff] 0.0
      %319 = vst [vmem:[#allocation2 + $0x170] sm:$0xff] 0.0
      %320 = vst [vmem:[#allocation2 + $0x178] sm:$0xff] 0.0
      %321 = vst [vmem:[#allocation2 + $0x180] sm:$0xff] 0.0
      %322 = vst [vmem:[#allocation2 + $0x188] sm:$0xff] 0.0
      %323 = vst [vmem:[#allocation2 + $0x190] sm:$0xff] 0.0
      %324 = vst [vmem:[#allocation2 + $0x198] sm:$0xff] 0.0
      %325 = vst [vmem:[#allocation2 + $0x1a0] sm:$0xff] 0.0
      %326 = vst [vmem:[#allocation2 + $0x1a8] sm:$0xff] 0.0
      %327 = vst [vmem:[#allocation2 + $0x1b0] sm:$0xff] 0.0
      %328 = vst [vmem:[#allocation2 + $0x1b8] sm:$0xff] 0.0
      %329 = vst [vmem:[#allocation2 + $0x1c0] sm:$0xff] 0.0
      %330 = vst [vmem:[#allocation2 + $0x1c8] sm:$0xff] 0.0
      %331 = vst [vmem:[#allocation2 + $0x1d0] sm:$0xff] 0.0
      %332 = vst [vmem:[#allocation2 + $0x1d8] sm:$0xff] 0.0
      %333 = vst [vmem:[#allocation2 + $0x1e0] sm:$0xff] 0.0
      %334 = vst [vmem:[#allocation2 + $0x1e8] sm:$0xff] 0.0
      %335 = vst [vmem:[#allocation2 + $0x1f0] sm:$0xff] 0.0
      %336 = vst [vmem:[#allocation2 + $0x1f8] sm:$0xff] 0.0
      %337 = vst [vmem:[#allocation2 + $0x200] sm:$0xff] 0.0
      %338 = vst [vmem:[#allocation2 + $0x208] sm:$0xff] 0.0
      %339 = vst [vmem:[#allocation2 + $0x210] sm:$0xff] 0.0
      %340 = vst [vmem:[#allocation2 + $0x218] sm:$0xff] 0.0
      %341 = vst [vmem:[#allocation2 + $0x220] sm:$0xff] 0.0
      %342 = vst [vmem:[#allocation2 + $0x228] sm:$0xff] 0.0
      %343 = vst [vmem:[#allocation2 + $0x230] sm:$0xff] 0.0
      %344 = vst [vmem:[#allocation2 + $0x238] sm:$0xff] 0.0
      %345 = vst [vmem:[#allocation2 + $0x240] sm:$0xff] 0.0
      %346 = vst [vmem:[#allocation2 + $0x248] sm:$0xff] 0.0
      %347 = vst [vmem:[#allocation2 + $0x250] sm:$0xff] 0.0
      %348 = vst [vmem:[#allocation2 + $0x258] sm:$0xff] 0.0
      %349 = vst [vmem:[#allocation2 + $0x260] sm:$0xff] 0.0
      %350 = vst [vmem:[#allocation2 + $0x268] sm:$0xff] 0.0
      %351 = vst [vmem:[#allocation2 + $0x270] sm:$0xff] 0.0
      %352 = vst [vmem:[#allocation2 + $0x278] sm:$0xff] 0.0
      %353 = vst [vmem:[#allocation2 + $0x280] sm:$0xff] 0.0
      %354 = vst [vmem:[#allocation2 + $0x288] sm:$0xff] 0.0
      %355 = vst [vmem:[#allocation2 + $0x290] sm:$0xff] 0.0
      %356 = vst [vmem:[#allocation2 + $0x298] sm:$0xff] 0.0
      %357 = vst [vmem:[#allocation2 + $0x2a0] sm:$0xff] 0.0
      %358 = vst [vmem:[#allocation2 + $0x2a8] sm:$0xff] 0.0
      %359 = vst [vmem:[#allocation2 + $0x2b0] sm:$0xff] 0.0
      %360 = vst [vmem:[#allocation2 + $0x2b8] sm:$0xff] 0.0
      %361 = vst [vmem:[#allocation2 + $0x2c0] sm:$0xff] 0.0
      %362 = vst [vmem:[#allocation2 + $0x2c8] sm:$0xff] 0.0
      %363 = vst [vmem:[#allocation2 + $0x2d0] sm:$0xff] 0.0
      %364 = vst [vmem:[#allocation2 + $0x2d8] sm:$0xff] 0.0
      %365 = vst [vmem:[#allocation2 + $0x2e0] sm:$0xff] 0.0
      %366 = vst [vmem:[#allocation2 + $0x2e8] sm:$0xff] 0.0
      %367 = vst [vmem:[#allocation2 + $0x2f0] sm:$0xff] 0.0
      %368 = vst [vmem:[#allocation2 + $0x2f8] sm:$0xff] 0.0
      %369 = vst [vmem:[#allocation2 + $0x300] sm:$0xff] 0.0
      %370 = vst [vmem:[#allocation2 + $0x308] sm:$0xff] 0.0
      %371 = vst [vmem:[#allocation2 + $0x310] sm:$0xff] 0.0
      %372 = vst [vmem:[#allocation2 + $0x318] sm:$0xff] 0.0
      %373 = vst [vmem:[#allocation2 + $0x320] sm:$0xff] 0.0
      %374 = vst [vmem:[#allocation2 + $0x328] sm:$0xff] 0.0
      %375 = vst [vmem:[#allocation2 + $0x330] sm:$0xff] 0.0
      %376 = vst [vmem:[#allocation2 + $0x338] sm:$0xff] 0.0
      %377 = vst [vmem:[#allocation2 + $0x340] sm:$0xff] 0.0
      %378 = vst [vmem:[#allocation2 + $0x348] sm:$0xff] 0.0
      %379 = vst [vmem:[#allocation2 + $0x350] sm:$0xff] 0.0
      %380 = vst [vmem:[#allocation2 + $0x358] sm:$0xff] 0.0
      %381 = vst [vmem:[#allocation2 + $0x360] sm:$0xff] 0.0
      %382 = vst [vmem:[#allocation2 + $0x368] sm:$0xff] 0.0
      %383 = vst [vmem:[#allocation2 + $0x370] sm:$0xff] 0.0
      %384 = vst [vmem:[#allocation2 + $0x378] sm:$0xff] 0.0
      %385 = vst [vmem:[#allocation2 + $0x380] sm:$0xff] 0.0
      %386 = vst [vmem:[#allocation2 + $0x388] sm:$0xff] 0.0
      %387 = vst [vmem:[#allocation2 + $0x390] sm:$0xff] 0.0
      %388 = vst [vmem:[#allocation2 + $0x398] sm:$0xff] 0.0
      %389 = vst [vmem:[#allocation2 + $0x3a0] sm:$0xff] 0.0
      %390 = vst [vmem:[#allocation2 + $0x3a8] sm:$0xff] 0.0
      %391 = vst [vmem:[#allocation2 + $0x3b0] sm:$0xff] 0.0
      %392 = vst [vmem:[#allocation2 + $0x3b8] sm:$0xff] 0.0
      %393 = vst [vmem:[#allocation2 + $0x3c0] sm:$0xff] 0.0
      %394 = vst [vmem:[#allocation2 + $0x3c8] sm:$0xff] 0.0
      %395 = vst [vmem:[#allocation2 + $0x3d0] sm:$0xff] 0.0
      %396 = vst [vmem:[#allocation2 + $0x3d8] sm:$0xff] 0.0
      %397 = vst [vmem:[#allocation2 + $0x3e0] sm:$0xff] 0.0
      %398 = vst [vmem:[#allocation2 + $0x3e8] sm:$0xff] 0.0
      %399 = vst [vmem:[#allocation2 + $0x3f0] sm:$0xff] 0.0
      %400 = vst [vmem:[#allocation2 + $0x3f8] sm:$0xff] 0.0
      %401 = vst [vmem:[#allocation2 + $0x400] sm:$0xff] 0.0
      %402 = vst [vmem:[#allocation2 + $0x408] sm:$0xff] 0.0
      %403 = vst [vmem:[#allocation2 + $0x410] sm:$0xff] 0.0
      %404 = vst [vmem:[#allocation2 + $0x418] sm:$0xff] 0.0
      %405 = vst [vmem:[#allocation2 + $0x420] sm:$0xff] 0.0
      %406 = vst [vmem:[#allocation2 + $0x428] sm:$0xff] 0.0
      %407 = vst [vmem:[#allocation2 + $0x430] sm:$0xff] 0.0
      %408 = vst [vmem:[#allocation2 + $0x438] sm:$0xff] 0.0
      %409 = vst [vmem:[#allocation2 + $0x440] sm:$0xff] 0.0
      %410 = vst [vmem:[#allocation2 + $0x448] sm:$0xff] 0.0
      %411 = vst [vmem:[#allocation2 + $0x450] sm:$0xff] 0.0
      %412 = vst [vmem:[#allocation2 + $0x458] sm:$0xff] 0.0
      %413 = vst [vmem:[#allocation2 + $0x460] sm:$0xff] 0.0
      %414 = vst [vmem:[#allocation2 + $0x468] sm:$0xff] 0.0
      %415 = vst [vmem:[#allocation2 + $0x470] sm:$0xff] 0.0
      %416 = vst [vmem:[#allocation2 + $0x478] sm:$0xff] 0.0
      %417 = vst [vmem:[#allocation2 + $0x480] sm:$0xff] 0.0
      %418 = vst [vmem:[#allocation2 + $0x488] sm:$0xff] 0.0
      %419 = vst [vmem:[#allocation2 + $0x490] sm:$0xff] 0.0
      %420 = vst [vmem:[#allocation2 + $0x498] sm:$0xff] 0.0
      %421 = vst [vmem:[#allocation2 + $0x4a0] sm:$0xff] 0.0
      %422 = vst [vmem:[#allocation2 + $0x4a8] sm:$0xff] 0.0
      %423 = vst [vmem:[#allocation2 + $0x4b0] sm:$0xff] 0.0
      %424 = vst [vmem:[#allocation2 + $0x4b8] sm:$0xff] 0.0
      %425 = vst [vmem:[#allocation2 + $0x4c0] sm:$0xff] 0.0
      %426 = vst [vmem:[#allocation2 + $0x4c8] sm:$0xff] 0.0
      %427 = vst [vmem:[#allocation2 + $0x4d0] sm:$0xff] 0.0
      %428 = vst [vmem:[#allocation2 + $0x4d8] sm:$0xff] 0.0
      %429 = vst [vmem:[#allocation2 + $0x4e0] sm:$0xff] 0.0
      %430 = vst [vmem:[#allocation2 + $0x4e8] sm:$0xff] 0.0
      %431 = vst [vmem:[#allocation2 + $0x4f0] sm:$0xff] 0.0
      %432 = vst [vmem:[#allocation2 + $0x4f8] sm:$0xff] 0.0
      %433 = vst [vmem:[#allocation2 + $0x500] sm:$0xff] 0.0
      %434 = vst [vmem:[#allocation2 + $0x508] sm:$0xff] 0.0
      %435 = vst [vmem:[#allocation2 + $0x510] sm:$0xff] 0.0
      %436 = vst [vmem:[#allocation2 + $0x518] sm:$0xff] 0.0
      %437 = vst [vmem:[#allocation2 + $0x520] sm:$0xff] 0.0
      %438 = vst [vmem:[#allocation2 + $0x528] sm:$0xff] 0.0
      %439 = vst [vmem:[#allocation2 + $0x530] sm:$0xff] 0.0
      %440 = vst [vmem:[#allocation2 + $0x538] sm:$0xff] 0.0
      %441 = vst [vmem:[#allocation2 + $0x540] sm:$0xff] 0.0
      %442 = vst [vmem:[#allocation2 + $0x548] sm:$0xff] 0.0
      %443 = vst [vmem:[#allocation2 + $0x550] sm:$0xff] 0.0
      %444 = vst [vmem:[#allocation2 + $0x558] sm:$0xff] 0.0
      %445 = vst [vmem:[#allocation2 + $0x560] sm:$0xff] 0.0
      %446 = vst [vmem:[#allocation2 + $0x568] sm:$0xff] 0.0
      %447 = vst [vmem:[#allocation2 + $0x570] sm:$0xff] 0.0
      %448 = vst [vmem:[#allocation2 + $0x578] sm:$0xff] 0.0
      %449 = vst [vmem:[#allocation2 + $0x580] sm:$0xff] 0.0
      %450 = vst [vmem:[#allocation2 + $0x588] sm:$0xff] 0.0
      %451 = vst [vmem:[#allocation2 + $0x590] sm:$0xff] 0.0
      %452 = vst [vmem:[#allocation2 + $0x598] sm:$0xff] 0.0
      %453 = vst [vmem:[#allocation2 + $0x5a0] sm:$0xff] 0.0
      %454 = vst [vmem:[#allocation2 + $0x5a8] sm:$0xff] 0.0
      %455 = vst [vmem:[#allocation2 + $0x5b0] sm:$0xff] 0.0
      %456 = vst [vmem:[#allocation2 + $0x5b8] sm:$0xff] 0.0
      %457 = vst [vmem:[#allocation2 + $0x5c0] sm:$0xff] 0.0
      %458 = vst [vmem:[#allocation2 + $0x5c8] sm:$0xff] 0.0
      %459 = vst [vmem:[#allocation2 + $0x5d0] sm:$0xff] 0.0
      %460 = vst [vmem:[#allocation2 + $0x5d8] sm:$0xff] 0.0
      %461 = vst [vmem:[#allocation2 + $0x5e0] sm:$0xff] 0.0
      %462 = vst [vmem:[#allocation2 + $0x5e8] sm:$0xff] 0.0
      %463 = vst [vmem:[#allocation2 + $0x5f0] sm:$0xff] 0.0
      %464 = vst [vmem:[#allocation2 + $0x5f8] sm:$0xff] 0.0
      %465 = vst [vmem:[#allocation2 + $0x600] sm:$0xff] 0.0
      %466 = vst [vmem:[#allocation2 + $0x608] sm:$0xff] 0.0
      %467 = vst [vmem:[#allocation2 + $0x610] sm:$0xff] 0.0
      %468 = vst [vmem:[#allocation2 + $0x618] sm:$0xff] 0.0
      %469 = vst [vmem:[#allocation2 + $0x620] sm:$0xff] 0.0
      %470 = vst [vmem:[#allocation2 + $0x628] sm:$0xff] 0.0
      %471 = vst [vmem:[#allocation2 + $0x630] sm:$0xff] 0.0
      %472 = vst [vmem:[#allocation2 + $0x638] sm:$0xff] 0.0
      %473 = vst [vmem:[#allocation2 + $0x640] sm:$0xff] 0.0
      %474 = vst [vmem:[#allocation2 + $0x648] sm:$0xff] 0.0
      %475 = vst [vmem:[#allocation2 + $0x650] sm:$0xff] 0.0
      %476 = vst [vmem:[#allocation2 + $0x658] sm:$0xff] 0.0
      %477 = vst [vmem:[#allocation2 + $0x660] sm:$0xff] 0.0
      %478 = vst [vmem:[#allocation2 + $0x668] sm:$0xff] 0.0
      %479 = vst [vmem:[#allocation2 + $0x670] sm:$0xff] 0.0
      %480 = vst [vmem:[#allocation2 + $0x678] sm:$0xff] 0.0
      %481 = vst [vmem:[#allocation2 + $0x680] sm:$0xff] 0.0
      %482 = vst [vmem:[#allocation2 + $0x688] sm:$0xff] 0.0
      %483 = vst [vmem:[#allocation2 + $0x690] sm:$0xff] 0.0
      %484 = vst [vmem:[#allocation2 + $0x698] sm:$0xff] 0.0
      %485 = vst [vmem:[#allocation2 + $0x6a0] sm:$0xff] 0.0
      %486 = vst [vmem:[#allocation2 + $0x6a8] sm:$0xff] 0.0
      %487 = vst [vmem:[#allocation2 + $0x6b0] sm:$0xff] 0.0
      %488 = vst [vmem:[#allocation2 + $0x6b8] sm:$0xff] 0.0
      %489 = vst [vmem:[#allocation2 + $0x6c0] sm:$0xff] 0.0
      %490 = vst [vmem:[#allocation2 + $0x6c8] sm:$0xff] 0.0
      %491 = vst [vmem:[#allocation2 + $0x6d0] sm:$0xff] 0.0
      %492 = vst [vmem:[#allocation2 + $0x6d8] sm:$0xff] 0.0
      %493 = vst [vmem:[#allocation2 + $0x6e0] sm:$0xff] 0.0
      %494 = vst [vmem:[#allocation2 + $0x6e8] sm:$0xff] 0.0
      %495 = vst [vmem:[#allocation2 + $0x6f0] sm:$0xff] 0.0
      %496 = vst [vmem:[#allocation2 + $0x6f8] sm:$0xff] 0.0
      %497 = vst [vmem:[#allocation2 + $0x700] sm:$0xff] 0.0
      %498 = vst [vmem:[#allocation2 + $0x708] sm:$0xff] 0.0
      %499 = vst [vmem:[#allocation2 + $0x710] sm:$0xff] 0.0
      %500 = vst [vmem:[#allocation2 + $0x718] sm:$0xff] 0.0
      %501 = vst [vmem:[#allocation2 + $0x720] sm:$0xff] 0.0
      %502 = vst [vmem:[#allocation2 + $0x728] sm:$0xff] 0.0
      %503 = vst [vmem:[#allocation2 + $0x730] sm:$0xff] 0.0
      %504 = vst [vmem:[#allocation2 + $0x738] sm:$0xff] 0.0
      %505 = vst [vmem:[#allocation2 + $0x740] sm:$0xff] 0.0
      %506 = vst [vmem:[#allocation2 + $0x748] sm:$0xff] 0.0
      %507 = vst [vmem:[#allocation2 + $0x750] sm:$0xff] 0.0
      %508 = vst [vmem:[#allocation2 + $0x758] sm:$0xff] 0.0
      %509 = vst [vmem:[#allocation2 + $0x760] sm:$0xff] 0.0
      %510 = vst [vmem:[#allocation2 + $0x768] sm:$0xff] 0.0
      %511 = vst [vmem:[#allocation2 + $0x770] sm:$0xff] 0.0
      %512 = vst [vmem:[#allocation2 + $0x778] sm:$0xff] 0.0
      %513 = vst [vmem:[#allocation2 + $0x780] sm:$0xff] 0.0
      %514 = vst [vmem:[#allocation2 + $0x788] sm:$0xff] 0.0
      %515 = vst [vmem:[#allocation2 + $0x790] sm:$0xff] 0.0
      %516 = vst [vmem:[#allocation2 + $0x798] sm:$0xff] 0.0
      %517 = vst [vmem:[#allocation2 + $0x7a0] sm:$0xff] 0.0
      %518 = vst [vmem:[#allocation2 + $0x7a8] sm:$0xff] 0.0
      %519 = vst [vmem:[#allocation2 + $0x7b0] sm:$0xff] 0.0
      %520 = vst [vmem:[#allocation2 + $0x7b8] sm:$0xff] 0.0
      %521 = vst [vmem:[#allocation2 + $0x7c0] sm:$0xff] 0.0
      %522 = vst [vmem:[#allocation2 + $0x7c8] sm:$0xff] 0.0
      %523 = vst [vmem:[#allocation2 + $0x7d0] sm:$0xff] 0.0
      %524 = vst [vmem:[#allocation2 + $0x7d8] sm:$0xff] 0.0
      %525 = vst [vmem:[#allocation2 + $0x7e0] sm:$0xff] 0.0
      %526 = vst [vmem:[#allocation2 + $0x7e8] sm:$0xff] 0.0
      %527 = vst [vmem:[#allocation2 + $0x7f0] sm:$0xff] 0.0
      %528 = vst [vmem:[#allocation2 + $0x7f8] sm:$0xff] 0.0
      %529 = vst [vmem:[#allocation2 + $0x800] sm:$0xff] 0.0
      %530 = vst [vmem:[#allocation2 + $0x808] sm:$0xff] 0.0
      %531 = vst [vmem:[#allocation2 + $0x810] sm:$0xff] 0.0
      %532 = vst [vmem:[#allocation2 + $0x818] sm:$0xff] 0.0
      %533 = vst [vmem:[#allocation2 + $0x820] sm:$0xff] 0.0
      %534 = vst [vmem:[#allocation2 + $0x828] sm:$0xff] 0.0
      %535 = vst [vmem:[#allocation2 + $0x830] sm:$0xff] 0.0
      %536 = vst [vmem:[#allocation2 + $0x838] sm:$0xff] 0.0
      %537 = vst [vmem:[#allocation2 + $0x840] sm:$0xff] 0.0
      %538 = vst [vmem:[#allocation2 + $0x848] sm:$0xff] 0.0
      %539 = vst [vmem:[#allocation2 + $0x850] sm:$0xff] 0.0
      %540 = vst [vmem:[#allocation2 + $0x858] sm:$0xff] 0.0
      %541 = vst [vmem:[#allocation2 + $0x860] sm:$0xff] 0.0
      %542 = vst [vmem:[#allocation2 + $0x868] sm:$0xff] 0.0
      %543 = vst [vmem:[#allocation2 + $0x870] sm:$0xff] 0.0
      %544 = vst [vmem:[#allocation2 + $0x878] sm:$0xff] 0.0
      %545 = vst [vmem:[#allocation2 + $0x880] sm:$0xff] 0.0
      %546 = vst [vmem:[#allocation2 + $0x888] sm:$0xff] 0.0
      %547 = vst [vmem:[#allocation2 + $0x890] sm:$0xff] 0.0
      %548 = vst [vmem:[#allocation2 + $0x898] sm:$0xff] 0.0
      %549 = vst [vmem:[#allocation2 + $0x8a0] sm:$0xff] 0.0
      %550 = vst [vmem:[#allocation2 + $0x8a8] sm:$0xff] 0.0
      %551 = vst [vmem:[#allocation2 + $0x8b0] sm:$0xff] 0.0
      %552 = vst [vmem:[#allocation2 + $0x8b8] sm:$0xff] 0.0
      %553 = vst [vmem:[#allocation2 + $0x8c0] sm:$0xff] 0.0
      %554 = vst [vmem:[#allocation2 + $0x8c8] sm:$0xff] 0.0
      %555 = vst [vmem:[#allocation2 + $0x8d0] sm:$0xff] 0.0
      %556 = vst [vmem:[#allocation2 + $0x8d8] sm:$0xff] 0.0
      %557 = vst [vmem:[#allocation2 + $0x8e0] sm:$0xff] 0.0
      %558 = vst [vmem:[#allocation2 + $0x8e8] sm:$0xff] 0.0
      %559 = vst [vmem:[#allocation2 + $0x8f0] sm:$0xff] 0.0
      %560 = vst [vmem:[#allocation2 + $0x8f8] sm:$0xff] 0.0
      %vm591 = vcmask 1040384
      %v592 = vrot.slane %v241, 7
      %v593 = vrot.slane %v242, 7
      %v594 = vsel %vm591, %v592, %v593
      %v595 = vrot.slane %v243, 7
      %v596 = vrot.slane %v244, 7
      %v597 = vsel %vm591, %v595, %v596
      %v598 = vrot.slane %v245, 7
      %v599 = vrot.slane %v246, 7
      %v600 = vsel %vm591, %v598, %v599
      %v601 = vrot.slane %v247, 7
      %v602 = vrot.slane %v248, 7
      %v603 = vsel %vm591, %v601, %v602
      %v604 = vrot.slane %v249, 7
      %v605 = vrot.slane %v250, 7
      %v606 = vsel %vm591, %v604, %v605
      %v607 = vrot.slane %v251, 7
      %v608 = vrot.slane %v252, 7
      %v609 = vsel %vm591, %v607, %v608
      %v610 = vrot.slane %v253, 7
      %v611 = vrot.slane %v254, 7
      %v612 = vsel %vm591, %v610, %v611
      %v613 = vrot.slane %v255, 7
      %v614 = vrot.slane %v256, 7
      %v615 = vsel %vm591, %v613, %v614
      %v616 = vrot.slane %v257, 7
      %v617 = vrot.slane %v258, 7
      %v618 = vsel %vm591, %v616, %v617
      %v619 = vrot.slane %v259, 7
      %v620 = vrot.slane %v260, 7
      %v621 = vsel %vm591, %v619, %v620
      %v622 = vrot.slane %v261, 7
      %v623 = vrot.slane %v262, 7
      %v624 = vsel %vm591, %v622, %v623
      %v625 = vrot.slane %v263, 7
      %v626 = vrot.slane %v264, 7
      %v627 = vsel %vm591, %v625, %v626
      %v628 = vrot.slane %v265, 7
      %v629 = vrot.slane %v266, 7
      %v630 = vsel %vm591, %v628, %v629
      %v631 = vrot.slane %v267, 7
      %v632 = vrot.slane %v268, 7
      %v633 = vsel %vm591, %v631, %v632
      %v634 = vrot.slane %v269, 7
      %v635 = vrot.slane %v270, 7
      %v636 = vsel %vm591, %v634, %v635
      %s667 = scalar_lea.vmem [#allocation2], 144
      %668 = vst [vmem:[%s667] sm:$0xfe] %v592
      %669 = vst [vmem:[%s667 + $0x48] sm:$0xff] %v594
      %670 = vst [vmem:[%s667 + $0x90] sm:$0xfe] %v595
      %671 = vst [vmem:[%s667 + $0xd8] sm:$0xff] %v597
      %672 = vst [vmem:[%s667 + $0x120] sm:$0xfe] %v598
      %673 = vst [vmem:[%s667 + $0x168] sm:$0xff] %v600
      %674 = vst [vmem:[%s667 + $0x1b0] sm:$0xfe] %v601
      %675 = vst [vmem:[%s667 + $0x1f8] sm:$0xff] %v603
      %676 = vst [vmem:[%s667 + $0x240] sm:$0xfe] %v604
      %677 = vst [vmem:[%s667 + $0x288] sm:$0xff] %v606
      %678 = vst [vmem:[%s667 + $0x2d0] sm:$0xfe] %v607
      %679 = vst [vmem:[%s667 + $0x318] sm:$0xff] %v609
      %680 = vst [vmem:[%s667 + $0x360] sm:$0xfe] %v610
      %681 = vst [vmem:[%s667 + $0x3a8] sm:$0xff] %v612
      %682 = vst [vmem:[%s667 + $0x3f0] sm:$0xfe] %v613
      %683 = vst [vmem:[%s667 + $0x438] sm:$0xff] %v615
      %684 = vst [vmem:[%s667 + $0x480] sm:$0xfe] %v616
      %685 = vst [vmem:[%s667 + $0x4c8] sm:$0xff] %v618
      %686 = vst [vmem:[%s667 + $0x510] sm:$0xfe] %v619
      %687 = vst [vmem:[%s667 + $0x558] sm:$0xff] %v621
      %688 = vst [vmem:[%s667 + $0x5a0] sm:$0xfe] %v622
      %689 = vst [vmem:[%s667 + $0x5e8] sm:$0xff] %v624
      %690 = vst [vmem:[%s667 + $0x630] sm:$0xfe] %v625
      %691 = vst [vmem:[%s667 + $0x678] sm:$0xff] %v627
      %692 = vst [vmem:[%s667 + $0x6c0] sm:$0xfe] %v628
      %693 = vst [vmem:[%s667 + $0x708] sm:$0xff] %v630
      %694 = vst [vmem:[%s667 + $0x750] sm:$0xfe] %v631
      %695 = vst [vmem:[%s667 + $0x798] sm:$0xff] %v633
      %696 = vst [vmem:[%s667 + $0x7e0] sm:$0xfe] %v634
      %697 = vst [vmem:[%s667 + $0x828] sm:$0xff] %v636
      %698 = vst [vmem:[%s667 + $0x8] sm:$0xff] %v241
      %699 = vst [vmem:[%s667 + $0x50] sm:$0xff] %v242
      %700 = vst [vmem:[%s667 + $0x98] sm:$0xff] %v243
      %701 = vst [vmem:[%s667 + $0xe0] sm:$0xff] %v244
      %702 = vst [vmem:[%s667 + $0x128] sm:$0xff] %v245
      %703 = vst [vmem:[%s667 + $0x170] sm:$0xff] %v246
      %704 = vst [vmem:[%s667 + $0x1b8] sm:$0xff] %v247
      %705 = vst [vmem:[%s667 + $0x200] sm:$0xff] %v248
      %706 = vst [vmem:[%s667 + $0x248] sm:$0xff] %v249
      %707 = vst [vmem:[%s667 + $0x290] sm:$0xff] %v250
      %708 = vst [vmem:[%s667 + $0x2d8] sm:$0xff] %v251
      %709 = vst [vmem:[%s667 + $0x320] sm:$0xff] %v252
      %710 = vst [vmem:[%s667 + $0x368] sm:$0xff] %v253
      %711 = vst [vmem:[%s667 + $0x3b0] sm:$0xff] %v254
      %712 = vst [vmem:[%s667 + $0x3f8] sm:$0xff] %v255
      %713 = vst [vmem:[%s667 + $0x440] sm:$0xff] %v256
      %714 = vst [vmem:[%s667 + $0x488] sm:$0xff] %v257
      %715 = vst [vmem:[%s667 + $0x4d0] sm:$0xff] %v258
      %716 = vst [vmem:[%s667 + $0x518] sm:$0xff] %v259
      %717 = vst [vmem:[%s667 + $0x560] sm:$0xff] %v260
      %718 = vst [vmem:[%s667 + $0x5a8] sm:$0xff] %v261
      %719 = vst [vmem:[%s667 + $0x5f0] sm:$0xff] %v262
      %720 = vst [vmem:[%s667 + $0x638] sm:$0xff] %v263
      %721 = vst [vmem:[%s667 + $0x680] sm:$0xff] %v264
      %722 = vst [vmem:[%s667 + $0x6c8] sm:$0xff] %v265
      %723 = vst [vmem:[%s667 + $0x710] sm:$0xff] %v266
      %724 = vst [vmem:[%s667 + $0x758] sm:$0xff] %v267
      %725 = vst [vmem:[%s667 + $0x7a0] sm:$0xff] %v268
      %726 = vst [vmem:[%s667 + $0x7e8] sm:$0xff] %v269
      %727 = vst [vmem:[%s667 + $0x830] sm:$0xff] %v270
      %vm728 = vcmask 1046528
      %v729 = vrot.slane %v241, 1
      %v730 = vrot.slane %v242, 1
      %v731 = vsel %vm728, %v729, %v730
      %v732 = vrot.slane %v243, 1
      %v733 = vrot.slane %v244, 1
      %v734 = vsel %vm728, %v732, %v733
      %v735 = vrot.slane %v245, 1
      %v736 = vrot.slane %v246, 1
      %v737 = vsel %vm728, %v735, %v736
      %v738 = vrot.slane %v247, 1
      %v739 = vrot.slane %v248, 1
      %v740 = vsel %vm728, %v738, %v739
      %v741 = vrot.slane %v249, 1
      %v742 = vrot.slane %v250, 1
      %v743 = vsel %vm728, %v741, %v742
      %v744 = vrot.slane %v251, 1
      %v745 = vrot.slane %v252, 1
      %v746 = vsel %vm728, %v744, %v745
      %v747 = vrot.slane %v253, 1
      %v748 = vrot.slane %v254, 1
      %v749 = vsel %vm728, %v747, %v748
      %v750 = vrot.slane %v255, 1
      %v751 = vrot.slane %v256, 1
      %v752 = vsel %vm728, %v750, %v751
      %v753 = vrot.slane %v257, 1
      %v754 = vrot.slane %v258, 1
      %v755 = vsel %vm728, %v753, %v754
      %v756 = vrot.slane %v259, 1
      %v757 = vrot.slane %v260, 1
      %v758 = vsel %vm728, %v756, %v757
      %v759 = vrot.slane %v261, 1
      %v760 = vrot.slane %v262, 1
      %v761 = vsel %vm728, %v759, %v760
      %v762 = vrot.slane %v263, 1
      %v763 = vrot.slane %v264, 1
      %v764 = vsel %vm728, %v762, %v763
      %v765 = vrot.slane %v265, 1
      %v766 = vrot.slane %v266, 1
      %v767 = vsel %vm728, %v765, %v766
      %v768 = vrot.slane %v267, 1
      %v769 = vrot.slane %v268, 1
      %v770 = vsel %vm728, %v768, %v769
      %v771 = vrot.slane %v269, 1
      %v772 = vrot.slane %v270, 1
      %v773 = vsel %vm728, %v771, %v772
      %804 = vst [vmem:[%s667 + $0x10] sm:$0xff] %v731
      %805 = vst [vmem:[%s667 + $0x58] sm:$0x7f] %v730
      %806 = vst [vmem:[%s667 + $0xa0] sm:$0xff] %v734
      %807 = vst [vmem:[%s667 + $0xe8] sm:$0x7f] %v733
      %808 = vst [vmem:[%s667 + $0x130] sm:$0xff] %v737
      %809 = vst [vmem:[%s667 + $0x178] sm:$0x7f] %v736
      %810 = vst [vmem:[%s667 + $0x1c0] sm:$0xff] %v740
      %811 = vst [vmem:[%s667 + $0x208] sm:$0x7f] %v739
      %812 = vst [vmem:[%s667 + $0x250] sm:$0xff] %v743
      %813 = vst [vmem:[%s667 + $0x298] sm:$0x7f] %v742
      %814 = vst [vmem:[%s667 + $0x2e0] sm:$0xff] %v746
      %815 = vst [vmem:[%s667 + $0x328] sm:$0x7f] %v745
      %816 = vst [vmem:[%s667 + $0x370] sm:$0xff] %v749
      %817 = vst [vmem:[%s667 + $0x3b8] sm:$0x7f] %v748
      %818 = vst [vmem:[%s667 + $0x400] sm:$0xff] %v752
      %819 = vst [vmem:[%s667 + $0x448] sm:$0x7f] %v751
      %820 = vst [vmem:[%s667 + $0x490] sm:$0xff] %v755
      %821 = vst [vmem:[%s667 + $0x4d8] sm:$0x7f] %v754
      %822 = vst [vmem:[%s667 + $0x520] sm:$0xff] %v758
      %823 = vst [vmem:[%s667 + $0x568] sm:$0x7f] %v757
      %824 = vst [vmem:[%s667 + $0x5b0] sm:$0xff] %v761
      %825 = vst [vmem:[%s667 + $0x5f8] sm:$0x7f] %v760
      %826 = vst [vmem:[%s667 + $0x640] sm:$0xff] %v764
      %827 = vst [vmem:[%s667 + $0x688] sm:$0x7f] %v763
      %828 = vst [vmem:[%s667 + $0x6d0] sm:$0xff] %v767
      %829 = vst [vmem:[%s667 + $0x718] sm:$0x7f] %v766
      %830 = vst [vmem:[%s667 + $0x760] sm:$0xff] %v770
      %831 = vst [vmem:[%s667 + $0x7a8] sm:$0x7f] %v769
      %832 = vst [vmem:[%s667 + $0x7f0] sm:$0xff] %v773
      %833 = vst [vmem:[%s667 + $0x838] sm:$0x7f] %v772
      %v836 = vrot.slane %v271, 7
      %v837 = vrot.slane %v272, 7
      %v838 = vsel %vm591, %v836, %v837
      %841 = vst [vmem:[#allocation2 + $0x18] sm:$0xfe] %v592
      %842 = vst [vmem:[#allocation2 + $0x60] sm:$0xff] %v594
      %843 = vst [vmem:[#allocation2 + $0xa8] sm:$0xfe] %v595
      %844 = vst [vmem:[#allocation2 + $0xf0] sm:$0xff] %v597
      %845 = vst [vmem:[#allocation2 + $0x138] sm:$0xfe] %v598
      %846 = vst [vmem:[#allocation2 + $0x180] sm:$0xff] %v600
      %847 = vst [vmem:[#allocation2 + $0x1c8] sm:$0xfe] %v601
      %848 = vst [vmem:[#allocation2 + $0x210] sm:$0xff] %v603
      %849 = vst [vmem:[#allocation2 + $0x258] sm:$0xfe] %v604
      %850 = vst [vmem:[#allocation2 + $0x2a0] sm:$0xff] %v606
      %851 = vst [vmem:[#allocation2 + $0x2e8] sm:$0xfe] %v607
      %852 = vst [vmem:[#allocation2 + $0x330] sm:$0xff] %v609
      %853 = vst [vmem:[#allocation2 + $0x378] sm:$0xfe] %v610
      %854 = vst [vmem:[#allocation2 + $0x3c0] sm:$0xff] %v612
      %855 = vst [vmem:[#allocation2 + $0x408] sm:$0xfe] %v613
      %856 = vst [vmem:[#allocation2 + $0x450] sm:$0xff] %v615
      %857 = vst [vmem:[#allocation2 + $0x498] sm:$0xfe] %v616
      %858 = vst [vmem:[#allocation2 + $0x4e0] sm:$0xff] %v618
      %859 = vst [vmem:[#allocation2 + $0x528] sm:$0xfe] %v619
      %860 = vst [vmem:[#allocation2 + $0x570] sm:$0xff] %v621
      %861 = vst [vmem:[#allocation2 + $0x5b8] sm:$0xfe] %v622
      %862 = vst [vmem:[#allocation2 + $0x600] sm:$0xff] %v624
      %863 = vst [vmem:[#allocation2 + $0x648] sm:$0xfe] %v625
      %864 = vst [vmem:[#allocation2 + $0x690] sm:$0xff] %v627
      %865 = vst [vmem:[#allocation2 + $0x6d8] sm:$0xfe] %v628
      %866 = vst [vmem:[#allocation2 + $0x720] sm:$0xff] %v630
      %867 = vst [vmem:[#allocation2 + $0x768] sm:$0xfe] %v631
      %868 = vst [vmem:[#allocation2 + $0x7b0] sm:$0xff] %v633
      %869 = vst [vmem:[#allocation2 + $0x7f8] sm:$0xfe] %v634
      %870 = vst [vmem:[#allocation2 + $0x840] sm:$0xff] %v636
      %871 = vst [vmem:[#allocation2 + $0x888] sm:$0xfe] %v836
      %872 = vst [vmem:[#allocation2 + $0x8d0] sm:$0xff] %v838
      %873 = vst [vmem:[#allocation2 + $0x20] sm:$0xff] %v241
      %874 = vst [vmem:[#allocation2 + $0x68] sm:$0xff] %v242
      %875 = vst [vmem:[#allocation2 + $0xb0] sm:$0xff] %v243
      %876 = vst [vmem:[#allocation2 + $0xf8] sm:$0xff] %v244
      %877 = vst [vmem:[#allocation2 + $0x140] sm:$0xff] %v245
      %878 = vst [vmem:[#allocation2 + $0x188] sm:$0xff] %v246
      %879 = vst [vmem:[#allocation2 + $0x1d0] sm:$0xff] %v247
      %880 = vst [vmem:[#allocation2 + $0x218] sm:$0xff] %v248
      %881 = vst [vmem:[#allocation2 + $0x260] sm:$0xff] %v249
      %882 = vst [vmem:[#allocation2 + $0x2a8] sm:$0xff] %v250
      %883 = vst [vmem:[#allocation2 + $0x2f0] sm:$0xff] %v251
      %884 = vst [vmem:[#allocation2 + $0x338] sm:$0xff] %v252
      %885 = vst [vmem:[#allocation2 + $0x380] sm:$0xff] %v253
      %886 = vst [vmem:[#allocation2 + $0x3c8] sm:$0xff] %v254
      %887 = vst [vmem:[#allocation2 + $0x410] sm:$0xff] %v255
      %888 = vst [vmem:[#allocation2 + $0x458] sm:$0xff] %v256
      %889 = vst [vmem:[#allocation2 + $0x4a0] sm:$0xff] %v257
      %890 = vst [vmem:[#allocation2 + $0x4e8] sm:$0xff] %v258
      %891 = vst [vmem:[#allocation2 + $0x530] sm:$0xff] %v259
      %892 = vst [vmem:[#allocation2 + $0x578] sm:$0xff] %v260
      %893 = vst [vmem:[#allocation2 + $0x5c0] sm:$0xff] %v261
      %894 = vst [vmem:[#allocation2 + $0x608] sm:$0xff] %v262
      %895 = vst [vmem:[#allocation2 + $0x650] sm:$0xff] %v263
      %896 = vst [vmem:[#allocation2 + $0x698] sm:$0xff] %v264
      %897 = vst [vmem:[#allocation2 + $0x6e0] sm:$0xff] %v265
      %898 = vst [vmem:[#allocation2 + $0x728] sm:$0xff] %v266
      %899 = vst [vmem:[#allocation2 + $0x770] sm:$0xff] %v267
      %900 = vst [vmem:[#allocation2 + $0x7b8] sm:$0xff] %v268
      %901 = vst [vmem:[#allocation2 + $0x800] sm:$0xff] %v269
      %902 = vst [vmem:[#allocation2 + $0x848] sm:$0xff] %v270
      %903 = vst [vmem:[#allocation2 + $0x890] sm:$0xff] %v271
      %904 = vst [vmem:[#allocation2 + $0x8d8] sm:$0xff] %v272
      %v905 = vrot.slane %v271, 1
      %v906 = vrot.slane %v272, 1
      %v907 = vsel %vm728, %v905, %v906
      %910 = vst [vmem:[#allocation2 + $0x28] sm:$0xff] %v731
      %911 = vst [vmem:[#allocation2 + $0x70] sm:$0x7f] %v730
      %912 = vst [vmem:[#allocation2 + $0xb8] sm:$0xff] %v734
      %913 = vst [vmem:[#allocation2 + $0x100] sm:$0x7f] %v733
      %914 = vst [vmem:[#allocation2 + $0x148] sm:$0xff] %v737
      %915 = vst [vmem:[#allocation2 + $0x190] sm:$0x7f] %v736
      %916 = vst [vmem:[#allocation2 + $0x1d8] sm:$0xff] %v740
      %917 = vst [vmem:[#allocation2 + $0x220] sm:$0x7f] %v739
      %918 = vst [vmem:[#allocation2 + $0x268] sm:$0xff] %v743
      %919 = vst [vmem:[#allocation2 + $0x2b0] sm:$0x7f] %v742
      %920 = vst [vmem:[#allocation2 + $0x2f8] sm:$0xff] %v746
      %921 = vst [vmem:[#allocation2 + $0x340] sm:$0x7f] %v745
      %922 = vst [vmem:[#allocation2 + $0x388] sm:$0xff] %v749
      %923 = vst [vmem:[#allocation2 + $0x3d0] sm:$0x7f] %v748
      %924 = vst [vmem:[#allocation2 + $0x418] sm:$0xff] %v752
      %925 = vst [vmem:[#allocation2 + $0x460] sm:$0x7f] %v751
      %926 = vst [vmem:[#allocation2 + $0x4a8] sm:$0xff] %v755
      %927 = vst [vmem:[#allocation2 + $0x4f0] sm:$0x7f] %v754
      %928 = vst [vmem:[#allocation2 + $0x538] sm:$0xff] %v758
      %929 = vst [vmem:[#allocation2 + $0x580] sm:$0x7f] %v757
      %930 = vst [vmem:[#allocation2 + $0x5c8] sm:$0xff] %v761
      %931 = vst [vmem:[#allocation2 + $0x610] sm:$0x7f] %v760
      %932 = vst [vmem:[#allocation2 + $0x658] sm:$0xff] %v764
      %933 = vst [vmem:[#allocation2 + $0x6a0] sm:$0x7f] %v763
      %934 = vst [vmem:[#allocation2 + $0x6e8] sm:$0xff] %v767
      %935 = vst [vmem:[#allocation2 + $0x730] sm:$0x7f] %v766
      %936 = vst [vmem:[#allocation2 + $0x778] sm:$0xff] %v770
      %937 = vst [vmem:[#allocation2 + $0x7c0] sm:$0x7f] %v769
      %938 = vst [vmem:[#allocation2 + $0x808] sm:$0xff] %v773
      %939 = vst [vmem:[#allocation2 + $0x850] sm:$0x7f] %v772
      %940 = vst [vmem:[#allocation2 + $0x898] sm:$0xff] %v907
      %941 = vst [vmem:[#allocation2 + $0x8e0] sm:$0x7f] %v906
      %942 = vst [vmem:[#allocation2 + $0x30] sm:$0xfe] %v595
      %943 = vst [vmem:[#allocation2 + $0x78] sm:$0xff] %v597
      %944 = vst [vmem:[#allocation2 + $0xc0] sm:$0xfe] %v598
      %945 = vst [vmem:[#allocation2 + $0x108] sm:$0xff] %v600
      %946 = vst [vmem:[#allocation2 + $0x150] sm:$0xfe] %v601
      %947 = vst [vmem:[#allocation2 + $0x198] sm:$0xff] %v603
      %948 = vst [vmem:[#allocation2 + $0x1e0] sm:$0xfe] %v604
      %949 = vst [vmem:[#allocation2 + $0x228] sm:$0xff] %v606
      %950 = vst [vmem:[#allocation2 + $0x270] sm:$0xfe] %v607
      %951 = vst [vmem:[#allocation2 + $0x2b8] sm:$0xff] %v609
      %952 = vst [vmem:[#allocation2 + $0x300] sm:$0xfe] %v610
      %953 = vst [vmem:[#allocation2 + $0x348] sm:$0xff] %v612
      %954 = vst [vmem:[#allocation2 + $0x390] sm:$0xfe] %v613
      %955 = vst [vmem:[#allocation2 + $0x3d8] sm:$0xff] %v615
      %956 = vst [vmem:[#allocation2 + $0x420] sm:$0xfe] %v616
      %957 = vst [vmem:[#allocation2 + $0x468] sm:$0xff] %v618
      %958 = vst [vmem:[#allocation2 + $0x4b0] sm:$0xfe] %v619
      %959 = vst [vmem:[#allocation2 + $0x4f8] sm:$0xff] %v621
      %960 = vst [vmem:[#allocation2 + $0x540] sm:$0xfe] %v622
      %961 = vst [vmem:[#allocation2 + $0x588] sm:$0xff] %v624
      %962 = vst [vmem:[#allocation2 + $0x5d0] sm:$0xfe] %v625
      %963 = vst [vmem:[#allocation2 + $0x618] sm:$0xff] %v627
      %964 = vst [vmem:[#allocation2 + $0x660] sm:$0xfe] %v628
      %965 = vst [vmem:[#allocation2 + $0x6a8] sm:$0xff] %v630
      %966 = vst [vmem:[#allocation2 + $0x6f0] sm:$0xfe] %v631
      %967 = vst [vmem:[#allocation2 + $0x738] sm:$0xff] %v633
      %968 = vst [vmem:[#allocation2 + $0x780] sm:$0xfe] %v634
      %969 = vst [vmem:[#allocation2 + $0x7c8] sm:$0xff] %v636
      %970 = vst [vmem:[#allocation2 + $0x810] sm:$0xfe] %v836
      %971 = vst [vmem:[#allocation2 + $0x858] sm:$0xff] %v838
      %972 = vst [vmem:[#allocation2 + $0x38] sm:$0xff] %v243
      %973 = vst [vmem:[#allocation2 + $0x80] sm:$0xff] %v244
      %974 = vst [vmem:[#allocation2 + $0xc8] sm:$0xff] %v245
      %975 = vst [vmem:[#allocation2 + $0x110] sm:$0xff] %v246
      %976 = vst [vmem:[#allocation2 + $0x158] sm:$0xff] %v247
      %977 = vst [vmem:[#allocation2 + $0x1a0] sm:$0xff] %v248
      %978 = vst [vmem:[#allocation2 + $0x1e8] sm:$0xff] %v249
      %979 = vst [vmem:[#allocation2 + $0x230] sm:$0xff] %v250
      %980 = vst [vmem:[#allocation2 + $0x278] sm:$0xff] %v251
      %981 = vst [vmem:[#allocation2 + $0x2c0] sm:$0xff] %v252
      %982 = vst [vmem:[#allocation2 + $0x308] sm:$0xff] %v253
      %983 = vst [vmem:[#allocation2 + $0x350] sm:$0xff] %v254
      %984 = vst [vmem:[#allocation2 + $0x398] sm:$0xff] %v255
      %985 = vst [vmem:[#allocation2 + $0x3e0] sm:$0xff] %v256
      %986 = vst [vmem:[#allocation2 + $0x428] sm:$0xff] %v257
      %987 = vst [vmem:[#allocation2 + $0x470] sm:$0xff] %v258
      %988 = vst [vmem:[#allocation2 + $0x4b8] sm:$0xff] %v259
      %989 = vst [vmem:[#allocation2 + $0x500] sm:$0xff] %v260
      %990 = vst [vmem:[#allocation2 + $0x548] sm:$0xff] %v261
      %991 = vst [vmem:[#allocation2 + $0x590] sm:$0xff] %v262
      %992 = vst [vmem:[#allocation2 + $0x5d8] sm:$0xff] %v263
      %993 = vst [vmem:[#allocation2 + $0x620] sm:$0xff] %v264
      %994 = vst [vmem:[#allocation2 + $0x668] sm:$0xff] %v265
      %995 = vst [vmem:[#allocation2 + $0x6b0] sm:$0xff] %v266
      %996 = vst [vmem:[#allocation2 + $0x6f8] sm:$0xff] %v267
      %997 = vst [vmem:[#allocation2 + $0x740] sm:$0xff] %v268
      %998 = vst [vmem:[#allocation2 + $0x788] sm:$0xff] %v269
      %999 = vst [vmem:[#allocation2 + $0x7d0] sm:$0xff] %v270
      %1000 = vst [vmem:[#allocation2 + $0x818] sm:$0xff] %v271
      %1001 = vst [vmem:[#allocation2 + $0x860] sm:$0xff] %v272
      %1002 = vst [vmem:[#allocation2 + $0x40] sm:$0xff] %v734
      %1003 = vst [vmem:[#allocation2 + $0x88] sm:$0x7f] %v733
      %1004 = vst [vmem:[#allocation2 + $0xd0] sm:$0xff] %v737
      %1005 = vst [vmem:[#allocation2 + $0x118] sm:$0x7f] %v736
      %1006 = vst [vmem:[#allocation2 + $0x160] sm:$0xff] %v740
      %1007 = vst [vmem:[#allocation2 + $0x1a8] sm:$0x7f] %v739
      %1008 = vst [vmem:[#allocation2 + $0x1f0] sm:$0xff] %v743
      %1009 = vst [vmem:[#allocation2 + $0x238] sm:$0x7f] %v742
      %1010 = vst [vmem:[#allocation2 + $0x280] sm:$0xff] %v746
      %1011 = vst [vmem:[#allocation2 + $0x2c8] sm:$0x7f] %v745
      %1012 = vst [vmem:[#allocation2 + $0x310] sm:$0xff] %v749
      %1013 = vst [vmem:[#allocation2 + $0x358] sm:$0x7f] %v748
      %1014 = vst [vmem:[#allocation2 + $0x3a0] sm:$0xff] %v752
      %1015 = vst [vmem:[#allocation2 + $0x3e8] sm:$0x7f] %v751
      %1016 = vst [vmem:[#allocation2 + $0x430] sm:$0xff] %v755
      %1017 = vst [vmem:[#allocation2 + $0x478] sm:$0x7f] %v754
      %1018 = vst [vmem:[#allocation2 + $0x4c0] sm:$0xff] %v758
      %1019 = vst [vmem:[#allocation2 + $0x508] sm:$0x7f] %v757
      %1020 = vst [vmem:[#allocation2 + $0x550] sm:$0xff] %v761
      %1021 = vst [vmem:[#allocation2 + $0x598] sm:$0x7f] %v760
      %1022 = vst [vmem:[#allocation2 + $0x5e0] sm:$0xff] %v764
      %1023 = vst [vmem:[#allocation2 + $0x628] sm:$0x7f] %v763
      %1024 = vst [vmem:[#allocation2 + $0x670] sm:$0xff] %v767
      %1025 = vst [vmem:[#allocation2 + $0x6b8] sm:$0x7f] %v766
      %1026 = vst [vmem:[#allocation2 + $0x700] sm:$0xff] %v770
      %1027 = vst [vmem:[#allocation2 + $0x748] sm:$0x7f] %v769
      %1028 = vst [vmem:[#allocation2 + $0x790] sm:$0xff] %v773
      %1029 = vst [vmem:[#allocation2 + $0x7d8] sm:$0x7f] %v772
      %1030 = vst [vmem:[#allocation2 + $0x820] sm:$0xff] %v907
      %1031 = vst [vmem:[#allocation2 + $0x868] sm:$0x7f] %v906
      %v1032 = vld [vmem:[#allocation2] sm:$0xff]
      %v1033 = vld [vmem:[#allocation2 + $0x8] sm:$0xff]
      %v1034 = vld [vmem:[#allocation2 + $0x10] sm:$0xff]
      %v1035 = vld [vmem:[#allocation2 + $0x18] sm:$0xff]
      %v1036 = vld [vmem:[#allocation2 + $0x20] sm:$0xff]
      %v1037 = vld [vmem:[#allocation2 + $0x28] sm:$0xff]
      %v1038 = vld [vmem:[#allocation2 + $0x30] sm:$0xff]
      %v1039 = vld [vmem:[#allocation2 + $0x38] sm:$0xff]
      %v1040 = vld [vmem:[#allocation2 + $0x40] sm:$0xff]
      %v1041 = vld [vmem:[#allocation2 + $0x48] sm:$0xff]
      %v1042 = vld [vmem:[#allocation2 + $0x50] sm:$0xff]
      %v1043 = vld [vmem:[#allocation2 + $0x58] sm:$0xff]
      %v1044 = vld [vmem:[#allocation2 + $0x60] sm:$0xff]
      %v1045 = vld [vmem:[#allocation2 + $0x68] sm:$0xff]
      %v1046 = vld [vmem:[#allocation2 + $0x70] sm:$0xff]
      %v1047 = vld [vmem:[#allocation2 + $0x78] sm:$0xff]
      %v1048 = vld [vmem:[#allocation2 + $0x80] sm:$0xff]
      %v1049 = vld [vmem:[#allocation2 + $0x88] sm:$0xff]
      %v1050 = vld [vmem:[#allocation2 + $0x90] sm:$0xff]
      %v1051 = vld [vmem:[#allocation2 + $0x98] sm:$0xff]
      %v1052 = vld [vmem:[#allocation2 + $0xa0] sm:$0xff]
      %v1053 = vld [vmem:[#allocation2 + $0xa8] sm:$0xff]
      %v1054 = vld [vmem:[#allocation2 + $0xb0] sm:$0xff]
      %v1055 = vld [vmem:[#allocation2 + $0xb8] sm:$0xff]
      %v1056 = vld [vmem:[#allocation2 + $0xc0] sm:$0xff]
      %v1057 = vld [vmem:[#allocation2 + $0xc8] sm:$0xff]
      %v1058 = vld [vmem:[#allocation2 + $0xd0] sm:$0xff]
      %v1059 = vld [vmem:[#allocation2 + $0xd8] sm:$0xff]
      %v1060 = vld [vmem:[#allocation2 + $0xe0] sm:$0xff]
      %v1061 = vld [vmem:[#allocation2 + $0xe8] sm:$0xff]
      %v1062 = vld [vmem:[#allocation2 + $0xf0] sm:$0xff]
      %v1063 = vld [vmem:[#allocation2 + $0xf8] sm:$0xff]
      %v1064 = vld [vmem:[#allocation2 + $0x100] sm:$0xff]
      %v1065 = vld [vmem:[#allocation2 + $0x108] sm:$0xff]
      %v1066 = vld [vmem:[#allocation2 + $0x110] sm:$0xff]
      %v1067 = vld [vmem:[#allocation2 + $0x118] sm:$0xff]
      %v1068 = vld [vmem:[#allocation2 + $0x120] sm:$0xff]
      %v1069 = vld [vmem:[#allocation2 + $0x128] sm:$0xff]
      %v1070 = vld [vmem:[#allocation2 + $0x130] sm:$0xff]
      %v1071 = vld [vmem:[#allocation2 + $0x138] sm:$0xff]
      %v1072 = vld [vmem:[#allocation2 + $0x140] sm:$0xff]
      %v1073 = vld [vmem:[#allocation2 + $0x148] sm:$0xff]
      %v1074 = vld [vmem:[#allocation2 + $0x150] sm:$0xff]
      %v1075 = vld [vmem:[#allocation2 + $0x158] sm:$0xff]
      %v1076 = vld [vmem:[#allocation2 + $0x160] sm:$0xff]
      %v1077 = vld [vmem:[#allocation2 + $0x168] sm:$0xff]
      %v1078 = vld [vmem:[#allocation2 + $0x170] sm:$0xff]
      %v1079 = vld [vmem:[#allocation2 + $0x178] sm:$0xff]
      %v1080 = vld [vmem:[#allocation2 + $0x180] sm:$0xff]
      %v1081 = vld [vmem:[#allocation2 + $0x188] sm:$0xff]
      %v1082 = vld [vmem:[#allocation2 + $0x190] sm:$0xff]
      %v1083 = vld [vmem:[#allocation2 + $0x198] sm:$0xff]
      %v1084 = vld [vmem:[#allocation2 + $0x1a0] sm:$0xff]
      %v1085 = vld [vmem:[#allocation2 + $0x1a8] sm:$0xff]
      %v1086 = vld [vmem:[#allocation2 + $0x1b0] sm:$0xff]
      %v1087 = vld [vmem:[#allocation2 + $0x1b8] sm:$0xff]
      %v1088 = vld [vmem:[#allocation2 + $0x1c0] sm:$0xff]
      %v1089 = vld [vmem:[#allocation2 + $0x1c8] sm:$0xff]
      %v1090 = vld [vmem:[#allocation2 + $0x1d0] sm:$0xff]
      %v1091 = vld [vmem:[#allocation2 + $0x1d8] sm:$0xff]
      %v1092 = vld [vmem:[#allocation2 + $0x1e0] sm:$0xff]
      %v1093 = vld [vmem:[#allocation2 + $0x1e8] sm:$0xff]
      %v1094 = vld [vmem:[#allocation2 + $0x1f0] sm:$0xff]
      %v1095 = vld [vmem:[#allocation2 + $0x1f8] sm:$0xff]
      %v1096 = vld [vmem:[#allocation2 + $0x200] sm:$0xff]
      %v1097 = vld [vmem:[#allocation2 + $0x208] sm:$0xff]
      %v1098 = vld [vmem:[#allocation2 + $0x210] sm:$0xff]
      %v1099 = vld [vmem:[#allocation2 + $0x218] sm:$0xff]
      %v1100 = vld [vmem:[#allocation2 + $0x220] sm:$0xff]
      %v1101 = vld [vmem:[#allocation2 + $0x228] sm:$0xff]
      %v1102 = vld [vmem:[#allocation2 + $0x230] sm:$0xff]
      %v1103 = vld [vmem:[#allocation2 + $0x238] sm:$0xff]
      %v1104 = vld [vmem:[#allocation2 + $0x240] sm:$0xff]
      %v1105 = vld [vmem:[#allocation2 + $0x248] sm:$0xff]
      %v1106 = vld [vmem:[#allocation2 + $0x250] sm:$0xff]
      %v1107 = vld [vmem:[#allocation2 + $0x258] sm:$0xff]
      %v1108 = vld [vmem:[#allocation2 + $0x260] sm:$0xff]
      %v1109 = vld [vmem:[#allocation2 + $0x268] sm:$0xff]
      %v1110 = vld [vmem:[#allocation2 + $0x270] sm:$0xff]
      %v1111 = vld [vmem:[#allocation2 + $0x278] sm:$0xff]
      %v1112 = vld [vmem:[#allocation2 + $0x280] sm:$0xff]
      %v1113 = vld [vmem:[#allocation2 + $0x288] sm:$0xff]
      %v1114 = vld [vmem:[#allocation2 + $0x290] sm:$0xff]
      %v1115 = vld [vmem:[#allocation2 + $0x298] sm:$0xff]
      %v1116 = vld [vmem:[#allocation2 + $0x2a0] sm:$0xff]
      %v1117 = vld [vmem:[#allocation2 + $0x2a8] sm:$0xff]
      %v1118 = vld [vmem:[#allocation2 + $0x2b0] sm:$0xff]
      %v1119 = vld [vmem:[#allocation2 + $0x2b8] sm:$0xff]
      %v1120 = vld [vmem:[#allocation2 + $0x2c0] sm:$0xff]
      %v1121 = vld [vmem:[#allocation2 + $0x2c8] sm:$0xff]
      %v1122 = vld [vmem:[#allocation2 + $0x2d0] sm:$0xff]
      %v1123 = vld [vmem:[#allocation2 + $0x2d8] sm:$0xff]
      %v1124 = vld [vmem:[#allocation2 + $0x2e0] sm:$0xff]
      %v1125 = vld [vmem:[#allocation2 + $0x2e8] sm:$0xff]
      %v1126 = vld [vmem:[#allocation2 + $0x2f0] sm:$0xff]
      %v1127 = vld [vmem:[#allocation2 + $0x2f8] sm:$0xff]
      %v1128 = vld [vmem:[#allocation2 + $0x300] sm:$0xff]
      %v1129 = vld [vmem:[#allocation2 + $0x308] sm:$0xff]
      %v1130 = vld [vmem:[#allocation2 + $0x310] sm:$0xff]
      %v1131 = vld [vmem:[#allocation2 + $0x318] sm:$0xff]
      %v1132 = vld [vmem:[#allocation2 + $0x320] sm:$0xff]
      %v1133 = vld [vmem:[#allocation2 + $0x328] sm:$0xff]
      %v1134 = vld [vmem:[#allocation2 + $0x330] sm:$0xff]
      %v1135 = vld [vmem:[#allocation2 + $0x338] sm:$0xff]
      %v1136 = vld [vmem:[#allocation2 + $0x340] sm:$0xff]
      %v1137 = vld [vmem:[#allocation2 + $0x348] sm:$0xff]
      %v1138 = vld [vmem:[#allocation2 + $0x350] sm:$0xff]
      %v1139 = vld [vmem:[#allocation2 + $0x358] sm:$0xff]
      %v1140 = vld [vmem:[#allocation2 + $0x360] sm:$0xff]
      %v1141 = vld [vmem:[#allocation2 + $0x368] sm:$0xff]
      %v1142 = vld [vmem:[#allocation2 + $0x370] sm:$0xff]
      %v1143 = vld [vmem:[#allocation2 + $0x378] sm:$0xff]
      %v1144 = vld [vmem:[#allocation2 + $0x380] sm:$0xff]
      %v1145 = vld [vmem:[#allocation2 + $0x388] sm:$0xff]
      %v1146 = vld [vmem:[#allocation2 + $0x390] sm:$0xff]
      %v1147 = vld [vmem:[#allocation2 + $0x398] sm:$0xff]
      %v1148 = vld [vmem:[#allocation2 + $0x3a0] sm:$0xff]
      %v1149 = vld [vmem:[#allocation2 + $0x3a8] sm:$0xff]
      %v1150 = vld [vmem:[#allocation2 + $0x3b0] sm:$0xff]
      %v1151 = vld [vmem:[#allocation2 + $0x3b8] sm:$0xff]
      %v1152 = vld [vmem:[#allocation2 + $0x3c0] sm:$0xff]
      %v1153 = vld [vmem:[#allocation2 + $0x3c8] sm:$0xff]
      %v1154 = vld [vmem:[#allocation2 + $0x3d0] sm:$0xff]
      %v1155 = vld [vmem:[#allocation2 + $0x3d8] sm:$0xff]
      %v1156 = vld [vmem:[#allocation2 + $0x3e0] sm:$0xff]
      %v1157 = vld [vmem:[#allocation2 + $0x3e8] sm:$0xff]
      %v1158 = vld [vmem:[#allocation2 + $0x3f0] sm:$0xff]
      %v1159 = vld [vmem:[#allocation2 + $0x3f8] sm:$0xff]
      %v1160 = vld [vmem:[#allocation2 + $0x400] sm:$0xff]
      %v1161 = vld [vmem:[#allocation2 + $0x408] sm:$0xff]
      %v1162 = vld [vmem:[#allocation2 + $0x410] sm:$0xff]
      %v1163 = vld [vmem:[#allocation2 + $0x418] sm:$0xff]
      %v1164 = vld [vmem:[#allocation2 + $0x420] sm:$0xff]
      %v1165 = vld [vmem:[#allocation2 + $0x428] sm:$0xff]
      %v1166 = vld [vmem:[#allocation2 + $0x430] sm:$0xff]
      %v1167 = vld [vmem:[#allocation2 + $0x438] sm:$0xff]
      %v1168 = vld [vmem:[#allocation2 + $0x440] sm:$0xff]
      %v1169 = vld [vmem:[#allocation2 + $0x448] sm:$0xff]
      %v1170 = vld [vmem:[#allocation2 + $0x450] sm:$0xff]
      %v1171 = vld [vmem:[#allocation2 + $0x458] sm:$0xff]
      %v1172 = vld [vmem:[#allocation2 + $0x460] sm:$0xff]
      %v1173 = vld [vmem:[#allocation2 + $0x468] sm:$0xff]
      %v1174 = vld [vmem:[#allocation2 + $0x470] sm:$0xff]
      %v1175 = vld [vmem:[#allocation2 + $0x478] sm:$0xff]
      %v1176 = vld [vmem:[#allocation2 + $0x480] sm:$0xff]
      %v1177 = vld [vmem:[#allocation2 + $0x488] sm:$0xff]
      %v1178 = vld [vmem:[#allocation2 + $0x490] sm:$0xff]
      %v1179 = vld [vmem:[#allocation2 + $0x498] sm:$0xff]
      %v1180 = vld [vmem:[#allocation2 + $0x4a0] sm:$0xff]
      %v1181 = vld [vmem:[#allocation2 + $0x4a8] sm:$0xff]
      %v1182 = vld [vmem:[#allocation2 + $0x4b0] sm:$0xff]
      %v1183 = vld [vmem:[#allocation2 + $0x4b8] sm:$0xff]
      %v1184 = vld [vmem:[#allocation2 + $0x4c0] sm:$0xff]
      %v1185 = vld [vmem:[#allocation2 + $0x4c8] sm:$0xff]
      %v1186 = vld [vmem:[#allocation2 + $0x4d0] sm:$0xff]
      %v1187 = vld [vmem:[#allocation2 + $0x4d8] sm:$0xff]
      %v1188 = vld [vmem:[#allocation2 + $0x4e0] sm:$0xff]
      %v1189 = vld [vmem:[#allocation2 + $0x4e8] sm:$0xff]
      %v1190 = vld [vmem:[#allocation2 + $0x4f0] sm:$0xff]
      %v1191 = vld [vmem:[#allocation2 + $0x4f8] sm:$0xff]
      %v1192 = vld [vmem:[#allocation2 + $0x500] sm:$0xff]
      %v1193 = vld [vmem:[#allocation2 + $0x508] sm:$0xff]
      %v1194 = vld [vmem:[#allocation2 + $0x510] sm:$0xff]
      %v1195 = vld [vmem:[#allocation2 + $0x518] sm:$0xff]
      %v1196 = vld [vmem:[#allocation2 + $0x520] sm:$0xff]
      %v1197 = vld [vmem:[#allocation2 + $0x528] sm:$0xff]
      %v1198 = vld [vmem:[#allocation2 + $0x530] sm:$0xff]
      %v1199 = vld [vmem:[#allocation2 + $0x538] sm:$0xff]
      %v1200 = vld [vmem:[#allocation2 + $0x540] sm:$0xff]
      %v1201 = vld [vmem:[#allocation2 + $0x548] sm:$0xff]
      %v1202 = vld [vmem:[#allocation2 + $0x550] sm:$0xff]
      %v1203 = vld [vmem:[#allocation2 + $0x558] sm:$0xff]
      %v1204 = vld [vmem:[#allocation2 + $0x560] sm:$0xff]
      %v1205 = vld [vmem:[#allocation2 + $0x568] sm:$0xff]
      %v1206 = vld [vmem:[#allocation2 + $0x570] sm:$0xff]
      %v1207 = vld [vmem:[#allocation2 + $0x578] sm:$0xff]
      %v1208 = vld [vmem:[#allocation2 + $0x580] sm:$0xff]
      %v1209 = vld [vmem:[#allocation2 + $0x588] sm:$0xff]
      %v1210 = vld [vmem:[#allocation2 + $0x590] sm:$0xff]
      %v1211 = vld [vmem:[#allocation2 + $0x598] sm:$0xff]
      %v1212 = vld [vmem:[#allocation2 + $0x5a0] sm:$0xff]
      %v1213 = vld [vmem:[#allocation2 + $0x5a8] sm:$0xff]
      %v1214 = vld [vmem:[#allocation2 + $0x5b0] sm:$0xff]
      %v1215 = vld [vmem:[#allocation2 + $0x5b8] sm:$0xff]
      %v1216 = vld [vmem:[#allocation2 + $0x5c0] sm:$0xff]
      %v1217 = vld [vmem:[#allocation2 + $0x5c8] sm:$0xff]
      %v1218 = vld [vmem:[#allocation2 + $0x5d0] sm:$0xff]
      %v1219 = vld [vmem:[#allocation2 + $0x5d8] sm:$0xff]
      %v1220 = vld [vmem:[#allocation2 + $0x5e0] sm:$0xff]
      %v1221 = vld [vmem:[#allocation2 + $0x5e8] sm:$0xff]
      %v1222 = vld [vmem:[#allocation2 + $0x5f0] sm:$0xff]
      %v1223 = vld [vmem:[#allocation2 + $0x5f8] sm:$0xff]
      %v1224 = vld [vmem:[#allocation2 + $0x600] sm:$0xff]
      %v1225 = vld [vmem:[#allocation2 + $0x608] sm:$0xff]
      %v1226 = vld [vmem:[#allocation2 + $0x610] sm:$0xff]
      %v1227 = vld [vmem:[#allocation2 + $0x618] sm:$0xff]
      %v1228 = vld [vmem:[#allocation2 + $0x620] sm:$0xff]
      %v1229 = vld [vmem:[#allocation2 + $0x628] sm:$0xff]
      %v1230 = vld [vmem:[#allocation2 + $0x630] sm:$0xff]
      %v1231 = vld [vmem:[#allocation2 + $0x638] sm:$0xff]
      %v1232 = vld [vmem:[#allocation2 + $0x640] sm:$0xff]
      %v1233 = vld [vmem:[#allocation2 + $0x648] sm:$0xff]
      %v1234 = vld [vmem:[#allocation2 + $0x650] sm:$0xff]
      %v1235 = vld [vmem:[#allocation2 + $0x658] sm:$0xff]
      %v1236 = vld [vmem:[#allocation2 + $0x660] sm:$0xff]
      %v1237 = vld [vmem:[#allocation2 + $0x668] sm:$0xff]
      %v1238 = vld [vmem:[#allocation2 + $0x670] sm:$0xff]
      %v1239 = vld [vmem:[#allocation2 + $0x678] sm:$0xff]
      %v1240 = vld [vmem:[#allocation2 + $0x680] sm:$0xff]
      %v1241 = vld [vmem:[#allocation2 + $0x688] sm:$0xff]
      %v1242 = vld [vmem:[#allocation2 + $0x690] sm:$0xff]
      %v1243 = vld [vmem:[#allocation2 + $0x698] sm:$0xff]
      %v1244 = vld [vmem:[#allocation2 + $0x6a0] sm:$0xff]
      %v1245 = vld [vmem:[#allocation2 + $0x6a8] sm:$0xff]
      %v1246 = vld [vmem:[#allocation2 + $0x6b0] sm:$0xff]
      %v1247 = vld [vmem:[#allocation2 + $0x6b8] sm:$0xff]
      %v1248 = vld [vmem:[#allocation2 + $0x6c0] sm:$0xff]
      %v1249 = vld [vmem:[#allocation2 + $0x6c8] sm:$0xff]
      %v1250 = vld [vmem:[#allocation2 + $0x6d0] sm:$0xff]
      %v1251 = vld [vmem:[#allocation2 + $0x6d8] sm:$0xff]
      %v1252 = vld [vmem:[#allocation2 + $0x6e0] sm:$0xff]
      %v1253 = vld [vmem:[#allocation2 + $0x6e8] sm:$0xff]
      %v1254 = vld [vmem:[#allocation2 + $0x6f0] sm:$0xff]
      %v1255 = vld [vmem:[#allocation2 + $0x6f8] sm:$0xff]
      %v1256 = vld [vmem:[#allocation2 + $0x700] sm:$0xff]
      %v1257 = vld [vmem:[#allocation2 + $0x708] sm:$0xff]
      %v1258 = vld [vmem:[#allocation2 + $0x710] sm:$0xff]
      %v1259 = vld [vmem:[#allocation2 + $0x718] sm:$0xff]
      %v1260 = vld [vmem:[#allocation2 + $0x720] sm:$0xff]
      %v1261 = vld [vmem:[#allocation2 + $0x728] sm:$0xff]
      %v1262 = vld [vmem:[#allocation2 + $0x730] sm:$0xff]
      %v1263 = vld [vmem:[#allocation2 + $0x738] sm:$0xff]
      %v1264 = vld [vmem:[#allocation2 + $0x740] sm:$0xff]
      %v1265 = vld [vmem:[#allocation2 + $0x748] sm:$0xff]
      %v1266 = vld [vmem:[#allocation2 + $0x750] sm:$0xff]
      %v1267 = vld [vmem:[#allocation2 + $0x758] sm:$0xff]
      %v1268 = vld [vmem:[#allocation2 + $0x760] sm:$0xff]
      %v1269 = vld [vmem:[#allocation2 + $0x768] sm:$0xff]
      %v1270 = vld [vmem:[#allocation2 + $0x770] sm:$0xff]
      %v1271 = vld [vmem:[#allocation2 + $0x778] sm:$0xff]
      %v1272 = vld [vmem:[#allocation2 + $0x780] sm:$0xff]
      %v1273 = vld [vmem:[#allocation2 + $0x788] sm:$0xff]
      %v1274 = vld [vmem:[#allocation2 + $0x790] sm:$0xff]
      %v1275 = vld [vmem:[#allocation2 + $0x798] sm:$0xff]
      %v1276 = vld [vmem:[#allocation2 + $0x7a0] sm:$0xff]
      %v1277 = vld [vmem:[#allocation2 + $0x7a8] sm:$0xff]
      %v1278 = vld [vmem:[#allocation2 + $0x7b0] sm:$0xff]
      %v1279 = vld [vmem:[#allocation2 + $0x7b8] sm:$0xff]
      %v1280 = vld [vmem:[#allocation2 + $0x7c0] sm:$0xff]
      %v1281 = vld [vmem:[#allocation2 + $0x7c8] sm:$0xff]
      %v1282 = vld [vmem:[#allocation2 + $0x7d0] sm:$0xff]
      %v1283 = vld [vmem:[#allocation2 + $0x7d8] sm:$0xff]
      %v1284 = vld [vmem:[#allocation2 + $0x7e0] sm:$0xff]
      %v1285 = vld [vmem:[#allocation2 + $0x7e8] sm:$0xff]
      %v1286 = vld [vmem:[#allocation2 + $0x7f0] sm:$0xff]
      %v1287 = vld [vmem:[#allocation2 + $0x7f8] sm:$0xff]
      %v1288 = vld [vmem:[#allocation2 + $0x800] sm:$0xff]
      %v1289 = vld [vmem:[#allocation2 + $0x808] sm:$0xff]
      %v1290 = vld [vmem:[#allocation2 + $0x810] sm:$0xff]
      %v1291 = vld [vmem:[#allocation2 + $0x818] sm:$0xff]
      %v1292 = vld [vmem:[#allocation2 + $0x820] sm:$0xff]
      %v1293 = vld [vmem:[#allocation2 + $0x828] sm:$0xff]
      %v1294 = vld [vmem:[#allocation2 + $0x830] sm:$0xff]
      %v1295 = vld [vmem:[#allocation2 + $0x838] sm:$0xff]
      %v1296 = vld [vmem:[#allocation2 + $0x840] sm:$0xff]
      %v1297 = vld [vmem:[#allocation2 + $0x848] sm:$0xff]
      %v1298 = vld [vmem:[#allocation2 + $0x850] sm:$0xff]
      %v1299 = vld [vmem:[#allocation2 + $0x858] sm:$0xff]
      %v1300 = vld [vmem:[#allocation2 + $0x860] sm:$0xff]
      %v1301 = vld [vmem:[#allocation2 + $0x868] sm:$0xff]
      %v1302 = vld [vmem:[#allocation2 + $0x870] sm:$0xff]
      %v1303 = vld [vmem:[#allocation2 + $0x878] sm:$0xff]
      %v1304 = vld [vmem:[#allocation2 + $0x880] sm:$0xff]
      %v1305 = vld [vmem:[#allocation2 + $0x888] sm:$0xff]
      %v1306 = vld [vmem:[#allocation2 + $0x890] sm:$0xff]
      %v1307 = vld [vmem:[#allocation2 + $0x898] sm:$0xff]
      %v1308 = vld [vmem:[#allocation2 + $0x8a0] sm:$0xff]
      %v1309 = vld [vmem:[#allocation2 + $0x8a8] sm:$0xff]
      %v1310 = vld [vmem:[#allocation2 + $0x8b0] sm:$0xff]
      %v1311 = vld [vmem:[#allocation2 + $0x8b8] sm:$0xff]
      %v1312 = vld [vmem:[#allocation2 + $0x8c0] sm:$0xff]
      %v1313 = vld [vmem:[#allocation2 + $0x8c8] sm:$0xff]
      %v1314 = vld [vmem:[#allocation2 + $0x8d0] sm:$0xff]
      %v1315 = vld [vmem:[#allocation2 + $0x8d8] sm:$0xff]
      %v1316 = vld [vmem:[#allocation2 + $0x8e0] sm:$0xff]
      %v1317 = vld [vmem:[#allocation2 + $0x8e8] sm:$0xff]
      %v1318 = vld [vmem:[#allocation2 + $0x8f0] sm:$0xff]
      %v1319 = vld [vmem:[#allocation2 + $0x8f8] sm:$0xff]
      %v1320 = vpack.c.bf16 %v1041, %v1032
      %v1321 = vpack.c.bf16 %v1042, %v1033
      %v1322 = vpack.c.bf16 %v1043, %v1034
      %v1323 = vpack.c.bf16 %v1044, %v1035
      %v1324 = vpack.c.bf16 %v1045, %v1036
      %v1325 = vpack.c.bf16 %v1046, %v1037
      %v1326 = vpack.c.bf16 %v1047, %v1038
      %v1327 = vpack.c.bf16 %v1048, %v1039
      %v1328 = vpack.c.bf16 %v1049, %v1040
      %v1329 = vpack.c.bf16 %v1059, %v1050
      %v1330 = vpack.c.bf16 %v1060, %v1051
      %v1331 = vpack.c.bf16 %v1061, %v1052
      %v1332 = vpack.c.bf16 %v1062, %v1053
      %v1333 = vpack.c.bf16 %v1063, %v1054
      %v1334 = vpack.c.bf16 %v1064, %v1055
      %v1335 = vpack.c.bf16 %v1065, %v1056
      %v1336 = vpack.c.bf16 %v1066, %v1057
      %v1337 = vpack.c.bf16 %v1067, %v1058
      %v1338 = vpack.c.bf16 %v1077, %v1068
      %v1339 = vpack.c.bf16 %v1078, %v1069
      %v1340 = vpack.c.bf16 %v1079, %v1070
      %v1341 = vpack.c.bf16 %v1080, %v1071
      %v1342 = vpack.c.bf16 %v1081, %v1072
      %v1343 = vpack.c.bf16 %v1082, %v1073
      %v1344 = vpack.c.bf16 %v1083, %v1074
      %v1345 = vpack.c.bf16 %v1084, %v1075
      %v1346 = vpack.c.bf16 %v1085, %v1076
      %v1347 = vpack.c.bf16 %v1095, %v1086
      %v1348 = vpack.c.bf16 %v1096, %v1087
      %v1349 = vpack.c.bf16 %v1097, %v1088
      %v1350 = vpack.c.bf16 %v1098, %v1089
      %v1351 = vpack.c.bf16 %v1099, %v1090
      %v1352 = vpack.c.bf16 %v1100, %v1091
      %v1353 = vpack.c.bf16 %v1101, %v1092
      %v1354 = vpack.c.bf16 %v1102, %v1093
      %v1355 = vpack.c.bf16 %v1103, %v1094
      %v1356 = vpack.c.bf16 %v1113, %v1104
      %v1357 = vpack.c.bf16 %v1114, %v1105
      %v1358 = vpack.c.bf16 %v1115, %v1106
      %v1359 = vpack.c.bf16 %v1116, %v1107
      %v1360 = vpack.c.bf16 %v1117, %v1108
      %v1361 = vpack.c.bf16 %v1118, %v1109
      %v1362 = vpack.c.bf16 %v1119, %v1110
      %v1363 = vpack.c.bf16 %v1120, %v1111
      %v1364 = vpack.c.bf16 %v1121, %v1112
      %v1365 = vpack.c.bf16 %v1131, %v1122
      %v1366 = vpack.c.bf16 %v1132, %v1123
      %v1367 = vpack.c.bf16 %v1133, %v1124
      %v1368 = vpack.c.bf16 %v1134, %v1125
      %v1369 = vpack.c.bf16 %v1135, %v1126
      %v1370 = vpack.c.bf16 %v1136, %v1127
      %v1371 = vpack.c.bf16 %v1137, %v1128
      %v1372 = vpack.c.bf16 %v1138, %v1129
      %v1373 = vpack.c.bf16 %v1139, %v1130
      %v1374 = vpack.c.bf16 %v1149, %v1140
      %v1375 = vpack.c.bf16 %v1150, %v1141
      %v1376 = vpack.c.bf16 %v1151, %v1142
      %v1377 = vpack.c.bf16 %v1152, %v1143
      %v1378 = vpack.c.bf16 %v1153, %v1144
      %v1379 = vpack.c.bf16 %v1154, %v1145
      %v1380 = vpack.c.bf16 %v1155, %v1146
      %v1381 = vpack.c.bf16 %v1156, %v1147
      %v1382 = vpack.c.bf16 %v1157, %v1148
      %v1383 = vpack.c.bf16 %v1167, %v1158
      %v1384 = vpack.c.bf16 %v1168, %v1159
      %v1385 = vpack.c.bf16 %v1169, %v1160
      %v1386 = vpack.c.bf16 %v1170, %v1161
      %v1387 = vpack.c.bf16 %v1171, %v1162
      %v1388 = vpack.c.bf16 %v1172, %v1163
      %v1389 = vpack.c.bf16 %v1173, %v1164
      %v1390 = vpack.c.bf16 %v1174, %v1165
      %v1391 = vpack.c.bf16 %v1175, %v1166
      %v1392 = vpack.c.bf16 %v1185, %v1176
      %v1393 = vpack.c.bf16 %v1186, %v1177
      %v1394 = vpack.c.bf16 %v1187, %v1178
      %v1395 = vpack.c.bf16 %v1188, %v1179
      %v1396 = vpack.c.bf16 %v1189, %v1180
      %v1397 = vpack.c.bf16 %v1190, %v1181
      %v1398 = vpack.c.bf16 %v1191, %v1182
      %v1399 = vpack.c.bf16 %v1192, %v1183
      %v1400 = vpack.c.bf16 %v1193, %v1184
      %v1401 = vpack.c.bf16 %v1203, %v1194
      %v1402 = vpack.c.bf16 %v1204, %v1195
      %v1403 = vpack.c.bf16 %v1205, %v1196
      %v1404 = vpack.c.bf16 %v1206, %v1197
      %v1405 = vpack.c.bf16 %v1207, %v1198
      %v1406 = vpack.c.bf16 %v1208, %v1199
      %v1407 = vpack.c.bf16 %v1209, %v1200
      %v1408 = vpack.c.bf16 %v1210, %v1201
      %v1409 = vpack.c.bf16 %v1211, %v1202
      %v1410 = vpack.c.bf16 %v1221, %v1212
      %v1411 = vpack.c.bf16 %v1222, %v1213
      %v1412 = vpack.c.bf16 %v1223, %v1214
      %v1413 = vpack.c.bf16 %v1224, %v1215
      %v1414 = vpack.c.bf16 %v1225, %v1216
      %v1415 = vpack.c.bf16 %v1226, %v1217
      %v1416 = vpack.c.bf16 %v1227, %v1218
      %v1417 = vpack.c.bf16 %v1228, %v1219
      %v1418 = vpack.c.bf16 %v1229, %v1220
      %v1419 = vpack.c.bf16 %v1239, %v1230
      %v1420 = vpack.c.bf16 %v1240, %v1231
      %v1421 = vpack.c.bf16 %v1241, %v1232
      %v1422 = vpack.c.bf16 %v1242, %v1233
      %v1423 = vpack.c.bf16 %v1243, %v1234
      %v1424 = vpack.c.bf16 %v1244, %v1235
      %v1425 = vpack.c.bf16 %v1245, %v1236
      %v1426 = vpack.c.bf16 %v1246, %v1237
      %v1427 = vpack.c.bf16 %v1247, %v1238
      %v1428 = vpack.c.bf16 %v1257, %v1248
      %v1429 = vpack.c.bf16 %v1258, %v1249
      %v1430 = vpack.c.bf16 %v1259, %v1250
      %v1431 = vpack.c.bf16 %v1260, %v1251
      %v1432 = vpack.c.bf16 %v1261, %v1252
      %v1433 = vpack.c.bf16 %v1262, %v1253
      %v1434 = vpack.c.bf16 %v1263, %v1254
      %v1435 = vpack.c.bf16 %v1264, %v1255
      %v1436 = vpack.c.bf16 %v1265, %v1256
      %v1437 = vpack.c.bf16 %v1275, %v1266
      %v1438 = vpack.c.bf16 %v1276, %v1267
      %v1439 = vpack.c.bf16 %v1277, %v1268
      %v1440 = vpack.c.bf16 %v1278, %v1269
      %v1441 = vpack.c.bf16 %v1279, %v1270
      %v1442 = vpack.c.bf16 %v1280, %v1271
      %v1443 = vpack.c.bf16 %v1281, %v1272
      %v1444 = vpack.c.bf16 %v1282, %v1273
      %v1445 = vpack.c.bf16 %v1283, %v1274
      %v1446 = vpack.c.bf16 %v1293, %v1284
      %v1447 = vpack.c.bf16 %v1294, %v1285
      %v1448 = vpack.c.bf16 %v1295, %v1286
      %v1449 = vpack.c.bf16 %v1296, %v1287
      %v1450 = vpack.c.bf16 %v1297, %v1288
      %v1451 = vpack.c.bf16 %v1298, %v1289
      %v1452 = vpack.c.bf16 %v1299, %v1290
      %v1453 = vpack.c.bf16 %v1300, %v1291
      %v1454 = vpack.c.bf16 %v1301, %v1292
      %v1455 = vpack.c.bf16 %v1311, %v1302
      %v1456 = vpack.c.bf16 %v1312, %v1303
      %v1457 = vpack.c.bf16 %v1313, %v1304
      %v1458 = vpack.c.bf16 %v1314, %v1305
      %v1459 = vpack.c.bf16 %v1315, %v1306
      %v1460 = vpack.c.bf16 %v1316, %v1307
      %v1461 = vpack.c.bf16 %v1317, %v1308
      %v1462 = vpack.c.bf16 %v1318, %v1309
      %v1463 = vpack.c.bf16 %v1319, %v1310
      %v1464 = vld [vmem:[%s2] sm:$0xf]
      %v1465 = vld [vmem:[%s2 + $0x4] sm:$0xf]
      %v1466 = vld [vmem:[%s2 + $0x8] sm:$0xf]
      %v1467 = vld [vmem:[%s2 + $0xc] sm:$0xf]
      %v1468 = vld [vmem:[%s2 + $0x10] sm:$0xf]
      %v1469 = vld [vmem:[%s2 + $0x14] sm:$0xf]
      %v1470 = vld [vmem:[%s2 + $0x18] sm:$0xf]
      %v1471 = vld [vmem:[%s2 + $0x1c] sm:$0xf]
      %v1472 = vld [vmem:[%s2 + $0x20] sm:$0xf]
      %v1473 = vld [vmem:[%s2 + $0x24] sm:$0xf]
      %v1474 = vld [vmem:[%s2 + $0x28] sm:$0xf]
      %v1475 = vld [vmem:[%s2 + $0x2c] sm:$0xf]
      %v1476 = vld [vmem:[%s2 + $0x30] sm:$0xf]
      %v1477 = vld [vmem:[%s2 + $0x34] sm:$0xf]
      %v1478 = vld [vmem:[%s2 + $0x38] sm:$0xf]
      %v1479 = vld [vmem:[%s2 + $0x3c] sm:$0xf]
      %v1480 = vld [vmem:[%s2 + $0x40] sm:$0xf]
      %v1481 = vld [vmem:[%s2 + $0x44] sm:$0xf]
      %v1482 = vld [vmem:[%s2 + $0x48] sm:$0xf]
      %v1483 = vld [vmem:[%s2 + $0x4c] sm:$0xf]
      %v1484 = vld [vmem:[%s2 + $0x50] sm:$0xf]
      %v1485 = vld [vmem:[%s2 + $0x54] sm:$0xf]
      %v1486 = vld [vmem:[%s2 + $0x58] sm:$0xf]
      %v1487 = vld [vmem:[%s2 + $0x5c] sm:$0xf]
      %v1488 = vld [vmem:[%s2 + $0x60] sm:$0xf]
      %v1489 = vld [vmem:[%s2 + $0x64] sm:$0xf]
      %v1490 = vld [vmem:[%s2 + $0x68] sm:$0xf]
      %v1491 = vld [vmem:[%s2 + $0x6c] sm:$0xf]
      %v1492 = vld [vmem:[%s2 + $0x70] sm:$0xf]
      %v1493 = vld [vmem:[%s2 + $0x74] sm:$0xf]
      %v1494 = vld [vmem:[%s2 + $0x78] sm:$0xf]
      %v1495 = vld [vmem:[%s2 + $0x7c] sm:$0xf]
      %v1496 = vld [vmem:[%s2 + $0x80] sm:$0xf]
      %v1497 = vld [vmem:[%s2 + $0x84] sm:$0xf]
      %v1498 = vld [vmem:[%s2 + $0x88] sm:$0xf]
      %v1499 = vld [vmem:[%s2 + $0x8c] sm:$0xf]
      %v1500 = vld [vmem:[%s2 + $0x90] sm:$0xf]
      %v1501 = vld [vmem:[%s2 + $0x94] sm:$0xf]
      %v1502 = vld [vmem:[%s2 + $0x98] sm:$0xf]
      %v1503 = vld [vmem:[%s2 + $0x9c] sm:$0xf]
      %v1504 = vld [vmem:[%s2 + $0xa0] sm:$0xf]
      %v1505 = vld [vmem:[%s2 + $0xa4] sm:$0xf]
      %v1506 = vld [vmem:[%s2 + $0xa8] sm:$0xf]
      %v1507 = vld [vmem:[%s2 + $0xac] sm:$0xf]
      %v1508 = vld [vmem:[%s2 + $0xb0] sm:$0xf]
      %v1509 = vld [vmem:[%s2 + $0xb4] sm:$0xf]
      %v1510 = vld [vmem:[%s2 + $0xb8] sm:$0xf]
      %v1511 = vld [vmem:[%s2 + $0xbc] sm:$0xf]
      %v1512 = vld [vmem:[%s2 + $0xc0] sm:$0xf]
      %v1513 = vld [vmem:[%s2 + $0xc4] sm:$0xf]
      %v1514 = vld [vmem:[%s2 + $0xc8] sm:$0xf]
      %v1515 = vld [vmem:[%s2 + $0xcc] sm:$0xf]
      %v1516 = vld [vmem:[%s2 + $0xd0] sm:$0xf]
      %v1517 = vld [vmem:[%s2 + $0xd4] sm:$0xf]
      %v1518 = vld [vmem:[%s2 + $0xd8] sm:$0xf]
      %v1519 = vld [vmem:[%s2 + $0xdc] sm:$0xf]
      %v1520 = vld [vmem:[%s2 + $0xe0] sm:$0xf]
      %v1521 = vld [vmem:[%s2 + $0xe4] sm:$0xf]
      %v1522 = vld [vmem:[%s2 + $0xe8] sm:$0xf]
      %v1523 = vld [vmem:[%s2 + $0xec] sm:$0xf]
      %v1524 = vld [vmem:[%s2 + $0xf0] sm:$0xf]
      %v1525 = vld [vmem:[%s2 + $0xf4] sm:$0xf]
      %v1526 = vld [vmem:[%s2 + $0xf8] sm:$0xf]
      %v1527 = vld [vmem:[%s2 + $0xfc] sm:$0xf]
      %v1528 = vld [vmem:[%s2 + $0x100] sm:$0xf]
      %v1529 = vld [vmem:[%s2 + $0x104] sm:$0xf]
      %v1530 = vld [vmem:[%s2 + $0x108] sm:$0xf]
      %v1531 = vld [vmem:[%s2 + $0x10c] sm:$0xf]
      %v1532 = vld [vmem:[%s2 + $0x110] sm:$0xf]
      %v1533 = vld [vmem:[%s2 + $0x114] sm:$0xf]
      %v1534 = vld [vmem:[%s2 + $0x118] sm:$0xf]
      %v1535 = vld [vmem:[%s2 + $0x11c] sm:$0xf]
      %v1536 = vld [vmem:[%s2 + $0x120] sm:$0xf]
      %v1537 = vld [vmem:[%s2 + $0x124] sm:$0xf]
      %v1538 = vld [vmem:[%s2 + $0x128] sm:$0xf]
      %v1539 = vld [vmem:[%s2 + $0x12c] sm:$0xf]
      %v1540 = vld [vmem:[%s2 + $0x130] sm:$0xf]
      %v1541 = vld [vmem:[%s2 + $0x134] sm:$0xf]
      %v1542 = vld [vmem:[%s2 + $0x138] sm:$0xf]
      %v1543 = vld [vmem:[%s2 + $0x13c] sm:$0xf]
      %v1544 = vld [vmem:[%s2 + $0x140] sm:$0xf]
      %v1545 = vld [vmem:[%s2 + $0x144] sm:$0xf]
      %v1546 = vld [vmem:[%s2 + $0x148] sm:$0xf]
      %v1547 = vld [vmem:[%s2 + $0x14c] sm:$0xf]
      %v1548 = vld [vmem:[%s2 + $0x150] sm:$0xf]
      %v1549 = vld [vmem:[%s2 + $0x154] sm:$0xf]
      %v1550 = vld [vmem:[%s2 + $0x158] sm:$0xf]
      %v1551 = vld [vmem:[%s2 + $0x15c] sm:$0xf]
      %v1552 = vld [vmem:[%s2 + $0x160] sm:$0xf]
      %v1553 = vld [vmem:[%s2 + $0x164] sm:$0xf]
      %v1554 = vld [vmem:[%s2 + $0x168] sm:$0xf]
      %v1555 = vld [vmem:[%s2 + $0x16c] sm:$0xf]
      %v1556 = vld [vmem:[%s2 + $0x170] sm:$0xf]
      %v1557 = vld [vmem:[%s2 + $0x174] sm:$0xf]
      %v1558 = vld [vmem:[%s2 + $0x178] sm:$0xf]
      %v1559 = vld [vmem:[%s2 + $0x17c] sm:$0xf]
      %v1560 = vld [vmem:[%s2 + $0x180] sm:$0xf]
      %v1561 = vld [vmem:[%s2 + $0x184] sm:$0xf]
      %v1562 = vld [vmem:[%s2 + $0x188] sm:$0xf]
      %v1563 = vld [vmem:[%s2 + $0x18c] sm:$0xf]
      %v1564 = vld [vmem:[%s2 + $0x190] sm:$0xf]
      %v1565 = vld [vmem:[%s2 + $0x194] sm:$0xf]
      %v1566 = vld [vmem:[%s2 + $0x198] sm:$0xf]
      %v1567 = vld [vmem:[%s2 + $0x19c] sm:$0xf]
      %v1568 = vld [vmem:[%s2 + $0x1a0] sm:$0xf]
      %v1569 = vld [vmem:[%s2 + $0x1a4] sm:$0xf]
      %v1570 = vld [vmem:[%s2 + $0x1a8] sm:$0xf]
      %v1571 = vld [vmem:[%s2 + $0x1ac] sm:$0xf]
      %v1572 = vld [vmem:[%s2 + $0x1b0] sm:$0xf]
      %v1573 = vld [vmem:[%s2 + $0x1b4] sm:$0xf]
      %v1574 = vld [vmem:[%s2 + $0x1b8] sm:$0xf]
      %v1575 = vld [vmem:[%s2 + $0x1bc] sm:$0xf]
      %v1576 = vld [vmem:[%s2 + $0x1c0] sm:$0xf]
      %v1577 = vld [vmem:[%s2 + $0x1c4] sm:$0xf]
      %v1578 = vld [vmem:[%s2 + $0x1c8] sm:$0xf]
      %v1579 = vld [vmem:[%s2 + $0x1cc] sm:$0xf]
      %v1580 = vld [vmem:[%s2 + $0x1d0] sm:$0xf]
      %v1581 = vld [vmem:[%s2 + $0x1d4] sm:$0xf]
      %v1582 = vld [vmem:[%s2 + $0x1d8] sm:$0xf]
      %v1583 = vld [vmem:[%s2 + $0x1dc] sm:$0xf]
      %v1584 = vld [vmem:[%s2 + $0x1e0] sm:$0xf]
      %v1585 = vld [vmem:[%s2 + $0x1e4] sm:$0xf]
      %v1586 = vld [vmem:[%s2 + $0x1e8] sm:$0xf]
      %v1587 = vld [vmem:[%s2 + $0x1ec] sm:$0xf]
      %v1588 = vld [vmem:[%s2 + $0x1f0] sm:$0xf]
      %v1589 = vld [vmem:[%s2 + $0x1f4] sm:$0xf]
      %v1590 = vld [vmem:[%s2 + $0x1f8] sm:$0xf]
      %v1591 = vld [vmem:[%s2 + $0x1fc] sm:$0xf]
      %v1592 = vld [vmem:[%s2 + $0x200] sm:$0xf]
      %v1593 = vld [vmem:[%s2 + $0x204] sm:$0xf]
      %v1594 = vld [vmem:[%s2 + $0x208] sm:$0xf]
      %v1595 = vld [vmem:[%s2 + $0x20c] sm:$0xf]
      %v1596 = vld [vmem:[%s2 + $0x210] sm:$0xf]
      %v1597 = vld [vmem:[%s2 + $0x214] sm:$0xf]
      %v1598 = vld [vmem:[%s2 + $0x218] sm:$0xf]
      %v1599 = vld [vmem:[%s2 + $0x21c] sm:$0xf]
      %v1600 = vld [vmem:[%s2 + $0x220] sm:$0xf]
      %v1601 = vld [vmem:[%s2 + $0x224] sm:$0xf]
      %v1602 = vld [vmem:[%s2 + $0x228] sm:$0xf]
      %v1603 = vld [vmem:[%s2 + $0x22c] sm:$0xf]
      %v1604 = vld [vmem:[%s2 + $0x230] sm:$0xf]
      %v1605 = vld [vmem:[%s2 + $0x234] sm:$0xf]
      %v1606 = vld [vmem:[%s2 + $0x238] sm:$0xf]
      %v1607 = vld [vmem:[%s2 + $0x23c] sm:$0xf]
      %v1752 = vunpack.c.l.b16 %v1464
      %v1753 = vunpack.c.l.b16 %v1465
      %v1754 = vunpack.c.l.b16 %v1466
      %v1755 = vunpack.c.l.b16 %v1467
      %v1756 = vunpack.c.l.b16 %v1468
      %v1757 = vunpack.c.l.b16 %v1469
      %v1758 = vunpack.c.l.b16 %v1470
      %v1759 = vunpack.c.l.b16 %v1471
      %v1760 = vunpack.c.l.b16 %v1472
      %v1761 = vunpack.c.l.b16 %v1473
      %v1762 = vunpack.c.l.b16 %v1474
      %v1763 = vunpack.c.l.b16 %v1475
      %v1764 = vunpack.c.l.b16 %v1476
      %v1765 = vunpack.c.l.b16 %v1477
      %v1766 = vunpack.c.l.b16 %v1478
      %v1767 = vunpack.c.l.b16 %v1479
      %v1768 = vunpack.c.l.b16 %v1480
      %v1769 = vunpack.c.l.b16 %v1481
      %v1770 = vunpack.c.l.b16 %v1482
      %v1771 = vunpack.c.l.b16 %v1483
      %v1772 = vunpack.c.l.b16 %v1484
      %v1773 = vunpack.c.l.b16 %v1485
      %v1774 = vunpack.c.l.b16 %v1486
      %v1775 = vunpack.c.l.b16 %v1487
      %v1776 = vunpack.c.l.b16 %v1488
      %v1777 = vunpack.c.l.b16 %v1489
      %v1778 = vunpack.c.l.b16 %v1490
      %v1779 = vunpack.c.l.b16 %v1491
      %v1780 = vunpack.c.l.b16 %v1492
      %v1781 = vunpack.c.l.b16 %v1493
      %v1782 = vunpack.c.l.b16 %v1494
      %v1783 = vunpack.c.l.b16 %v1495
      %v1784 = vunpack.c.l.b16 %v1496
      %v1785 = vunpack.c.l.b16 %v1497
      %v1786 = vunpack.c.l.b16 %v1498
      %v1787 = vunpack.c.l.b16 %v1499
      %v1788 = vunpack.c.l.b16 %v1500
      %v1789 = vunpack.c.l.b16 %v1501
      %v1790 = vunpack.c.l.b16 %v1502
      %v1791 = vunpack.c.l.b16 %v1503
      %v1792 = vunpack.c.l.b16 %v1504
      %v1793 = vunpack.c.l.b16 %v1505
      %v1794 = vunpack.c.l.b16 %v1506
      %v1795 = vunpack.c.l.b16 %v1507
      %v1796 = vunpack.c.l.b16 %v1508
      %v1797 = vunpack.c.l.b16 %v1509
      %v1798 = vunpack.c.l.b16 %v1510
      %v1799 = vunpack.c.l.b16 %v1511
      %v1800 = vunpack.c.l.b16 %v1512
      %v1801 = vunpack.c.l.b16 %v1513
      %v1802 = vunpack.c.l.b16 %v1514
      %v1803 = vunpack.c.l.b16 %v1515
      %v1804 = vunpack.c.l.b16 %v1516
      %v1805 = vunpack.c.l.b16 %v1517
      %v1806 = vunpack.c.l.b16 %v1518
      %v1807 = vunpack.c.l.b16 %v1519
      %v1808 = vunpack.c.l.b16 %v1520
      %v1809 = vunpack.c.l.b16 %v1521
      %v1810 = vunpack.c.l.b16 %v1522
      %v1811 = vunpack.c.l.b16 %v1523
      %v1812 = vunpack.c.l.b16 %v1524
      %v1813 = vunpack.c.l.b16 %v1525
      %v1814 = vunpack.c.l.b16 %v1526
      %v1815 = vunpack.c.l.b16 %v1527
      %v1816 = vunpack.c.l.b16 %v1528
      %v1817 = vunpack.c.l.b16 %v1529
      %v1818 = vunpack.c.l.b16 %v1530
      %v1819 = vunpack.c.l.b16 %v1531
      %v1820 = vunpack.c.l.b16 %v1532
      %v1821 = vunpack.c.l.b16 %v1533
      %v1822 = vunpack.c.l.b16 %v1534
      %v1823 = vunpack.c.l.b16 %v1535
      %v1824 = vunpack.c.l.b16 %v1536
      %v1825 = vunpack.c.l.b16 %v1537
      %v1826 = vunpack.c.l.b16 %v1538
      %v1827 = vunpack.c.l.b16 %v1539
      %v1828 = vunpack.c.l.b16 %v1540
      %v1829 = vunpack.c.l.b16 %v1541
      %v1830 = vunpack.c.l.b16 %v1542
      %v1831 = vunpack.c.l.b16 %v1543
      %v1832 = vunpack.c.l.b16 %v1544
      %v1833 = vunpack.c.l.b16 %v1545
      %v1834 = vunpack.c.l.b16 %v1546
      %v1835 = vunpack.c.l.b16 %v1547
      %v1836 = vunpack.c.l.b16 %v1548
      %v1837 = vunpack.c.l.b16 %v1549
      %v1838 = vunpack.c.l.b16 %v1550
      %v1839 = vunpack.c.l.b16 %v1551
      %v1840 = vunpack.c.l.b16 %v1552
      %v1841 = vunpack.c.l.b16 %v1553
      %v1842 = vunpack.c.l.b16 %v1554
      %v1843 = vunpack.c.l.b16 %v1555
      %v1844 = vunpack.c.l.b16 %v1556
      %v1845 = vunpack.c.l.b16 %v1557
      %v1846 = vunpack.c.l.b16 %v1558
      %v1847 = vunpack.c.l.b16 %v1559
      %v1848 = vunpack.c.l.b16 %v1560
      %v1849 = vunpack.c.l.b16 %v1561
      %v1850 = vunpack.c.l.b16 %v1562
      %v1851 = vunpack.c.l.b16 %v1563
      %v1852 = vunpack.c.l.b16 %v1564
      %v1853 = vunpack.c.l.b16 %v1565
      %v1854 = vunpack.c.l.b16 %v1566
      %v1855 = vunpack.c.l.b16 %v1567
      %v1856 = vunpack.c.l.b16 %v1568
      %v1857 = vunpack.c.l.b16 %v1569
      %v1858 = vunpack.c.l.b16 %v1570
      %v1859 = vunpack.c.l.b16 %v1571
      %v1860 = vunpack.c.l.b16 %v1572
      %v1861 = vunpack.c.l.b16 %v1573
      %v1862 = vunpack.c.l.b16 %v1574
      %v1863 = vunpack.c.l.b16 %v1575
      %v1864 = vunpack.c.l.b16 %v1576
      %v1865 = vunpack.c.l.b16 %v1577
      %v1866 = vunpack.c.l.b16 %v1578
      %v1867 = vunpack.c.l.b16 %v1579
      %v1868 = vunpack.c.l.b16 %v1580
      %v1869 = vunpack.c.l.b16 %v1581
      %v1870 = vunpack.c.l.b16 %v1582
      %v1871 = vunpack.c.l.b16 %v1583
      %v1872 = vunpack.c.l.b16 %v1584
      %v1873 = vunpack.c.l.b16 %v1585
      %v1874 = vunpack.c.l.b16 %v1586
      %v1875 = vunpack.c.l.b16 %v1587
      %v1876 = vunpack.c.l.b16 %v1588
      %v1877 = vunpack.c.l.b16 %v1589
      %v1878 = vunpack.c.l.b16 %v1590
      %v1879 = vunpack.c.l.b16 %v1591
      %v1880 = vunpack.c.l.b16 %v1592
      %v1881 = vunpack.c.l.b16 %v1593
      %v1882 = vunpack.c.l.b16 %v1594
      %v1883 = vunpack.c.l.b16 %v1595
      %v1884 = vunpack.c.l.b16 %v1596
      %v1885 = vunpack.c.l.b16 %v1597
      %v1886 = vunpack.c.l.b16 %v1598
      %v1887 = vunpack.c.l.b16 %v1599
      %v1888 = vunpack.c.l.b16 %v1600
      %v1889 = vunpack.c.l.b16 %v1601
      %v1890 = vunpack.c.l.b16 %v1602
      %v1891 = vunpack.c.l.b16 %v1603
      %v1892 = vunpack.c.l.b16 %v1604
      %v1893 = vunpack.c.l.b16 %v1605
      %v1894 = vunpack.c.l.b16 %v1606
      %v1895 = vunpack.c.l.b16 %v1607
      %v1896 = vpack.c.b16 %v1753, %v1752
      %v1897 = vpack.c.b16 %v1755, %v1754
      %v1898 = vpack.c.b16 %v1757, %v1756
      %v1899 = vpack.c.b16 %v1759, %v1758
      %v1900 = vpack.c.b16 %v1761, %v1760
      %v1901 = vpack.c.b16 %v1763, %v1762
      %v1902 = vpack.c.b16 %v1765, %v1764
      %v1903 = vpack.c.b16 %v1767, %v1766
      %v1904 = vpack.c.b16 %v1769, %v1768
      %v1905 = vpack.c.b16 %v1771, %v1770
      %v1906 = vpack.c.b16 %v1773, %v1772
      %v1907 = vpack.c.b16 %v1775, %v1774
      %v1908 = vpack.c.b16 %v1777, %v1776
      %v1909 = vpack.c.b16 %v1779, %v1778
      %v1910 = vpack.c.b16 %v1781, %v1780
      %v1911 = vpack.c.b16 %v1783, %v1782
      %v1912 = vpack.c.b16 %v1785, %v1784
      %v1913 = vpack.c.b16 %v1787, %v1786
      %v1914 = vpack.c.b16 %v1789, %v1788
      %v1915 = vpack.c.b16 %v1791, %v1790
      %v1916 = vpack.c.b16 %v1793, %v1792
      %v1917 = vpack.c.b16 %v1795, %v1794
      %v1918 = vpack.c.b16 %v1797, %v1796
      %v1919 = vpack.c.b16 %v1799, %v1798
      %v1920 = vpack.c.b16 %v1801, %v1800
      %v1921 = vpack.c.b16 %v1803, %v1802
      %v1922 = vpack.c.b16 %v1805, %v1804
      %v1923 = vpack.c.b16 %v1807, %v1806
      %v1924 = vpack.c.b16 %v1809, %v1808
      %v1925 = vpack.c.b16 %v1811, %v1810
      %v1926 = vpack.c.b16 %v1813, %v1812
      %v1927 = vpack.c.b16 %v1815, %v1814
      %v1928 = vpack.c.b16 %v1817, %v1816
      %v1929 = vpack.c.b16 %v1819, %v1818
      %v1930 = vpack.c.b16 %v1821, %v1820
      %v1931 = vpack.c.b16 %v1823, %v1822
      %v1932 = vpack.c.b16 %v1825, %v1824
      %v1933 = vpack.c.b16 %v1827, %v1826
      %v1934 = vpack.c.b16 %v1829, %v1828
      %v1935 = vpack.c.b16 %v1831, %v1830
      %v1936 = vpack.c.b16 %v1833, %v1832
      %v1937 = vpack.c.b16 %v1835, %v1834
      %v1938 = vpack.c.b16 %v1837, %v1836
      %v1939 = vpack.c.b16 %v1839, %v1838
      %v1940 = vpack.c.b16 %v1841, %v1840
      %v1941 = vpack.c.b16 %v1843, %v1842
      %v1942 = vpack.c.b16 %v1845, %v1844
      %v1943 = vpack.c.b16 %v1847, %v1846
      %v1944 = vpack.c.b16 %v1849, %v1848
      %v1945 = vpack.c.b16 %v1851, %v1850
      %v1946 = vpack.c.b16 %v1853, %v1852
      %v1947 = vpack.c.b16 %v1855, %v1854
      %v1948 = vpack.c.b16 %v1857, %v1856
      %v1949 = vpack.c.b16 %v1859, %v1858
      %v1950 = vpack.c.b16 %v1861, %v1860
      %v1951 = vpack.c.b16 %v1863, %v1862
      %v1952 = vpack.c.b16 %v1865, %v1864
      %v1953 = vpack.c.b16 %v1867, %v1866
      %v1954 = vpack.c.b16 %v1869, %v1868
      %v1955 = vpack.c.b16 %v1871, %v1870
      %v1956 = vpack.c.b16 %v1873, %v1872
      %v1957 = vpack.c.b16 %v1875, %v1874
      %v1958 = vpack.c.b16 %v1877, %v1876
      %v1959 = vpack.c.b16 %v1879, %v1878
      %v1960 = vpack.c.b16 %v1881, %v1880
      %v1961 = vpack.c.b16 %v1883, %v1882
      %v1962 = vpack.c.b16 %v1885, %v1884
      %v1963 = vpack.c.b16 %v1887, %v1886
      %v1964 = vpack.c.b16 %v1889, %v1888
      %v1965 = vpack.c.b16 %v1891, %v1890
      %v1966 = vpack.c.b16 %v1893, %v1892
      %v1967 = vpack.c.b16 %v1895, %v1894
      %2040 = vmatpush.bf16.msra.mxu0 %v1903
      %2041 = vmatpush.bf16.msra.mxu0 %v1902
      %2042 = vmatpush.bf16.msra.mxu0 %v1901
      %2043 = vmatpush.bf16.msra.mxu0 %v1900
      %2044 = vmatpush.bf16.msra.mxu0 %v1899
      %2045 = vmatpush.bf16.msra.mxu0 %v1898
      %2046 = vmatpush.bf16.msra.mxu0 %v1897
      %2047 = vmatpush.bf16.msra.mxu0 %v1896
      %2048 = vmatmul.bf16.gmra.mxu0 %v1320
      %v2049 = vpop.f32.mrf.mxu0
      %v2050 = vadd.f32 0.0, %v2049
      %v2051 = vpop.f32.mrf.mxu0
      %v2052 = vadd.f32 0.0, %v2051
      %2053 = vmatmul.bf16.gmra.mxu0 %v1329
      %v2054 = vpop.f32.mrf.mxu0
      %v2055 = vadd.f32 0.0, %v2054
      %v2056 = vpop.f32.mrf.mxu0
      %v2057 = vadd.f32 0.0, %v2056
      %2058 = vmatmul.bf16.gmra.mxu0 %v1338
      %v2059 = vpop.f32.mrf.mxu0
      %v2060 = vadd.f32 0.0, %v2059
      %v2061 = vpop.f32.mrf.mxu0
      %v2062 = vadd.f32 0.0, %v2061
      %2063 = vmatmul.bf16.gmra.mxu0 %v1347
      %v2064 = vpop.f32.mrf.mxu0
      %v2065 = vadd.f32 0.0, %v2064
      %v2066 = vpop.f32.mrf.mxu0
      %v2067 = vadd.f32 0.0, %v2066
      %2068 = vmatmul.bf16.gmra.mxu0 %v1356
      %v2069 = vpop.f32.mrf.mxu0
      %v2070 = vadd.f32 0.0, %v2069
      %v2071 = vpop.f32.mrf.mxu0
      %v2072 = vadd.f32 0.0, %v2071
      %2073 = vmatmul.bf16.gmra.mxu0 %v1365
      %v2074 = vpop.f32.mrf.mxu0
      %v2075 = vadd.f32 0.0, %v2074
      %v2076 = vpop.f32.mrf.mxu0
      %v2077 = vadd.f32 0.0, %v2076
      %2078 = vmatmul.bf16.gmra.mxu0 %v1374
      %v2079 = vpop.f32.mrf.mxu0
      %v2080 = vadd.f32 0.0, %v2079
      %v2081 = vpop.f32.mrf.mxu0
      %v2082 = vadd.f32 0.0, %v2081
      %2083 = vmatmul.bf16.gmra.mxu0 %v1383
      %v2084 = vpop.f32.mrf.mxu0
      %v2085 = vadd.f32 0.0, %v2084
      %v2086 = vpop.f32.mrf.mxu0
      %v2087 = vadd.f32 0.0, %v2086
      %2088 = vmatmul.bf16.gmra.mxu0 %v1392
      %v2089 = vpop.f32.mrf.mxu0
      %v2090 = vadd.f32 0.0, %v2089
      %v2091 = vpop.f32.mrf.mxu0
      %v2092 = vadd.f32 0.0, %v2091
      %2093 = vmatmul.bf16.gmra.mxu0 %v1401
      %v2094 = vpop.f32.mrf.mxu0
      %v2095 = vadd.f32 0.0, %v2094
      %v2096 = vpop.f32.mrf.mxu0
      %v2097 = vadd.f32 0.0, %v2096
      %2098 = vmatmul.bf16.gmra.mxu0 %v1410
      %v2099 = vpop.f32.mrf.mxu0
      %v2100 = vadd.f32 0.0, %v2099
      %v2101 = vpop.f32.mrf.mxu0
      %v2102 = vadd.f32 0.0, %v2101
      %2103 = vmatmul.bf16.gmra.mxu0 %v1419
      %v2104 = vpop.f32.mrf.mxu0
      %v2105 = vadd.f32 0.0, %v2104
      %v2106 = vpop.f32.mrf.mxu0
      %v2107 = vadd.f32 0.0, %v2106
      %2108 = vmatmul.bf16.gmra.mxu0 %v1428
      %v2109 = vpop.f32.mrf.mxu0
      %v2110 = vadd.f32 0.0, %v2109
      %v2111 = vpop.f32.mrf.mxu0
      %v2112 = vadd.f32 0.0, %v2111
      %2113 = vmatmul.bf16.gmra.mxu0 %v1437
      %v2114 = vpop.f32.mrf.mxu0
      %v2115 = vadd.f32 0.0, %v2114
      %v2116 = vpop.f32.mrf.mxu0
      %v2117 = vadd.f32 0.0, %v2116
      %2118 = vmatmul.bf16.gmra.mxu0 %v1446
      %v2119 = vpop.f32.mrf.mxu0
      %v2120 = vadd.f32 0.0, %v2119
      %v2121 = vpop.f32.mrf.mxu0
      %v2122 = vadd.f32 0.0, %v2121
      %2123 = vmatmul.bf16.gmra.mxu0 %v1455
      %v2124 = vpop.f32.mrf.mxu0
      %v2125 = vadd.f32 0.0, %v2124
      %v2126 = vpop.f32.mrf.mxu0
      %v2127 = vadd.f32 0.0, %v2126
      %2128 = vdwg.mxu0
      %2129 = vmatpush.bf16.msra.mxu0 %v1911
      %2130 = vmatpush.bf16.msra.mxu0 %v1910
      %2131 = vmatpush.bf16.msra.mxu0 %v1909
      %2132 = vmatpush.bf16.msra.mxu0 %v1908
      %2133 = vmatpush.bf16.msra.mxu0 %v1907
      %2134 = vmatpush.bf16.msra.mxu0 %v1906
      %2135 = vmatpush.bf16.msra.mxu0 %v1905
      %2136 = vmatpush.bf16.msra.mxu0 %v1904
      %2137 = vmatmul.bf16.gmra.mxu0 %v1321
      %v2138 = vpop.f32.mrf.mxu0
      %v2139 = vadd.f32 %v2050, %v2138
      %v2140 = vpop.f32.mrf.mxu0
      %v2141 = vadd.f32 %v2052, %v2140
      %2142 = vmatmul.bf16.gmra.mxu0 %v1330
      %v2143 = vpop.f32.mrf.mxu0
      %v2144 = vadd.f32 %v2055, %v2143
      %v2145 = vpop.f32.mrf.mxu0
      %v2146 = vadd.f32 %v2057, %v2145
      %2147 = vmatmul.bf16.gmra.mxu0 %v1339
      %v2148 = vpop.f32.mrf.mxu0
      %v2149 = vadd.f32 %v2060, %v2148
      %v2150 = vpop.f32.mrf.mxu0
      %v2151 = vadd.f32 %v2062, %v2150
      %2152 = vmatmul.bf16.gmra.mxu0 %v1348
      %v2153 = vpop.f32.mrf.mxu0
      %v2154 = vadd.f32 %v2065, %v2153
      %v2155 = vpop.f32.mrf.mxu0
      %v2156 = vadd.f32 %v2067, %v2155
      %2157 = vmatmul.bf16.gmra.mxu0 %v1357
      %v2158 = vpop.f32.mrf.mxu0
      %v2159 = vadd.f32 %v2070, %v2158
      %v2160 = vpop.f32.mrf.mxu0
      %v2161 = vadd.f32 %v2072, %v2160
      %2162 = vmatmul.bf16.gmra.mxu0 %v1366
      %v2163 = vpop.f32.mrf.mxu0
      %v2164 = vadd.f32 %v2075, %v2163
      %v2165 = vpop.f32.mrf.mxu0
      %v2166 = vadd.f32 %v2077, %v2165
      %2167 = vmatmul.bf16.gmra.mxu0 %v1375
      %v2168 = vpop.f32.mrf.mxu0
      %v2169 = vadd.f32 %v2080, %v2168
      %v2170 = vpop.f32.mrf.mxu0
      %v2171 = vadd.f32 %v2082, %v2170
      %2172 = vmatmul.bf16.gmra.mxu0 %v1384
      %v2173 = vpop.f32.mrf.mxu0
      %v2174 = vadd.f32 %v2085, %v2173
      %v2175 = vpop.f32.mrf.mxu0
      %v2176 = vadd.f32 %v2087, %v2175
      %2177 = vmatmul.bf16.gmra.mxu0 %v1393
      %v2178 = vpop.f32.mrf.mxu0
      %v2179 = vadd.f32 %v2090, %v2178
      %v2180 = vpop.f32.mrf.mxu0
      %v2181 = vadd.f32 %v2092, %v2180
      %2182 = vmatmul.bf16.gmra.mxu0 %v1402
      %v2183 = vpop.f32.mrf.mxu0
      %v2184 = vadd.f32 %v2095, %v2183
      %v2185 = vpop.f32.mrf.mxu0
      %v2186 = vadd.f32 %v2097, %v2185
      %2187 = vmatmul.bf16.gmra.mxu0 %v1411
      %v2188 = vpop.f32.mrf.mxu0
      %v2189 = vadd.f32 %v2100, %v2188
      %v2190 = vpop.f32.mrf.mxu0
      %v2191 = vadd.f32 %v2102, %v2190
      %2192 = vmatmul.bf16.gmra.mxu0 %v1420
      %v2193 = vpop.f32.mrf.mxu0
      %v2194 = vadd.f32 %v2105, %v2193
      %v2195 = vpop.f32.mrf.mxu0
      %v2196 = vadd.f32 %v2107, %v2195
      %2197 = vmatmul.bf16.gmra.mxu0 %v1429
      %v2198 = vpop.f32.mrf.mxu0
      %v2199 = vadd.f32 %v2110, %v2198
      %v2200 = vpop.f32.mrf.mxu0
      %v2201 = vadd.f32 %v2112, %v2200
      %2202 = vmatmul.bf16.gmra.mxu0 %v1438
      %v2203 = vpop.f32.mrf.mxu0
      %v2204 = vadd.f32 %v2115, %v2203
      %v2205 = vpop.f32.mrf.mxu0
      %v2206 = vadd.f32 %v2117, %v2205
      %2207 = vmatmul.bf16.gmra.mxu0 %v1447
      %v2208 = vpop.f32.mrf.mxu0
      %v2209 = vadd.f32 %v2120, %v2208
      %v2210 = vpop.f32.mrf.mxu0
      %v2211 = vadd.f32 %v2122, %v2210
      %2212 = vmatmul.bf16.gmra.mxu0 %v1456
      %v2213 = vpop.f32.mrf.mxu0
      %v2214 = vadd.f32 %v2125, %v2213
      %v2215 = vpop.f32.mrf.mxu0
      %v2216 = vadd.f32 %v2127, %v2215
      %2217 = vdwg.mxu0
      %2218 = vmatpush.bf16.msra.mxu0 %v1919
      %2219 = vmatpush.bf16.msra.mxu0 %v1918
      %2220 = vmatpush.bf16.msra.mxu0 %v1917
      %2221 = vmatpush.bf16.msra.mxu0 %v1916
      %2222 = vmatpush.bf16.msra.mxu0 %v1915
      %2223 = vmatpush.bf16.msra.mxu0 %v1914
      %2224 = vmatpush.bf16.msra.mxu0 %v1913
      %2225 = vmatpush.bf16.msra.mxu0 %v1912
      %2226 = vmatmul.bf16.gmra.mxu0 %v1322
      %v2227 = vpop.f32.mrf.mxu0
      %v2228 = vadd.f32 %v2139, %v2227
      %v2229 = vpop.f32.mrf.mxu0
      %v2230 = vadd.f32 %v2141, %v2229
      %2231 = vmatmul.bf16.gmra.mxu0 %v1331
      %v2232 = vpop.f32.mrf.mxu0
      %v2233 = vadd.f32 %v2144, %v2232
      %v2234 = vpop.f32.mrf.mxu0
      %v2235 = vadd.f32 %v2146, %v2234
      %2236 = vmatmul.bf16.gmra.mxu0 %v1340
      %v2237 = vpop.f32.mrf.mxu0
      %v2238 = vadd.f32 %v2149, %v2237
      %v2239 = vpop.f32.mrf.mxu0
      %v2240 = vadd.f32 %v2151, %v2239
      %2241 = vmatmul.bf16.gmra.mxu0 %v1349
      %v2242 = vpop.f32.mrf.mxu0
      %v2243 = vadd.f32 %v2154, %v2242
      %v2244 = vpop.f32.mrf.mxu0
      %v2245 = vadd.f32 %v2156, %v2244
      %2246 = vmatmul.bf16.gmra.mxu0 %v1358
      %v2247 = vpop.f32.mrf.mxu0
      %v2248 = vadd.f32 %v2159, %v2247
      %v2249 = vpop.f32.mrf.mxu0
      %v2250 = vadd.f32 %v2161, %v2249
      %2251 = vmatmul.bf16.gmra.mxu0 %v1367
      %v2252 = vpop.f32.mrf.mxu0
      %v2253 = vadd.f32 %v2164, %v2252
      %v2254 = vpop.f32.mrf.mxu0
      %v2255 = vadd.f32 %v2166, %v2254
      %2256 = vmatmul.bf16.gmra.mxu0 %v1376
      %v2257 = vpop.f32.mrf.mxu0
      %v2258 = vadd.f32 %v2169, %v2257
      %v2259 = vpop.f32.mrf.mxu0
      %v2260 = vadd.f32 %v2171, %v2259
      %2261 = vmatmul.bf16.gmra.mxu0 %v1385
      %v2262 = vpop.f32.mrf.mxu0
      %v2263 = vadd.f32 %v2174, %v2262
      %v2264 = vpop.f32.mrf.mxu0
      %v2265 = vadd.f32 %v2176, %v2264
      %2266 = vmatmul.bf16.gmra.mxu0 %v1394
      %v2267 = vpop.f32.mrf.mxu0
      %v2268 = vadd.f32 %v2179, %v2267
      %v2269 = vpop.f32.mrf.mxu0
      %v2270 = vadd.f32 %v2181, %v2269
      %2271 = vmatmul.bf16.gmra.mxu0 %v1403
      %v2272 = vpop.f32.mrf.mxu0
      %v2273 = vadd.f32 %v2184, %v2272
      %v2274 = vpop.f32.mrf.mxu0
      %v2275 = vadd.f32 %v2186, %v2274
      %2276 = vmatmul.bf16.gmra.mxu0 %v1412
      %v2277 = vpop.f32.mrf.mxu0
      %v2278 = vadd.f32 %v2189, %v2277
      %v2279 = vpop.f32.mrf.mxu0
      %v2280 = vadd.f32 %v2191, %v2279
      %2281 = vmatmul.bf16.gmra.mxu0 %v1421
      %v2282 = vpop.f32.mrf.mxu0
      %v2283 = vadd.f32 %v2194, %v2282
      %v2284 = vpop.f32.mrf.mxu0
      %v2285 = vadd.f32 %v2196, %v2284
      %2286 = vmatmul.bf16.gmra.mxu0 %v1430
      %v2287 = vpop.f32.mrf.mxu0
      %v2288 = vadd.f32 %v2199, %v2287
      %v2289 = vpop.f32.mrf.mxu0
      %v2290 = vadd.f32 %v2201, %v2289
      %2291 = vmatmul.bf16.gmra.mxu0 %v1439
      %v2292 = vpop.f32.mrf.mxu0
      %v2293 = vadd.f32 %v2204, %v2292
      %v2294 = vpop.f32.mrf.mxu0
      %v2295 = vadd.f32 %v2206, %v2294
      %2296 = vmatmul.bf16.gmra.mxu0 %v1448
      %v2297 = vpop.f32.mrf.mxu0
      %v2298 = vadd.f32 %v2209, %v2297
      %v2299 = vpop.f32.mrf.mxu0
      %v2300 = vadd.f32 %v2211, %v2299
      %2301 = vmatmul.bf16.gmra.mxu0 %v1457
      %v2302 = vpop.f32.mrf.mxu0
      %v2303 = vadd.f32 %v2214, %v2302
      %v2304 = vpop.f32.mrf.mxu0
      %v2305 = vadd.f32 %v2216, %v2304
      %2306 = vdwg.mxu0
      %2307 = vmatpush.bf16.msra.mxu0 %v1927
      %2308 = vmatpush.bf16.msra.mxu0 %v1926
      %2309 = vmatpush.bf16.msra.mxu0 %v1925
      %2310 = vmatpush.bf16.msra.mxu0 %v1924
      %2311 = vmatpush.bf16.msra.mxu0 %v1923
      %2312 = vmatpush.bf16.msra.mxu0 %v1922
      %2313 = vmatpush.bf16.msra.mxu0 %v1921
      %2314 = vmatpush.bf16.msra.mxu0 %v1920
      %2315 = vmatmul.bf16.gmra.mxu0 %v1323
      %v2316 = vpop.f32.mrf.mxu0
      %v2317 = vadd.f32 %v2228, %v2316
      %v2318 = vpop.f32.mrf.mxu0
      %v2319 = vadd.f32 %v2230, %v2318
      %2320 = vmatmul.bf16.gmra.mxu0 %v1332
      %v2321 = vpop.f32.mrf.mxu0
      %v2322 = vadd.f32 %v2233, %v2321
      %v2323 = vpop.f32.mrf.mxu0
      %v2324 = vadd.f32 %v2235, %v2323
      %2325 = vmatmul.bf16.gmra.mxu0 %v1341
      %v2326 = vpop.f32.mrf.mxu0
      %v2327 = vadd.f32 %v2238, %v2326
      %v2328 = vpop.f32.mrf.mxu0
      %v2329 = vadd.f32 %v2240, %v2328
      %2330 = vmatmul.bf16.gmra.mxu0 %v1350
      %v2331 = vpop.f32.mrf.mxu0
      %v2332 = vadd.f32 %v2243, %v2331
      %v2333 = vpop.f32.mrf.mxu0
      %v2334 = vadd.f32 %v2245, %v2333
      %2335 = vmatmul.bf16.gmra.mxu0 %v1359
      %v2336 = vpop.f32.mrf.mxu0
      %v2337 = vadd.f32 %v2248, %v2336
      %v2338 = vpop.f32.mrf.mxu0
      %v2339 = vadd.f32 %v2250, %v2338
      %2340 = vmatmul.bf16.gmra.mxu0 %v1368
      %v2341 = vpop.f32.mrf.mxu0
      %v2342 = vadd.f32 %v2253, %v2341
      %v2343 = vpop.f32.mrf.mxu0
      %v2344 = vadd.f32 %v2255, %v2343
      %2345 = vmatmul.bf16.gmra.mxu0 %v1377
      %v2346 = vpop.f32.mrf.mxu0
      %v2347 = vadd.f32 %v2258, %v2346
      %v2348 = vpop.f32.mrf.mxu0
      %v2349 = vadd.f32 %v2260, %v2348
      %2350 = vmatmul.bf16.gmra.mxu0 %v1386
      %v2351 = vpop.f32.mrf.mxu0
      %v2352 = vadd.f32 %v2263, %v2351
      %v2353 = vpop.f32.mrf.mxu0
      %v2354 = vadd.f32 %v2265, %v2353
      %2355 = vmatmul.bf16.gmra.mxu0 %v1395
      %v2356 = vpop.f32.mrf.mxu0
      %v2357 = vadd.f32 %v2268, %v2356
      %v2358 = vpop.f32.mrf.mxu0
      %v2359 = vadd.f32 %v2270, %v2358
      %2360 = vmatmul.bf16.gmra.mxu0 %v1404
      %v2361 = vpop.f32.mrf.mxu0
      %v2362 = vadd.f32 %v2273, %v2361
      %v2363 = vpop.f32.mrf.mxu0
      %v2364 = vadd.f32 %v2275, %v2363
      %2365 = vmatmul.bf16.gmra.mxu0 %v1413
      %v2366 = vpop.f32.mrf.mxu0
      %v2367 = vadd.f32 %v2278, %v2366
      %v2368 = vpop.f32.mrf.mxu0
      %v2369 = vadd.f32 %v2280, %v2368
      %2370 = vmatmul.bf16.gmra.mxu0 %v1422
      %v2371 = vpop.f32.mrf.mxu0
      %v2372 = vadd.f32 %v2283, %v2371
      %v2373 = vpop.f32.mrf.mxu0
      %v2374 = vadd.f32 %v2285, %v2373
      %2375 = vmatmul.bf16.gmra.mxu0 %v1431
      %v2376 = vpop.f32.mrf.mxu0
      %v2377 = vadd.f32 %v2288, %v2376
      %v2378 = vpop.f32.mrf.mxu0
      %v2379 = vadd.f32 %v2290, %v2378
      %2380 = vmatmul.bf16.gmra.mxu0 %v1440
      %v2381 = vpop.f32.mrf.mxu0
      %v2382 = vadd.f32 %v2293, %v2381
      %v2383 = vpop.f32.mrf.mxu0
      %v2384 = vadd.f32 %v2295, %v2383
      %2385 = vmatmul.bf16.gmra.mxu0 %v1449
      %v2386 = vpop.f32.mrf.mxu0
      %v2387 = vadd.f32 %v2298, %v2386
      %v2388 = vpop.f32.mrf.mxu0
      %v2389 = vadd.f32 %v2300, %v2388
      %2390 = vmatmul.bf16.gmra.mxu0 %v1458
      %v2391 = vpop.f32.mrf.mxu0
      %v2392 = vadd.f32 %v2303, %v2391
      %v2393 = vpop.f32.mrf.mxu0
      %v2394 = vadd.f32 %v2305, %v2393
      %2395 = vdwg.mxu0
      %2396 = vmatpush.bf16.msra.mxu0 %v1935
      %2397 = vmatpush.bf16.msra.mxu0 %v1934
      %2398 = vmatpush.bf16.msra.mxu0 %v1933
      %2399 = vmatpush.bf16.msra.mxu0 %v1932
      %2400 = vmatpush.bf16.msra.mxu0 %v1931
      %2401 = vmatpush.bf16.msra.mxu0 %v1930
      %2402 = vmatpush.bf16.msra.mxu0 %v1929
      %2403 = vmatpush.bf16.msra.mxu0 %v1928
      %2404 = vmatmul.bf16.gmra.mxu0 %v1324
      %v2405 = vpop.f32.mrf.mxu0
      %v2406 = vadd.f32 %v2317, %v2405
      %v2407 = vpop.f32.mrf.mxu0
      %v2408 = vadd.f32 %v2319, %v2407
      %2409 = vmatmul.bf16.gmra.mxu0 %v1333
      %v2410 = vpop.f32.mrf.mxu0
      %v2411 = vadd.f32 %v2322, %v2410
      %v2412 = vpop.f32.mrf.mxu0
      %v2413 = vadd.f32 %v2324, %v2412
      %2414 = vmatmul.bf16.gmra.mxu0 %v1342
      %v2415 = vpop.f32.mrf.mxu0
      %v2416 = vadd.f32 %v2327, %v2415
      %v2417 = vpop.f32.mrf.mxu0
      %v2418 = vadd.f32 %v2329, %v2417
      %2419 = vmatmul.bf16.gmra.mxu0 %v1351
      %v2420 = vpop.f32.mrf.mxu0
      %v2421 = vadd.f32 %v2332, %v2420
      %v2422 = vpop.f32.mrf.mxu0
      %v2423 = vadd.f32 %v2334, %v2422
      %2424 = vmatmul.bf16.gmra.mxu0 %v1360
      %v2425 = vpop.f32.mrf.mxu0
      %v2426 = vadd.f32 %v2337, %v2425
      %v2427 = vpop.f32.mrf.mxu0
      %v2428 = vadd.f32 %v2339, %v2427
      %2429 = vmatmul.bf16.gmra.mxu0 %v1369
      %v2430 = vpop.f32.mrf.mxu0
      %v2431 = vadd.f32 %v2342, %v2430
      %v2432 = vpop.f32.mrf.mxu0
      %v2433 = vadd.f32 %v2344, %v2432
      %2434 = vmatmul.bf16.gmra.mxu0 %v1378
      %v2435 = vpop.f32.mrf.mxu0
      %v2436 = vadd.f32 %v2347, %v2435
      %v2437 = vpop.f32.mrf.mxu0
      %v2438 = vadd.f32 %v2349, %v2437
      %2439 = vmatmul.bf16.gmra.mxu0 %v1387
      %v2440 = vpop.f32.mrf.mxu0
      %v2441 = vadd.f32 %v2352, %v2440
      %v2442 = vpop.f32.mrf.mxu0
      %v2443 = vadd.f32 %v2354, %v2442
      %2444 = vmatmul.bf16.gmra.mxu0 %v1396
      %v2445 = vpop.f32.mrf.mxu0
      %v2446 = vadd.f32 %v2357, %v2445
      %v2447 = vpop.f32.mrf.mxu0
      %v2448 = vadd.f32 %v2359, %v2447
      %2449 = vmatmul.bf16.gmra.mxu0 %v1405
      %v2450 = vpop.f32.mrf.mxu0
      %v2451 = vadd.f32 %v2362, %v2450
      %v2452 = vpop.f32.mrf.mxu0
      %v2453 = vadd.f32 %v2364, %v2452
      %2454 = vmatmul.bf16.gmra.mxu0 %v1414
      %v2455 = vpop.f32.mrf.mxu0
      %v2456 = vadd.f32 %v2367, %v2455
      %v2457 = vpop.f32.mrf.mxu0
      %v2458 = vadd.f32 %v2369, %v2457
      %2459 = vmatmul.bf16.gmra.mxu0 %v1423
      %v2460 = vpop.f32.mrf.mxu0
      %v2461 = vadd.f32 %v2372, %v2460
      %v2462 = vpop.f32.mrf.mxu0
      %v2463 = vadd.f32 %v2374, %v2462
      %2464 = vmatmul.bf16.gmra.mxu0 %v1432
      %v2465 = vpop.f32.mrf.mxu0
      %v2466 = vadd.f32 %v2377, %v2465
      %v2467 = vpop.f32.mrf.mxu0
      %v2468 = vadd.f32 %v2379, %v2467
      %2469 = vmatmul.bf16.gmra.mxu0 %v1441
      %v2470 = vpop.f32.mrf.mxu0
      %v2471 = vadd.f32 %v2382, %v2470
      %v2472 = vpop.f32.mrf.mxu0
      %v2473 = vadd.f32 %v2384, %v2472
      %2474 = vmatmul.bf16.gmra.mxu0 %v1450
      %v2475 = vpop.f32.mrf.mxu0
      %v2476 = vadd.f32 %v2387, %v2475
      %v2477 = vpop.f32.mrf.mxu0
      %v2478 = vadd.f32 %v2389, %v2477
      %2479 = vmatmul.bf16.gmra.mxu0 %v1459
      %v2480 = vpop.f32.mrf.mxu0
      %v2481 = vadd.f32 %v2392, %v2480
      %v2482 = vpop.f32.mrf.mxu0
      %v2483 = vadd.f32 %v2394, %v2482
      %2484 = vdwg.mxu0
      %2485 = vmatpush.bf16.msra.mxu0 %v1943
      %2486 = vmatpush.bf16.msra.mxu0 %v1942
      %2487 = vmatpush.bf16.msra.mxu0 %v1941
      %2488 = vmatpush.bf16.msra.mxu0 %v1940
      %2489 = vmatpush.bf16.msra.mxu0 %v1939
      %2490 = vmatpush.bf16.msra.mxu0 %v1938
      %2491 = vmatpush.bf16.msra.mxu0 %v1937
      %2492 = vmatpush.bf16.msra.mxu0 %v1936
      %2493 = vmatmul.bf16.gmra.mxu0 %v1325
      %v2494 = vpop.f32.mrf.mxu0
      %v2495 = vadd.f32 %v2406, %v2494
      %v2496 = vpop.f32.mrf.mxu0
      %v2497 = vadd.f32 %v2408, %v2496
      %2498 = vmatmul.bf16.gmra.mxu0 %v1334
      %v2499 = vpop.f32.mrf.mxu0
      %v2500 = vadd.f32 %v2411, %v2499
      %v2501 = vpop.f32.mrf.mxu0
      %v2502 = vadd.f32 %v2413, %v2501
      %2503 = vmatmul.bf16.gmra.mxu0 %v1343
      %v2504 = vpop.f32.mrf.mxu0
      %v2505 = vadd.f32 %v2416, %v2504
      %v2506 = vpop.f32.mrf.mxu0
      %v2507 = vadd.f32 %v2418, %v2506
      %2508 = vmatmul.bf16.gmra.mxu0 %v1352
      %v2509 = vpop.f32.mrf.mxu0
      %v2510 = vadd.f32 %v2421, %v2509
      %v2511 = vpop.f32.mrf.mxu0
      %v2512 = vadd.f32 %v2423, %v2511
      %2513 = vmatmul.bf16.gmra.mxu0 %v1361
      %v2514 = vpop.f32.mrf.mxu0
      %v2515 = vadd.f32 %v2426, %v2514
      %v2516 = vpop.f32.mrf.mxu0
      %v2517 = vadd.f32 %v2428, %v2516
      %2518 = vmatmul.bf16.gmra.mxu0 %v1370
      %v2519 = vpop.f32.mrf.mxu0
      %v2520 = vadd.f32 %v2431, %v2519
      %v2521 = vpop.f32.mrf.mxu0
      %v2522 = vadd.f32 %v2433, %v2521
      %2523 = vmatmul.bf16.gmra.mxu0 %v1379
      %v2524 = vpop.f32.mrf.mxu0
      %v2525 = vadd.f32 %v2436, %v2524
      %v2526 = vpop.f32.mrf.mxu0
      %v2527 = vadd.f32 %v2438, %v2526
      %2528 = vmatmul.bf16.gmra.mxu0 %v1388
      %v2529 = vpop.f32.mrf.mxu0
      %v2530 = vadd.f32 %v2441, %v2529
      %v2531 = vpop.f32.mrf.mxu0
      %v2532 = vadd.f32 %v2443, %v2531
      %2533 = vmatmul.bf16.gmra.mxu0 %v1397
      %v2534 = vpop.f32.mrf.mxu0
      %v2535 = vadd.f32 %v2446, %v2534
      %v2536 = vpop.f32.mrf.mxu0
      %v2537 = vadd.f32 %v2448, %v2536
      %2538 = vmatmul.bf16.gmra.mxu0 %v1406
      %v2539 = vpop.f32.mrf.mxu0
      %v2540 = vadd.f32 %v2451, %v2539
      %v2541 = vpop.f32.mrf.mxu0
      %v2542 = vadd.f32 %v2453, %v2541
      %2543 = vmatmul.bf16.gmra.mxu0 %v1415
      %v2544 = vpop.f32.mrf.mxu0
      %v2545 = vadd.f32 %v2456, %v2544
      %v2546 = vpop.f32.mrf.mxu0
      %v2547 = vadd.f32 %v2458, %v2546
      %2548 = vmatmul.bf16.gmra.mxu0 %v1424
      %v2549 = vpop.f32.mrf.mxu0
      %v2550 = vadd.f32 %v2461, %v2549
      %v2551 = vpop.f32.mrf.mxu0
      %v2552 = vadd.f32 %v2463, %v2551
      %2553 = vmatmul.bf16.gmra.mxu0 %v1433
      %v2554 = vpop.f32.mrf.mxu0
      %v2555 = vadd.f32 %v2466, %v2554
      %v2556 = vpop.f32.mrf.mxu0
      %v2557 = vadd.f32 %v2468, %v2556
      %2558 = vmatmul.bf16.gmra.mxu0 %v1442
      %v2559 = vpop.f32.mrf.mxu0
      %v2560 = vadd.f32 %v2471, %v2559
      %v2561 = vpop.f32.mrf.mxu0
      %v2562 = vadd.f32 %v2473, %v2561
      %2563 = vmatmul.bf16.gmra.mxu0 %v1451
      %v2564 = vpop.f32.mrf.mxu0
      %v2565 = vadd.f32 %v2476, %v2564
      %v2566 = vpop.f32.mrf.mxu0
      %v2567 = vadd.f32 %v2478, %v2566
      %2568 = vmatmul.bf16.gmra.mxu0 %v1460
      %v2569 = vpop.f32.mrf.mxu0
      %v2570 = vadd.f32 %v2481, %v2569
      %v2571 = vpop.f32.mrf.mxu0
      %v2572 = vadd.f32 %v2483, %v2571
      %2573 = vdwg.mxu0
      %2574 = vmatpush.bf16.msra.mxu0 %v1951
      %2575 = vmatpush.bf16.msra.mxu0 %v1950
      %2576 = vmatpush.bf16.msra.mxu0 %v1949
      %2577 = vmatpush.bf16.msra.mxu0 %v1948
      %2578 = vmatpush.bf16.msra.mxu0 %v1947
      %2579 = vmatpush.bf16.msra.mxu0 %v1946
      %2580 = vmatpush.bf16.msra.mxu0 %v1945
      %2581 = vmatpush.bf16.msra.mxu0 %v1944
      %2582 = vmatmul.bf16.gmra.mxu0 %v1326
      %v2583 = vpop.f32.mrf.mxu0
      %v2584 = vadd.f32 %v2495, %v2583
      %v2585 = vpop.f32.mrf.mxu0
      %v2586 = vadd.f32 %v2497, %v2585
      %2587 = vmatmul.bf16.gmra.mxu0 %v1335
      %v2588 = vpop.f32.mrf.mxu0
      %v2589 = vadd.f32 %v2500, %v2588
      %v2590 = vpop.f32.mrf.mxu0
      %v2591 = vadd.f32 %v2502, %v2590
      %2592 = vmatmul.bf16.gmra.mxu0 %v1344
      %v2593 = vpop.f32.mrf.mxu0
      %v2594 = vadd.f32 %v2505, %v2593
      %v2595 = vpop.f32.mrf.mxu0
      %v2596 = vadd.f32 %v2507, %v2595
      %2597 = vmatmul.bf16.gmra.mxu0 %v1353
      %v2598 = vpop.f32.mrf.mxu0
      %v2599 = vadd.f32 %v2510, %v2598
      %v2600 = vpop.f32.mrf.mxu0
      %v2601 = vadd.f32 %v2512, %v2600
      %2602 = vmatmul.bf16.gmra.mxu0 %v1362
      %v2603 = vpop.f32.mrf.mxu0
      %v2604 = vadd.f32 %v2515, %v2603
      %v2605 = vpop.f32.mrf.mxu0
      %v2606 = vadd.f32 %v2517, %v2605
      %2607 = vmatmul.bf16.gmra.mxu0 %v1371
      %v2608 = vpop.f32.mrf.mxu0
      %v2609 = vadd.f32 %v2520, %v2608
      %v2610 = vpop.f32.mrf.mxu0
      %v2611 = vadd.f32 %v2522, %v2610
      %2612 = vmatmul.bf16.gmra.mxu0 %v1380
      %v2613 = vpop.f32.mrf.mxu0
      %v2614 = vadd.f32 %v2525, %v2613
      %v2615 = vpop.f32.mrf.mxu0
      %v2616 = vadd.f32 %v2527, %v2615
      %2617 = vmatmul.bf16.gmra.mxu0 %v1389
      %v2618 = vpop.f32.mrf.mxu0
      %v2619 = vadd.f32 %v2530, %v2618
      %v2620 = vpop.f32.mrf.mxu0
      %v2621 = vadd.f32 %v2532, %v2620
      %2622 = vmatmul.bf16.gmra.mxu0 %v1398
      %v2623 = vpop.f32.mrf.mxu0
      %v2624 = vadd.f32 %v2535, %v2623
      %v2625 = vpop.f32.mrf.mxu0
      %v2626 = vadd.f32 %v2537, %v2625
      %2627 = vmatmul.bf16.gmra.mxu0 %v1407
      %v2628 = vpop.f32.mrf.mxu0
      %v2629 = vadd.f32 %v2540, %v2628
      %v2630 = vpop.f32.mrf.mxu0
      %v2631 = vadd.f32 %v2542, %v2630
      %2632 = vmatmul.bf16.gmra.mxu0 %v1416
      %v2633 = vpop.f32.mrf.mxu0
      %v2634 = vadd.f32 %v2545, %v2633
      %v2635 = vpop.f32.mrf.mxu0
      %v2636 = vadd.f32 %v2547, %v2635
      %2637 = vmatmul.bf16.gmra.mxu0 %v1425
      %v2638 = vpop.f32.mrf.mxu0
      %v2639 = vadd.f32 %v2550, %v2638
      %v2640 = vpop.f32.mrf.mxu0
      %v2641 = vadd.f32 %v2552, %v2640
      %2642 = vmatmul.bf16.gmra.mxu0 %v1434
      %v2643 = vpop.f32.mrf.mxu0
      %v2644 = vadd.f32 %v2555, %v2643
      %v2645 = vpop.f32.mrf.mxu0
      %v2646 = vadd.f32 %v2557, %v2645
      %2647 = vmatmul.bf16.gmra.mxu0 %v1443
      %v2648 = vpop.f32.mrf.mxu0
      %v2649 = vadd.f32 %v2560, %v2648
      %v2650 = vpop.f32.mrf.mxu0
      %v2651 = vadd.f32 %v2562, %v2650
      %2652 = vmatmul.bf16.gmra.mxu0 %v1452
      %v2653 = vpop.f32.mrf.mxu0
      %v2654 = vadd.f32 %v2565, %v2653
      %v2655 = vpop.f32.mrf.mxu0
      %v2656 = vadd.f32 %v2567, %v2655
      %2657 = vmatmul.bf16.gmra.mxu0 %v1461
      %v2658 = vpop.f32.mrf.mxu0
      %v2659 = vadd.f32 %v2570, %v2658
      %v2660 = vpop.f32.mrf.mxu0
      %v2661 = vadd.f32 %v2572, %v2660
      %2662 = vdwg.mxu0
      %2663 = vmatpush.bf16.msra.mxu0 %v1959
      %2664 = vmatpush.bf16.msra.mxu0 %v1958
      %2665 = vmatpush.bf16.msra.mxu0 %v1957
      %2666 = vmatpush.bf16.msra.mxu0 %v1956
      %2667 = vmatpush.bf16.msra.mxu0 %v1955
      %2668 = vmatpush.bf16.msra.mxu0 %v1954
      %2669 = vmatpush.bf16.msra.mxu0 %v1953
      %2670 = vmatpush.bf16.msra.mxu0 %v1952
      %2671 = vmatmul.bf16.gmra.mxu0 %v1327
      %v2672 = vpop.f32.mrf.mxu0
      %v2673 = vadd.f32 %v2584, %v2672
      %v2674 = vpop.f32.mrf.mxu0
      %v2675 = vadd.f32 %v2586, %v2674
      %2676 = vmatmul.bf16.gmra.mxu0 %v1336
      %v2677 = vpop.f32.mrf.mxu0
      %v2678 = vadd.f32 %v2589, %v2677
      %v2679 = vpop.f32.mrf.mxu0
      %v2680 = vadd.f32 %v2591, %v2679
      %2681 = vmatmul.bf16.gmra.mxu0 %v1345
      %v2682 = vpop.f32.mrf.mxu0
      %v2683 = vadd.f32 %v2594, %v2682
      %v2684 = vpop.f32.mrf.mxu0
      %v2685 = vadd.f32 %v2596, %v2684
      %2686 = vmatmul.bf16.gmra.mxu0 %v1354
      %v2687 = vpop.f32.mrf.mxu0
      %v2688 = vadd.f32 %v2599, %v2687
      %v2689 = vpop.f32.mrf.mxu0
      %v2690 = vadd.f32 %v2601, %v2689
      %2691 = vmatmul.bf16.gmra.mxu0 %v1363
      %v2692 = vpop.f32.mrf.mxu0
      %v2693 = vadd.f32 %v2604, %v2692
      %v2694 = vpop.f32.mrf.mxu0
      %v2695 = vadd.f32 %v2606, %v2694
      %2696 = vmatmul.bf16.gmra.mxu0 %v1372
      %v2697 = vpop.f32.mrf.mxu0
      %v2698 = vadd.f32 %v2609, %v2697
      %v2699 = vpop.f32.mrf.mxu0
      %v2700 = vadd.f32 %v2611, %v2699
      %2701 = vmatmul.bf16.gmra.mxu0 %v1381
      %v2702 = vpop.f32.mrf.mxu0
      %v2703 = vadd.f32 %v2614, %v2702
      %v2704 = vpop.f32.mrf.mxu0
      %v2705 = vadd.f32 %v2616, %v2704
      %2706 = vmatmul.bf16.gmra.mxu0 %v1390
      %v2707 = vpop.f32.mrf.mxu0
      %v2708 = vadd.f32 %v2619, %v2707
      %v2709 = vpop.f32.mrf.mxu0
      %v2710 = vadd.f32 %v2621, %v2709
      %2711 = vmatmul.bf16.gmra.mxu0 %v1399
      %v2712 = vpop.f32.mrf.mxu0
      %v2713 = vadd.f32 %v2624, %v2712
      %v2714 = vpop.f32.mrf.mxu0
      %v2715 = vadd.f32 %v2626, %v2714
      %2716 = vmatmul.bf16.gmra.mxu0 %v1408
      %v2717 = vpop.f32.mrf.mxu0
      %v2718 = vadd.f32 %v2629, %v2717
      %v2719 = vpop.f32.mrf.mxu0
      %v2720 = vadd.f32 %v2631, %v2719
      %2721 = vmatmul.bf16.gmra.mxu0 %v1417
      %v2722 = vpop.f32.mrf.mxu0
      %v2723 = vadd.f32 %v2634, %v2722
      %v2724 = vpop.f32.mrf.mxu0
      %v2725 = vadd.f32 %v2636, %v2724
      %2726 = vmatmul.bf16.gmra.mxu0 %v1426
      %v2727 = vpop.f32.mrf.mxu0
      %v2728 = vadd.f32 %v2639, %v2727
      %v2729 = vpop.f32.mrf.mxu0
      %v2730 = vadd.f32 %v2641, %v2729
      %2731 = vmatmul.bf16.gmra.mxu0 %v1435
      %v2732 = vpop.f32.mrf.mxu0
      %v2733 = vadd.f32 %v2644, %v2732
      %v2734 = vpop.f32.mrf.mxu0
      %v2735 = vadd.f32 %v2646, %v2734
      %2736 = vmatmul.bf16.gmra.mxu0 %v1444
      %v2737 = vpop.f32.mrf.mxu0
      %v2738 = vadd.f32 %v2649, %v2737
      %v2739 = vpop.f32.mrf.mxu0
      %v2740 = vadd.f32 %v2651, %v2739
      %2741 = vmatmul.bf16.gmra.mxu0 %v1453
      %v2742 = vpop.f32.mrf.mxu0
      %v2743 = vadd.f32 %v2654, %v2742
      %v2744 = vpop.f32.mrf.mxu0
      %v2745 = vadd.f32 %v2656, %v2744
      %2746 = vmatmul.bf16.gmra.mxu0 %v1462
      %v2747 = vpop.f32.mrf.mxu0
      %v2748 = vadd.f32 %v2659, %v2747
      %v2749 = vpop.f32.mrf.mxu0
      %v2750 = vadd.f32 %v2661, %v2749
      %2751 = vdwg.mxu0
      %2752 = vmatpush.bf16.msra.mxu0 %v1967
      %2753 = vmatpush.bf16.msra.mxu0 %v1966
      %2754 = vmatpush.bf16.msra.mxu0 %v1965
      %2755 = vmatpush.bf16.msra.mxu0 %v1964
      %2756 = vmatpush.bf16.msra.mxu0 %v1963
      %2757 = vmatpush.bf16.msra.mxu0 %v1962
      %2758 = vmatpush.bf16.msra.mxu0 %v1961
      %2759 = vmatpush.bf16.msra.mxu0 %v1960
      %2760 = vmatmul.bf16.gmra.mxu0 %v1328
      %v2761 = vpop.f32.mrf.mxu0
      %v2762 = vadd.f32 %v2673, %v2761
      %v2763 = vpop.f32.mrf.mxu0
      %v2764 = vadd.f32 %v2675, %v2763
      %2765 = vmatmul.bf16.gmra.mxu0 %v1337
      %v2766 = vpop.f32.mrf.mxu0
      %v2767 = vadd.f32 %v2678, %v2766
      %v2768 = vpop.f32.mrf.mxu0
      %v2769 = vadd.f32 %v2680, %v2768
      %2770 = vmatmul.bf16.gmra.mxu0 %v1346
      %v2771 = vpop.f32.mrf.mxu0
      %v2772 = vadd.f32 %v2683, %v2771
      %v2773 = vpop.f32.mrf.mxu0
      %v2774 = vadd.f32 %v2685, %v2773
      %2775 = vmatmul.bf16.gmra.mxu0 %v1355
      %v2776 = vpop.f32.mrf.mxu0
      %v2777 = vadd.f32 %v2688, %v2776
      %v2778 = vpop.f32.mrf.mxu0
      %v2779 = vadd.f32 %v2690, %v2778
      %2780 = vmatmul.bf16.gmra.mxu0 %v1364
      %v2781 = vpop.f32.mrf.mxu0
      %v2782 = vadd.f32 %v2693, %v2781
      %v2783 = vpop.f32.mrf.mxu0
      %v2784 = vadd.f32 %v2695, %v2783
      %2785 = vmatmul.bf16.gmra.mxu0 %v1373
      %v2786 = vpop.f32.mrf.mxu0
      %v2787 = vadd.f32 %v2698, %v2786
      %v2788 = vpop.f32.mrf.mxu0
      %v2789 = vadd.f32 %v2700, %v2788
      %2790 = vmatmul.bf16.gmra.mxu0 %v1382
      %v2791 = vpop.f32.mrf.mxu0
      %v2792 = vadd.f32 %v2703, %v2791
      %v2793 = vpop.f32.mrf.mxu0
      %v2794 = vadd.f32 %v2705, %v2793
      %2795 = vmatmul.bf16.gmra.mxu0 %v1391
      %v2796 = vpop.f32.mrf.mxu0
      %v2797 = vadd.f32 %v2708, %v2796
      %v2798 = vpop.f32.mrf.mxu0
      %v2799 = vadd.f32 %v2710, %v2798
      %2800 = vmatmul.bf16.gmra.mxu0 %v1400
      %v2801 = vpop.f32.mrf.mxu0
      %v2802 = vadd.f32 %v2713, %v2801
      %v2803 = vpop.f32.mrf.mxu0
      %v2804 = vadd.f32 %v2715, %v2803
      %2805 = vmatmul.bf16.gmra.mxu0 %v1409
      %v2806 = vpop.f32.mrf.mxu0
      %v2807 = vadd.f32 %v2718, %v2806
      %v2808 = vpop.f32.mrf.mxu0
      %v2809 = vadd.f32 %v2720, %v2808
      %2810 = vmatmul.bf16.gmra.mxu0 %v1418
      %v2811 = vpop.f32.mrf.mxu0
      %v2812 = vadd.f32 %v2723, %v2811
      %v2813 = vpop.f32.mrf.mxu0
      %v2814 = vadd.f32 %v2725, %v2813
      %2815 = vmatmul.bf16.gmra.mxu0 %v1427
      %v2816 = vpop.f32.mrf.mxu0
      %v2817 = vadd.f32 %v2728, %v2816
      %v2818 = vpop.f32.mrf.mxu0
      %v2819 = vadd.f32 %v2730, %v2818
      %2820 = vmatmul.bf16.gmra.mxu0 %v1436
      %v2821 = vpop.f32.mrf.mxu0
      %v2822 = vadd.f32 %v2733, %v2821
      %v2823 = vpop.f32.mrf.mxu0
      %v2824 = vadd.f32 %v2735, %v2823
      %2825 = vmatmul.bf16.gmra.mxu0 %v1445
      %v2826 = vpop.f32.mrf.mxu0
      %v2827 = vadd.f32 %v2738, %v2826
      %v2828 = vpop.f32.mrf.mxu0
      %v2829 = vadd.f32 %v2740, %v2828
      %2830 = vmatmul.bf16.gmra.mxu0 %v1454
      %v2831 = vpop.f32.mrf.mxu0
      %v2832 = vadd.f32 %v2743, %v2831
      %v2833 = vpop.f32.mrf.mxu0
      %v2834 = vadd.f32 %v2745, %v2833
      %2835 = vmatmul.bf16.gmra.mxu0 %v1463
      %v2836 = vpop.f32.mrf.mxu0
      %v2837 = vadd.f32 %v2748, %v2836
      %v2838 = vpop.f32.mrf.mxu0
      %v2839 = vadd.f32 %v2750, %v2838
      %2840 = vdwg.mxu0
      %v2841 = vadd.f32 %v2762, %v2764
      %v2842 = vadd.f32 %v2841, %v2767
      %v2843 = vadd.f32 %v2842, %v2769
      %v2844 = vadd.f32 %v2843, %v2772
      %v2845 = vadd.f32 %v2844, %v2774
      %v2846 = vadd.f32 %v2845, %v2777
      %v2847 = vadd.f32 %v2846, %v2779
      %v2848 = vadd.f32 %v2847, %v2782
      %v2849 = vadd.f32 %v2848, %v2784
      %v2850 = vadd.f32 %v2849, %v2787
      %v2851 = vadd.f32 %v2850, %v2789
      %v2852 = vadd.f32 %v2851, %v2792
      %v2853 = vadd.f32 %v2852, %v2794
      %v2854 = vadd.f32 %v2853, %v2797
      %v2855 = vadd.f32 %v2854, %v2799
      %v2856 = vadd.f32 %v2855, %v2802
      %v2857 = vadd.f32 %v2856, %v2804
      %v2858 = vadd.f32 %v2857, %v2807
      %v2859 = vadd.f32 %v2858, %v2809
      %v2860 = vadd.f32 %v2859, %v2812
      %v2861 = vadd.f32 %v2860, %v2814
      %v2862 = vadd.f32 %v2861, %v2817
      %v2863 = vadd.f32 %v2862, %v2819
      %v2864 = vadd.f32 %v2863, %v2822
      %v2865 = vadd.f32 %v2864, %v2824
      %v2866 = vadd.f32 %v2865, %v2827
      %v2867 = vadd.f32 %v2866, %v2829
      %v2868 = vadd.f32 %v2867, %v2832
      %v2869 = vadd.f32 %v2868, %v2834
      %v2870 = vadd.f32 %v2869, %v2837
      %v2871 = vadd.f32 %v2870, %v2839
      %v2872 = vrot.slane %v2871, 4
      %v2873 = vadd.f32 %v2871, %v2872
      %v2874 = vrot.slane %v2873, 2
      %v2875 = vadd.f32 %v2873, %v2874
      %v2876 = vrot.slane %v2875, 1
      %v2877 = vadd.f32 %v2875, %v2876
      %2878 = vst [vmem:[%s208] sm:$0x1] %v2877
      %v2879 = vmul.f32 %v2762, %v2762
      %v2880 = vmul.f32 %v2764, %v2764
      %v2881 = vmul.f32 %v2767, %v2767
      %v2882 = vmul.f32 %v2769, %v2769
      %v2883 = vmul.f32 %v2772, %v2772
      %v2884 = vmul.f32 %v2774, %v2774
      %v2885 = vmul.f32 %v2777, %v2777
      %v2886 = vmul.f32 %v2779, %v2779
      %v2887 = vmul.f32 %v2782, %v2782
      %v2888 = vmul.f32 %v2784, %v2784
      %v2889 = vmul.f32 %v2787, %v2787
      %v2890 = vmul.f32 %v2789, %v2789
      %v2891 = vmul.f32 %v2792, %v2792
      %v2892 = vmul.f32 %v2794, %v2794
      %v2893 = vmul.f32 %v2797, %v2797
      %v2894 = vmul.f32 %v2799, %v2799
      %v2895 = vmul.f32 %v2802, %v2802
      %v2896 = vmul.f32 %v2804, %v2804
      %v2897 = vmul.f32 %v2807, %v2807
      %v2898 = vmul.f32 %v2809, %v2809
      %v2899 = vmul.f32 %v2812, %v2812
      %v2900 = vmul.f32 %v2814, %v2814
      %v2901 = vmul.f32 %v2817, %v2817
      %v2902 = vmul.f32 %v2819, %v2819
      %v2903 = vmul.f32 %v2822, %v2822
      %v2904 = vmul.f32 %v2824, %v2824
      %v2905 = vmul.f32 %v2827, %v2827
      %v2906 = vmul.f32 %v2829, %v2829
      %v2907 = vmul.f32 %v2832, %v2832
      %v2908 = vmul.f32 %v2834, %v2834
      %v2909 = vmul.f32 %v2837, %v2837
      %v2910 = vmul.f32 %v2839, %v2839
      %v2911 = vadd.f32 %v2879, %v2880
      %v2912 = vadd.f32 %v2911, %v2881
      %v2913 = vadd.f32 %v2912, %v2882
      %v2914 = vadd.f32 %v2913, %v2883
      %v2915 = vadd.f32 %v2914, %v2884
      %v2916 = vadd.f32 %v2915, %v2885
      %v2917 = vadd.f32 %v2916, %v2886
      %v2918 = vadd.f32 %v2917, %v2887
      %v2919 = vadd.f32 %v2918, %v2888
      %v2920 = vadd.f32 %v2919, %v2889
      %v2921 = vadd.f32 %v2920, %v2890
      %v2922 = vadd.f32 %v2921, %v2891
      %v2923 = vadd.f32 %v2922, %v2892
      %v2924 = vadd.f32 %v2923, %v2893
      %v2925 = vadd.f32 %v2924, %v2894
      %v2926 = vadd.f32 %v2925, %v2895
      %v2927 = vadd.f32 %v2926, %v2896
      %v2928 = vadd.f32 %v2927, %v2897
      %v2929 = vadd.f32 %v2928, %v2898
      %v2930 = vadd.f32 %v2929, %v2899
      %v2931 = vadd.f32 %v2930, %v2900
      %v2932 = vadd.f32 %v2931, %v2901
      %v2933 = vadd.f32 %v2932, %v2902
      %v2934 = vadd.f32 %v2933, %v2903
      %v2935 = vadd.f32 %v2934, %v2904
      %v2936 = vadd.f32 %v2935, %v2905
      %v2937 = vadd.f32 %v2936, %v2906
      %v2938 = vadd.f32 %v2937, %v2907
      %v2939 = vadd.f32 %v2938, %v2908
      %v2940 = vadd.f32 %v2939, %v2909
      %v2941 = vadd.f32 %v2940, %v2910
      %v2942 = vrot.slane %v2941, 4
      %v2943 = vadd.f32 %v2941, %v2942
      %v2944 = vrot.slane %v2943, 2
      %v2945 = vadd.f32 %v2943, %v2944
      %v2946 = vrot.slane %v2945, 1
      %v2947 = vadd.f32 %v2945, %v2946
      %2948 = vst [vmem:[%s208 + $0x1] sm:$0x1] %v2947
      %v2949 = vpack.c.bf16 %v2762, %v2762
      %v2950 = vpack.c.bf16 %v2764, %v2764
      %v2951 = vpack.c.bf16 %v2767, %v2767
      %v2952 = vpack.c.bf16 %v2769, %v2769
      %v2953 = vpack.c.bf16 %v2772, %v2772
      %v2954 = vpack.c.bf16 %v2774, %v2774
      %v2955 = vpack.c.bf16 %v2777, %v2777
      %v2956 = vpack.c.bf16 %v2779, %v2779
      %v2957 = vpack.c.bf16 %v2782, %v2782
      %v2958 = vpack.c.bf16 %v2784, %v2784
      %v2959 = vpack.c.bf16 %v2787, %v2787
      %v2960 = vpack.c.bf16 %v2789, %v2789
      %v2961 = vpack.c.bf16 %v2792, %v2792
      %v2962 = vpack.c.bf16 %v2794, %v2794
      %v2963 = vpack.c.bf16 %v2797, %v2797
      %v2964 = vpack.c.bf16 %v2799, %v2799
      %v2965 = vpack.c.bf16 %v2802, %v2802
      %v2966 = vpack.c.bf16 %v2804, %v2804
      %v2967 = vpack.c.bf16 %v2807, %v2807
      %v2968 = vpack.c.bf16 %v2809, %v2809
      %v2969 = vpack.c.bf16 %v2812, %v2812
      %v2970 = vpack.c.bf16 %v2814, %v2814
      %v2971 = vpack.c.bf16 %v2817, %v2817
      %v2972 = vpack.c.bf16 %v2819, %v2819
      %v2973 = vpack.c.bf16 %v2822, %v2822
      %v2974 = vpack.c.bf16 %v2824, %v2824
      %v2975 = vpack.c.bf16 %v2827, %v2827
      %v2976 = vpack.c.bf16 %v2829, %v2829
      %v2977 = vpack.c.bf16 %v2832, %v2832
      %v2978 = vpack.c.bf16 %v2834, %v2834
      %v2979 = vpack.c.bf16 %v2837, %v2837
      %v2980 = vpack.c.bf16 %v2839, %v2839
      %2981 = vst [vmem:[%s204] sm:$0xf] %v2949
      %2982 = vst [vmem:[%s204 + $0x4] sm:$0xf] %v2950
      %2983 = vst [vmem:[%s204 + $0x8] sm:$0xf] %v2951
      %2984 = vst [vmem:[%s204 + $0xc] sm:$0xf] %v2952
      %2985 = vst [vmem:[%s204 + $0x10] sm:$0xf] %v2953
      %2986 = vst [vmem:[%s204 + $0x14] sm:$0xf] %v2954
      %2987 = vst [vmem:[%s204 + $0x18] sm:$0xf] %v2955
      %2988 = vst [vmem:[%s204 + $0x1c] sm:$0xf] %v2956
      %2989 = vst [vmem:[%s204 + $0x20] sm:$0xf] %v2957
      %2990 = vst [vmem:[%s204 + $0x24] sm:$0xf] %v2958
      %2991 = vst [vmem:[%s204 + $0x28] sm:$0xf] %v2959
      %2992 = vst [vmem:[%s204 + $0x2c] sm:$0xf] %v2960
      %2993 = vst [vmem:[%s204 + $0x30] sm:$0xf] %v2961
      %2994 = vst [vmem:[%s204 + $0x34] sm:$0xf] %v2962
      %2995 = vst [vmem:[%s204 + $0x38] sm:$0xf] %v2963
      %2996 = vst [vmem:[%s204 + $0x3c] sm:$0xf] %v2964
      %2997 = vst [vmem:[%s204 + $0x40] sm:$0xf] %v2965
      %2998 = vst [vmem:[%s204 + $0x44] sm:$0xf] %v2966
      %2999 = vst [vmem:[%s204 + $0x48] sm:$0xf] %v2967
      %3000 = vst [vmem:[%s204 + $0x4c] sm:$0xf] %v2968
      %3001 = vst [vmem:[%s204 + $0x50] sm:$0xf] %v2969
      %3002 = vst [vmem:[%s204 + $0x54] sm:$0xf] %v2970
      %3003 = vst [vmem:[%s204 + $0x58] sm:$0xf] %v2971
      %3004 = vst [vmem:[%s204 + $0x5c] sm:$0xf] %v2972
      %3005 = vst [vmem:[%s204 + $0x60] sm:$0xf] %v2973
      %3006 = vst [vmem:[%s204 + $0x64] sm:$0xf] %v2974
      %3007 = vst [vmem:[%s204 + $0x68] sm:$0xf] %v2975
      %3008 = vst [vmem:[%s204 + $0x6c] sm:$0xf] %v2976
      %3009 = vst [vmem:[%s204 + $0x70] sm:$0xf] %v2977
      %3010 = vst [vmem:[%s204 + $0x74] sm:$0xf] %v2978
      %3011 = vst [vmem:[%s204 + $0x78] sm:$0xf] %v2979
      %3012 = vst [vmem:[%s204 + $0x7c] sm:$0xf] %v2980
      %p3013 = scmp.lt.s32.totalorder %s16, 1
      %s3014 = scalar_select %p3013, %s16, 1
      %s3015 = smul.addr %s3014, 32
      %s3016 = smul.addr %s3015, 4
      %s3017 = scalar_lea.vmem %s3, %s3016
      %p3018 = scmp.lt.s32.totalorder %s16, 1
      %s3019 = scalar_select %p3018, %s16, 1
      %s3020 = smul.addr %s3019, 2
      %s3021 = scalar_lea.vmem %s4, %s3020
      // Predicated region
      $region33: #{stacked_conv_layers_forward.3} parent=31 // pred_check
        %p3022 = pneg %p102
      $region34: #{stacked_conv_layers_forward.3} parent=31 // pred_check_branch
        %3024 = sbr.rel (%p3022) target = $region36
      $region35: #{stacked_conv_layers_forward.3} parent=31 // pred_region
        _
      $region36: #{stacked_conv_layers_forward.3} parent=31 // pred_fallthru
        _
      // Predicated region
      $region37: #{stacked_conv_layers_forward.3} parent=31 // pred_check
        %p3025 = pneg %p128
      $region38: #{stacked_conv_layers_forward.3} parent=31 // pred_check_branch
        %3027 = sbr.rel (%p3025) target = $region40
      $region39: #{stacked_conv_layers_forward.3} parent=31 // pred_region
        _
      $region40: #{stacked_conv_layers_forward.3} parent=31 // pred_fallthru
        _
    $region32: #{stacked_conv_layers_forward.3} parent=5 // pred_fallthru
      _
    %p3028 = scmp.le.s32.totalorder 2, %s11
    // Predicated region
    $region41: #{stacked_conv_layers_forward.3} parent=5 // pred_check
      %p3029 = pneg %p3028
    $region42: #{stacked_conv_layers_forward.3} parent=5 // pred_check_branch
      %3031 = sbr.rel (%p3029) target = $region44
    $region43: #{stacked_conv_layers_forward.3} parent=5 // pred_region
      %s3032 = ssub.s32 %s11, 2
      // Predicated region
      $region45: #{stacked_conv_layers_forward.3} parent=43 // pred_check
        %p3033 = pneg %p108
      $region46: #{stacked_conv_layers_forward.3} parent=43 // pred_check_branch
        %3035 = sbr.rel (%p3033) target = $region48
      $region47: #{stacked_conv_layers_forward.3} parent=43 // pred_region
        %p3036 = scmp.lt.s32.totalorder %s17, 1
        %s3037 = scalar_select %p3036, %s17, 1
        %s3038 = smul.addr %s3037, 32
        %s3039 = smul.addr %s3038, 4
        %s3040 = scalar_lea.vmem %s3, %s3039
      $region48: #{stacked_conv_layers_forward.3} parent=43 // pred_fallthru
        _
      // Predicated region
      $region49: #{stacked_conv_layers_forward.3} parent=43 // pred_check
        %p3041 = pneg %p134
      $region50: #{stacked_conv_layers_forward.3} parent=43 // pred_check_branch
        %3043 = sbr.rel (%p3041) target = $region52
      $region51: #{stacked_conv_layers_forward.3} parent=43 // pred_region
        %p3044 = scmp.lt.s32.totalorder %s17, 1
        %s3045 = scalar_select %p3044, %s17, 1
        %s3046 = smul.addr %s3045, 2
        %s3047 = scalar_lea.vmem %s4, %s3046
      $region52: #{stacked_conv_layers_forward.3} parent=43 // pred_fallthru
        _
    $region44: #{stacked_conv_layers_forward.3} parent=5 // pred_fallthru
      _
  $region6: #{stacked_conv_layers_forward.3} parent=0 // loop_footer
    %s15 = sadd.s32 1, %s11
  $region7: #{stacked_conv_layers_forward.3} parent=0 // loop_footer_branch
    %10 = sbr.rel target = $region3
  $region8: #{stacked_conv_layers_forward.3} parent=0 // loop_exit
    _

// kernel: stacked_conv_layers_forward.4
$region0: #{stacked_conv_layers_forward.4}
  #allocation0 [shape = 'u32[]', space=smem, size = 0x4, offset = 0x4, fixed_abs, tag = 'smem constant byte address 0x4 - core index']
  #allocation1 [shape = 'u32[72,128]{1,0:T(1,128)}', space=vmem, size = 0x9000, scoped, tag = 'internal scratch']
  #allocation2 [shape = 'f32[16,16,1152]{2,1,0:T(8,128)}', space=vmem, size = 0x120000, scoped, tag = 'scratch operand']
  %s0 = inlined_call_operand.vmem [shape: bf16[2,16,16,128], index: 0, kind: input, shape index: {}]
  %s1 = inlined_call_operand.vmem [shape: f32[2,128], index: 1, kind: input, shape index: {}]
  %s2 = inlined_call_operand.vmem [shape: bf16[1152,128], index: 2, kind: input, shape index: {}]
  %s3 = inlined_call_operand.vmem [shape: bf16[2,16,16,128], index: 3, kind: output, shape index: {0}]
  %s4 = inlined_call_operand.vmem [shape: f32[2,2,128], index: 4, kind: output, shape index: {1}]
  %5 = xla_tuple %s3, %s4
  %s6 = sld [smem:[#allocation0]]
  $region53: #{stacked_conv_layers_forward.4} parent=0
    _
  %s8 = ssub.s32 1, %s6
  %s9 = scalar_select 0, %s8, %s6
  loop: start=0, step=1, limit=4
  $region2: #{stacked_conv_layers_forward.4} parent=0 // loop_pre_header
    _
  $region3: #{stacked_conv_layers_forward.4} parent=0 // loop_header
    %s11 = sphi 0, %s15
    %p12 = scmp.ge.s32.totalorder %s11, 4
    %s21 = sphi 0, %s23
    %s24 = sphi 0, %s21
    %s25 = sphi 0, %s24
    %s41 = sphi 0, %s25
    %s45 = sphi 0, %s45
    %s47 = sphi 0, %s45
    %s48 = sphi 0, %s47
    %s62 = sphi 0, %s48
    %s66 = sphi 0, %s66
    %s68 = sphi 0, %s66
    %s69 = sphi 0, %s68
    %s83 = sphi 0, %s69
    %s89 = sphi 0, %s91
    %s92 = sphi 0, %s89
    %s93 = sphi 0, %s92
    %s109 = sphi 0, %s93
    %s115 = sphi 0, %s117
    %s118 = sphi 0, %s115
    %s119 = sphi 0, %s118
    %s135 = sphi 0, %s119
  $region4: #{stacked_conv_layers_forward.4} parent=0 // loop_header_branch
    %14 = sbr.rel (%p12) target = $region8
  $region5: #{stacked_conv_layers_forward.4} parent=0 // loop_body
    %s16 = ssub.s32 %s11, 1
    %s17 = ssub.s32 %s11, 2
    %s18 = sadd.s32 %s11, 1
    %s19 = ssub.s32 %s11, %s18
    %p20 = scmp.eq.s32.totalorder %s19, 0
    %s22 = sadd.s32 %s21, 1
    %s23 = scalar_select %p20, %s21, %s22
    %p26 = pneg %p20
    %p27 = scmp.eq.s32.totalorder %s11, 1
    %p28 = por %p26, %p27
    %p29 = scmp.ne.s32.totalorder %s21, %s24
    %p30 = scmp.eq.s32.totalorder %s11, 0
    %p31 = por %p29, %p30
    %p32 = scmp.ne.s32.totalorder %s21, %s24
    %p33 = scmp.eq.s32.totalorder %s16, 1
    %p34 = por %p32, %p33
    %p35 = scmp.ne.s32.totalorder %s24, %s25
    %p36 = scmp.eq.s32.totalorder %s16, 0
    %p37 = por %p35, %p36
    %p38 = scmp.ne.s32.totalorder %s24, %s25
    %p39 = scmp.eq.s32.totalorder %s17, 1
    %p40 = por %p38, %p39
    %p42 = scmp.ne.s32.totalorder %s25, %s41
    %p43 = scmp.eq.s32.totalorder %s17, 0
    %p44 = por %p42, %p43
    %s46 = sadd.s32 %s45, 1
    %p49 = scmp.eq.s32.totalorder %s11, 1
    %p50 = scmp.ne.s32.totalorder %s45, %s47
    %p51 = scmp.eq.s32.totalorder %s11, 0
    %p52 = por %p50, %p51
    %p53 = scmp.ne.s32.totalorder %s45, %s47
    %p54 = scmp.eq.s32.totalorder %s16, 1
    %p55 = por %p53, %p54
    %p56 = scmp.ne.s32.totalorder %s47, %s48
    %p57 = scmp.eq.s32.totalorder %s16, 0
    %p58 = por %p56, %p57
    %p59 = scmp.ne.s32.totalorder %s47, %s48
    %p60 = scmp.eq.s32.totalorder %s17, 1
    %p61 = por %p59, %p60
    %p63 = scmp.ne.s32.totalorder %s48, %s62
    %p64 = scmp.eq.s32.totalorder %s17, 0
    %p65 = por %p63, %p64
    %s67 = sadd.s32 %s66, 1
    %p70 = scmp.eq.s32.totalorder %s11, 1
    %p71 = scmp.ne.s32.totalorder %s66, %s68
    %p72 = scmp.eq.s32.totalorder %s11, 0
    %p73 = por %p71, %p72
    %p74 = scmp.ne.s32.totalorder %s66, %s68
    %p75 = scmp.eq.s32.totalorder %s16, 1
    %p76 = por %p74, %p75
    %p77 = scmp.ne.s32.totalorder %s68, %s69
    %p78 = scmp.eq.s32.totalorder %s16, 0
    %p79 = por %p77, %p78
    %p80 = scmp.ne.s32.totalorder %s68, %s69
    %p81 = scmp.eq.s32.totalorder %s17, 1
    %p82 = por %p80, %p81
    %p84 = scmp.ne.s32.totalorder %s69, %s83
    %p85 = scmp.eq.s32.totalorder %s17, 0
    %p86 = por %p84, %p85
    %s87 = ssub.s32 %s11, %s18
    %p88 = scmp.eq.s32.totalorder %s87, 0
    %s90 = sadd.s32 %s89, 1
    %s91 = scalar_select %p88, %s89, %s90
    %p94 = pneg %p88
    %p95 = scmp.eq.s32.totalorder %s11, 1
    %p96 = por %p94, %p95
    %p97 = scmp.ne.s32.totalorder %s89, %s92
    %p98 = scmp.eq.s32.totalorder %s11, 0
    %p99 = por %p97, %p98
    %p100 = scmp.ne.s32.totalorder %s89, %s92
    %p101 = scmp.eq.s32.totalorder %s16, 1
    %p102 = por %p100, %p101
    %p103 = scmp.ne.s32.totalorder %s92, %s93
    %p104 = scmp.eq.s32.totalorder %s16, 0
    %p105 = por %p103, %p104
    %p106 = scmp.ne.s32.totalorder %s92, %s93
    %p107 = scmp.eq.s32.totalorder %s17, 1
    %p108 = por %p106, %p107
    %p110 = scmp.ne.s32.totalorder %s93, %s109
    %p111 = scmp.eq.s32.totalorder %s17, 0
    %p112 = por %p110, %p111
    %s113 = ssub.s32 %s11, %s18
    %p114 = scmp.eq.s32.totalorder %s113, 0
    %s116 = sadd.s32 %s115, 1
    %s117 = scalar_select %p114, %s115, %s116
    %p120 = pneg %p114
    %p121 = scmp.eq.s32.totalorder %s11, 1
    %p122 = por %p120, %p121
    %p123 = scmp.ne.s32.totalorder %s115, %s118
    %p124 = scmp.eq.s32.totalorder %s11, 0
    %p125 = por %p123, %p124
    %p126 = scmp.ne.s32.totalorder %s115, %s118
    %p127 = scmp.eq.s32.totalorder %s16, 1
    %p128 = por %p126, %p127
    %p129 = scmp.ne.s32.totalorder %s118, %s119
    %p130 = scmp.eq.s32.totalorder %s16, 0
    %p131 = por %p129, %p130
    %p132 = scmp.ne.s32.totalorder %s118, %s119
    %p133 = scmp.eq.s32.totalorder %s17, 1
    %p134 = por %p132, %p133
    %p136 = scmp.ne.s32.totalorder %s119, %s135
    %p137 = scmp.eq.s32.totalorder %s17, 0
    %p138 = por %p136, %p137
    %p139 = scmp.le.s32.totalorder 1, %s11
    %p140 = scmp.lt.s32.totalorder %s11, 3
    %p141 = pnand %p139, %p140
    %p142 = pneg %p141
    // Predicated region
    $region9: #{stacked_conv_layers_forward.4} parent=5 // pred_check
      _
    $region10: #{stacked_conv_layers_forward.4} parent=5 // pred_check_branch
      %144 = sbr.rel (%p141) target = $region12
    $region11: #{stacked_conv_layers_forward.4} parent=5 // pred_region
      %s145 = ssub.s32 %s11, 1
      // Predicated region
      $region13: #{stacked_conv_layers_forward.4} parent=11 // pred_check
        %p146 = pneg %p58
      $region14: #{stacked_conv_layers_forward.4} parent=11 // pred_check_branch
        %148 = sbr.rel (%p146) target = $region16
      $region15: #{stacked_conv_layers_forward.4} parent=11 // pred_region
        _
      $region16: #{stacked_conv_layers_forward.4} parent=11 // pred_fallthru
        _
      // Predicated region
      $region17: #{stacked_conv_layers_forward.4} parent=11 // pred_check
        %p149 = pneg %p79
      $region18: #{stacked_conv_layers_forward.4} parent=11 // pred_check_branch
        %151 = sbr.rel (%p149) target = $region20
      $region19: #{stacked_conv_layers_forward.4} parent=11 // pred_region
        _
      $region20: #{stacked_conv_layers_forward.4} parent=11 // pred_fallthru
        _
    $region12: #{stacked_conv_layers_forward.4} parent=5 // pred_fallthru
      _
    %p152 = scmp.lt.s32.totalorder %s11, 2
    // Predicated region
    $region21: #{stacked_conv_layers_forward.4} parent=5 // pred_check
      %p153 = pneg %p152
    $region22: #{stacked_conv_layers_forward.4} parent=5 // pred_check_branch
      %155 = sbr.rel (%p153) target = $region24
    $region23: #{stacked_conv_layers_forward.4} parent=5 // pred_region
      // Predicated region
      $region25: #{stacked_conv_layers_forward.4} parent=23 // pred_check
        %p156 = pneg %p31
      $region26: #{stacked_conv_layers_forward.4} parent=23 // pred_check_branch
        %158 = sbr.rel (%p156) target = $region28
      $region27: #{stacked_conv_layers_forward.4} parent=23 // pred_region
        %p159 = scmp.lt.s32.totalorder %s11, 1
        %s160 = scalar_select %p159, %s11, 1
        %s161 = smul.addr %s160, 32
        %s162 = smul.addr %s161, 4
        %s163 = scalar_lea.vmem %s0, %s162
      $region28: #{stacked_conv_layers_forward.4} parent=23 // pred_fallthru
        _
    $region24: #{stacked_conv_layers_forward.4} parent=5 // pred_fallthru
      _
    %p164 = scmp.le.s32.totalorder 1, %s11
    %p165 = scmp.lt.s32.totalorder %s11, 3
    %p166 = pnand %p164, %p165
    %p167 = pneg %p166
    // Predicated region
    $region29: #{stacked_conv_layers_forward.4} parent=5 // pred_check
      _
    $region30: #{stacked_conv_layers_forward.4} parent=5 // pred_check_branch
      %169 = sbr.rel (%p166) target = $region32
    $region31: #{stacked_conv_layers_forward.4} parent=5 // pred_region
      %s170 = ssub.s32 %s11, 1
      %p171 = scmp.lt.s32.totalorder %s16, 1
      %s172 = scalar_select %p171, %s16, 1
      %s173 = smul.addr %s172, 32
      %s174 = smul.addr %s173, 4
      %s175 = scalar_lea.vmem %s0, %s174
      %p176 = pneg %p37
      %p177 = pneg %p34
      %p178 = pneg %p58
      %p179 = pneg %p55
      %p180 = pneg %p79
      %p181 = pneg %p76
      %p182 = pneg %p105
      %p183 = pneg %p102
      %p184 = scmp.lt.s32.totalorder %s16, 1
      %s185 = scalar_select %p184, %s16, 1
      %s186 = smul.addr %s185, 32
      %s187 = smul.addr %s186, 4
      %s188 = scalar_lea.vmem %s3, %s187
      %p189 = pneg %p131
      %p190 = pneg %p128
      %p191 = scmp.lt.s32.totalorder %s16, 1
      %s192 = scalar_select %p191, %s16, 1
      %s193 = smul.addr %s192, 2
      %s194 = scalar_lea.vmem %s4, %s193
      %p195 = scmp.lt.s32.totalorder %s16, 1
      %s196 = scalar_select %p195, %s16, 1
      %s197 = smul.addr %s196, 32
      %s198 = smul.addr %s197, 4
      %s199 = scalar_lea.vmem %s0, %s198
      %p200 = scmp.lt.s32.totalorder %s16, 1
      %s201 = scalar_select %p200, %s16, 1
      %s202 = smul.addr %s201, 32
      %s203 = smul.addr %s202, 4
      %s204 = scalar_lea.vmem %s3, %s203
      %p205 = scmp.lt.s32.totalorder %s16, 1
      %s206 = scalar_select %p205, %s16, 1
      %s207 = smul.addr %s206, 2
      %s208 = scalar_lea.vmem %s4, %s207
      %v209 = vld [vmem:[%s1] sm:$0x1]
      %v210 = vld [vmem:[%s1 + $0x1] sm:$0x1]
      %v211 = vld [vmem:[%s199] sm:$0xf]
      %v212 = vld [vmem:[%s199 + $0x4] sm:$0xf]
      %v213 = vld [vmem:[%s199 + $0x8] sm:$0xf]
      %v214 = vld [vmem:[%s199 + $0xc] sm:$0xf]
      %v215 = vld [vmem:[%s199 + $0x10] sm:$0xf]
      %v216 = vld [vmem:[%s199 + $0x14] sm:$0xf]
      %v217 = vld [vmem:[%s199 + $0x18] sm:$0xf]
      %v218 = vld [vmem:[%s199 + $0x1c] sm:$0xf]
      %v219 = vld [vmem:[%s199 + $0x20] sm:$0xf]
      %v220 = vld [vmem:[%s199 + $0x24] sm:$0xf]
      %v221 = vld [vmem:[%s199 + $0x28] sm:$0xf]
      %v222 = vld [vmem:[%s199 + $0x2c] sm:$0xf]
      %v223 = vld [vmem:[%s199 + $0x30] sm:$0xf]
      %v224 = vld [vmem:[%s199 + $0x34] sm:$0xf]
      %v225 = vld [vmem:[%s199 + $0x38] sm:$0xf]
      %v226 = vld [vmem:[%s199 + $0x3c] sm:$0xf]
      %v227 = vld [vmem:[%s199 + $0x40] sm:$0xf]
      %v228 = vld [vmem:[%s199 + $0x44] sm:$0xf]
      %v229 = vld [vmem:[%s199 + $0x48] sm:$0xf]
      %v230 = vld [vmem:[%s199 + $0x4c] sm:$0xf]
      %v231 = vld [vmem:[%s199 + $0x50] sm:$0xf]
      %v232 = vld [vmem:[%s199 + $0x54] sm:$0xf]
      %v233 = vld [vmem:[%s199 + $0x58] sm:$0xf]
      %v234 = vld [vmem:[%s199 + $0x5c] sm:$0xf]
      %v235 = vld [vmem:[%s199 + $0x60] sm:$0xf]
      %v236 = vld [vmem:[%s199 + $0x64] sm:$0xf]
      %v237 = vld [vmem:[%s199 + $0x68] sm:$0xf]
      %v238 = vld [vmem:[%s199 + $0x6c] sm:$0xf]
      %v239 = vld [vmem:[%s199 + $0x70] sm:$0xf]
      %v240 = vld [vmem:[%s199 + $0x74] sm:$0xf]
      %v241 = vld [vmem:[%s199 + $0x78] sm:$0xf]
      %v242 = vld [vmem:[%s199 + $0x7c] sm:$0xf]
      %v243 = vunpack.c.l.bf16 %v211
      %v244 = vunpack.c.l.bf16 %v212
      %v245 = vunpack.c.l.bf16 %v213
      %v246 = vunpack.c.l.bf16 %v214
      %v247 = vunpack.c.l.bf16 %v215
      %v248 = vunpack.c.l.bf16 %v216
      %v249 = vunpack.c.l.bf16 %v217
      %v250 = vunpack.c.l.bf16 %v218
      %v251 = vunpack.c.l.bf16 %v219
      %v252 = vunpack.c.l.bf16 %v220
      %v253 = vunpack.c.l.bf16 %v221
      %v254 = vunpack.c.l.bf16 %v222
      %v255 = vunpack.c.l.bf16 %v223
      %v256 = vunpack.c.l.bf16 %v224
      %v257 = vunpack.c.l.bf16 %v225
      %v258 = vunpack.c.l.bf16 %v226
      %v259 = vunpack.c.l.bf16 %v227
      %v260 = vunpack.c.l.bf16 %v228
      %v261 = vunpack.c.l.bf16 %v229
      %v262 = vunpack.c.l.bf16 %v230
      %v263 = vunpack.c.l.bf16 %v231
      %v264 = vunpack.c.l.bf16 %v232
      %v265 = vunpack.c.l.bf16 %v233
      %v266 = vunpack.c.l.bf16 %v234
      %v267 = vunpack.c.l.bf16 %v235
      %v268 = vunpack.c.l.bf16 %v236
      %v269 = vunpack.c.l.bf16 %v237
      %v270 = vunpack.c.l.bf16 %v238
      %v271 = vunpack.c.l.bf16 %v239
      %v272 = vunpack.c.l.bf16 %v240
      %v273 = vunpack.c.l.bf16 %v241
      %v274 = vunpack.c.l.bf16 %v242
      %v275 = vperm.slane %v209, 0
      %v276 = vmul.f32 %v243, %v275
      %v277 = vmul.f32 %v244, %v275
      %v278 = vmul.f32 %v245, %v275
      %v279 = vmul.f32 %v246, %v275
      %v280 = vmul.f32 %v247, %v275
      %v281 = vmul.f32 %v248, %v275
      %v282 = vmul.f32 %v249, %v275
      %v283 = vmul.f32 %v250, %v275
      %v284 = vmul.f32 %v251, %v275
      %v285 = vmul.f32 %v252, %v275
      %v286 = vmul.f32 %v253, %v275
      %v287 = vmul.f32 %v254, %v275
      %v288 = vmul.f32 %v255, %v275
      %v289 = vmul.f32 %v256, %v275
      %v290 = vmul.f32 %v257, %v275
      %v291 = vmul.f32 %v258, %v275
      %v292 = vmul.f32 %v259, %v275
      %v293 = vmul.f32 %v260, %v275
      %v294 = vmul.f32 %v261, %v275
      %v295 = vmul.f32 %v262, %v275
      %v296 = vmul.f32 %v263, %v275
      %v297 = vmul.f32 %v264, %v275
      %v298 = vmul.f32 %v265, %v275
      %v299 = vmul.f32 %v266, %v275
      %v300 = vmul.f32 %v267, %v275
      %v301 = vmul.f32 %v268, %v275
      %v302 = vmul.f32 %v269, %v275
      %v303 = vmul.f32 %v270, %v275
      %v304 = vmul.f32 %v271, %v275
      %v305 = vmul.f32 %v272, %v275
      %v306 = vmul.f32 %v273, %v275
      %v307 = vmul.f32 %v274, %v275
      %v308 = vperm.slane %v210, 0
      %v309 = vadd.f32 %v276, %v308
      %v310 = vadd.f32 %v277, %v308
      %v311 = vadd.f32 %v278, %v308
      %v312 = vadd.f32 %v279, %v308
      %v313 = vadd.f32 %v280, %v308
      %v314 = vadd.f32 %v281, %v308
      %v315 = vadd.f32 %v282, %v308
      %v316 = vadd.f32 %v283, %v308
      %v317 = vadd.f32 %v284, %v308
      %v318 = vadd.f32 %v285, %v308
      %v319 = vadd.f32 %v286, %v308
      %v320 = vadd.f32 %v287, %v308
      %v321 = vadd.f32 %v288, %v308
      %v322 = vadd.f32 %v289, %v308
      %v323 = vadd.f32 %v290, %v308
      %v324 = vadd.f32 %v291, %v308
      %v325 = vadd.f32 %v292, %v308
      %v326 = vadd.f32 %v293, %v308
      %v327 = vadd.f32 %v294, %v308
      %v328 = vadd.f32 %v295, %v308
      %v329 = vadd.f32 %v296, %v308
      %v330 = vadd.f32 %v297, %v308
      %v331 = vadd.f32 %v298, %v308
      %v332 = vadd.f32 %v299, %v308
      %v333 = vadd.f32 %v300, %v308
      %v334 = vadd.f32 %v301, %v308
      %v335 = vadd.f32 %v302, %v308
      %v336 = vadd.f32 %v303, %v308
      %v337 = vadd.f32 %v304, %v308
      %v338 = vadd.f32 %v305, %v308
      %v339 = vadd.f32 %v306, %v308
      %v340 = vadd.f32 %v307, %v308
      %vm341 = vcmp.ge.f32.partialorder %v309, 0.0
      %vm342 = vcmp.ge.f32.partialorder %v310, 0.0
      %vm343 = vcmp.ge.f32.partialorder %v311, 0.0
      %vm344 = vcmp.ge.f32.partialorder %v312, 0.0
      %vm345 = vcmp.ge.f32.partialorder %v313, 0.0
      %vm346 = vcmp.ge.f32.partialorder %v314, 0.0
      %vm347 = vcmp.ge.f32.partialorder %v315, 0.0
      %vm348 = vcmp.ge.f32.partialorder %v316, 0.0
      %vm349 = vcmp.ge.f32.partialorder %v317, 0.0
      %vm350 = vcmp.ge.f32.partialorder %v318, 0.0
      %vm351 = vcmp.ge.f32.partialorder %v319, 0.0
      %vm352 = vcmp.ge.f32.partialorder %v320, 0.0
      %vm353 = vcmp.ge.f32.partialorder %v321, 0.0
      %vm354 = vcmp.ge.f32.partialorder %v322, 0.0
      %vm355 = vcmp.ge.f32.partialorder %v323, 0.0
      %vm356 = vcmp.ge.f32.partialorder %v324, 0.0
      %vm357 = vcmp.ge.f32.partialorder %v325, 0.0
      %vm358 = vcmp.ge.f32.partialorder %v326, 0.0
      %vm359 = vcmp.ge.f32.partialorder %v327, 0.0
      %vm360 = vcmp.ge.f32.partialorder %v328, 0.0
      %vm361 = vcmp.ge.f32.partialorder %v329, 0.0
      %vm362 = vcmp.ge.f32.partialorder %v330, 0.0
      %vm363 = vcmp.ge.f32.partialorder %v331, 0.0
      %vm364 = vcmp.ge.f32.partialorder %v332, 0.0
      %vm365 = vcmp.ge.f32.partialorder %v333, 0.0
      %vm366 = vcmp.ge.f32.partialorder %v334, 0.0
      %vm367 = vcmp.ge.f32.partialorder %v335, 0.0
      %vm368 = vcmp.ge.f32.partialorder %v336, 0.0
      %vm369 = vcmp.ge.f32.partialorder %v337, 0.0
      %vm370 = vcmp.ge.f32.partialorder %v338, 0.0
      %vm371 = vcmp.ge.f32.partialorder %v339, 0.0
      %vm372 = vcmp.ge.f32.partialorder %v340, 0.0
      %v373 = vmul.f32 %v309, 0.01
      %v374 = vmul.f32 %v310, 0.01
      %v375 = vmul.f32 %v311, 0.01
      %v376 = vmul.f32 %v312, 0.01
      %v377 = vmul.f32 %v313, 0.01
      %v378 = vmul.f32 %v314, 0.01
      %v379 = vmul.f32 %v315, 0.01
      %v380 = vmul.f32 %v316, 0.01
      %v381 = vmul.f32 %v317, 0.01
      %v382 = vmul.f32 %v318, 0.01
      %v383 = vmul.f32 %v319, 0.01
      %v384 = vmul.f32 %v320, 0.01
      %v385 = vmul.f32 %v321, 0.01
      %v386 = vmul.f32 %v322, 0.01
      %v387 = vmul.f32 %v323, 0.01
      %v388 = vmul.f32 %v324, 0.01
      %v389 = vmul.f32 %v325, 0.01
      %v390 = vmul.f32 %v326, 0.01
      %v391 = vmul.f32 %v327, 0.01
      %v392 = vmul.f32 %v328, 0.01
      %v393 = vmul.f32 %v329, 0.01
      %v394 = vmul.f32 %v330, 0.01
      %v395 = vmul.f32 %v331, 0.01
      %v396 = vmul.f32 %v332, 0.01
      %v397 = vmul.f32 %v333, 0.01
      %v398 = vmul.f32 %v334, 0.01
      %v399 = vmul.f32 %v335, 0.01
      %v400 = vmul.f32 %v336, 0.01
      %v401 = vmul.f32 %v337, 0.01
      %v402 = vmul.f32 %v338, 0.01
      %v403 = vmul.f32 %v339, 0.01
      %v404 = vmul.f32 %v340, 0.01
      %v405 = vsel %vm341, %v309, %v373
      %v406 = vsel %vm342, %v310, %v374
      %v407 = vsel %vm343, %v311, %v375
      %v408 = vsel %vm344, %v312, %v376
      %v409 = vsel %vm345, %v313, %v377
      %v410 = vsel %vm346, %v314, %v378
      %v411 = vsel %vm347, %v315, %v379
      %v412 = vsel %vm348, %v316, %v380
      %v413 = vsel %vm349, %v317, %v381
      %v414 = vsel %vm350, %v318, %v382
      %v415 = vsel %vm351, %v319, %v383
      %v416 = vsel %vm352, %v320, %v384
      %v417 = vsel %vm353, %v321, %v385
      %v418 = vsel %vm354, %v322, %v386
      %v419 = vsel %vm355, %v323, %v387
      %v420 = vsel %vm356, %v324, %v388
      %v421 = vsel %vm357, %v325, %v389
      %v422 = vsel %vm358, %v326, %v390
      %v423 = vsel %vm359, %v327, %v391
      %v424 = vsel %vm360, %v328, %v392
      %v425 = vsel %vm361, %v329, %v393
      %v426 = vsel %vm362, %v330, %v394
      %v427 = vsel %vm363, %v331, %v395
      %v428 = vsel %vm364, %v332, %v396
      %v429 = vsel %vm365, %v333, %v397
      %v430 = vsel %vm366, %v334, %v398
      %v431 = vsel %vm367, %v335, %v399
      %v432 = vsel %vm368, %v336, %v400
      %v433 = vsel %vm369, %v337, %v401
      %v434 = vsel %vm370, %v338, %v402
      %v435 = vsel %vm371, %v339, %v403
      %v436 = vsel %vm372, %v340, %v404
      %437 = vst [vmem:[#allocation2] sm:$0xff] 0.0
      %438 = vst [vmem:[#allocation2 + $0x8] sm:$0xff] 0.0
      %439 = vst [vmem:[#allocation2 + $0x10] sm:$0xff] 0.0
      %440 = vst [vmem:[#allocation2 + $0x18] sm:$0xff] 0.0
      %441 = vst [vmem:[#allocation2 + $0x20] sm:$0xff] 0.0
      %442 = vst [vmem:[#allocation2 + $0x28] sm:$0xff] 0.0
      %443 = vst [vmem:[#allocation2 + $0x30] sm:$0xff] 0.0
      %444 = vst [vmem:[#allocation2 + $0x38] sm:$0xff] 0.0
      %445 = vst [vmem:[#allocation2 + $0x40] sm:$0xff] 0.0
      %446 = vst [vmem:[#allocation2 + $0x48] sm:$0xff] 0.0
      %447 = vst [vmem:[#allocation2 + $0x50] sm:$0xff] 0.0
      %448 = vst [vmem:[#allocation2 + $0x58] sm:$0xff] 0.0
      %449 = vst [vmem:[#allocation2 + $0x60] sm:$0xff] 0.0
      %450 = vst [vmem:[#allocation2 + $0x68] sm:$0xff] 0.0
      %451 = vst [vmem:[#allocation2 + $0x70] sm:$0xff] 0.0
      %452 = vst [vmem:[#allocation2 + $0x78] sm:$0xff] 0.0
      %453 = vst [vmem:[#allocation2 + $0x80] sm:$0xff] 0.0
      %454 = vst [vmem:[#allocation2 + $0x88] sm:$0xff] 0.0
      %455 = vst [vmem:[#allocation2 + $0x90] sm:$0xff] 0.0
      %456 = vst [vmem:[#allocation2 + $0x98] sm:$0xff] 0.0
      %457 = vst [vmem:[#allocation2 + $0xa0] sm:$0xff] 0.0
      %458 = vst [vmem:[#allocation2 + $0xa8] sm:$0xff] 0.0
      %459 = vst [vmem:[#allocation2 + $0xb0] sm:$0xff] 0.0
      %460 = vst [vmem:[#allocation2 + $0xb8] sm:$0xff] 0.0
      %461 = vst [vmem:[#allocation2 + $0xc0] sm:$0xff] 0.0
      %462 = vst [vmem:[#allocation2 + $0xc8] sm:$0xff] 0.0
      %463 = vst [vmem:[#allocation2 + $0xd0] sm:$0xff] 0.0
      %464 = vst [vmem:[#allocation2 + $0xd8] sm:$0xff] 0.0
      %465 = vst [vmem:[#allocation2 + $0xe0] sm:$0xff] 0.0
      %466 = vst [vmem:[#allocation2 + $0xe8] sm:$0xff] 0.0
      %467 = vst [vmem:[#allocation2 + $0xf0] sm:$0xff] 0.0
      %468 = vst [vmem:[#allocation2 + $0xf8] sm:$0xff] 0.0
      %469 = vst [vmem:[#allocation2 + $0x100] sm:$0xff] 0.0
      %470 = vst [vmem:[#allocation2 + $0x108] sm:$0xff] 0.0
      %471 = vst [vmem:[#allocation2 + $0x110] sm:$0xff] 0.0
      %472 = vst [vmem:[#allocation2 + $0x118] sm:$0xff] 0.0
      %473 = vst [vmem:[#allocation2 + $0x120] sm:$0xff] 0.0
      %474 = vst [vmem:[#allocation2 + $0x128] sm:$0xff] 0.0
      %475 = vst [vmem:[#allocation2 + $0x130] sm:$0xff] 0.0
      %476 = vst [vmem:[#allocation2 + $0x138] sm:$0xff] 0.0
      %477 = vst [vmem:[#allocation2 + $0x140] sm:$0xff] 0.0
      %478 = vst [vmem:[#allocation2 + $0x148] sm:$0xff] 0.0
      %479 = vst [vmem:[#allocation2 + $0x150] sm:$0xff] 0.0
      %480 = vst [vmem:[#allocation2 + $0x158] sm:$0xff] 0.0
      %481 = vst [vmem:[#allocation2 + $0x160] sm:$0xff] 0.0
      %482 = vst [vmem:[#allocation2 + $0x168] sm:$0xff] 0.0
      %483 = vst [vmem:[#allocation2 + $0x170] sm:$0xff] 0.0
      %484 = vst [vmem:[#allocation2 + $0x178] sm:$0xff] 0.0
      %485 = vst [vmem:[#allocation2 + $0x180] sm:$0xff] 0.0
      %486 = vst [vmem:[#allocation2 + $0x188] sm:$0xff] 0.0
      %487 = vst [vmem:[#allocation2 + $0x190] sm:$0xff] 0.0
      %488 = vst [vmem:[#allocation2 + $0x198] sm:$0xff] 0.0
      %489 = vst [vmem:[#allocation2 + $0x1a0] sm:$0xff] 0.0
      %490 = vst [vmem:[#allocation2 + $0x1a8] sm:$0xff] 0.0
      %491 = vst [vmem:[#allocation2 + $0x1b0] sm:$0xff] 0.0
      %492 = vst [vmem:[#allocation2 + $0x1b8] sm:$0xff] 0.0
      %493 = vst [vmem:[#allocation2 + $0x1c0] sm:$0xff] 0.0
      %494 = vst [vmem:[#allocation2 + $0x1c8] sm:$0xff] 0.0
      %495 = vst [vmem:[#allocation2 + $0x1d0] sm:$0xff] 0.0
      %496 = vst [vmem:[#allocation2 + $0x1d8] sm:$0xff] 0.0
      %497 = vst [vmem:[#allocation2 + $0x1e0] sm:$0xff] 0.0
      %498 = vst [vmem:[#allocation2 + $0x1e8] sm:$0xff] 0.0
      %499 = vst [vmem:[#allocation2 + $0x1f0] sm:$0xff] 0.0
      %500 = vst [vmem:[#allocation2 + $0x1f8] sm:$0xff] 0.0
      %501 = vst [vmem:[#allocation2 + $0x200] sm:$0xff] 0.0
      %502 = vst [vmem:[#allocation2 + $0x208] sm:$0xff] 0.0
      %503 = vst [vmem:[#allocation2 + $0x210] sm:$0xff] 0.0
      %504 = vst [vmem:[#allocation2 + $0x218] sm:$0xff] 0.0
      %505 = vst [vmem:[#allocation2 + $0x220] sm:$0xff] 0.0
      %506 = vst [vmem:[#allocation2 + $0x228] sm:$0xff] 0.0
      %507 = vst [vmem:[#allocation2 + $0x230] sm:$0xff] 0.0
      %508 = vst [vmem:[#allocation2 + $0x238] sm:$0xff] 0.0
      %509 = vst [vmem:[#allocation2 + $0x240] sm:$0xff] 0.0
      %510 = vst [vmem:[#allocation2 + $0x248] sm:$0xff] 0.0
      %511 = vst [vmem:[#allocation2 + $0x250] sm:$0xff] 0.0
      %512 = vst [vmem:[#allocation2 + $0x258] sm:$0xff] 0.0
      %513 = vst [vmem:[#allocation2 + $0x260] sm:$0xff] 0.0
      %514 = vst [vmem:[#allocation2 + $0x268] sm:$0xff] 0.0
      %515 = vst [vmem:[#allocation2 + $0x270] sm:$0xff] 0.0
      %516 = vst [vmem:[#allocation2 + $0x278] sm:$0xff] 0.0
      %517 = vst [vmem:[#allocation2 + $0x280] sm:$0xff] 0.0
      %518 = vst [vmem:[#allocation2 + $0x288] sm:$0xff] 0.0
      %519 = vst [vmem:[#allocation2 + $0x290] sm:$0xff] 0.0
      %520 = vst [vmem:[#allocation2 + $0x298] sm:$0xff] 0.0
      %521 = vst [vmem:[#allocation2 + $0x2a0] sm:$0xff] 0.0
      %522 = vst [vmem:[#allocation2 + $0x2a8] sm:$0xff] 0.0
      %523 = vst [vmem:[#allocation2 + $0x2b0] sm:$0xff] 0.0
      %524 = vst [vmem:[#allocation2 + $0x2b8] sm:$0xff] 0.0
      %525 = vst [vmem:[#allocation2 + $0x2c0] sm:$0xff] 0.0
      %526 = vst [vmem:[#allocation2 + $0x2c8] sm:$0xff] 0.0
      %527 = vst [vmem:[#allocation2 + $0x2d0] sm:$0xff] 0.0
      %528 = vst [vmem:[#allocation2 + $0x2d8] sm:$0xff] 0.0
      %529 = vst [vmem:[#allocation2 + $0x2e0] sm:$0xff] 0.0
      %530 = vst [vmem:[#allocation2 + $0x2e8] sm:$0xff] 0.0
      %531 = vst [vmem:[#allocation2 + $0x2f0] sm:$0xff] 0.0
      %532 = vst [vmem:[#allocation2 + $0x2f8] sm:$0xff] 0.0
      %533 = vst [vmem:[#allocation2 + $0x300] sm:$0xff] 0.0
      %534 = vst [vmem:[#allocation2 + $0x308] sm:$0xff] 0.0
      %535 = vst [vmem:[#allocation2 + $0x310] sm:$0xff] 0.0
      %536 = vst [vmem:[#allocation2 + $0x318] sm:$0xff] 0.0
      %537 = vst [vmem:[#allocation2 + $0x320] sm:$0xff] 0.0
      %538 = vst [vmem:[#allocation2 + $0x328] sm:$0xff] 0.0
      %539 = vst [vmem:[#allocation2 + $0x330] sm:$0xff] 0.0
      %540 = vst [vmem:[#allocation2 + $0x338] sm:$0xff] 0.0
      %541 = vst [vmem:[#allocation2 + $0x340] sm:$0xff] 0.0
      %542 = vst [vmem:[#allocation2 + $0x348] sm:$0xff] 0.0
      %543 = vst [vmem:[#allocation2 + $0x350] sm:$0xff] 0.0
      %544 = vst [vmem:[#allocation2 + $0x358] sm:$0xff] 0.0
      %545 = vst [vmem:[#allocation2 + $0x360] sm:$0xff] 0.0
      %546 = vst [vmem:[#allocation2 + $0x368] sm:$0xff] 0.0
      %547 = vst [vmem:[#allocation2 + $0x370] sm:$0xff] 0.0
      %548 = vst [vmem:[#allocation2 + $0x378] sm:$0xff] 0.0
      %549 = vst [vmem:[#allocation2 + $0x380] sm:$0xff] 0.0
      %550 = vst [vmem:[#allocation2 + $0x388] sm:$0xff] 0.0
      %551 = vst [vmem:[#allocation2 + $0x390] sm:$0xff] 0.0
      %552 = vst [vmem:[#allocation2 + $0x398] sm:$0xff] 0.0
      %553 = vst [vmem:[#allocation2 + $0x3a0] sm:$0xff] 0.0
      %554 = vst [vmem:[#allocation2 + $0x3a8] sm:$0xff] 0.0
      %555 = vst [vmem:[#allocation2 + $0x3b0] sm:$0xff] 0.0
      %556 = vst [vmem:[#allocation2 + $0x3b8] sm:$0xff] 0.0
      %557 = vst [vmem:[#allocation2 + $0x3c0] sm:$0xff] 0.0
      %558 = vst [vmem:[#allocation2 + $0x3c8] sm:$0xff] 0.0
      %559 = vst [vmem:[#allocation2 + $0x3d0] sm:$0xff] 0.0
      %560 = vst [vmem:[#allocation2 + $0x3d8] sm:$0xff] 0.0
      %561 = vst [vmem:[#allocation2 + $0x3e0] sm:$0xff] 0.0
      %562 = vst [vmem:[#allocation2 + $0x3e8] sm:$0xff] 0.0
      %563 = vst [vmem:[#allocation2 + $0x3f0] sm:$0xff] 0.0
      %564 = vst [vmem:[#allocation2 + $0x3f8] sm:$0xff] 0.0
      %565 = vst [vmem:[#allocation2 + $0x400] sm:$0xff] 0.0
      %566 = vst [vmem:[#allocation2 + $0x408] sm:$0xff] 0.0
      %567 = vst [vmem:[#allocation2 + $0x410] sm:$0xff] 0.0
      %568 = vst [vmem:[#allocation2 + $0x418] sm:$0xff] 0.0
      %569 = vst [vmem:[#allocation2 + $0x420] sm:$0xff] 0.0
      %570 = vst [vmem:[#allocation2 + $0x428] sm:$0xff] 0.0
      %571 = vst [vmem:[#allocation2 + $0x430] sm:$0xff] 0.0
      %572 = vst [vmem:[#allocation2 + $0x438] sm:$0xff] 0.0
      %573 = vst [vmem:[#allocation2 + $0x440] sm:$0xff] 0.0
      %574 = vst [vmem:[#allocation2 + $0x448] sm:$0xff] 0.0
      %575 = vst [vmem:[#allocation2 + $0x450] sm:$0xff] 0.0
      %576 = vst [vmem:[#allocation2 + $0x458] sm:$0xff] 0.0
      %577 = vst [vmem:[#allocation2 + $0x460] sm:$0xff] 0.0
      %578 = vst [vmem:[#allocation2 + $0x468] sm:$0xff] 0.0
      %579 = vst [vmem:[#allocation2 + $0x470] sm:$0xff] 0.0
      %580 = vst [vmem:[#allocation2 + $0x478] sm:$0xff] 0.0
      %581 = vst [vmem:[#allocation2 + $0x480] sm:$0xff] 0.0
      %582 = vst [vmem:[#allocation2 + $0x488] sm:$0xff] 0.0
      %583 = vst [vmem:[#allocation2 + $0x490] sm:$0xff] 0.0
      %584 = vst [vmem:[#allocation2 + $0x498] sm:$0xff] 0.0
      %585 = vst [vmem:[#allocation2 + $0x4a0] sm:$0xff] 0.0
      %586 = vst [vmem:[#allocation2 + $0x4a8] sm:$0xff] 0.0
      %587 = vst [vmem:[#allocation2 + $0x4b0] sm:$0xff] 0.0
      %588 = vst [vmem:[#allocation2 + $0x4b8] sm:$0xff] 0.0
      %589 = vst [vmem:[#allocation2 + $0x4c0] sm:$0xff] 0.0
      %590 = vst [vmem:[#allocation2 + $0x4c8] sm:$0xff] 0.0
      %591 = vst [vmem:[#allocation2 + $0x4d0] sm:$0xff] 0.0
      %592 = vst [vmem:[#allocation2 + $0x4d8] sm:$0xff] 0.0
      %593 = vst [vmem:[#allocation2 + $0x4e0] sm:$0xff] 0.0
      %594 = vst [vmem:[#allocation2 + $0x4e8] sm:$0xff] 0.0
      %595 = vst [vmem:[#allocation2 + $0x4f0] sm:$0xff] 0.0
      %596 = vst [vmem:[#allocation2 + $0x4f8] sm:$0xff] 0.0
      %597 = vst [vmem:[#allocation2 + $0x500] sm:$0xff] 0.0
      %598 = vst [vmem:[#allocation2 + $0x508] sm:$0xff] 0.0
      %599 = vst [vmem:[#allocation2 + $0x510] sm:$0xff] 0.0
      %600 = vst [vmem:[#allocation2 + $0x518] sm:$0xff] 0.0
      %601 = vst [vmem:[#allocation2 + $0x520] sm:$0xff] 0.0
      %602 = vst [vmem:[#allocation2 + $0x528] sm:$0xff] 0.0
      %603 = vst [vmem:[#allocation2 + $0x530] sm:$0xff] 0.0
      %604 = vst [vmem:[#allocation2 + $0x538] sm:$0xff] 0.0
      %605 = vst [vmem:[#allocation2 + $0x540] sm:$0xff] 0.0
      %606 = vst [vmem:[#allocation2 + $0x548] sm:$0xff] 0.0
      %607 = vst [vmem:[#allocation2 + $0x550] sm:$0xff] 0.0
      %608 = vst [vmem:[#allocation2 + $0x558] sm:$0xff] 0.0
      %609 = vst [vmem:[#allocation2 + $0x560] sm:$0xff] 0.0
      %610 = vst [vmem:[#allocation2 + $0x568] sm:$0xff] 0.0
      %611 = vst [vmem:[#allocation2 + $0x570] sm:$0xff] 0.0
      %612 = vst [vmem:[#allocation2 + $0x578] sm:$0xff] 0.0
      %613 = vst [vmem:[#allocation2 + $0x580] sm:$0xff] 0.0
      %614 = vst [vmem:[#allocation2 + $0x588] sm:$0xff] 0.0
      %615 = vst [vmem:[#allocation2 + $0x590] sm:$0xff] 0.0
      %616 = vst [vmem:[#allocation2 + $0x598] sm:$0xff] 0.0
      %617 = vst [vmem:[#allocation2 + $0x5a0] sm:$0xff] 0.0
      %618 = vst [vmem:[#allocation2 + $0x5a8] sm:$0xff] 0.0
      %619 = vst [vmem:[#allocation2 + $0x5b0] sm:$0xff] 0.0
      %620 = vst [vmem:[#allocation2 + $0x5b8] sm:$0xff] 0.0
      %621 = vst [vmem:[#allocation2 + $0x5c0] sm:$0xff] 0.0
      %622 = vst [vmem:[#allocation2 + $0x5c8] sm:$0xff] 0.0
      %623 = vst [vmem:[#allocation2 + $0x5d0] sm:$0xff] 0.0
      %624 = vst [vmem:[#allocation2 + $0x5d8] sm:$0xff] 0.0
      %625 = vst [vmem:[#allocation2 + $0x5e0] sm:$0xff] 0.0
      %626 = vst [vmem:[#allocation2 + $0x5e8] sm:$0xff] 0.0
      %627 = vst [vmem:[#allocation2 + $0x5f0] sm:$0xff] 0.0
      %628 = vst [vmem:[#allocation2 + $0x5f8] sm:$0xff] 0.0
      %629 = vst [vmem:[#allocation2 + $0x600] sm:$0xff] 0.0
      %630 = vst [vmem:[#allocation2 + $0x608] sm:$0xff] 0.0
      %631 = vst [vmem:[#allocation2 + $0x610] sm:$0xff] 0.0
      %632 = vst [vmem:[#allocation2 + $0x618] sm:$0xff] 0.0
      %633 = vst [vmem:[#allocation2 + $0x620] sm:$0xff] 0.0
      %634 = vst [vmem:[#allocation2 + $0x628] sm:$0xff] 0.0
      %635 = vst [vmem:[#allocation2 + $0x630] sm:$0xff] 0.0
      %636 = vst [vmem:[#allocation2 + $0x638] sm:$0xff] 0.0
      %637 = vst [vmem:[#allocation2 + $0x640] sm:$0xff] 0.0
      %638 = vst [vmem:[#allocation2 + $0x648] sm:$0xff] 0.0
      %639 = vst [vmem:[#allocation2 + $0x650] sm:$0xff] 0.0
      %640 = vst [vmem:[#allocation2 + $0x658] sm:$0xff] 0.0
      %641 = vst [vmem:[#allocation2 + $0x660] sm:$0xff] 0.0
      %642 = vst [vmem:[#allocation2 + $0x668] sm:$0xff] 0.0
      %643 = vst [vmem:[#allocation2 + $0x670] sm:$0xff] 0.0
      %644 = vst [vmem:[#allocation2 + $0x678] sm:$0xff] 0.0
      %645 = vst [vmem:[#allocation2 + $0x680] sm:$0xff] 0.0
      %646 = vst [vmem:[#allocation2 + $0x688] sm:$0xff] 0.0
      %647 = vst [vmem:[#allocation2 + $0x690] sm:$0xff] 0.0
      %648 = vst [vmem:[#allocation2 + $0x698] sm:$0xff] 0.0
      %649 = vst [vmem:[#allocation2 + $0x6a0] sm:$0xff] 0.0
      %650 = vst [vmem:[#allocation2 + $0x6a8] sm:$0xff] 0.0
      %651 = vst [vmem:[#allocation2 + $0x6b0] sm:$0xff] 0.0
      %652 = vst [vmem:[#allocation2 + $0x6b8] sm:$0xff] 0.0
      %653 = vst [vmem:[#allocation2 + $0x6c0] sm:$0xff] 0.0
      %654 = vst [vmem:[#allocation2 + $0x6c8] sm:$0xff] 0.0
      %655 = vst [vmem:[#allocation2 + $0x6d0] sm:$0xff] 0.0
      %656 = vst [vmem:[#allocation2 + $0x6d8] sm:$0xff] 0.0
      %657 = vst [vmem:[#allocation2 + $0x6e0] sm:$0xff] 0.0
      %658 = vst [vmem:[#allocation2 + $0x6e8] sm:$0xff] 0.0
      %659 = vst [vmem:[#allocation2 + $0x6f0] sm:$0xff] 0.0
      %660 = vst [vmem:[#allocation2 + $0x6f8] sm:$0xff] 0.0
      %661 = vst [vmem:[#allocation2 + $0x700] sm:$0xff] 0.0
      %662 = vst [vmem:[#allocation2 + $0x708] sm:$0xff] 0.0
      %663 = vst [vmem:[#allocation2 + $0x710] sm:$0xff] 0.0
      %664 = vst [vmem:[#allocation2 + $0x718] sm:$0xff] 0.0
      %665 = vst [vmem:[#allocation2 + $0x720] sm:$0xff] 0.0
      %666 = vst [vmem:[#allocation2 + $0x728] sm:$0xff] 0.0
      %667 = vst [vmem:[#allocation2 + $0x730] sm:$0xff] 0.0
      %668 = vst [vmem:[#allocation2 + $0x738] sm:$0xff] 0.0
      %669 = vst [vmem:[#allocation2 + $0x740] sm:$0xff] 0.0
      %670 = vst [vmem:[#allocation2 + $0x748] sm:$0xff] 0.0
      %671 = vst [vmem:[#allocation2 + $0x750] sm:$0xff] 0.0
      %672 = vst [vmem:[#allocation2 + $0x758] sm:$0xff] 0.0
      %673 = vst [vmem:[#allocation2 + $0x760] sm:$0xff] 0.0
      %674 = vst [vmem:[#allocation2 + $0x768] sm:$0xff] 0.0
      %675 = vst [vmem:[#allocation2 + $0x770] sm:$0xff] 0.0
      %676 = vst [vmem:[#allocation2 + $0x778] sm:$0xff] 0.0
      %677 = vst [vmem:[#allocation2 + $0x780] sm:$0xff] 0.0
      %678 = vst [vmem:[#allocation2 + $0x788] sm:$0xff] 0.0
      %679 = vst [vmem:[#allocation2 + $0x790] sm:$0xff] 0.0
      %680 = vst [vmem:[#allocation2 + $0x798] sm:$0xff] 0.0
      %681 = vst [vmem:[#allocation2 + $0x7a0] sm:$0xff] 0.0
      %682 = vst [vmem:[#allocation2 + $0x7a8] sm:$0xff] 0.0
      %683 = vst [vmem:[#allocation2 + $0x7b0] sm:$0xff] 0.0
      %684 = vst [vmem:[#allocation2 + $0x7b8] sm:$0xff] 0.0
      %685 = vst [vmem:[#allocation2 + $0x7c0] sm:$0xff] 0.0
      %686 = vst [vmem:[#allocation2 + $0x7c8] sm:$0xff] 0.0
      %687 = vst [vmem:[#allocation2 + $0x7d0] sm:$0xff] 0.0
      %688 = vst [vmem:[#allocation2 + $0x7d8] sm:$0xff] 0.0
      %689 = vst [vmem:[#allocation2 + $0x7e0] sm:$0xff] 0.0
      %690 = vst [vmem:[#allocation2 + $0x7e8] sm:$0xff] 0.0
      %691 = vst [vmem:[#allocation2 + $0x7f0] sm:$0xff] 0.0
      %692 = vst [vmem:[#allocation2 + $0x7f8] sm:$0xff] 0.0
      %693 = vst [vmem:[#allocation2 + $0x800] sm:$0xff] 0.0
      %694 = vst [vmem:[#allocation2 + $0x808] sm:$0xff] 0.0
      %695 = vst [vmem:[#allocation2 + $0x810] sm:$0xff] 0.0
      %696 = vst [vmem:[#allocation2 + $0x818] sm:$0xff] 0.0
      %697 = vst [vmem:[#allocation2 + $0x820] sm:$0xff] 0.0
      %698 = vst [vmem:[#allocation2 + $0x828] sm:$0xff] 0.0
      %699 = vst [vmem:[#allocation2 + $0x830] sm:$0xff] 0.0
      %700 = vst [vmem:[#allocation2 + $0x838] sm:$0xff] 0.0
      %701 = vst [vmem:[#allocation2 + $0x840] sm:$0xff] 0.0
      %702 = vst [vmem:[#allocation2 + $0x848] sm:$0xff] 0.0
      %703 = vst [vmem:[#allocation2 + $0x850] sm:$0xff] 0.0
      %704 = vst [vmem:[#allocation2 + $0x858] sm:$0xff] 0.0
      %705 = vst [vmem:[#allocation2 + $0x860] sm:$0xff] 0.0
      %706 = vst [vmem:[#allocation2 + $0x868] sm:$0xff] 0.0
      %707 = vst [vmem:[#allocation2 + $0x870] sm:$0xff] 0.0
      %708 = vst [vmem:[#allocation2 + $0x878] sm:$0xff] 0.0
      %709 = vst [vmem:[#allocation2 + $0x880] sm:$0xff] 0.0
      %710 = vst [vmem:[#allocation2 + $0x888] sm:$0xff] 0.0
      %711 = vst [vmem:[#allocation2 + $0x890] sm:$0xff] 0.0
      %712 = vst [vmem:[#allocation2 + $0x898] sm:$0xff] 0.0
      %713 = vst [vmem:[#allocation2 + $0x8a0] sm:$0xff] 0.0
      %714 = vst [vmem:[#allocation2 + $0x8a8] sm:$0xff] 0.0
      %715 = vst [vmem:[#allocation2 + $0x8b0] sm:$0xff] 0.0
      %716 = vst [vmem:[#allocation2 + $0x8b8] sm:$0xff] 0.0
      %717 = vst [vmem:[#allocation2 + $0x8c0] sm:$0xff] 0.0
      %718 = vst [vmem:[#allocation2 + $0x8c8] sm:$0xff] 0.0
      %719 = vst [vmem:[#allocation2 + $0x8d0] sm:$0xff] 0.0
      %720 = vst [vmem:[#allocation2 + $0x8d8] sm:$0xff] 0.0
      %721 = vst [vmem:[#allocation2 + $0x8e0] sm:$0xff] 0.0
      %722 = vst [vmem:[#allocation2 + $0x8e8] sm:$0xff] 0.0
      %723 = vst [vmem:[#allocation2 + $0x8f0] sm:$0xff] 0.0
      %724 = vst [vmem:[#allocation2 + $0x8f8] sm:$0xff] 0.0
      %vm755 = vcmask 1040384
      %v756 = vrot.slane %v405, 7
      %v757 = vrot.slane %v406, 7
      %v758 = vsel %vm755, %v756, %v757
      %v759 = vrot.slane %v407, 7
      %v760 = vrot.slane %v408, 7
      %v761 = vsel %vm755, %v759, %v760
      %v762 = vrot.slane %v409, 7
      %v763 = vrot.slane %v410, 7
      %v764 = vsel %vm755, %v762, %v763
      %v765 = vrot.slane %v411, 7
      %v766 = vrot.slane %v412, 7
      %v767 = vsel %vm755, %v765, %v766
      %v768 = vrot.slane %v413, 7
      %v769 = vrot.slane %v414, 7
      %v770 = vsel %vm755, %v768, %v769
      %v771 = vrot.slane %v415, 7
      %v772 = vrot.slane %v416, 7
      %v773 = vsel %vm755, %v771, %v772
      %v774 = vrot.slane %v417, 7
      %v775 = vrot.slane %v418, 7
      %v776 = vsel %vm755, %v774, %v775
      %v777 = vrot.slane %v419, 7
      %v778 = vrot.slane %v420, 7
      %v779 = vsel %vm755, %v777, %v778
      %v780 = vrot.slane %v421, 7
      %v781 = vrot.slane %v422, 7
      %v782 = vsel %vm755, %v780, %v781
      %v783 = vrot.slane %v423, 7
      %v784 = vrot.slane %v424, 7
      %v785 = vsel %vm755, %v783, %v784
      %v786 = vrot.slane %v425, 7
      %v787 = vrot.slane %v426, 7
      %v788 = vsel %vm755, %v786, %v787
      %v789 = vrot.slane %v427, 7
      %v790 = vrot.slane %v428, 7
      %v791 = vsel %vm755, %v789, %v790
      %v792 = vrot.slane %v429, 7
      %v793 = vrot.slane %v430, 7
      %v794 = vsel %vm755, %v792, %v793
      %v795 = vrot.slane %v431, 7
      %v796 = vrot.slane %v432, 7
      %v797 = vsel %vm755, %v795, %v796
      %v798 = vrot.slane %v433, 7
      %v799 = vrot.slane %v434, 7
      %v800 = vsel %vm755, %v798, %v799
      %s831 = scalar_lea.vmem [#allocation2], 144
      %832 = vst [vmem:[%s831] sm:$0xfe] %v756
      %833 = vst [vmem:[%s831 + $0x48] sm:$0xff] %v758
      %834 = vst [vmem:[%s831 + $0x90] sm:$0xfe] %v759
      %835 = vst [vmem:[%s831 + $0xd8] sm:$0xff] %v761
      %836 = vst [vmem:[%s831 + $0x120] sm:$0xfe] %v762
      %837 = vst [vmem:[%s831 + $0x168] sm:$0xff] %v764
      %838 = vst [vmem:[%s831 + $0x1b0] sm:$0xfe] %v765
      %839 = vst [vmem:[%s831 + $0x1f8] sm:$0xff] %v767
      %840 = vst [vmem:[%s831 + $0x240] sm:$0xfe] %v768
      %841 = vst [vmem:[%s831 + $0x288] sm:$0xff] %v770
      %842 = vst [vmem:[%s831 + $0x2d0] sm:$0xfe] %v771
      %843 = vst [vmem:[%s831 + $0x318] sm:$0xff] %v773
      %844 = vst [vmem:[%s831 + $0x360] sm:$0xfe] %v774
      %845 = vst [vmem:[%s831 + $0x3a8] sm:$0xff] %v776
      %846 = vst [vmem:[%s831 + $0x3f0] sm:$0xfe] %v777
      %847 = vst [vmem:[%s831 + $0x438] sm:$0xff] %v779
      %848 = vst [vmem:[%s831 + $0x480] sm:$0xfe] %v780
      %849 = vst [vmem:[%s831 + $0x4c8] sm:$0xff] %v782
      %850 = vst [vmem:[%s831 + $0x510] sm:$0xfe] %v783
      %851 = vst [vmem:[%s831 + $0x558] sm:$0xff] %v785
      %852 = vst [vmem:[%s831 + $0x5a0] sm:$0xfe] %v786
      %853 = vst [vmem:[%s831 + $0x5e8] sm:$0xff] %v788
      %854 = vst [vmem:[%s831 + $0x630] sm:$0xfe] %v789
      %855 = vst [vmem:[%s831 + $0x678] sm:$0xff] %v791
      %856 = vst [vmem:[%s831 + $0x6c0] sm:$0xfe] %v792
      %857 = vst [vmem:[%s831 + $0x708] sm:$0xff] %v794
      %858 = vst [vmem:[%s831 + $0x750] sm:$0xfe] %v795
      %859 = vst [vmem:[%s831 + $0x798] sm:$0xff] %v797
      %860 = vst [vmem:[%s831 + $0x7e0] sm:$0xfe] %v798
      %861 = vst [vmem:[%s831 + $0x828] sm:$0xff] %v800
      %862 = vst [vmem:[%s831 + $0x8] sm:$0xff] %v405
      %863 = vst [vmem:[%s831 + $0x50] sm:$0xff] %v406
      %864 = vst [vmem:[%s831 + $0x98] sm:$0xff] %v407
      %865 = vst [vmem:[%s831 + $0xe0] sm:$0xff] %v408
      %866 = vst [vmem:[%s831 + $0x128] sm:$0xff] %v409
      %867 = vst [vmem:[%s831 + $0x170] sm:$0xff] %v410
      %868 = vst [vmem:[%s831 + $0x1b8] sm:$0xff] %v411
      %869 = vst [vmem:[%s831 + $0x200] sm:$0xff] %v412
      %870 = vst [vmem:[%s831 + $0x248] sm:$0xff] %v413
      %871 = vst [vmem:[%s831 + $0x290] sm:$0xff] %v414
      %872 = vst [vmem:[%s831 + $0x2d8] sm:$0xff] %v415
      %873 = vst [vmem:[%s831 + $0x320] sm:$0xff] %v416
      %874 = vst [vmem:[%s831 + $0x368] sm:$0xff] %v417
      %875 = vst [vmem:[%s831 + $0x3b0] sm:$0xff] %v418
      %876 = vst [vmem:[%s831 + $0x3f8] sm:$0xff] %v419
      %877 = vst [vmem:[%s831 + $0x440] sm:$0xff] %v420
      %878 = vst [vmem:[%s831 + $0x488] sm:$0xff] %v421
      %879 = vst [vmem:[%s831 + $0x4d0] sm:$0xff] %v422
      %880 = vst [vmem:[%s831 + $0x518] sm:$0xff] %v423
      %881 = vst [vmem:[%s831 + $0x560] sm:$0xff] %v424
      %882 = vst [vmem:[%s831 + $0x5a8] sm:$0xff] %v425
      %883 = vst [vmem:[%s831 + $0x5f0] sm:$0xff] %v426
      %884 = vst [vmem:[%s831 + $0x638] sm:$0xff] %v427
      %885 = vst [vmem:[%s831 + $0x680] sm:$0xff] %v428
      %886 = vst [vmem:[%s831 + $0x6c8] sm:$0xff] %v429
      %887 = vst [vmem:[%s831 + $0x710] sm:$0xff] %v430
      %888 = vst [vmem:[%s831 + $0x758] sm:$0xff] %v431
      %889 = vst [vmem:[%s831 + $0x7a0] sm:$0xff] %v432
      %890 = vst [vmem:[%s831 + $0x7e8] sm:$0xff] %v433
      %891 = vst [vmem:[%s831 + $0x830] sm:$0xff] %v434
      %vm892 = vcmask 1046528
      %v893 = vrot.slane %v405, 1
      %v894 = vrot.slane %v406, 1
      %v895 = vsel %vm892, %v893, %v894
      %v896 = vrot.slane %v407, 1
      %v897 = vrot.slane %v408, 1
      %v898 = vsel %vm892, %v896, %v897
      %v899 = vrot.slane %v409, 1
      %v900 = vrot.slane %v410, 1
      %v901 = vsel %vm892, %v899, %v900
      %v902 = vrot.slane %v411, 1
      %v903 = vrot.slane %v412, 1
      %v904 = vsel %vm892, %v902, %v903
      %v905 = vrot.slane %v413, 1
      %v906 = vrot.slane %v414, 1
      %v907 = vsel %vm892, %v905, %v906
      %v908 = vrot.slane %v415, 1
      %v909 = vrot.slane %v416, 1
      %v910 = vsel %vm892, %v908, %v909
      %v911 = vrot.slane %v417, 1
      %v912 = vrot.slane %v418, 1
      %v913 = vsel %vm892, %v911, %v912
      %v914 = vrot.slane %v419, 1
      %v915 = vrot.slane %v420, 1
      %v916 = vsel %vm892, %v914, %v915
      %v917 = vrot.slane %v421, 1
      %v918 = vrot.slane %v422, 1
      %v919 = vsel %vm892, %v917, %v918
      %v920 = vrot.slane %v423, 1
      %v921 = vrot.slane %v424, 1
      %v922 = vsel %vm892, %v920, %v921
      %v923 = vrot.slane %v425, 1
      %v924 = vrot.slane %v426, 1
      %v925 = vsel %vm892, %v923, %v924
      %v926 = vrot.slane %v427, 1
      %v927 = vrot.slane %v428, 1
      %v928 = vsel %vm892, %v926, %v927
      %v929 = vrot.slane %v429, 1
      %v930 = vrot.slane %v430, 1
      %v931 = vsel %vm892, %v929, %v930
      %v932 = vrot.slane %v431, 1
      %v933 = vrot.slane %v432, 1
      %v934 = vsel %vm892, %v932, %v933
      %v935 = vrot.slane %v433, 1
      %v936 = vrot.slane %v434, 1
      %v937 = vsel %vm892, %v935, %v936
      %968 = vst [vmem:[%s831 + $0x10] sm:$0xff] %v895
      %969 = vst [vmem:[%s831 + $0x58] sm:$0x7f] %v894
      %970 = vst [vmem:[%s831 + $0xa0] sm:$0xff] %v898
      %971 = vst [vmem:[%s831 + $0xe8] sm:$0x7f] %v897
      %972 = vst [vmem:[%s831 + $0x130] sm:$0xff] %v901
      %973 = vst [vmem:[%s831 + $0x178] sm:$0x7f] %v900
      %974 = vst [vmem:[%s831 + $0x1c0] sm:$0xff] %v904
      %975 = vst [vmem:[%s831 + $0x208] sm:$0x7f] %v903
      %976 = vst [vmem:[%s831 + $0x250] sm:$0xff] %v907
      %977 = vst [vmem:[%s831 + $0x298] sm:$0x7f] %v906
      %978 = vst [vmem:[%s831 + $0x2e0] sm:$0xff] %v910
      %979 = vst [vmem:[%s831 + $0x328] sm:$0x7f] %v909
      %980 = vst [vmem:[%s831 + $0x370] sm:$0xff] %v913
      %981 = vst [vmem:[%s831 + $0x3b8] sm:$0x7f] %v912
      %982 = vst [vmem:[%s831 + $0x400] sm:$0xff] %v916
      %983 = vst [vmem:[%s831 + $0x448] sm:$0x7f] %v915
      %984 = vst [vmem:[%s831 + $0x490] sm:$0xff] %v919
      %985 = vst [vmem:[%s831 + $0x4d8] sm:$0x7f] %v918
      %986 = vst [vmem:[%s831 + $0x520] sm:$0xff] %v922
      %987 = vst [vmem:[%s831 + $0x568] sm:$0x7f] %v921
      %988 = vst [vmem:[%s831 + $0x5b0] sm:$0xff] %v925
      %989 = vst [vmem:[%s831 + $0x5f8] sm:$0x7f] %v924
      %990 = vst [vmem:[%s831 + $0x640] sm:$0xff] %v928
      %991 = vst [vmem:[%s831 + $0x688] sm:$0x7f] %v927
      %992 = vst [vmem:[%s831 + $0x6d0] sm:$0xff] %v931
      %993 = vst [vmem:[%s831 + $0x718] sm:$0x7f] %v930
      %994 = vst [vmem:[%s831 + $0x760] sm:$0xff] %v934
      %995 = vst [vmem:[%s831 + $0x7a8] sm:$0x7f] %v933
      %996 = vst [vmem:[%s831 + $0x7f0] sm:$0xff] %v937
      %997 = vst [vmem:[%s831 + $0x838] sm:$0x7f] %v936
      %v1000 = vrot.slane %v435, 7
      %v1001 = vrot.slane %v436, 7
      %v1002 = vsel %vm755, %v1000, %v1001
      %1005 = vst [vmem:[#allocation2 + $0x18] sm:$0xfe] %v756
      %1006 = vst [vmem:[#allocation2 + $0x60] sm:$0xff] %v758
      %1007 = vst [vmem:[#allocation2 + $0xa8] sm:$0xfe] %v759
      %1008 = vst [vmem:[#allocation2 + $0xf0] sm:$0xff] %v761
      %1009 = vst [vmem:[#allocation2 + $0x138] sm:$0xfe] %v762
      %1010 = vst [vmem:[#allocation2 + $0x180] sm:$0xff] %v764
      %1011 = vst [vmem:[#allocation2 + $0x1c8] sm:$0xfe] %v765
      %1012 = vst [vmem:[#allocation2 + $0x210] sm:$0xff] %v767
      %1013 = vst [vmem:[#allocation2 + $0x258] sm:$0xfe] %v768
      %1014 = vst [vmem:[#allocation2 + $0x2a0] sm:$0xff] %v770
      %1015 = vst [vmem:[#allocation2 + $0x2e8] sm:$0xfe] %v771
      %1016 = vst [vmem:[#allocation2 + $0x330] sm:$0xff] %v773
      %1017 = vst [vmem:[#allocation2 + $0x378] sm:$0xfe] %v774
      %1018 = vst [vmem:[#allocation2 + $0x3c0] sm:$0xff] %v776
      %1019 = vst [vmem:[#allocation2 + $0x408] sm:$0xfe] %v777
      %1020 = vst [vmem:[#allocation2 + $0x450] sm:$0xff] %v779
      %1021 = vst [vmem:[#allocation2 + $0x498] sm:$0xfe] %v780
      %1022 = vst [vmem:[#allocation2 + $0x4e0] sm:$0xff] %v782
      %1023 = vst [vmem:[#allocation2 + $0x528] sm:$0xfe] %v783
      %1024 = vst [vmem:[#allocation2 + $0x570] sm:$0xff] %v785
      %1025 = vst [vmem:[#allocation2 + $0x5b8] sm:$0xfe] %v786
      %1026 = vst [vmem:[#allocation2 + $0x600] sm:$0xff] %v788
      %1027 = vst [vmem:[#allocation2 + $0x648] sm:$0xfe] %v789
      %1028 = vst [vmem:[#allocation2 + $0x690] sm:$0xff] %v791
      %1029 = vst [vmem:[#allocation2 + $0x6d8] sm:$0xfe] %v792
      %1030 = vst [vmem:[#allocation2 + $0x720] sm:$0xff] %v794
      %1031 = vst [vmem:[#allocation2 + $0x768] sm:$0xfe] %v795
      %1032 = vst [vmem:[#allocation2 + $0x7b0] sm:$0xff] %v797
      %1033 = vst [vmem:[#allocation2 + $0x7f8] sm:$0xfe] %v798
      %1034 = vst [vmem:[#allocation2 + $0x840] sm:$0xff] %v800
      %1035 = vst [vmem:[#allocation2 + $0x888] sm:$0xfe] %v1000
      %1036 = vst [vmem:[#allocation2 + $0x8d0] sm:$0xff] %v1002
      %1037 = vst [vmem:[#allocation2 + $0x20] sm:$0xff] %v405
      %1038 = vst [vmem:[#allocation2 + $0x68] sm:$0xff] %v406
      %1039 = vst [vmem:[#allocation2 + $0xb0] sm:$0xff] %v407
      %1040 = vst [vmem:[#allocation2 + $0xf8] sm:$0xff] %v408
      %1041 = vst [vmem:[#allocation2 + $0x140] sm:$0xff] %v409
      %1042 = vst [vmem:[#allocation2 + $0x188] sm:$0xff] %v410
      %1043 = vst [vmem:[#allocation2 + $0x1d0] sm:$0xff] %v411
      %1044 = vst [vmem:[#allocation2 + $0x218] sm:$0xff] %v412
      %1045 = vst [vmem:[#allocation2 + $0x260] sm:$0xff] %v413
      %1046 = vst [vmem:[#allocation2 + $0x2a8] sm:$0xff] %v414
      %1047 = vst [vmem:[#allocation2 + $0x2f0] sm:$0xff] %v415
      %1048 = vst [vmem:[#allocation2 + $0x338] sm:$0xff] %v416
      %1049 = vst [vmem:[#allocation2 + $0x380] sm:$0xff] %v417
      %1050 = vst [vmem:[#allocation2 + $0x3c8] sm:$0xff] %v418
      %1051 = vst [vmem:[#allocation2 + $0x410] sm:$0xff] %v419
      %1052 = vst [vmem:[#allocation2 + $0x458] sm:$0xff] %v420
      %1053 = vst [vmem:[#allocation2 + $0x4a0] sm:$0xff] %v421
      %1054 = vst [vmem:[#allocation2 + $0x4e8] sm:$0xff] %v422
      %1055 = vst [vmem:[#allocation2 + $0x530] sm:$0xff] %v423
      %1056 = vst [vmem:[#allocation2 + $0x578] sm:$0xff] %v424
      %1057 = vst [vmem:[#allocation2 + $0x5c0] sm:$0xff] %v425
      %1058 = vst [vmem:[#allocation2 + $0x608] sm:$0xff] %v426
      %1059 = vst [vmem:[#allocation2 + $0x650] sm:$0xff] %v427
      %1060 = vst [vmem:[#allocation2 + $0x698] sm:$0xff] %v428
      %1061 = vst [vmem:[#allocation2 + $0x6e0] sm:$0xff] %v429
      %1062 = vst [vmem:[#allocation2 + $0x728] sm:$0xff] %v430
      %1063 = vst [vmem:[#allocation2 + $0x770] sm:$0xff] %v431
      %1064 = vst [vmem:[#allocation2 + $0x7b8] sm:$0xff] %v432
      %1065 = vst [vmem:[#allocation2 + $0x800] sm:$0xff] %v433
      %1066 = vst [vmem:[#allocation2 + $0x848] sm:$0xff] %v434
      %1067 = vst [vmem:[#allocation2 + $0x890] sm:$0xff] %v435
      %1068 = vst [vmem:[#allocation2 + $0x8d8] sm:$0xff] %v436
      %v1069 = vrot.slane %v435, 1
      %v1070 = vrot.slane %v436, 1
      %v1071 = vsel %vm892, %v1069, %v1070
      %1074 = vst [vmem:[#allocation2 + $0x28] sm:$0xff] %v895
      %1075 = vst [vmem:[#allocation2 + $0x70] sm:$0x7f] %v894
      %1076 = vst [vmem:[#allocation2 + $0xb8] sm:$0xff] %v898
      %1077 = vst [vmem:[#allocation2 + $0x100] sm:$0x7f] %v897
      %1078 = vst [vmem:[#allocation2 + $0x148] sm:$0xff] %v901
      %1079 = vst [vmem:[#allocation2 + $0x190] sm:$0x7f] %v900
      %1080 = vst [vmem:[#allocation2 + $0x1d8] sm:$0xff] %v904
      %1081 = vst [vmem:[#allocation2 + $0x220] sm:$0x7f] %v903
      %1082 = vst [vmem:[#allocation2 + $0x268] sm:$0xff] %v907
      %1083 = vst [vmem:[#allocation2 + $0x2b0] sm:$0x7f] %v906
      %1084 = vst [vmem:[#allocation2 + $0x2f8] sm:$0xff] %v910
      %1085 = vst [vmem:[#allocation2 + $0x340] sm:$0x7f] %v909
      %1086 = vst [vmem:[#allocation2 + $0x388] sm:$0xff] %v913
      %1087 = vst [vmem:[#allocation2 + $0x3d0] sm:$0x7f] %v912
      %1088 = vst [vmem:[#allocation2 + $0x418] sm:$0xff] %v916
      %1089 = vst [vmem:[#allocation2 + $0x460] sm:$0x7f] %v915
      %1090 = vst [vmem:[#allocation2 + $0x4a8] sm:$0xff] %v919
      %1091 = vst [vmem:[#allocation2 + $0x4f0] sm:$0x7f] %v918
      %1092 = vst [vmem:[#allocation2 + $0x538] sm:$0xff] %v922
      %1093 = vst [vmem:[#allocation2 + $0x580] sm:$0x7f] %v921
      %1094 = vst [vmem:[#allocation2 + $0x5c8] sm:$0xff] %v925
      %1095 = vst [vmem:[#allocation2 + $0x610] sm:$0x7f] %v924
      %1096 = vst [vmem:[#allocation2 + $0x658] sm:$0xff] %v928
      %1097 = vst [vmem:[#allocation2 + $0x6a0] sm:$0x7f] %v927
      %1098 = vst [vmem:[#allocation2 + $0x6e8] sm:$0xff] %v931
      %1099 = vst [vmem:[#allocation2 + $0x730] sm:$0x7f] %v930
      %1100 = vst [vmem:[#allocation2 + $0x778] sm:$0xff] %v934
      %1101 = vst [vmem:[#allocation2 + $0x7c0] sm:$0x7f] %v933
      %1102 = vst [vmem:[#allocation2 + $0x808] sm:$0xff] %v937
      %1103 = vst [vmem:[#allocation2 + $0x850] sm:$0x7f] %v936
      %1104 = vst [vmem:[#allocation2 + $0x898] sm:$0xff] %v1071
      %1105 = vst [vmem:[#allocation2 + $0x8e0] sm:$0x7f] %v1070
      %1106 = vst [vmem:[#allocation2 + $0x30] sm:$0xfe] %v759
      %1107 = vst [vmem:[#allocation2 + $0x78] sm:$0xff] %v761
      %1108 = vst [vmem:[#allocation2 + $0xc0] sm:$0xfe] %v762
      %1109 = vst [vmem:[#allocation2 + $0x108] sm:$0xff] %v764
      %1110 = vst [vmem:[#allocation2 + $0x150] sm:$0xfe] %v765
      %1111 = vst [vmem:[#allocation2 + $0x198] sm:$0xff] %v767
      %1112 = vst [vmem:[#allocation2 + $0x1e0] sm:$0xfe] %v768
      %1113 = vst [vmem:[#allocation2 + $0x228] sm:$0xff] %v770
      %1114 = vst [vmem:[#allocation2 + $0x270] sm:$0xfe] %v771
      %1115 = vst [vmem:[#allocation2 + $0x2b8] sm:$0xff] %v773
      %1116 = vst [vmem:[#allocation2 + $0x300] sm:$0xfe] %v774
      %1117 = vst [vmem:[#allocation2 + $0x348] sm:$0xff] %v776
      %1118 = vst [vmem:[#allocation2 + $0x390] sm:$0xfe] %v777
      %1119 = vst [vmem:[#allocation2 + $0x3d8] sm:$0xff] %v779
      %1120 = vst [vmem:[#allocation2 + $0x420] sm:$0xfe] %v780
      %1121 = vst [vmem:[#allocation2 + $0x468] sm:$0xff] %v782
      %1122 = vst [vmem:[#allocation2 + $0x4b0] sm:$0xfe] %v783
      %1123 = vst [vmem:[#allocation2 + $0x4f8] sm:$0xff] %v785
      %1124 = vst [vmem:[#allocation2 + $0x540] sm:$0xfe] %v786
      %1125 = vst [vmem:[#allocation2 + $0x588] sm:$0xff] %v788
      %1126 = vst [vmem:[#allocation2 + $0x5d0] sm:$0xfe] %v789
      %1127 = vst [vmem:[#allocation2 + $0x618] sm:$0xff] %v791
      %1128 = vst [vmem:[#allocation2 + $0x660] sm:$0xfe] %v792
      %1129 = vst [vmem:[#allocation2 + $0x6a8] sm:$0xff] %v794
      %1130 = vst [vmem:[#allocation2 + $0x6f0] sm:$0xfe] %v795
      %1131 = vst [vmem:[#allocation2 + $0x738] sm:$0xff] %v797
      %1132 = vst [vmem:[#allocation2 + $0x780] sm:$0xfe] %v798
      %1133 = vst [vmem:[#allocation2 + $0x7c8] sm:$0xff] %v800
      %1134 = vst [vmem:[#allocation2 + $0x810] sm:$0xfe] %v1000
      %1135 = vst [vmem:[#allocation2 + $0x858] sm:$0xff] %v1002
      %1136 = vst [vmem:[#allocation2 + $0x38] sm:$0xff] %v407
      %1137 = vst [vmem:[#allocation2 + $0x80] sm:$0xff] %v408
      %1138 = vst [vmem:[#allocation2 + $0xc8] sm:$0xff] %v409
      %1139 = vst [vmem:[#allocation2 + $0x110] sm:$0xff] %v410
      %1140 = vst [vmem:[#allocation2 + $0x158] sm:$0xff] %v411
      %1141 = vst [vmem:[#allocation2 + $0x1a0] sm:$0xff] %v412
      %1142 = vst [vmem:[#allocation2 + $0x1e8] sm:$0xff] %v413
      %1143 = vst [vmem:[#allocation2 + $0x230] sm:$0xff] %v414
      %1144 = vst [vmem:[#allocation2 + $0x278] sm:$0xff] %v415
      %1145 = vst [vmem:[#allocation2 + $0x2c0] sm:$0xff] %v416
      %1146 = vst [vmem:[#allocation2 + $0x308] sm:$0xff] %v417
      %1147 = vst [vmem:[#allocation2 + $0x350] sm:$0xff] %v418
      %1148 = vst [vmem:[#allocation2 + $0x398] sm:$0xff] %v419
      %1149 = vst [vmem:[#allocation2 + $0x3e0] sm:$0xff] %v420
      %1150 = vst [vmem:[#allocation2 + $0x428] sm:$0xff] %v421
      %1151 = vst [vmem:[#allocation2 + $0x470] sm:$0xff] %v422
      %1152 = vst [vmem:[#allocation2 + $0x4b8] sm:$0xff] %v423
      %1153 = vst [vmem:[#allocation2 + $0x500] sm:$0xff] %v424
      %1154 = vst [vmem:[#allocation2 + $0x548] sm:$0xff] %v425
      %1155 = vst [vmem:[#allocation2 + $0x590] sm:$0xff] %v426
      %1156 = vst [vmem:[#allocation2 + $0x5d8] sm:$0xff] %v427
      %1157 = vst [vmem:[#allocation2 + $0x620] sm:$0xff] %v428
      %1158 = vst [vmem:[#allocation2 + $0x668] sm:$0xff] %v429
      %1159 = vst [vmem:[#allocation2 + $0x6b0] sm:$0xff] %v430
      %1160 = vst [vmem:[#allocation2 + $0x6f8] sm:$0xff] %v431
      %1161 = vst [vmem:[#allocation2 + $0x740] sm:$0xff] %v432
      %1162 = vst [vmem:[#allocation2 + $0x788] sm:$0xff] %v433
      %1163 = vst [vmem:[#allocation2 + $0x7d0] sm:$0xff] %v434
      %1164 = vst [vmem:[#allocation2 + $0x818] sm:$0xff] %v435
      %1165 = vst [vmem:[#allocation2 + $0x860] sm:$0xff] %v436
      %1166 = vst [vmem:[#allocation2 + $0x40] sm:$0xff] %v898
      %1167 = vst [vmem:[#allocation2 + $0x88] sm:$0x7f] %v897
      %1168 = vst [vmem:[#allocation2 + $0xd0] sm:$0xff] %v901
      %1169 = vst [vmem:[#allocation2 + $0x118] sm:$0x7f] %v900
      %1170 = vst [vmem:[#allocation2 + $0x160] sm:$0xff] %v904
      %1171 = vst [vmem:[#allocation2 + $0x1a8] sm:$0x7f] %v903
      %1172 = vst [vmem:[#allocation2 + $0x1f0] sm:$0xff] %v907
      %1173 = vst [vmem:[#allocation2 + $0x238] sm:$0x7f] %v906
      %1174 = vst [vmem:[#allocation2 + $0x280] sm:$0xff] %v910
      %1175 = vst [vmem:[#allocation2 + $0x2c8] sm:$0x7f] %v909
      %1176 = vst [vmem:[#allocation2 + $0x310] sm:$0xff] %v913
      %1177 = vst [vmem:[#allocation2 + $0x358] sm:$0x7f] %v912
      %1178 = vst [vmem:[#allocation2 + $0x3a0] sm:$0xff] %v916
      %1179 = vst [vmem:[#allocation2 + $0x3e8] sm:$0x7f] %v915
      %1180 = vst [vmem:[#allocation2 + $0x430] sm:$0xff] %v919
      %1181 = vst [vmem:[#allocation2 + $0x478] sm:$0x7f] %v918
      %1182 = vst [vmem:[#allocation2 + $0x4c0] sm:$0xff] %v922
      %1183 = vst [vmem:[#allocation2 + $0x508] sm:$0x7f] %v921
      %1184 = vst [vmem:[#allocation2 + $0x550] sm:$0xff] %v925
      %1185 = vst [vmem:[#allocation2 + $0x598] sm:$0x7f] %v924
      %1186 = vst [vmem:[#allocation2 + $0x5e0] sm:$0xff] %v928
      %1187 = vst [vmem:[#allocation2 + $0x628] sm:$0x7f] %v927
      %1188 = vst [vmem:[#allocation2 + $0x670] sm:$0xff] %v931
      %1189 = vst [vmem:[#allocation2 + $0x6b8] sm:$0x7f] %v930
      %1190 = vst [vmem:[#allocation2 + $0x700] sm:$0xff] %v934
      %1191 = vst [vmem:[#allocation2 + $0x748] sm:$0x7f] %v933
      %1192 = vst [vmem:[#allocation2 + $0x790] sm:$0xff] %v937
      %1193 = vst [vmem:[#allocation2 + $0x7d8] sm:$0x7f] %v936
      %1194 = vst [vmem:[#allocation2 + $0x820] sm:$0xff] %v1071
      %1195 = vst [vmem:[#allocation2 + $0x868] sm:$0x7f] %v1070
      %v1196 = vld [vmem:[#allocation2] sm:$0xff]
      %v1197 = vld [vmem:[#allocation2 + $0x8] sm:$0xff]
      %v1198 = vld [vmem:[#allocation2 + $0x10] sm:$0xff]
      %v1199 = vld [vmem:[#allocation2 + $0x18] sm:$0xff]
      %v1200 = vld [vmem:[#allocation2 + $0x20] sm:$0xff]
      %v1201 = vld [vmem:[#allocation2 + $0x28] sm:$0xff]
      %v1202 = vld [vmem:[#allocation2 + $0x30] sm:$0xff]
      %v1203 = vld [vmem:[#allocation2 + $0x38] sm:$0xff]
      %v1204 = vld [vmem:[#allocation2 + $0x40] sm:$0xff]
      %v1205 = vld [vmem:[#allocation2 + $0x48] sm:$0xff]
      %v1206 = vld [vmem:[#allocation2 + $0x50] sm:$0xff]
      %v1207 = vld [vmem:[#allocation2 + $0x58] sm:$0xff]
      %v1208 = vld [vmem:[#allocation2 + $0x60] sm:$0xff]
      %v1209 = vld [vmem:[#allocation2 + $0x68] sm:$0xff]
      %v1210 = vld [vmem:[#allocation2 + $0x70] sm:$0xff]
      %v1211 = vld [vmem:[#allocation2 + $0x78] sm:$0xff]
      %v1212 = vld [vmem:[#allocation2 + $0x80] sm:$0xff]
      %v1213 = vld [vmem:[#allocation2 + $0x88] sm:$0xff]
      %v1214 = vld [vmem:[#allocation2 + $0x90] sm:$0xff]
      %v1215 = vld [vmem:[#allocation2 + $0x98] sm:$0xff]
      %v1216 = vld [vmem:[#allocation2 + $0xa0] sm:$0xff]
      %v1217 = vld [vmem:[#allocation2 + $0xa8] sm:$0xff]
      %v1218 = vld [vmem:[#allocation2 + $0xb0] sm:$0xff]
      %v1219 = vld [vmem:[#allocation2 + $0xb8] sm:$0xff]
      %v1220 = vld [vmem:[#allocation2 + $0xc0] sm:$0xff]
      %v1221 = vld [vmem:[#allocation2 + $0xc8] sm:$0xff]
      %v1222 = vld [vmem:[#allocation2 + $0xd0] sm:$0xff]
      %v1223 = vld [vmem:[#allocation2 + $0xd8] sm:$0xff]
      %v1224 = vld [vmem:[#allocation2 + $0xe0] sm:$0xff]
      %v1225 = vld [vmem:[#allocation2 + $0xe8] sm:$0xff]
      %v1226 = vld [vmem:[#allocation2 + $0xf0] sm:$0xff]
      %v1227 = vld [vmem:[#allocation2 + $0xf8] sm:$0xff]
      %v1228 = vld [vmem:[#allocation2 + $0x100] sm:$0xff]
      %v1229 = vld [vmem:[#allocation2 + $0x108] sm:$0xff]
      %v1230 = vld [vmem:[#allocation2 + $0x110] sm:$0xff]
      %v1231 = vld [vmem:[#allocation2 + $0x118] sm:$0xff]
      %v1232 = vld [vmem:[#allocation2 + $0x120] sm:$0xff]
      %v1233 = vld [vmem:[#allocation2 + $0x128] sm:$0xff]
      %v1234 = vld [vmem:[#allocation2 + $0x130] sm:$0xff]
      %v1235 = vld [vmem:[#allocation2 + $0x138] sm:$0xff]
      %v1236 = vld [vmem:[#allocation2 + $0x140] sm:$0xff]
      %v1237 = vld [vmem:[#allocation2 + $0x148] sm:$0xff]
      %v1238 = vld [vmem:[#allocation2 + $0x150] sm:$0xff]
      %v1239 = vld [vmem:[#allocation2 + $0x158] sm:$0xff]
      %v1240 = vld [vmem:[#allocation2 + $0x160] sm:$0xff]
      %v1241 = vld [vmem:[#allocation2 + $0x168] sm:$0xff]
      %v1242 = vld [vmem:[#allocation2 + $0x170] sm:$0xff]
      %v1243 = vld [vmem:[#allocation2 + $0x178] sm:$0xff]
      %v1244 = vld [vmem:[#allocation2 + $0x180] sm:$0xff]
      %v1245 = vld [vmem:[#allocation2 + $0x188] sm:$0xff]
      %v1246 = vld [vmem:[#allocation2 + $0x190] sm:$0xff]
      %v1247 = vld [vmem:[#allocation2 + $0x198] sm:$0xff]
      %v1248 = vld [vmem:[#allocation2 + $0x1a0] sm:$0xff]
      %v1249 = vld [vmem:[#allocation2 + $0x1a8] sm:$0xff]
      %v1250 = vld [vmem:[#allocation2 + $0x1b0] sm:$0xff]
      %v1251 = vld [vmem:[#allocation2 + $0x1b8] sm:$0xff]
      %v1252 = vld [vmem:[#allocation2 + $0x1c0] sm:$0xff]
      %v1253 = vld [vmem:[#allocation2 + $0x1c8] sm:$0xff]
      %v1254 = vld [vmem:[#allocation2 + $0x1d0] sm:$0xff]
      %v1255 = vld [vmem:[#allocation2 + $0x1d8] sm:$0xff]
      %v1256 = vld [vmem:[#allocation2 + $0x1e0] sm:$0xff]
      %v1257 = vld [vmem:[#allocation2 + $0x1e8] sm:$0xff]
      %v1258 = vld [vmem:[#allocation2 + $0x1f0] sm:$0xff]
      %v1259 = vld [vmem:[#allocation2 + $0x1f8] sm:$0xff]
      %v1260 = vld [vmem:[#allocation2 + $0x200] sm:$0xff]
      %v1261 = vld [vmem:[#allocation2 + $0x208] sm:$0xff]
      %v1262 = vld [vmem:[#allocation2 + $0x210] sm:$0xff]
      %v1263 = vld [vmem:[#allocation2 + $0x218] sm:$0xff]
      %v1264 = vld [vmem:[#allocation2 + $0x220] sm:$0xff]
      %v1265 = vld [vmem:[#allocation2 + $0x228] sm:$0xff]
      %v1266 = vld [vmem:[#allocation2 + $0x230] sm:$0xff]
      %v1267 = vld [vmem:[#allocation2 + $0x238] sm:$0xff]
      %v1268 = vld [vmem:[#allocation2 + $0x240] sm:$0xff]
      %v1269 = vld [vmem:[#allocation2 + $0x248] sm:$0xff]
      %v1270 = vld [vmem:[#allocation2 + $0x250] sm:$0xff]
      %v1271 = vld [vmem:[#allocation2 + $0x258] sm:$0xff]
      %v1272 = vld [vmem:[#allocation2 + $0x260] sm:$0xff]
      %v1273 = vld [vmem:[#allocation2 + $0x268] sm:$0xff]
      %v1274 = vld [vmem:[#allocation2 + $0x270] sm:$0xff]
      %v1275 = vld [vmem:[#allocation2 + $0x278] sm:$0xff]
      %v1276 = vld [vmem:[#allocation2 + $0x280] sm:$0xff]
      %v1277 = vld [vmem:[#allocation2 + $0x288] sm:$0xff]
      %v1278 = vld [vmem:[#allocation2 + $0x290] sm:$0xff]
      %v1279 = vld [vmem:[#allocation2 + $0x298] sm:$0xff]
      %v1280 = vld [vmem:[#allocation2 + $0x2a0] sm:$0xff]
      %v1281 = vld [vmem:[#allocation2 + $0x2a8] sm:$0xff]
      %v1282 = vld [vmem:[#allocation2 + $0x2b0] sm:$0xff]
      %v1283 = vld [vmem:[#allocation2 + $0x2b8] sm:$0xff]
      %v1284 = vld [vmem:[#allocation2 + $0x2c0] sm:$0xff]
      %v1285 = vld [vmem:[#allocation2 + $0x2c8] sm:$0xff]
      %v1286 = vld [vmem:[#allocation2 + $0x2d0] sm:$0xff]
      %v1287 = vld [vmem:[#allocation2 + $0x2d8] sm:$0xff]
      %v1288 = vld [vmem:[#allocation2 + $0x2e0] sm:$0xff]
      %v1289 = vld [vmem:[#allocation2 + $0x2e8] sm:$0xff]
      %v1290 = vld [vmem:[#allocation2 + $0x2f0] sm:$0xff]
      %v1291 = vld [vmem:[#allocation2 + $0x2f8] sm:$0xff]
      %v1292 = vld [vmem:[#allocation2 + $0x300] sm:$0xff]
      %v1293 = vld [vmem:[#allocation2 + $0x308] sm:$0xff]
      %v1294 = vld [vmem:[#allocation2 + $0x310] sm:$0xff]
      %v1295 = vld [vmem:[#allocation2 + $0x318] sm:$0xff]
      %v1296 = vld [vmem:[#allocation2 + $0x320] sm:$0xff]
      %v1297 = vld [vmem:[#allocation2 + $0x328] sm:$0xff]
      %v1298 = vld [vmem:[#allocation2 + $0x330] sm:$0xff]
      %v1299 = vld [vmem:[#allocation2 + $0x338] sm:$0xff]
      %v1300 = vld [vmem:[#allocation2 + $0x340] sm:$0xff]
      %v1301 = vld [vmem:[#allocation2 + $0x348] sm:$0xff]
      %v1302 = vld [vmem:[#allocation2 + $0x350] sm:$0xff]
      %v1303 = vld [vmem:[#allocation2 + $0x358] sm:$0xff]
      %v1304 = vld [vmem:[#allocation2 + $0x360] sm:$0xff]
      %v1305 = vld [vmem:[#allocation2 + $0x368] sm:$0xff]
      %v1306 = vld [vmem:[#allocation2 + $0x370] sm:$0xff]
      %v1307 = vld [vmem:[#allocation2 + $0x378] sm:$0xff]
      %v1308 = vld [vmem:[#allocation2 + $0x380] sm:$0xff]
      %v1309 = vld [vmem:[#allocation2 + $0x388] sm:$0xff]
      %v1310 = vld [vmem:[#allocation2 + $0x390] sm:$0xff]
      %v1311 = vld [vmem:[#allocation2 + $0x398] sm:$0xff]
      %v1312 = vld [vmem:[#allocation2 + $0x3a0] sm:$0xff]
      %v1313 = vld [vmem:[#allocation2 + $0x3a8] sm:$0xff]
      %v1314 = vld [vmem:[#allocation2 + $0x3b0] sm:$0xff]
      %v1315 = vld [vmem:[#allocation2 + $0x3b8] sm:$0xff]
      %v1316 = vld [vmem:[#allocation2 + $0x3c0] sm:$0xff]
      %v1317 = vld [vmem:[#allocation2 + $0x3c8] sm:$0xff]
      %v1318 = vld [vmem:[#allocation2 + $0x3d0] sm:$0xff]
      %v1319 = vld [vmem:[#allocation2 + $0x3d8] sm:$0xff]
      %v1320 = vld [vmem:[#allocation2 + $0x3e0] sm:$0xff]
      %v1321 = vld [vmem:[#allocation2 + $0x3e8] sm:$0xff]
      %v1322 = vld [vmem:[#allocation2 + $0x3f0] sm:$0xff]
      %v1323 = vld [vmem:[#allocation2 + $0x3f8] sm:$0xff]
      %v1324 = vld [vmem:[#allocation2 + $0x400] sm:$0xff]
      %v1325 = vld [vmem:[#allocation2 + $0x408] sm:$0xff]
      %v1326 = vld [vmem:[#allocation2 + $0x410] sm:$0xff]
      %v1327 = vld [vmem:[#allocation2 + $0x418] sm:$0xff]
      %v1328 = vld [vmem:[#allocation2 + $0x420] sm:$0xff]
      %v1329 = vld [vmem:[#allocation2 + $0x428] sm:$0xff]
      %v1330 = vld [vmem:[#allocation2 + $0x430] sm:$0xff]
      %v1331 = vld [vmem:[#allocation2 + $0x438] sm:$0xff]
      %v1332 = vld [vmem:[#allocation2 + $0x440] sm:$0xff]
      %v1333 = vld [vmem:[#allocation2 + $0x448] sm:$0xff]
      %v1334 = vld [vmem:[#allocation2 + $0x450] sm:$0xff]
      %v1335 = vld [vmem:[#allocation2 + $0x458] sm:$0xff]
      %v1336 = vld [vmem:[#allocation2 + $0x460] sm:$0xff]
      %v1337 = vld [vmem:[#allocation2 + $0x468] sm:$0xff]
      %v1338 = vld [vmem:[#allocation2 + $0x470] sm:$0xff]
      %v1339 = vld [vmem:[#allocation2 + $0x478] sm:$0xff]
      %v1340 = vld [vmem:[#allocation2 + $0x480] sm:$0xff]
      %v1341 = vld [vmem:[#allocation2 + $0x488] sm:$0xff]
      %v1342 = vld [vmem:[#allocation2 + $0x490] sm:$0xff]
      %v1343 = vld [vmem:[#allocation2 + $0x498] sm:$0xff]
      %v1344 = vld [vmem:[#allocation2 + $0x4a0] sm:$0xff]
      %v1345 = vld [vmem:[#allocation2 + $0x4a8] sm:$0xff]
      %v1346 = vld [vmem:[#allocation2 + $0x4b0] sm:$0xff]
      %v1347 = vld [vmem:[#allocation2 + $0x4b8] sm:$0xff]
      %v1348 = vld [vmem:[#allocation2 + $0x4c0] sm:$0xff]
      %v1349 = vld [vmem:[#allocation2 + $0x4c8] sm:$0xff]
      %v1350 = vld [vmem:[#allocation2 + $0x4d0] sm:$0xff]
      %v1351 = vld [vmem:[#allocation2 + $0x4d8] sm:$0xff]
      %v1352 = vld [vmem:[#allocation2 + $0x4e0] sm:$0xff]
      %v1353 = vld [vmem:[#allocation2 + $0x4e8] sm:$0xff]
      %v1354 = vld [vmem:[#allocation2 + $0x4f0] sm:$0xff]
      %v1355 = vld [vmem:[#allocation2 + $0x4f8] sm:$0xff]
      %v1356 = vld [vmem:[#allocation2 + $0x500] sm:$0xff]
      %v1357 = vld [vmem:[#allocation2 + $0x508] sm:$0xff]
      %v1358 = vld [vmem:[#allocation2 + $0x510] sm:$0xff]
      %v1359 = vld [vmem:[#allocation2 + $0x518] sm:$0xff]
      %v1360 = vld [vmem:[#allocation2 + $0x520] sm:$0xff]
      %v1361 = vld [vmem:[#allocation2 + $0x528] sm:$0xff]
      %v1362 = vld [vmem:[#allocation2 + $0x530] sm:$0xff]
      %v1363 = vld [vmem:[#allocation2 + $0x538] sm:$0xff]
      %v1364 = vld [vmem:[#allocation2 + $0x540] sm:$0xff]
      %v1365 = vld [vmem:[#allocation2 + $0x548] sm:$0xff]
      %v1366 = vld [vmem:[#allocation2 + $0x550] sm:$0xff]
      %v1367 = vld [vmem:[#allocation2 + $0x558] sm:$0xff]
      %v1368 = vld [vmem:[#allocation2 + $0x560] sm:$0xff]
      %v1369 = vld [vmem:[#allocation2 + $0x568] sm:$0xff]
      %v1370 = vld [vmem:[#allocation2 + $0x570] sm:$0xff]
      %v1371 = vld [vmem:[#allocation2 + $0x578] sm:$0xff]
      %v1372 = vld [vmem:[#allocation2 + $0x580] sm:$0xff]
      %v1373 = vld [vmem:[#allocation2 + $0x588] sm:$0xff]
      %v1374 = vld [vmem:[#allocation2 + $0x590] sm:$0xff]
      %v1375 = vld [vmem:[#allocation2 + $0x598] sm:$0xff]
      %v1376 = vld [vmem:[#allocation2 + $0x5a0] sm:$0xff]
      %v1377 = vld [vmem:[#allocation2 + $0x5a8] sm:$0xff]
      %v1378 = vld [vmem:[#allocation2 + $0x5b0] sm:$0xff]
      %v1379 = vld [vmem:[#allocation2 + $0x5b8] sm:$0xff]
      %v1380 = vld [vmem:[#allocation2 + $0x5c0] sm:$0xff]
      %v1381 = vld [vmem:[#allocation2 + $0x5c8] sm:$0xff]
      %v1382 = vld [vmem:[#allocation2 + $0x5d0] sm:$0xff]
      %v1383 = vld [vmem:[#allocation2 + $0x5d8] sm:$0xff]
      %v1384 = vld [vmem:[#allocation2 + $0x5e0] sm:$0xff]
      %v1385 = vld [vmem:[#allocation2 + $0x5e8] sm:$0xff]
      %v1386 = vld [vmem:[#allocation2 + $0x5f0] sm:$0xff]
      %v1387 = vld [vmem:[#allocation2 + $0x5f8] sm:$0xff]
      %v1388 = vld [vmem:[#allocation2 + $0x600] sm:$0xff]
      %v1389 = vld [vmem:[#allocation2 + $0x608] sm:$0xff]
      %v1390 = vld [vmem:[#allocation2 + $0x610] sm:$0xff]
      %v1391 = vld [vmem:[#allocation2 + $0x618] sm:$0xff]
      %v1392 = vld [vmem:[#allocation2 + $0x620] sm:$0xff]
      %v1393 = vld [vmem:[#allocation2 + $0x628] sm:$0xff]
      %v1394 = vld [vmem:[#allocation2 + $0x630] sm:$0xff]
      %v1395 = vld [vmem:[#allocation2 + $0x638] sm:$0xff]
      %v1396 = vld [vmem:[#allocation2 + $0x640] sm:$0xff]
      %v1397 = vld [vmem:[#allocation2 + $0x648] sm:$0xff]
      %v1398 = vld [vmem:[#allocation2 + $0x650] sm:$0xff]
      %v1399 = vld [vmem:[#allocation2 + $0x658] sm:$0xff]
      %v1400 = vld [vmem:[#allocation2 + $0x660] sm:$0xff]
      %v1401 = vld [vmem:[#allocation2 + $0x668] sm:$0xff]
      %v1402 = vld [vmem:[#allocation2 + $0x670] sm:$0xff]
      %v1403 = vld [vmem:[#allocation2 + $0x678] sm:$0xff]
      %v1404 = vld [vmem:[#allocation2 + $0x680] sm:$0xff]
      %v1405 = vld [vmem:[#allocation2 + $0x688] sm:$0xff]
      %v1406 = vld [vmem:[#allocation2 + $0x690] sm:$0xff]
      %v1407 = vld [vmem:[#allocation2 + $0x698] sm:$0xff]
      %v1408 = vld [vmem:[#allocation2 + $0x6a0] sm:$0xff]
      %v1409 = vld [vmem:[#allocation2 + $0x6a8] sm:$0xff]
      %v1410 = vld [vmem:[#allocation2 + $0x6b0] sm:$0xff]
      %v1411 = vld [vmem:[#allocation2 + $0x6b8] sm:$0xff]
      %v1412 = vld [vmem:[#allocation2 + $0x6c0] sm:$0xff]
      %v1413 = vld [vmem:[#allocation2 + $0x6c8] sm:$0xff]
      %v1414 = vld [vmem:[#allocation2 + $0x6d0] sm:$0xff]
      %v1415 = vld [vmem:[#allocation2 + $0x6d8] sm:$0xff]
      %v1416 = vld [vmem:[#allocation2 + $0x6e0] sm:$0xff]
      %v1417 = vld [vmem:[#allocation2 + $0x6e8] sm:$0xff]
      %v1418 = vld [vmem:[#allocation2 + $0x6f0] sm:$0xff]
      %v1419 = vld [vmem:[#allocation2 + $0x6f8] sm:$0xff]
      %v1420 = vld [vmem:[#allocation2 + $0x700] sm:$0xff]
      %v1421 = vld [vmem:[#allocation2 + $0x708] sm:$0xff]
      %v1422 = vld [vmem:[#allocation2 + $0x710] sm:$0xff]
      %v1423 = vld [vmem:[#allocation2 + $0x718] sm:$0xff]
      %v1424 = vld [vmem:[#allocation2 + $0x720] sm:$0xff]
      %v1425 = vld [vmem:[#allocation2 + $0x728] sm:$0xff]
      %v1426 = vld [vmem:[#allocation2 + $0x730] sm:$0xff]
      %v1427 = vld [vmem:[#allocation2 + $0x738] sm:$0xff]
      %v1428 = vld [vmem:[#allocation2 + $0x740] sm:$0xff]
      %v1429 = vld [vmem:[#allocation2 + $0x748] sm:$0xff]
      %v1430 = vld [vmem:[#allocation2 + $0x750] sm:$0xff]
      %v1431 = vld [vmem:[#allocation2 + $0x758] sm:$0xff]
      %v1432 = vld [vmem:[#allocation2 + $0x760] sm:$0xff]
      %v1433 = vld [vmem:[#allocation2 + $0x768] sm:$0xff]
      %v1434 = vld [vmem:[#allocation2 + $0x770] sm:$0xff]
      %v1435 = vld [vmem:[#allocation2 + $0x778] sm:$0xff]
      %v1436 = vld [vmem:[#allocation2 + $0x780] sm:$0xff]
      %v1437 = vld [vmem:[#allocation2 + $0x788] sm:$0xff]
      %v1438 = vld [vmem:[#allocation2 + $0x790] sm:$0xff]
      %v1439 = vld [vmem:[#allocation2 + $0x798] sm:$0xff]
      %v1440 = vld [vmem:[#allocation2 + $0x7a0] sm:$0xff]
      %v1441 = vld [vmem:[#allocation2 + $0x7a8] sm:$0xff]
      %v1442 = vld [vmem:[#allocation2 + $0x7b0] sm:$0xff]
      %v1443 = vld [vmem:[#allocation2 + $0x7b8] sm:$0xff]
      %v1444 = vld [vmem:[#allocation2 + $0x7c0] sm:$0xff]
      %v1445 = vld [vmem:[#allocation2 + $0x7c8] sm:$0xff]
      %v1446 = vld [vmem:[#allocation2 + $0x7d0] sm:$0xff]
      %v1447 = vld [vmem:[#allocation2 + $0x7d8] sm:$0xff]
      %v1448 = vld [vmem:[#allocation2 + $0x7e0] sm:$0xff]
      %v1449 = vld [vmem:[#allocation2 + $0x7e8] sm:$0xff]
      %v1450 = vld [vmem:[#allocation2 + $0x7f0] sm:$0xff]
      %v1451 = vld [vmem:[#allocation2 + $0x7f8] sm:$0xff]
      %v1452 = vld [vmem:[#allocation2 + $0x800] sm:$0xff]
      %v1453 = vld [vmem:[#allocation2 + $0x808] sm:$0xff]
      %v1454 = vld [vmem:[#allocation2 + $0x810] sm:$0xff]
      %v1455 = vld [vmem:[#allocation2 + $0x818] sm:$0xff]
      %v1456 = vld [vmem:[#allocation2 + $0x820] sm:$0xff]
      %v1457 = vld [vmem:[#allocation2 + $0x828] sm:$0xff]
      %v1458 = vld [vmem:[#allocation2 + $0x830] sm:$0xff]
      %v1459 = vld [vmem:[#allocation2 + $0x838] sm:$0xff]
      %v1460 = vld [vmem:[#allocation2 + $0x840] sm:$0xff]
      %v1461 = vld [vmem:[#allocation2 + $0x848] sm:$0xff]
      %v1462 = vld [vmem:[#allocation2 + $0x850] sm:$0xff]
      %v1463 = vld [vmem:[#allocation2 + $0x858] sm:$0xff]
      %v1464 = vld [vmem:[#allocation2 + $0x860] sm:$0xff]
      %v1465 = vld [vmem:[#allocation2 + $0x868] sm:$0xff]
      %v1466 = vld [vmem:[#allocation2 + $0x870] sm:$0xff]
      %v1467 = vld [vmem:[#allocation2 + $0x878] sm:$0xff]
      %v1468 = vld [vmem:[#allocation2 + $0x880] sm:$0xff]
      %v1469 = vld [vmem:[#allocation2 + $0x888] sm:$0xff]
      %v1470 = vld [vmem:[#allocation2 + $0x890] sm:$0xff]
      %v1471 = vld [vmem:[#allocation2 + $0x898] sm:$0xff]
      %v1472 = vld [vmem:[#allocation2 + $0x8a0] sm:$0xff]
      %v1473 = vld [vmem:[#allocation2 + $0x8a8] sm:$0xff]
      %v1474 = vld [vmem:[#allocation2 + $0x8b0] sm:$0xff]
      %v1475 = vld [vmem:[#allocation2 + $0x8b8] sm:$0xff]
      %v1476 = vld [vmem:[#allocation2 + $0x8c0] sm:$0xff]
      %v1477 = vld [vmem:[#allocation2 + $0x8c8] sm:$0xff]
      %v1478 = vld [vmem:[#allocation2 + $0x8d0] sm:$0xff]
      %v1479 = vld [vmem:[#allocation2 + $0x8d8] sm:$0xff]
      %v1480 = vld [vmem:[#allocation2 + $0x8e0] sm:$0xff]
      %v1481 = vld [vmem:[#allocation2 + $0x8e8] sm:$0xff]
      %v1482 = vld [vmem:[#allocation2 + $0x8f0] sm:$0xff]
      %v1483 = vld [vmem:[#allocation2 + $0x8f8] sm:$0xff]
      %v1484 = vpack.c.bf16 %v1205, %v1196
      %v1485 = vpack.c.bf16 %v1206, %v1197
      %v1486 = vpack.c.bf16 %v1207, %v1198
      %v1487 = vpack.c.bf16 %v1208, %v1199
      %v1488 = vpack.c.bf16 %v1209, %v1200
      %v1489 = vpack.c.bf16 %v1210, %v1201
      %v1490 = vpack.c.bf16 %v1211, %v1202
      %v1491 = vpack.c.bf16 %v1212, %v1203
      %v1492 = vpack.c.bf16 %v1213, %v1204
      %v1493 = vpack.c.bf16 %v1223, %v1214
      %v1494 = vpack.c.bf16 %v1224, %v1215
      %v1495 = vpack.c.bf16 %v1225, %v1216
      %v1496 = vpack.c.bf16 %v1226, %v1217
      %v1497 = vpack.c.bf16 %v1227, %v1218
      %v1498 = vpack.c.bf16 %v1228, %v1219
      %v1499 = vpack.c.bf16 %v1229, %v1220
      %v1500 = vpack.c.bf16 %v1230, %v1221
      %v1501 = vpack.c.bf16 %v1231, %v1222
      %v1502 = vpack.c.bf16 %v1241, %v1232
      %v1503 = vpack.c.bf16 %v1242, %v1233
      %v1504 = vpack.c.bf16 %v1243, %v1234
      %v1505 = vpack.c.bf16 %v1244, %v1235
      %v1506 = vpack.c.bf16 %v1245, %v1236
      %v1507 = vpack.c.bf16 %v1246, %v1237
      %v1508 = vpack.c.bf16 %v1247, %v1238
      %v1509 = vpack.c.bf16 %v1248, %v1239
      %v1510 = vpack.c.bf16 %v1249, %v1240
      %v1511 = vpack.c.bf16 %v1259, %v1250
      %v1512 = vpack.c.bf16 %v1260, %v1251
      %v1513 = vpack.c.bf16 %v1261, %v1252
      %v1514 = vpack.c.bf16 %v1262, %v1253
      %v1515 = vpack.c.bf16 %v1263, %v1254
      %v1516 = vpack.c.bf16 %v1264, %v1255
      %v1517 = vpack.c.bf16 %v1265, %v1256
      %v1518 = vpack.c.bf16 %v1266, %v1257
      %v1519 = vpack.c.bf16 %v1267, %v1258
      %v1520 = vpack.c.bf16 %v1277, %v1268
      %v1521 = vpack.c.bf16 %v1278, %v1269
      %v1522 = vpack.c.bf16 %v1279, %v1270
      %v1523 = vpack.c.bf16 %v1280, %v1271
      %v1524 = vpack.c.bf16 %v1281, %v1272
      %v1525 = vpack.c.bf16 %v1282, %v1273
      %v1526 = vpack.c.bf16 %v1283, %v1274
      %v1527 = vpack.c.bf16 %v1284, %v1275
      %v1528 = vpack.c.bf16 %v1285, %v1276
      %v1529 = vpack.c.bf16 %v1295, %v1286
      %v1530 = vpack.c.bf16 %v1296, %v1287
      %v1531 = vpack.c.bf16 %v1297, %v1288
      %v1532 = vpack.c.bf16 %v1298, %v1289
      %v1533 = vpack.c.bf16 %v1299, %v1290
      %v1534 = vpack.c.bf16 %v1300, %v1291
      %v1535 = vpack.c.bf16 %v1301, %v1292
      %v1536 = vpack.c.bf16 %v1302, %v1293
      %v1537 = vpack.c.bf16 %v1303, %v1294
      %v1538 = vpack.c.bf16 %v1313, %v1304
      %v1539 = vpack.c.bf16 %v1314, %v1305
      %v1540 = vpack.c.bf16 %v1315, %v1306
      %v1541 = vpack.c.bf16 %v1316, %v1307
      %v1542 = vpack.c.bf16 %v1317, %v1308
      %v1543 = vpack.c.bf16 %v1318, %v1309
      %v1544 = vpack.c.bf16 %v1319, %v1310
      %v1545 = vpack.c.bf16 %v1320, %v1311
      %v1546 = vpack.c.bf16 %v1321, %v1312
      %v1547 = vpack.c.bf16 %v1331, %v1322
      %v1548 = vpack.c.bf16 %v1332, %v1323
      %v1549 = vpack.c.bf16 %v1333, %v1324
      %v1550 = vpack.c.bf16 %v1334, %v1325
      %v1551 = vpack.c.bf16 %v1335, %v1326
      %v1552 = vpack.c.bf16 %v1336, %v1327
      %v1553 = vpack.c.bf16 %v1337, %v1328
      %v1554 = vpack.c.bf16 %v1338, %v1329
      %v1555 = vpack.c.bf16 %v1339, %v1330
      %v1556 = vpack.c.bf16 %v1349, %v1340
      %v1557 = vpack.c.bf16 %v1350, %v1341
      %v1558 = vpack.c.bf16 %v1351, %v1342
      %v1559 = vpack.c.bf16 %v1352, %v1343
      %v1560 = vpack.c.bf16 %v1353, %v1344
      %v1561 = vpack.c.bf16 %v1354, %v1345
      %v1562 = vpack.c.bf16 %v1355, %v1346
      %v1563 = vpack.c.bf16 %v1356, %v1347
      %v1564 = vpack.c.bf16 %v1357, %v1348
      %v1565 = vpack.c.bf16 %v1367, %v1358
      %v1566 = vpack.c.bf16 %v1368, %v1359
      %v1567 = vpack.c.bf16 %v1369, %v1360
      %v1568 = vpack.c.bf16 %v1370, %v1361
      %v1569 = vpack.c.bf16 %v1371, %v1362
      %v1570 = vpack.c.bf16 %v1372, %v1363
      %v1571 = vpack.c.bf16 %v1373, %v1364
      %v1572 = vpack.c.bf16 %v1374, %v1365
      %v1573 = vpack.c.bf16 %v1375, %v1366
      %v1574 = vpack.c.bf16 %v1385, %v1376
      %v1575 = vpack.c.bf16 %v1386, %v1377
      %v1576 = vpack.c.bf16 %v1387, %v1378
      %v1577 = vpack.c.bf16 %v1388, %v1379
      %v1578 = vpack.c.bf16 %v1389, %v1380
      %v1579 = vpack.c.bf16 %v1390, %v1381
      %v1580 = vpack.c.bf16 %v1391, %v1382
      %v1581 = vpack.c.bf16 %v1392, %v1383
      %v1582 = vpack.c.bf16 %v1393, %v1384
      %v1583 = vpack.c.bf16 %v1403, %v1394
      %v1584 = vpack.c.bf16 %v1404, %v1395
      %v1585 = vpack.c.bf16 %v1405, %v1396
      %v1586 = vpack.c.bf16 %v1406, %v1397
      %v1587 = vpack.c.bf16 %v1407, %v1398
      %v1588 = vpack.c.bf16 %v1408, %v1399
      %v1589 = vpack.c.bf16 %v1409, %v1400
      %v1590 = vpack.c.bf16 %v1410, %v1401
      %v1591 = vpack.c.bf16 %v1411, %v1402
      %v1592 = vpack.c.bf16 %v1421, %v1412
      %v1593 = vpack.c.bf16 %v1422, %v1413
      %v1594 = vpack.c.bf16 %v1423, %v1414
      %v1595 = vpack.c.bf16 %v1424, %v1415
      %v1596 = vpack.c.bf16 %v1425, %v1416
      %v1597 = vpack.c.bf16 %v1426, %v1417
      %v1598 = vpack.c.bf16 %v1427, %v1418
      %v1599 = vpack.c.bf16 %v1428, %v1419
      %v1600 = vpack.c.bf16 %v1429, %v1420
      %v1601 = vpack.c.bf16 %v1439, %v1430
      %v1602 = vpack.c.bf16 %v1440, %v1431
      %v1603 = vpack.c.bf16 %v1441, %v1432
      %v1604 = vpack.c.bf16 %v1442, %v1433
      %v1605 = vpack.c.bf16 %v1443, %v1434
      %v1606 = vpack.c.bf16 %v1444, %v1435
      %v1607 = vpack.c.bf16 %v1445, %v1436
      %v1608 = vpack.c.bf16 %v1446, %v1437
      %v1609 = vpack.c.bf16 %v1447, %v1438
      %v1610 = vpack.c.bf16 %v1457, %v1448
      %v1611 = vpack.c.bf16 %v1458, %v1449
      %v1612 = vpack.c.bf16 %v1459, %v1450
      %v1613 = vpack.c.bf16 %v1460, %v1451
      %v1614 = vpack.c.bf16 %v1461, %v1452
      %v1615 = vpack.c.bf16 %v1462, %v1453
      %v1616 = vpack.c.bf16 %v1463, %v1454
      %v1617 = vpack.c.bf16 %v1464, %v1455
      %v1618 = vpack.c.bf16 %v1465, %v1456
      %v1619 = vpack.c.bf16 %v1475, %v1466
      %v1620 = vpack.c.bf16 %v1476, %v1467
      %v1621 = vpack.c.bf16 %v1477, %v1468
      %v1622 = vpack.c.bf16 %v1478, %v1469
      %v1623 = vpack.c.bf16 %v1479, %v1470
      %v1624 = vpack.c.bf16 %v1480, %v1471
      %v1625 = vpack.c.bf16 %v1481, %v1472
      %v1626 = vpack.c.bf16 %v1482, %v1473
      %v1627 = vpack.c.bf16 %v1483, %v1474
      %v1628 = vld [vmem:[%s2] sm:$0xf]
      %v1629 = vld [vmem:[%s2 + $0x4] sm:$0xf]
      %v1630 = vld [vmem:[%s2 + $0x8] sm:$0xf]
      %v1631 = vld [vmem:[%s2 + $0xc] sm:$0xf]
      %v1632 = vld [vmem:[%s2 + $0x10] sm:$0xf]
      %v1633 = vld [vmem:[%s2 + $0x14] sm:$0xf]
      %v1634 = vld [vmem:[%s2 + $0x18] sm:$0xf]
      %v1635 = vld [vmem:[%s2 + $0x1c] sm:$0xf]
      %v1636 = vld [vmem:[%s2 + $0x20] sm:$0xf]
      %v1637 = vld [vmem:[%s2 + $0x24] sm:$0xf]
      %v1638 = vld [vmem:[%s2 + $0x28] sm:$0xf]
      %v1639 = vld [vmem:[%s2 + $0x2c] sm:$0xf]
      %v1640 = vld [vmem:[%s2 + $0x30] sm:$0xf]
      %v1641 = vld [vmem:[%s2 + $0x34] sm:$0xf]
      %v1642 = vld [vmem:[%s2 + $0x38] sm:$0xf]
      %v1643 = vld [vmem:[%s2 + $0x3c] sm:$0xf]
      %v1644 = vld [vmem:[%s2 + $0x40] sm:$0xf]
      %v1645 = vld [vmem:[%s2 + $0x44] sm:$0xf]
      %v1646 = vld [vmem:[%s2 + $0x48] sm:$0xf]
      %v1647 = vld [vmem:[%s2 + $0x4c] sm:$0xf]
      %v1648 = vld [vmem:[%s2 + $0x50] sm:$0xf]
      %v1649 = vld [vmem:[%s2 + $0x54] sm:$0xf]
      %v1650 = vld [vmem:[%s2 + $0x58] sm:$0xf]
      %v1651 = vld [vmem:[%s2 + $0x5c] sm:$0xf]
      %v1652 = vld [vmem:[%s2 + $0x60] sm:$0xf]
      %v1653 = vld [vmem:[%s2 + $0x64] sm:$0xf]
      %v1654 = vld [vmem:[%s2 + $0x68] sm:$0xf]
      %v1655 = vld [vmem:[%s2 + $0x6c] sm:$0xf]
      %v1656 = vld [vmem:[%s2 + $0x70] sm:$0xf]
      %v1657 = vld [vmem:[%s2 + $0x74] sm:$0xf]
      %v1658 = vld [vmem:[%s2 + $0x78] sm:$0xf]
      %v1659 = vld [vmem:[%s2 + $0x7c] sm:$0xf]
      %v1660 = vld [vmem:[%s2 + $0x80] sm:$0xf]
      %v1661 = vld [vmem:[%s2 + $0x84] sm:$0xf]
      %v1662 = vld [vmem:[%s2 + $0x88] sm:$0xf]
      %v1663 = vld [vmem:[%s2 + $0x8c] sm:$0xf]
      %v1664 = vld [vmem:[%s2 + $0x90] sm:$0xf]
      %v1665 = vld [vmem:[%s2 + $0x94] sm:$0xf]
      %v1666 = vld [vmem:[%s2 + $0x98] sm:$0xf]
      %v1667 = vld [vmem:[%s2 + $0x9c] sm:$0xf]
      %v1668 = vld [vmem:[%s2 + $0xa0] sm:$0xf]
      %v1669 = vld [vmem:[%s2 + $0xa4] sm:$0xf]
      %v1670 = vld [vmem:[%s2 + $0xa8] sm:$0xf]
      %v1671 = vld [vmem:[%s2 + $0xac] sm:$0xf]
      %v1672 = vld [vmem:[%s2 + $0xb0] sm:$0xf]
      %v1673 = vld [vmem:[%s2 + $0xb4] sm:$0xf]
      %v1674 = vld [vmem:[%s2 + $0xb8] sm:$0xf]
      %v1675 = vld [vmem:[%s2 + $0xbc] sm:$0xf]
      %v1676 = vld [vmem:[%s2 + $0xc0] sm:$0xf]
      %v1677 = vld [vmem:[%s2 + $0xc4] sm:$0xf]
      %v1678 = vld [vmem:[%s2 + $0xc8] sm:$0xf]
      %v1679 = vld [vmem:[%s2 + $0xcc] sm:$0xf]
      %v1680 = vld [vmem:[%s2 + $0xd0] sm:$0xf]
      %v1681 = vld [vmem:[%s2 + $0xd4] sm:$0xf]
      %v1682 = vld [vmem:[%s2 + $0xd8] sm:$0xf]
      %v1683 = vld [vmem:[%s2 + $0xdc] sm:$0xf]
      %v1684 = vld [vmem:[%s2 + $0xe0] sm:$0xf]
      %v1685 = vld [vmem:[%s2 + $0xe4] sm:$0xf]
      %v1686 = vld [vmem:[%s2 + $0xe8] sm:$0xf]
      %v1687 = vld [vmem:[%s2 + $0xec] sm:$0xf]
      %v1688 = vld [vmem:[%s2 + $0xf0] sm:$0xf]
      %v1689 = vld [vmem:[%s2 + $0xf4] sm:$0xf]
      %v1690 = vld [vmem:[%s2 + $0xf8] sm:$0xf]
      %v1691 = vld [vmem:[%s2 + $0xfc] sm:$0xf]
      %v1692 = vld [vmem:[%s2 + $0x100] sm:$0xf]
      %v1693 = vld [vmem:[%s2 + $0x104] sm:$0xf]
      %v1694 = vld [vmem:[%s2 + $0x108] sm:$0xf]
      %v1695 = vld [vmem:[%s2 + $0x10c] sm:$0xf]
      %v1696 = vld [vmem:[%s2 + $0x110] sm:$0xf]
      %v1697 = vld [vmem:[%s2 + $0x114] sm:$0xf]
      %v1698 = vld [vmem:[%s2 + $0x118] sm:$0xf]
      %v1699 = vld [vmem:[%s2 + $0x11c] sm:$0xf]
      %v1700 = vld [vmem:[%s2 + $0x120] sm:$0xf]
      %v1701 = vld [vmem:[%s2 + $0x124] sm:$0xf]
      %v1702 = vld [vmem:[%s2 + $0x128] sm:$0xf]
      %v1703 = vld [vmem:[%s2 + $0x12c] sm:$0xf]
      %v1704 = vld [vmem:[%s2 + $0x130] sm:$0xf]
      %v1705 = vld [vmem:[%s2 + $0x134] sm:$0xf]
      %v1706 = vld [vmem:[%s2 + $0x138] sm:$0xf]
      %v1707 = vld [vmem:[%s2 + $0x13c] sm:$0xf]
      %v1708 = vld [vmem:[%s2 + $0x140] sm:$0xf]
      %v1709 = vld [vmem:[%s2 + $0x144] sm:$0xf]
      %v1710 = vld [vmem:[%s2 + $0x148] sm:$0xf]
      %v1711 = vld [vmem:[%s2 + $0x14c] sm:$0xf]
      %v1712 = vld [vmem:[%s2 + $0x150] sm:$0xf]
      %v1713 = vld [vmem:[%s2 + $0x154] sm:$0xf]
      %v1714 = vld [vmem:[%s2 + $0x158] sm:$0xf]
      %v1715 = vld [vmem:[%s2 + $0x15c] sm:$0xf]
      %v1716 = vld [vmem:[%s2 + $0x160] sm:$0xf]
      %v1717 = vld [vmem:[%s2 + $0x164] sm:$0xf]
      %v1718 = vld [vmem:[%s2 + $0x168] sm:$0xf]
      %v1719 = vld [vmem:[%s2 + $0x16c] sm:$0xf]
      %v1720 = vld [vmem:[%s2 + $0x170] sm:$0xf]
      %v1721 = vld [vmem:[%s2 + $0x174] sm:$0xf]
      %v1722 = vld [vmem:[%s2 + $0x178] sm:$0xf]
      %v1723 = vld [vmem:[%s2 + $0x17c] sm:$0xf]
      %v1724 = vld [vmem:[%s2 + $0x180] sm:$0xf]
      %v1725 = vld [vmem:[%s2 + $0x184] sm:$0xf]
      %v1726 = vld [vmem:[%s2 + $0x188] sm:$0xf]
      %v1727 = vld [vmem:[%s2 + $0x18c] sm:$0xf]
      %v1728 = vld [vmem:[%s2 + $0x190] sm:$0xf]
      %v1729 = vld [vmem:[%s2 + $0x194] sm:$0xf]
      %v1730 = vld [vmem:[%s2 + $0x198] sm:$0xf]
      %v1731 = vld [vmem:[%s2 + $0x19c] sm:$0xf]
      %v1732 = vld [vmem:[%s2 + $0x1a0] sm:$0xf]
      %v1733 = vld [vmem:[%s2 + $0x1a4] sm:$0xf]
      %v1734 = vld [vmem:[%s2 + $0x1a8] sm:$0xf]
      %v1735 = vld [vmem:[%s2 + $0x1ac] sm:$0xf]
      %v1736 = vld [vmem:[%s2 + $0x1b0] sm:$0xf]
      %v1737 = vld [vmem:[%s2 + $0x1b4] sm:$0xf]
      %v1738 = vld [vmem:[%s2 + $0x1b8] sm:$0xf]
      %v1739 = vld [vmem:[%s2 + $0x1bc] sm:$0xf]
      %v1740 = vld [vmem:[%s2 + $0x1c0] sm:$0xf]
      %v1741 = vld [vmem:[%s2 + $0x1c4] sm:$0xf]
      %v1742 = vld [vmem:[%s2 + $0x1c8] sm:$0xf]
      %v1743 = vld [vmem:[%s2 + $0x1cc] sm:$0xf]
      %v1744 = vld [vmem:[%s2 + $0x1d0] sm:$0xf]
      %v1745 = vld [vmem:[%s2 + $0x1d4] sm:$0xf]
      %v1746 = vld [vmem:[%s2 + $0x1d8] sm:$0xf]
      %v1747 = vld [vmem:[%s2 + $0x1dc] sm:$0xf]
      %v1748 = vld [vmem:[%s2 + $0x1e0] sm:$0xf]
      %v1749 = vld [vmem:[%s2 + $0x1e4] sm:$0xf]
      %v1750 = vld [vmem:[%s2 + $0x1e8] sm:$0xf]
      %v1751 = vld [vmem:[%s2 + $0x1ec] sm:$0xf]
      %v1752 = vld [vmem:[%s2 + $0x1f0] sm:$0xf]
      %v1753 = vld [vmem:[%s2 + $0x1f4] sm:$0xf]
      %v1754 = vld [vmem:[%s2 + $0x1f8] sm:$0xf]
      %v1755 = vld [vmem:[%s2 + $0x1fc] sm:$0xf]
      %v1756 = vld [vmem:[%s2 + $0x200] sm:$0xf]
      %v1757 = vld [vmem:[%s2 + $0x204] sm:$0xf]
      %v1758 = vld [vmem:[%s2 + $0x208] sm:$0xf]
      %v1759 = vld [vmem:[%s2 + $0x20c] sm:$0xf]
      %v1760 = vld [vmem:[%s2 + $0x210] sm:$0xf]
      %v1761 = vld [vmem:[%s2 + $0x214] sm:$0xf]
      %v1762 = vld [vmem:[%s2 + $0x218] sm:$0xf]
      %v1763 = vld [vmem:[%s2 + $0x21c] sm:$0xf]
      %v1764 = vld [vmem:[%s2 + $0x220] sm:$0xf]
      %v1765 = vld [vmem:[%s2 + $0x224] sm:$0xf]
      %v1766 = vld [vmem:[%s2 + $0x228] sm:$0xf]
      %v1767 = vld [vmem:[%s2 + $0x22c] sm:$0xf]
      %v1768 = vld [vmem:[%s2 + $0x230] sm:$0xf]
      %v1769 = vld [vmem:[%s2 + $0x234] sm:$0xf]
      %v1770 = vld [vmem:[%s2 + $0x238] sm:$0xf]
      %v1771 = vld [vmem:[%s2 + $0x23c] sm:$0xf]
      %v1916 = vunpack.c.l.b16 %v1628
      %v1917 = vunpack.c.l.b16 %v1629
      %v1918 = vunpack.c.l.b16 %v1630
      %v1919 = vunpack.c.l.b16 %v1631
      %v1920 = vunpack.c.l.b16 %v1632
      %v1921 = vunpack.c.l.b16 %v1633
      %v1922 = vunpack.c.l.b16 %v1634
      %v1923 = vunpack.c.l.b16 %v1635
      %v1924 = vunpack.c.l.b16 %v1636
      %v1925 = vunpack.c.l.b16 %v1637
      %v1926 = vunpack.c.l.b16 %v1638
      %v1927 = vunpack.c.l.b16 %v1639
      %v1928 = vunpack.c.l.b16 %v1640
      %v1929 = vunpack.c.l.b16 %v1641
      %v1930 = vunpack.c.l.b16 %v1642
      %v1931 = vunpack.c.l.b16 %v1643
      %v1932 = vunpack.c.l.b16 %v1644
      %v1933 = vunpack.c.l.b16 %v1645
      %v1934 = vunpack.c.l.b16 %v1646
      %v1935 = vunpack.c.l.b16 %v1647
      %v1936 = vunpack.c.l.b16 %v1648
      %v1937 = vunpack.c.l.b16 %v1649
      %v1938 = vunpack.c.l.b16 %v1650
      %v1939 = vunpack.c.l.b16 %v1651
      %v1940 = vunpack.c.l.b16 %v1652
      %v1941 = vunpack.c.l.b16 %v1653
      %v1942 = vunpack.c.l.b16 %v1654
      %v1943 = vunpack.c.l.b16 %v1655
      %v1944 = vunpack.c.l.b16 %v1656
      %v1945 = vunpack.c.l.b16 %v1657
      %v1946 = vunpack.c.l.b16 %v1658
      %v1947 = vunpack.c.l.b16 %v1659
      %v1948 = vunpack.c.l.b16 %v1660
      %v1949 = vunpack.c.l.b16 %v1661
      %v1950 = vunpack.c.l.b16 %v1662
      %v1951 = vunpack.c.l.b16 %v1663
      %v1952 = vunpack.c.l.b16 %v1664
      %v1953 = vunpack.c.l.b16 %v1665
      %v1954 = vunpack.c.l.b16 %v1666
      %v1955 = vunpack.c.l.b16 %v1667
      %v1956 = vunpack.c.l.b16 %v1668
      %v1957 = vunpack.c.l.b16 %v1669
      %v1958 = vunpack.c.l.b16 %v1670
      %v1959 = vunpack.c.l.b16 %v1671
      %v1960 = vunpack.c.l.b16 %v1672
      %v1961 = vunpack.c.l.b16 %v1673
      %v1962 = vunpack.c.l.b16 %v1674
      %v1963 = vunpack.c.l.b16 %v1675
      %v1964 = vunpack.c.l.b16 %v1676
      %v1965 = vunpack.c.l.b16 %v1677
      %v1966 = vunpack.c.l.b16 %v1678
      %v1967 = vunpack.c.l.b16 %v1679
      %v1968 = vunpack.c.l.b16 %v1680
      %v1969 = vunpack.c.l.b16 %v1681
      %v1970 = vunpack.c.l.b16 %v1682
      %v1971 = vunpack.c.l.b16 %v1683
      %v1972 = vunpack.c.l.b16 %v1684
      %v1973 = vunpack.c.l.b16 %v1685
      %v1974 = vunpack.c.l.b16 %v1686
      %v1975 = vunpack.c.l.b16 %v1687
      %v1976 = vunpack.c.l.b16 %v1688
      %v1977 = vunpack.c.l.b16 %v1689
      %v1978 = vunpack.c.l.b16 %v1690
      %v1979 = vunpack.c.l.b16 %v1691
      %v1980 = vunpack.c.l.b16 %v1692
      %v1981 = vunpack.c.l.b16 %v1693
      %v1982 = vunpack.c.l.b16 %v1694
      %v1983 = vunpack.c.l.b16 %v1695
      %v1984 = vunpack.c.l.b16 %v1696
      %v1985 = vunpack.c.l.b16 %v1697
      %v1986 = vunpack.c.l.b16 %v1698
      %v1987 = vunpack.c.l.b16 %v1699
      %v1988 = vunpack.c.l.b16 %v1700
      %v1989 = vunpack.c.l.b16 %v1701
      %v1990 = vunpack.c.l.b16 %v1702
      %v1991 = vunpack.c.l.b16 %v1703
      %v1992 = vunpack.c.l.b16 %v1704
      %v1993 = vunpack.c.l.b16 %v1705
      %v1994 = vunpack.c.l.b16 %v1706
      %v1995 = vunpack.c.l.b16 %v1707
      %v1996 = vunpack.c.l.b16 %v1708
      %v1997 = vunpack.c.l.b16 %v1709
      %v1998 = vunpack.c.l.b16 %v1710
      %v1999 = vunpack.c.l.b16 %v1711
      %v2000 = vunpack.c.l.b16 %v1712
      %v2001 = vunpack.c.l.b16 %v1713
      %v2002 = vunpack.c.l.b16 %v1714
      %v2003 = vunpack.c.l.b16 %v1715
      %v2004 = vunpack.c.l.b16 %v1716
      %v2005 = vunpack.c.l.b16 %v1717
      %v2006 = vunpack.c.l.b16 %v1718
      %v2007 = vunpack.c.l.b16 %v1719
      %v2008 = vunpack.c.l.b16 %v1720
      %v2009 = vunpack.c.l.b16 %v1721
      %v2010 = vunpack.c.l.b16 %v1722
      %v2011 = vunpack.c.l.b16 %v1723
      %v2012 = vunpack.c.l.b16 %v1724
      %v2013 = vunpack.c.l.b16 %v1725
      %v2014 = vunpack.c.l.b16 %v1726
      %v2015 = vunpack.c.l.b16 %v1727
      %v2016 = vunpack.c.l.b16 %v1728
      %v2017 = vunpack.c.l.b16 %v1729
      %v2018 = vunpack.c.l.b16 %v1730
      %v2019 = vunpack.c.l.b16 %v1731
      %v2020 = vunpack.c.l.b16 %v1732
      %v2021 = vunpack.c.l.b16 %v1733
      %v2022 = vunpack.c.l.b16 %v1734
      %v2023 = vunpack.c.l.b16 %v1735
      %v2024 = vunpack.c.l.b16 %v1736
      %v2025 = vunpack.c.l.b16 %v1737
      %v2026 = vunpack.c.l.b16 %v1738
      %v2027 = vunpack.c.l.b16 %v1739
      %v2028 = vunpack.c.l.b16 %v1740
      %v2029 = vunpack.c.l.b16 %v1741
      %v2030 = vunpack.c.l.b16 %v1742
      %v2031 = vunpack.c.l.b16 %v1743
      %v2032 = vunpack.c.l.b16 %v1744
      %v2033 = vunpack.c.l.b16 %v1745
      %v2034 = vunpack.c.l.b16 %v1746
      %v2035 = vunpack.c.l.b16 %v1747
      %v2036 = vunpack.c.l.b16 %v1748
      %v2037 = vunpack.c.l.b16 %v1749
      %v2038 = vunpack.c.l.b16 %v1750
      %v2039 = vunpack.c.l.b16 %v1751
      %v2040 = vunpack.c.l.b16 %v1752
      %v2041 = vunpack.c.l.b16 %v1753
      %v2042 = vunpack.c.l.b16 %v1754
      %v2043 = vunpack.c.l.b16 %v1755
      %v2044 = vunpack.c.l.b16 %v1756
      %v2045 = vunpack.c.l.b16 %v1757
      %v2046 = vunpack.c.l.b16 %v1758
      %v2047 = vunpack.c.l.b16 %v1759
      %v2048 = vunpack.c.l.b16 %v1760
      %v2049 = vunpack.c.l.b16 %v1761
      %v2050 = vunpack.c.l.b16 %v1762
      %v2051 = vunpack.c.l.b16 %v1763
      %v2052 = vunpack.c.l.b16 %v1764
      %v2053 = vunpack.c.l.b16 %v1765
      %v2054 = vunpack.c.l.b16 %v1766
      %v2055 = vunpack.c.l.b16 %v1767
      %v2056 = vunpack.c.l.b16 %v1768
      %v2057 = vunpack.c.l.b16 %v1769
      %v2058 = vunpack.c.l.b16 %v1770
      %v2059 = vunpack.c.l.b16 %v1771
      %v2060 = vpack.c.b16 %v1917, %v1916
      %v2061 = vpack.c.b16 %v1919, %v1918
      %v2062 = vpack.c.b16 %v1921, %v1920
      %v2063 = vpack.c.b16 %v1923, %v1922
      %v2064 = vpack.c.b16 %v1925, %v1924
      %v2065 = vpack.c.b16 %v1927, %v1926
      %v2066 = vpack.c.b16 %v1929, %v1928
      %v2067 = vpack.c.b16 %v1931, %v1930
      %v2068 = vpack.c.b16 %v1933, %v1932
      %v2069 = vpack.c.b16 %v1935, %v1934
      %v2070 = vpack.c.b16 %v1937, %v1936
      %v2071 = vpack.c.b16 %v1939, %v1938
      %v2072 = vpack.c.b16 %v1941, %v1940
      %v2073 = vpack.c.b16 %v1943, %v1942
      %v2074 = vpack.c.b16 %v1945, %v1944
      %v2075 = vpack.c.b16 %v1947, %v1946
      %v2076 = vpack.c.b16 %v1949, %v1948
      %v2077 = vpack.c.b16 %v1951, %v1950
      %v2078 = vpack.c.b16 %v1953, %v1952
      %v2079 = vpack.c.b16 %v1955, %v1954
      %v2080 = vpack.c.b16 %v1957, %v1956
      %v2081 = vpack.c.b16 %v1959, %v1958
      %v2082 = vpack.c.b16 %v1961, %v1960
      %v2083 = vpack.c.b16 %v1963, %v1962
      %v2084 = vpack.c.b16 %v1965, %v1964
      %v2085 = vpack.c.b16 %v1967, %v1966
      %v2086 = vpack.c.b16 %v1969, %v1968
      %v2087 = vpack.c.b16 %v1971, %v1970
      %v2088 = vpack.c.b16 %v1973, %v1972
      %v2089 = vpack.c.b16 %v1975, %v1974
      %v2090 = vpack.c.b16 %v1977, %v1976
      %v2091 = vpack.c.b16 %v1979, %v1978
      %v2092 = vpack.c.b16 %v1981, %v1980
      %v2093 = vpack.c.b16 %v1983, %v1982
      %v2094 = vpack.c.b16 %v1985, %v1984
      %v2095 = vpack.c.b16 %v1987, %v1986
      %v2096 = vpack.c.b16 %v1989, %v1988
      %v2097 = vpack.c.b16 %v1991, %v1990
      %v2098 = vpack.c.b16 %v1993, %v1992
      %v2099 = vpack.c.b16 %v1995, %v1994
      %v2100 = vpack.c.b16 %v1997, %v1996
      %v2101 = vpack.c.b16 %v1999, %v1998
      %v2102 = vpack.c.b16 %v2001, %v2000
      %v2103 = vpack.c.b16 %v2003, %v2002
      %v2104 = vpack.c.b16 %v2005, %v2004
      %v2105 = vpack.c.b16 %v2007, %v2006
      %v2106 = vpack.c.b16 %v2009, %v2008
      %v2107 = vpack.c.b16 %v2011, %v2010
      %v2108 = vpack.c.b16 %v2013, %v2012
      %v2109 = vpack.c.b16 %v2015, %v2014
      %v2110 = vpack.c.b16 %v2017, %v2016
      %v2111 = vpack.c.b16 %v2019, %v2018
      %v2112 = vpack.c.b16 %v2021, %v2020
      %v2113 = vpack.c.b16 %v2023, %v2022
      %v2114 = vpack.c.b16 %v2025, %v2024
      %v2115 = vpack.c.b16 %v2027, %v2026
      %v2116 = vpack.c.b16 %v2029, %v2028
      %v2117 = vpack.c.b16 %v2031, %v2030
      %v2118 = vpack.c.b16 %v2033, %v2032
      %v2119 = vpack.c.b16 %v2035, %v2034
      %v2120 = vpack.c.b16 %v2037, %v2036
      %v2121 = vpack.c.b16 %v2039, %v2038
      %v2122 = vpack.c.b16 %v2041, %v2040
      %v2123 = vpack.c.b16 %v2043, %v2042
      %v2124 = vpack.c.b16 %v2045, %v2044
      %v2125 = vpack.c.b16 %v2047, %v2046
      %v2126 = vpack.c.b16 %v2049, %v2048
      %v2127 = vpack.c.b16 %v2051, %v2050
      %v2128 = vpack.c.b16 %v2053, %v2052
      %v2129 = vpack.c.b16 %v2055, %v2054
      %v2130 = vpack.c.b16 %v2057, %v2056
      %v2131 = vpack.c.b16 %v2059, %v2058
      %2204 = vmatpush.bf16.msra.mxu0 %v2067
      %2205 = vmatpush.bf16.msra.mxu0 %v2066
      %2206 = vmatpush.bf16.msra.mxu0 %v2065
      %2207 = vmatpush.bf16.msra.mxu0 %v2064
      %2208 = vmatpush.bf16.msra.mxu0 %v2063
      %2209 = vmatpush.bf16.msra.mxu0 %v2062
      %2210 = vmatpush.bf16.msra.mxu0 %v2061
      %2211 = vmatpush.bf16.msra.mxu0 %v2060
      %2212 = vmatmul.bf16.gmra.mxu0 %v1484
      %v2213 = vpop.f32.mrf.mxu0
      %v2214 = vadd.f32 0.0, %v2213
      %v2215 = vpop.f32.mrf.mxu0
      %v2216 = vadd.f32 0.0, %v2215
      %2217 = vmatmul.bf16.gmra.mxu0 %v1493
      %v2218 = vpop.f32.mrf.mxu0
      %v2219 = vadd.f32 0.0, %v2218
      %v2220 = vpop.f32.mrf.mxu0
      %v2221 = vadd.f32 0.0, %v2220
      %2222 = vmatmul.bf16.gmra.mxu0 %v1502
      %v2223 = vpop.f32.mrf.mxu0
      %v2224 = vadd.f32 0.0, %v2223
      %v2225 = vpop.f32.mrf.mxu0
      %v2226 = vadd.f32 0.0, %v2225
      %2227 = vmatmul.bf16.gmra.mxu0 %v1511
      %v2228 = vpop.f32.mrf.mxu0
      %v2229 = vadd.f32 0.0, %v2228
      %v2230 = vpop.f32.mrf.mxu0
      %v2231 = vadd.f32 0.0, %v2230
      %2232 = vmatmul.bf16.gmra.mxu0 %v1520
      %v2233 = vpop.f32.mrf.mxu0
      %v2234 = vadd.f32 0.0, %v2233
      %v2235 = vpop.f32.mrf.mxu0
      %v2236 = vadd.f32 0.0, %v2235
      %2237 = vmatmul.bf16.gmra.mxu0 %v1529
      %v2238 = vpop.f32.mrf.mxu0
      %v2239 = vadd.f32 0.0, %v2238
      %v2240 = vpop.f32.mrf.mxu0
      %v2241 = vadd.f32 0.0, %v2240
      %2242 = vmatmul.bf16.gmra.mxu0 %v1538
      %v2243 = vpop.f32.mrf.mxu0
      %v2244 = vadd.f32 0.0, %v2243
      %v2245 = vpop.f32.mrf.mxu0
      %v2246 = vadd.f32 0.0, %v2245
      %2247 = vmatmul.bf16.gmra.mxu0 %v1547
      %v2248 = vpop.f32.mrf.mxu0
      %v2249 = vadd.f32 0.0, %v2248
      %v2250 = vpop.f32.mrf.mxu0
      %v2251 = vadd.f32 0.0, %v2250
      %2252 = vmatmul.bf16.gmra.mxu0 %v1556
      %v2253 = vpop.f32.mrf.mxu0
      %v2254 = vadd.f32 0.0, %v2253
      %v2255 = vpop.f32.mrf.mxu0
      %v2256 = vadd.f32 0.0, %v2255
      %2257 = vmatmul.bf16.gmra.mxu0 %v1565
      %v2258 = vpop.f32.mrf.mxu0
      %v2259 = vadd.f32 0.0, %v2258
      %v2260 = vpop.f32.mrf.mxu0
      %v2261 = vadd.f32 0.0, %v2260
      %2262 = vmatmul.bf16.gmra.mxu0 %v1574
      %v2263 = vpop.f32.mrf.mxu0
      %v2264 = vadd.f32 0.0, %v2263
      %v2265 = vpop.f32.mrf.mxu0
      %v2266 = vadd.f32 0.0, %v2265
      %2267 = vmatmul.bf16.gmra.mxu0 %v1583
      %v2268 = vpop.f32.mrf.mxu0
      %v2269 = vadd.f32 0.0, %v2268
      %v2270 = vpop.f32.mrf.mxu0
      %v2271 = vadd.f32 0.0, %v2270
      %2272 = vmatmul.bf16.gmra.mxu0 %v1592
      %v2273 = vpop.f32.mrf.mxu0
      %v2274 = vadd.f32 0.0, %v2273
      %v2275 = vpop.f32.mrf.mxu0
      %v2276 = vadd.f32 0.0, %v2275
      %2277 = vmatmul.bf16.gmra.mxu0 %v1601
      %v2278 = vpop.f32.mrf.mxu0
      %v2279 = vadd.f32 0.0, %v2278
      %v2280 = vpop.f32.mrf.mxu0
      %v2281 = vadd.f32 0.0, %v2280
      %2282 = vmatmul.bf16.gmra.mxu0 %v1610
      %v2283 = vpop.f32.mrf.mxu0
      %v2284 = vadd.f32 0.0, %v2283
      %v2285 = vpop.f32.mrf.mxu0
      %v2286 = vadd.f32 0.0, %v2285
      %2287 = vmatmul.bf16.gmra.mxu0 %v1619
      %v2288 = vpop.f32.mrf.mxu0
      %v2289 = vadd.f32 0.0, %v2288
      %v2290 = vpop.f32.mrf.mxu0
      %v2291 = vadd.f32 0.0, %v2290
      %2292 = vdwg.mxu0
      %2293 = vmatpush.bf16.msra.mxu0 %v2075
      %2294 = vmatpush.bf16.msra.mxu0 %v2074
      %2295 = vmatpush.bf16.msra.mxu0 %v2073
      %2296 = vmatpush.bf16.msra.mxu0 %v2072
      %2297 = vmatpush.bf16.msra.mxu0 %v2071
      %2298 = vmatpush.bf16.msra.mxu0 %v2070
      %2299 = vmatpush.bf16.msra.mxu0 %v2069
      %2300 = vmatpush.bf16.msra.mxu0 %v2068
      %2301 = vmatmul.bf16.gmra.mxu0 %v1485
      %v2302 = vpop.f32.mrf.mxu0
      %v2303 = vadd.f32 %v2214, %v2302
      %v2304 = vpop.f32.mrf.mxu0
      %v2305 = vadd.f32 %v2216, %v2304
      %2306 = vmatmul.bf16.gmra.mxu0 %v1494
      %v2307 = vpop.f32.mrf.mxu0
      %v2308 = vadd.f32 %v2219, %v2307
      %v2309 = vpop.f32.mrf.mxu0
      %v2310 = vadd.f32 %v2221, %v2309
      %2311 = vmatmul.bf16.gmra.mxu0 %v1503
      %v2312 = vpop.f32.mrf.mxu0
      %v2313 = vadd.f32 %v2224, %v2312
      %v2314 = vpop.f32.mrf.mxu0
      %v2315 = vadd.f32 %v2226, %v2314
      %2316 = vmatmul.bf16.gmra.mxu0 %v1512
      %v2317 = vpop.f32.mrf.mxu0
      %v2318 = vadd.f32 %v2229, %v2317
      %v2319 = vpop.f32.mrf.mxu0
      %v2320 = vadd.f32 %v2231, %v2319
      %2321 = vmatmul.bf16.gmra.mxu0 %v1521
      %v2322 = vpop.f32.mrf.mxu0
      %v2323 = vadd.f32 %v2234, %v2322
      %v2324 = vpop.f32.mrf.mxu0
      %v2325 = vadd.f32 %v2236, %v2324
      %2326 = vmatmul.bf16.gmra.mxu0 %v1530
      %v2327 = vpop.f32.mrf.mxu0
      %v2328 = vadd.f32 %v2239, %v2327
      %v2329 = vpop.f32.mrf.mxu0
      %v2330 = vadd.f32 %v2241, %v2329
      %2331 = vmatmul.bf16.gmra.mxu0 %v1539
      %v2332 = vpop.f32.mrf.mxu0
      %v2333 = vadd.f32 %v2244, %v2332
      %v2334 = vpop.f32.mrf.mxu0
      %v2335 = vadd.f32 %v2246, %v2334
      %2336 = vmatmul.bf16.gmra.mxu0 %v1548
      %v2337 = vpop.f32.mrf.mxu0
      %v2338 = vadd.f32 %v2249, %v2337
      %v2339 = vpop.f32.mrf.mxu0
      %v2340 = vadd.f32 %v2251, %v2339
      %2341 = vmatmul.bf16.gmra.mxu0 %v1557
      %v2342 = vpop.f32.mrf.mxu0
      %v2343 = vadd.f32 %v2254, %v2342
      %v2344 = vpop.f32.mrf.mxu0
      %v2345 = vadd.f32 %v2256, %v2344
      %2346 = vmatmul.bf16.gmra.mxu0 %v1566
      %v2347 = vpop.f32.mrf.mxu0
      %v2348 = vadd.f32 %v2259, %v2347
      %v2349 = vpop.f32.mrf.mxu0
      %v2350 = vadd.f32 %v2261, %v2349
      %2351 = vmatmul.bf16.gmra.mxu0 %v1575
      %v2352 = vpop.f32.mrf.mxu0
      %v2353 = vadd.f32 %v2264, %v2352
      %v2354 = vpop.f32.mrf.mxu0
      %v2355 = vadd.f32 %v2266, %v2354
      %2356 = vmatmul.bf16.gmra.mxu0 %v1584
      %v2357 = vpop.f32.mrf.mxu0
      %v2358 = vadd.f32 %v2269, %v2357
      %v2359 = vpop.f32.mrf.mxu0
      %v2360 = vadd.f32 %v2271, %v2359
      %2361 = vmatmul.bf16.gmra.mxu0 %v1593
      %v2362 = vpop.f32.mrf.mxu0
      %v2363 = vadd.f32 %v2274, %v2362
      %v2364 = vpop.f32.mrf.mxu0
      %v2365 = vadd.f32 %v2276, %v2364
      %2366 = vmatmul.bf16.gmra.mxu0 %v1602
      %v2367 = vpop.f32.mrf.mxu0
      %v2368 = vadd.f32 %v2279, %v2367
      %v2369 = vpop.f32.mrf.mxu0
      %v2370 = vadd.f32 %v2281, %v2369
      %2371 = vmatmul.bf16.gmra.mxu0 %v1611
      %v2372 = vpop.f32.mrf.mxu0
      %v2373 = vadd.f32 %v2284, %v2372
      %v2374 = vpop.f32.mrf.mxu0
      %v2375 = vadd.f32 %v2286, %v2374
      %2376 = vmatmul.bf16.gmra.mxu0 %v1620
      %v2377 = vpop.f32.mrf.mxu0
      %v2378 = vadd.f32 %v2289, %v2377
      %v2379 = vpop.f32.mrf.mxu0
      %v2380 = vadd.f32 %v2291, %v2379
      %2381 = vdwg.mxu0
      %2382 = vmatpush.bf16.msra.mxu0 %v2083
      %2383 = vmatpush.bf16.msra.mxu0 %v2082
      %2384 = vmatpush.bf16.msra.mxu0 %v2081
      %2385 = vmatpush.bf16.msra.mxu0 %v2080
      %2386 = vmatpush.bf16.msra.mxu0 %v2079
      %2387 = vmatpush.bf16.msra.mxu0 %v2078
      %2388 = vmatpush.bf16.msra.mxu0 %v2077
      %2389 = vmatpush.bf16.msra.mxu0 %v2076
      %2390 = vmatmul.bf16.gmra.mxu0 %v1486
      %v2391 = vpop.f32.mrf.mxu0
      %v2392 = vadd.f32 %v2303, %v2391
      %v2393 = vpop.f32.mrf.mxu0
      %v2394 = vadd.f32 %v2305, %v2393
      %2395 = vmatmul.bf16.gmra.mxu0 %v1495
      %v2396 = vpop.f32.mrf.mxu0
      %v2397 = vadd.f32 %v2308, %v2396
      %v2398 = vpop.f32.mrf.mxu0
      %v2399 = vadd.f32 %v2310, %v2398
      %2400 = vmatmul.bf16.gmra.mxu0 %v1504
      %v2401 = vpop.f32.mrf.mxu0
      %v2402 = vadd.f32 %v2313, %v2401
      %v2403 = vpop.f32.mrf.mxu0
      %v2404 = vadd.f32 %v2315, %v2403
      %2405 = vmatmul.bf16.gmra.mxu0 %v1513
      %v2406 = vpop.f32.mrf.mxu0
      %v2407 = vadd.f32 %v2318, %v2406
      %v2408 = vpop.f32.mrf.mxu0
      %v2409 = vadd.f32 %v2320, %v2408
      %2410 = vmatmul.bf16.gmra.mxu0 %v1522
      %v2411 = vpop.f32.mrf.mxu0
      %v2412 = vadd.f32 %v2323, %v2411
      %v2413 = vpop.f32.mrf.mxu0
      %v2414 = vadd.f32 %v2325, %v2413
      %2415 = vmatmul.bf16.gmra.mxu0 %v1531
      %v2416 = vpop.f32.mrf.mxu0
      %v2417 = vadd.f32 %v2328, %v2416
      %v2418 = vpop.f32.mrf.mxu0
      %v2419 = vadd.f32 %v2330, %v2418
      %2420 = vmatmul.bf16.gmra.mxu0 %v1540
      %v2421 = vpop.f32.mrf.mxu0
      %v2422 = vadd.f32 %v2333, %v2421
      %v2423 = vpop.f32.mrf.mxu0
      %v2424 = vadd.f32 %v2335, %v2423
      %2425 = vmatmul.bf16.gmra.mxu0 %v1549
      %v2426 = vpop.f32.mrf.mxu0
      %v2427 = vadd.f32 %v2338, %v2426
      %v2428 = vpop.f32.mrf.mxu0
      %v2429 = vadd.f32 %v2340, %v2428
      %2430 = vmatmul.bf16.gmra.mxu0 %v1558
      %v2431 = vpop.f32.mrf.mxu0
      %v2432 = vadd.f32 %v2343, %v2431
      %v2433 = vpop.f32.mrf.mxu0
      %v2434 = vadd.f32 %v2345, %v2433
      %2435 = vmatmul.bf16.gmra.mxu0 %v1567
      %v2436 = vpop.f32.mrf.mxu0
      %v2437 = vadd.f32 %v2348, %v2436
      %v2438 = vpop.f32.mrf.mxu0
      %v2439 = vadd.f32 %v2350, %v2438
      %2440 = vmatmul.bf16.gmra.mxu0 %v1576
      %v2441 = vpop.f32.mrf.mxu0
      %v2442 = vadd.f32 %v2353, %v2441
      %v2443 = vpop.f32.mrf.mxu0
      %v2444 = vadd.f32 %v2355, %v2443
      %2445 = vmatmul.bf16.gmra.mxu0 %v1585
      %v2446 = vpop.f32.mrf.mxu0
      %v2447 = vadd.f32 %v2358, %v2446
      %v2448 = vpop.f32.mrf.mxu0
      %v2449 = vadd.f32 %v2360, %v2448
      %2450 = vmatmul.bf16.gmra.mxu0 %v1594
      %v2451 = vpop.f32.mrf.mxu0
      %v2452 = vadd.f32 %v2363, %v2451
      %v2453 = vpop.f32.mrf.mxu0
      %v2454 = vadd.f32 %v2365, %v2453
      %2455 = vmatmul.bf16.gmra.mxu0 %v1603
      %v2456 = vpop.f32.mrf.mxu0
      %v2457 = vadd.f32 %v2368, %v2456
      %v2458 = vpop.f32.mrf.mxu0
      %v2459 = vadd.f32 %v2370, %v2458
      %2460 = vmatmul.bf16.gmra.mxu0 %v1612
      %v2461 = vpop.f32.mrf.mxu0
      %v2462 = vadd.f32 %v2373, %v2461
      %v2463 = vpop.f32.mrf.mxu0
      %v2464 = vadd.f32 %v2375, %v2463
      %2465 = vmatmul.bf16.gmra.mxu0 %v1621
      %v2466 = vpop.f32.mrf.mxu0
      %v2467 = vadd.f32 %v2378, %v2466
      %v2468 = vpop.f32.mrf.mxu0
      %v2469 = vadd.f32 %v2380, %v2468
      %2470 = vdwg.mxu0
      %2471 = vmatpush.bf16.msra.mxu0 %v2091
      %2472 = vmatpush.bf16.msra.mxu0 %v2090
      %2473 = vmatpush.bf16.msra.mxu0 %v2089
      %2474 = vmatpush.bf16.msra.mxu0 %v2088
      %2475 = vmatpush.bf16.msra.mxu0 %v2087
      %2476 = vmatpush.bf16.msra.mxu0 %v2086
      %2477 = vmatpush.bf16.msra.mxu0 %v2085
      %2478 = vmatpush.bf16.msra.mxu0 %v2084
      %2479 = vmatmul.bf16.gmra.mxu0 %v1487
      %v2480 = vpop.f32.mrf.mxu0
      %v2481 = vadd.f32 %v2392, %v2480
      %v2482 = vpop.f32.mrf.mxu0
      %v2483 = vadd.f32 %v2394, %v2482
      %2484 = vmatmul.bf16.gmra.mxu0 %v1496
      %v2485 = vpop.f32.mrf.mxu0
      %v2486 = vadd.f32 %v2397, %v2485
      %v2487 = vpop.f32.mrf.mxu0
      %v2488 = vadd.f32 %v2399, %v2487
      %2489 = vmatmul.bf16.gmra.mxu0 %v1505
      %v2490 = vpop.f32.mrf.mxu0
      %v2491 = vadd.f32 %v2402, %v2490
      %v2492 = vpop.f32.mrf.mxu0
      %v2493 = vadd.f32 %v2404, %v2492
      %2494 = vmatmul.bf16.gmra.mxu0 %v1514
      %v2495 = vpop.f32.mrf.mxu0
      %v2496 = vadd.f32 %v2407, %v2495
      %v2497 = vpop.f32.mrf.mxu0
      %v2498 = vadd.f32 %v2409, %v2497
      %2499 = vmatmul.bf16.gmra.mxu0 %v1523
      %v2500 = vpop.f32.mrf.mxu0
      %v2501 = vadd.f32 %v2412, %v2500
      %v2502 = vpop.f32.mrf.mxu0
      %v2503 = vadd.f32 %v2414, %v2502
      %2504 = vmatmul.bf16.gmra.mxu0 %v1532
      %v2505 = vpop.f32.mrf.mxu0
      %v2506 = vadd.f32 %v2417, %v2505
      %v2507 = vpop.f32.mrf.mxu0
      %v2508 = vadd.f32 %v2419, %v2507
      %2509 = vmatmul.bf16.gmra.mxu0 %v1541
      %v2510 = vpop.f32.mrf.mxu0
      %v2511 = vadd.f32 %v2422, %v2510
      %v2512 = vpop.f32.mrf.mxu0
      %v2513 = vadd.f32 %v2424, %v2512
      %2514 = vmatmul.bf16.gmra.mxu0 %v1550
      %v2515 = vpop.f32.mrf.mxu0
      %v2516 = vadd.f32 %v2427, %v2515
      %v2517 = vpop.f32.mrf.mxu0
      %v2518 = vadd.f32 %v2429, %v2517
      %2519 = vmatmul.bf16.gmra.mxu0 %v1559
      %v2520 = vpop.f32.mrf.mxu0
      %v2521 = vadd.f32 %v2432, %v2520
      %v2522 = vpop.f32.mrf.mxu0
      %v2523 = vadd.f32 %v2434, %v2522
      %2524 = vmatmul.bf16.gmra.mxu0 %v1568
      %v2525 = vpop.f32.mrf.mxu0
      %v2526 = vadd.f32 %v2437, %v2525
      %v2527 = vpop.f32.mrf.mxu0
      %v2528 = vadd.f32 %v2439, %v2527
      %2529 = vmatmul.bf16.gmra.mxu0 %v1577
      %v2530 = vpop.f32.mrf.mxu0
      %v2531 = vadd.f32 %v2442, %v2530
      %v2532 = vpop.f32.mrf.mxu0
      %v2533 = vadd.f32 %v2444, %v2532
      %2534 = vmatmul.bf16.gmra.mxu0 %v1586
      %v2535 = vpop.f32.mrf.mxu0
      %v2536 = vadd.f32 %v2447, %v2535
      %v2537 = vpop.f32.mrf.mxu0
      %v2538 = vadd.f32 %v2449, %v2537
      %2539 = vmatmul.bf16.gmra.mxu0 %v1595
      %v2540 = vpop.f32.mrf.mxu0
      %v2541 = vadd.f32 %v2452, %v2540
      %v2542 = vpop.f32.mrf.mxu0
      %v2543 = vadd.f32 %v2454, %v2542
      %2544 = vmatmul.bf16.gmra.mxu0 %v1604
      %v2545 = vpop.f32.mrf.mxu0
      %v2546 = vadd.f32 %v2457, %v2545
      %v2547 = vpop.f32.mrf.mxu0
      %v2548 = vadd.f32 %v2459, %v2547
      %2549 = vmatmul.bf16.gmra.mxu0 %v1613
      %v2550 = vpop.f32.mrf.mxu0
      %v2551 = vadd.f32 %v2462, %v2550
      %v2552 = vpop.f32.mrf.mxu0
      %v2553 = vadd.f32 %v2464, %v2552
      %2554 = vmatmul.bf16.gmra.mxu0 %v1622
      %v2555 = vpop.f32.mrf.mxu0
      %v2556 = vadd.f32 %v2467, %v2555
      %v2557 = vpop.f32.mrf.mxu0
      %v2558 = vadd.f32 %v2469, %v2557
      %2559 = vdwg.mxu0
      %2560 = vmatpush.bf16.msra.mxu0 %v2099
      %2561 = vmatpush.bf16.msra.mxu0 %v2098
      %2562 = vmatpush.bf16.msra.mxu0 %v2097
      %2563 = vmatpush.bf16.msra.mxu0 %v2096
      %2564 = vmatpush.bf16.msra.mxu0 %v2095
      %2565 = vmatpush.bf16.msra.mxu0 %v2094
      %2566 = vmatpush.bf16.msra.mxu0 %v2093
      %2567 = vmatpush.bf16.msra.mxu0 %v2092
      %2568 = vmatmul.bf16.gmra.mxu0 %v1488
      %v2569 = vpop.f32.mrf.mxu0
      %v2570 = vadd.f32 %v2481, %v2569
      %v2571 = vpop.f32.mrf.mxu0
      %v2572 = vadd.f32 %v2483, %v2571
      %2573 = vmatmul.bf16.gmra.mxu0 %v1497
      %v2574 = vpop.f32.mrf.mxu0
      %v2575 = vadd.f32 %v2486, %v2574
      %v2576 = vpop.f32.mrf.mxu0
      %v2577 = vadd.f32 %v2488, %v2576
      %2578 = vmatmul.bf16.gmra.mxu0 %v1506
      %v2579 = vpop.f32.mrf.mxu0
      %v2580 = vadd.f32 %v2491, %v2579
      %v2581 = vpop.f32.mrf.mxu0
      %v2582 = vadd.f32 %v2493, %v2581
      %2583 = vmatmul.bf16.gmra.mxu0 %v1515
      %v2584 = vpop.f32.mrf.mxu0
      %v2585 = vadd.f32 %v2496, %v2584
      %v2586 = vpop.f32.mrf.mxu0
      %v2587 = vadd.f32 %v2498, %v2586
      %2588 = vmatmul.bf16.gmra.mxu0 %v1524
      %v2589 = vpop.f32.mrf.mxu0
      %v2590 = vadd.f32 %v2501, %v2589
      %v2591 = vpop.f32.mrf.mxu0
      %v2592 = vadd.f32 %v2503, %v2591
      %2593 = vmatmul.bf16.gmra.mxu0 %v1533
      %v2594 = vpop.f32.mrf.mxu0
      %v2595 = vadd.f32 %v2506, %v2594
      %v2596 = vpop.f32.mrf.mxu0
      %v2597 = vadd.f32 %v2508, %v2596
      %2598 = vmatmul.bf16.gmra.mxu0 %v1542
      %v2599 = vpop.f32.mrf.mxu0
      %v2600 = vadd.f32 %v2511, %v2599
      %v2601 = vpop.f32.mrf.mxu0
      %v2602 = vadd.f32 %v2513, %v2601
      %2603 = vmatmul.bf16.gmra.mxu0 %v1551
      %v2604 = vpop.f32.mrf.mxu0
      %v2605 = vadd.f32 %v2516, %v2604
      %v2606 = vpop.f32.mrf.mxu0
      %v2607 = vadd.f32 %v2518, %v2606
      %2608 = vmatmul.bf16.gmra.mxu0 %v1560
      %v2609 = vpop.f32.mrf.mxu0
      %v2610 = vadd.f32 %v2521, %v2609
      %v2611 = vpop.f32.mrf.mxu0
      %v2612 = vadd.f32 %v2523, %v2611
      %2613 = vmatmul.bf16.gmra.mxu0 %v1569
      %v2614 = vpop.f32.mrf.mxu0
      %v2615 = vadd.f32 %v2526, %v2614
      %v2616 = vpop.f32.mrf.mxu0
      %v2617 = vadd.f32 %v2528, %v2616
      %2618 = vmatmul.bf16.gmra.mxu0 %v1578
      %v2619 = vpop.f32.mrf.mxu0
      %v2620 = vadd.f32 %v2531, %v2619
      %v2621 = vpop.f32.mrf.mxu0
      %v2622 = vadd.f32 %v2533, %v2621
      %2623 = vmatmul.bf16.gmra.mxu0 %v1587
      %v2624 = vpop.f32.mrf.mxu0
      %v2625 = vadd.f32 %v2536, %v2624
      %v2626 = vpop.f32.mrf.mxu0
      %v2627 = vadd.f32 %v2538, %v2626
      %2628 = vmatmul.bf16.gmra.mxu0 %v1596
      %v2629 = vpop.f32.mrf.mxu0
      %v2630 = vadd.f32 %v2541, %v2629
      %v2631 = vpop.f32.mrf.mxu0
      %v2632 = vadd.f32 %v2543, %v2631
      %2633 = vmatmul.bf16.gmra.mxu0 %v1605
      %v2634 = vpop.f32.mrf.mxu0
      %v2635 = vadd.f32 %v2546, %v2634
      %v2636 = vpop.f32.mrf.mxu0
      %v2637 = vadd.f32 %v2548, %v2636
      %2638 = vmatmul.bf16.gmra.mxu0 %v1614
      %v2639 = vpop.f32.mrf.mxu0
      %v2640 = vadd.f32 %v2551, %v2639
      %v2641 = vpop.f32.mrf.mxu0
      %v2642 = vadd.f32 %v2553, %v2641
      %2643 = vmatmul.bf16.gmra.mxu0 %v1623
      %v2644 = vpop.f32.mrf.mxu0
      %v2645 = vadd.f32 %v2556, %v2644
      %v2646 = vpop.f32.mrf.mxu0
      %v2647 = vadd.f32 %v2558, %v2646
      %2648 = vdwg.mxu0
      %2649 = vmatpush.bf16.msra.mxu0 %v2107
      %2650 = vmatpush.bf16.msra.mxu0 %v2106
      %2651 = vmatpush.bf16.msra.mxu0 %v2105
      %2652 = vmatpush.bf16.msra.mxu0 %v2104
      %2653 = vmatpush.bf16.msra.mxu0 %v2103
      %2654 = vmatpush.bf16.msra.mxu0 %v2102
      %2655 = vmatpush.bf16.msra.mxu0 %v2101
      %2656 = vmatpush.bf16.msra.mxu0 %v2100
      %2657 = vmatmul.bf16.gmra.mxu0 %v1489
      %v2658 = vpop.f32.mrf.mxu0
      %v2659 = vadd.f32 %v2570, %v2658
      %v2660 = vpop.f32.mrf.mxu0
      %v2661 = vadd.f32 %v2572, %v2660
      %2662 = vmatmul.bf16.gmra.mxu0 %v1498
      %v2663 = vpop.f32.mrf.mxu0
      %v2664 = vadd.f32 %v2575, %v2663
      %v2665 = vpop.f32.mrf.mxu0
      %v2666 = vadd.f32 %v2577, %v2665
      %2667 = vmatmul.bf16.gmra.mxu0 %v1507
      %v2668 = vpop.f32.mrf.mxu0
      %v2669 = vadd.f32 %v2580, %v2668
      %v2670 = vpop.f32.mrf.mxu0
      %v2671 = vadd.f32 %v2582, %v2670
      %2672 = vmatmul.bf16.gmra.mxu0 %v1516
      %v2673 = vpop.f32.mrf.mxu0
      %v2674 = vadd.f32 %v2585, %v2673
      %v2675 = vpop.f32.mrf.mxu0
      %v2676 = vadd.f32 %v2587, %v2675
      %2677 = vmatmul.bf16.gmra.mxu0 %v1525
      %v2678 = vpop.f32.mrf.mxu0
      %v2679 = vadd.f32 %v2590, %v2678
      %v2680 = vpop.f32.mrf.mxu0
      %v2681 = vadd.f32 %v2592, %v2680
      %2682 = vmatmul.bf16.gmra.mxu0 %v1534
      %v2683 = vpop.f32.mrf.mxu0
      %v2684 = vadd.f32 %v2595, %v2683
      %v2685 = vpop.f32.mrf.mxu0
      %v2686 = vadd.f32 %v2597, %v2685
      %2687 = vmatmul.bf16.gmra.mxu0 %v1543
      %v2688 = vpop.f32.mrf.mxu0
      %v2689 = vadd.f32 %v2600, %v2688
      %v2690 = vpop.f32.mrf.mxu0
      %v2691 = vadd.f32 %v2602, %v2690
      %2692 = vmatmul.bf16.gmra.mxu0 %v1552
      %v2693 = vpop.f32.mrf.mxu0
      %v2694 = vadd.f32 %v2605, %v2693
      %v2695 = vpop.f32.mrf.mxu0
      %v2696 = vadd.f32 %v2607, %v2695
      %2697 = vmatmul.bf16.gmra.mxu0 %v1561
      %v2698 = vpop.f32.mrf.mxu0
      %v2699 = vadd.f32 %v2610, %v2698
      %v2700 = vpop.f32.mrf.mxu0
      %v2701 = vadd.f32 %v2612, %v2700
      %2702 = vmatmul.bf16.gmra.mxu0 %v1570
      %v2703 = vpop.f32.mrf.mxu0
      %v2704 = vadd.f32 %v2615, %v2703
      %v2705 = vpop.f32.mrf.mxu0
      %v2706 = vadd.f32 %v2617, %v2705
      %2707 = vmatmul.bf16.gmra.mxu0 %v1579
      %v2708 = vpop.f32.mrf.mxu0
      %v2709 = vadd.f32 %v2620, %v2708
      %v2710 = vpop.f32.mrf.mxu0
      %v2711 = vadd.f32 %v2622, %v2710
      %2712 = vmatmul.bf16.gmra.mxu0 %v1588
      %v2713 = vpop.f32.mrf.mxu0
      %v2714 = vadd.f32 %v2625, %v2713
      %v2715 = vpop.f32.mrf.mxu0
      %v2716 = vadd.f32 %v2627, %v2715
      %2717 = vmatmul.bf16.gmra.mxu0 %v1597
      %v2718 = vpop.f32.mrf.mxu0
      %v2719 = vadd.f32 %v2630, %v2718
      %v2720 = vpop.f32.mrf.mxu0
      %v2721 = vadd.f32 %v2632, %v2720
      %2722 = vmatmul.bf16.gmra.mxu0 %v1606
      %v2723 = vpop.f32.mrf.mxu0
      %v2724 = vadd.f32 %v2635, %v2723
      %v2725 = vpop.f32.mrf.mxu0
      %v2726 = vadd.f32 %v2637, %v2725
      %2727 = vmatmul.bf16.gmra.mxu0 %v1615
      %v2728 = vpop.f32.mrf.mxu0
      %v2729 = vadd.f32 %v2640, %v2728
      %v2730 = vpop.f32.mrf.mxu0
      %v2731 = vadd.f32 %v2642, %v2730
      %2732 = vmatmul.bf16.gmra.mxu0 %v1624
      %v2733 = vpop.f32.mrf.mxu0
      %v2734 = vadd.f32 %v2645, %v2733
      %v2735 = vpop.f32.mrf.mxu0
      %v2736 = vadd.f32 %v2647, %v2735
      %2737 = vdwg.mxu0
      %2738 = vmatpush.bf16.msra.mxu0 %v2115
      %2739 = vmatpush.bf16.msra.mxu0 %v2114
      %2740 = vmatpush.bf16.msra.mxu0 %v2113
      %2741 = vmatpush.bf16.msra.mxu0 %v2112
      %2742 = vmatpush.bf16.msra.mxu0 %v2111
      %2743 = vmatpush.bf16.msra.mxu0 %v2110
      %2744 = vmatpush.bf16.msra.mxu0 %v2109
      %2745 = vmatpush.bf16.msra.mxu0 %v2108
      %2746 = vmatmul.bf16.gmra.mxu0 %v1490
      %v2747 = vpop.f32.mrf.mxu0
      %v2748 = vadd.f32 %v2659, %v2747
      %v2749 = vpop.f32.mrf.mxu0
      %v2750 = vadd.f32 %v2661, %v2749
      %2751 = vmatmul.bf16.gmra.mxu0 %v1499
      %v2752 = vpop.f32.mrf.mxu0
      %v2753 = vadd.f32 %v2664, %v2752
      %v2754 = vpop.f32.mrf.mxu0
      %v2755 = vadd.f32 %v2666, %v2754
      %2756 = vmatmul.bf16.gmra.mxu0 %v1508
      %v2757 = vpop.f32.mrf.mxu0
      %v2758 = vadd.f32 %v2669, %v2757
      %v2759 = vpop.f32.mrf.mxu0
      %v2760 = vadd.f32 %v2671, %v2759
      %2761 = vmatmul.bf16.gmra.mxu0 %v1517
      %v2762 = vpop.f32.mrf.mxu0
      %v2763 = vadd.f32 %v2674, %v2762
      %v2764 = vpop.f32.mrf.mxu0
      %v2765 = vadd.f32 %v2676, %v2764
      %2766 = vmatmul.bf16.gmra.mxu0 %v1526
      %v2767 = vpop.f32.mrf.mxu0
      %v2768 = vadd.f32 %v2679, %v2767
      %v2769 = vpop.f32.mrf.mxu0
      %v2770 = vadd.f32 %v2681, %v2769
      %2771 = vmatmul.bf16.gmra.mxu0 %v1535
      %v2772 = vpop.f32.mrf.mxu0
      %v2773 = vadd.f32 %v2684, %v2772
      %v2774 = vpop.f32.mrf.mxu0
      %v2775 = vadd.f32 %v2686, %v2774
      %2776 = vmatmul.bf16.gmra.mxu0 %v1544
      %v2777 = vpop.f32.mrf.mxu0
      %v2778 = vadd.f32 %v2689, %v2777
      %v2779 = vpop.f32.mrf.mxu0
      %v2780 = vadd.f32 %v2691, %v2779
      %2781 = vmatmul.bf16.gmra.mxu0 %v1553
      %v2782 = vpop.f32.mrf.mxu0
      %v2783 = vadd.f32 %v2694, %v2782
      %v2784 = vpop.f32.mrf.mxu0
      %v2785 = vadd.f32 %v2696, %v2784
      %2786 = vmatmul.bf16.gmra.mxu0 %v1562
      %v2787 = vpop.f32.mrf.mxu0
      %v2788 = vadd.f32 %v2699, %v2787
      %v2789 = vpop.f32.mrf.mxu0
      %v2790 = vadd.f32 %v2701, %v2789
      %2791 = vmatmul.bf16.gmra.mxu0 %v1571
      %v2792 = vpop.f32.mrf.mxu0
      %v2793 = vadd.f32 %v2704, %v2792
      %v2794 = vpop.f32.mrf.mxu0
      %v2795 = vadd.f32 %v2706, %v2794
      %2796 = vmatmul.bf16.gmra.mxu0 %v1580
      %v2797 = vpop.f32.mrf.mxu0
      %v2798 = vadd.f32 %v2709, %v2797
      %v2799 = vpop.f32.mrf.mxu0
      %v2800 = vadd.f32 %v2711, %v2799
      %2801 = vmatmul.bf16.gmra.mxu0 %v1589
      %v2802 = vpop.f32.mrf.mxu0
      %v2803 = vadd.f32 %v2714, %v2802
      %v2804 = vpop.f32.mrf.mxu0
      %v2805 = vadd.f32 %v2716, %v2804
      %2806 = vmatmul.bf16.gmra.mxu0 %v1598
      %v2807 = vpop.f32.mrf.mxu0
      %v2808 = vadd.f32 %v2719, %v2807
      %v2809 = vpop.f32.mrf.mxu0
      %v2810 = vadd.f32 %v2721, %v2809
      %2811 = vmatmul.bf16.gmra.mxu0 %v1607
      %v2812 = vpop.f32.mrf.mxu0
      %v2813 = vadd.f32 %v2724, %v2812
      %v2814 = vpop.f32.mrf.mxu0
      %v2815 = vadd.f32 %v2726, %v2814
      %2816 = vmatmul.bf16.gmra.mxu0 %v1616
      %v2817 = vpop.f32.mrf.mxu0
      %v2818 = vadd.f32 %v2729, %v2817
      %v2819 = vpop.f32.mrf.mxu0
      %v2820 = vadd.f32 %v2731, %v2819
      %2821 = vmatmul.bf16.gmra.mxu0 %v1625
      %v2822 = vpop.f32.mrf.mxu0
      %v2823 = vadd.f32 %v2734, %v2822
      %v2824 = vpop.f32.mrf.mxu0
      %v2825 = vadd.f32 %v2736, %v2824
      %2826 = vdwg.mxu0
      %2827 = vmatpush.bf16.msra.mxu0 %v2123
      %2828 = vmatpush.bf16.msra.mxu0 %v2122
      %2829 = vmatpush.bf16.msra.mxu0 %v2121
      %2830 = vmatpush.bf16.msra.mxu0 %v2120
      %2831 = vmatpush.bf16.msra.mxu0 %v2119
      %2832 = vmatpush.bf16.msra.mxu0 %v2118
      %2833 = vmatpush.bf16.msra.mxu0 %v2117
      %2834 = vmatpush.bf16.msra.mxu0 %v2116
      %2835 = vmatmul.bf16.gmra.mxu0 %v1491
      %v2836 = vpop.f32.mrf.mxu0
      %v2837 = vadd.f32 %v2748, %v2836
      %v2838 = vpop.f32.mrf.mxu0
      %v2839 = vadd.f32 %v2750, %v2838
      %2840 = vmatmul.bf16.gmra.mxu0 %v1500
      %v2841 = vpop.f32.mrf.mxu0
      %v2842 = vadd.f32 %v2753, %v2841
      %v2843 = vpop.f32.mrf.mxu0
      %v2844 = vadd.f32 %v2755, %v2843
      %2845 = vmatmul.bf16.gmra.mxu0 %v1509
      %v2846 = vpop.f32.mrf.mxu0
      %v2847 = vadd.f32 %v2758, %v2846
      %v2848 = vpop.f32.mrf.mxu0
      %v2849 = vadd.f32 %v2760, %v2848
      %2850 = vmatmul.bf16.gmra.mxu0 %v1518
      %v2851 = vpop.f32.mrf.mxu0
      %v2852 = vadd.f32 %v2763, %v2851
      %v2853 = vpop.f32.mrf.mxu0
      %v2854 = vadd.f32 %v2765, %v2853
      %2855 = vmatmul.bf16.gmra.mxu0 %v1527
      %v2856 = vpop.f32.mrf.mxu0
      %v2857 = vadd.f32 %v2768, %v2856
      %v2858 = vpop.f32.mrf.mxu0
      %v2859 = vadd.f32 %v2770, %v2858
      %2860 = vmatmul.bf16.gmra.mxu0 %v1536
      %v2861 = vpop.f32.mrf.mxu0
      %v2862 = vadd.f32 %v2773, %v2861
      %v2863 = vpop.f32.mrf.mxu0
      %v2864 = vadd.f32 %v2775, %v2863
      %2865 = vmatmul.bf16.gmra.mxu0 %v1545
      %v2866 = vpop.f32.mrf.mxu0
      %v2867 = vadd.f32 %v2778, %v2866
      %v2868 = vpop.f32.mrf.mxu0
      %v2869 = vadd.f32 %v2780, %v2868
      %2870 = vmatmul.bf16.gmra.mxu0 %v1554
      %v2871 = vpop.f32.mrf.mxu0
      %v2872 = vadd.f32 %v2783, %v2871
      %v2873 = vpop.f32.mrf.mxu0
      %v2874 = vadd.f32 %v2785, %v2873
      %2875 = vmatmul.bf16.gmra.mxu0 %v1563
      %v2876 = vpop.f32.mrf.mxu0
      %v2877 = vadd.f32 %v2788, %v2876
      %v2878 = vpop.f32.mrf.mxu0
      %v2879 = vadd.f32 %v2790, %v2878
      %2880 = vmatmul.bf16.gmra.mxu0 %v1572
      %v2881 = vpop.f32.mrf.mxu0
      %v2882 = vadd.f32 %v2793, %v2881
      %v2883 = vpop.f32.mrf.mxu0
      %v2884 = vadd.f32 %v2795, %v2883
      %2885 = vmatmul.bf16.gmra.mxu0 %v1581
      %v2886 = vpop.f32.mrf.mxu0
      %v2887 = vadd.f32 %v2798, %v2886
      %v2888 = vpop.f32.mrf.mxu0
      %v2889 = vadd.f32 %v2800, %v2888
      %2890 = vmatmul.bf16.gmra.mxu0 %v1590
      %v2891 = vpop.f32.mrf.mxu0
      %v2892 = vadd.f32 %v2803, %v2891
      %v2893 = vpop.f32.mrf.mxu0
      %v2894 = vadd.f32 %v2805, %v2893
      %2895 = vmatmul.bf16.gmra.mxu0 %v1599
      %v2896 = vpop.f32.mrf.mxu0
      %v2897 = vadd.f32 %v2808, %v2896
      %v2898 = vpop.f32.mrf.mxu0
      %v2899 = vadd.f32 %v2810, %v2898
      %2900 = vmatmul.bf16.gmra.mxu0 %v1608
      %v2901 = vpop.f32.mrf.mxu0
      %v2902 = vadd.f32 %v2813, %v2901
      %v2903 = vpop.f32.mrf.mxu0
      %v2904 = vadd.f32 %v2815, %v2903
      %2905 = vmatmul.bf16.gmra.mxu0 %v1617
      %v2906 = vpop.f32.mrf.mxu0
      %v2907 = vadd.f32 %v2818, %v2906
      %v2908 = vpop.f32.mrf.mxu0
      %v2909 = vadd.f32 %v2820, %v2908
      %2910 = vmatmul.bf16.gmra.mxu0 %v1626
      %v2911 = vpop.f32.mrf.mxu0
      %v2912 = vadd.f32 %v2823, %v2911
      %v2913 = vpop.f32.mrf.mxu0
      %v2914 = vadd.f32 %v2825, %v2913
      %2915 = vdwg.mxu0
      %2916 = vmatpush.bf16.msra.mxu0 %v2131
      %2917 = vmatpush.bf16.msra.mxu0 %v2130
      %2918 = vmatpush.bf16.msra.mxu0 %v2129
      %2919 = vmatpush.bf16.msra.mxu0 %v2128
      %2920 = vmatpush.bf16.msra.mxu0 %v2127
      %2921 = vmatpush.bf16.msra.mxu0 %v2126
      %2922 = vmatpush.bf16.msra.mxu0 %v2125
      %2923 = vmatpush.bf16.msra.mxu0 %v2124
      %2924 = vmatmul.bf16.gmra.mxu0 %v1492
      %v2925 = vpop.f32.mrf.mxu0
      %v2926 = vadd.f32 %v2837, %v2925
      %v2927 = vpop.f32.mrf.mxu0
      %v2928 = vadd.f32 %v2839, %v2927
      %2929 = vmatmul.bf16.gmra.mxu0 %v1501
      %v2930 = vpop.f32.mrf.mxu0
      %v2931 = vadd.f32 %v2842, %v2930
      %v2932 = vpop.f32.mrf.mxu0
      %v2933 = vadd.f32 %v2844, %v2932
      %2934 = vmatmul.bf16.gmra.mxu0 %v1510
      %v2935 = vpop.f32.mrf.mxu0
      %v2936 = vadd.f32 %v2847, %v2935
      %v2937 = vpop.f32.mrf.mxu0
      %v2938 = vadd.f32 %v2849, %v2937
      %2939 = vmatmul.bf16.gmra.mxu0 %v1519
      %v2940 = vpop.f32.mrf.mxu0
      %v2941 = vadd.f32 %v2852, %v2940
      %v2942 = vpop.f32.mrf.mxu0
      %v2943 = vadd.f32 %v2854, %v2942
      %2944 = vmatmul.bf16.gmra.mxu0 %v1528
      %v2945 = vpop.f32.mrf.mxu0
      %v2946 = vadd.f32 %v2857, %v2945
      %v2947 = vpop.f32.mrf.mxu0
      %v2948 = vadd.f32 %v2859, %v2947
      %2949 = vmatmul.bf16.gmra.mxu0 %v1537
      %v2950 = vpop.f32.mrf.mxu0
      %v2951 = vadd.f32 %v2862, %v2950
      %v2952 = vpop.f32.mrf.mxu0
      %v2953 = vadd.f32 %v2864, %v2952
      %2954 = vmatmul.bf16.gmra.mxu0 %v1546
      %v2955 = vpop.f32.mrf.mxu0
      %v2956 = vadd.f32 %v2867, %v2955
      %v2957 = vpop.f32.mrf.mxu0
      %v2958 = vadd.f32 %v2869, %v2957
      %2959 = vmatmul.bf16.gmra.mxu0 %v1555
      %v2960 = vpop.f32.mrf.mxu0
      %v2961 = vadd.f32 %v2872, %v2960
      %v2962 = vpop.f32.mrf.mxu0
      %v2963 = vadd.f32 %v2874, %v2962
      %2964 = vmatmul.bf16.gmra.mxu0 %v1564
      %v2965 = vpop.f32.mrf.mxu0
      %v2966 = vadd.f32 %v2877, %v2965
      %v2967 = vpop.f32.mrf.mxu0
      %v2968 = vadd.f32 %v2879, %v2967
      %2969 = vmatmul.bf16.gmra.mxu0 %v1573
      %v2970 = vpop.f32.mrf.mxu0
      %v2971 = vadd.f32 %v2882, %v2970
      %v2972 = vpop.f32.mrf.mxu0
      %v2973 = vadd.f32 %v2884, %v2972
      %2974 = vmatmul.bf16.gmra.mxu0 %v1582
      %v2975 = vpop.f32.mrf.mxu0
      %v2976 = vadd.f32 %v2887, %v2975
      %v2977 = vpop.f32.mrf.mxu0
      %v2978 = vadd.f32 %v2889, %v2977
      %2979 = vmatmul.bf16.gmra.mxu0 %v1591
      %v2980 = vpop.f32.mrf.mxu0
      %v2981 = vadd.f32 %v2892, %v2980
      %v2982 = vpop.f32.mrf.mxu0
      %v2983 = vadd.f32 %v2894, %v2982
      %2984 = vmatmul.bf16.gmra.mxu0 %v1600
      %v2985 = vpop.f32.mrf.mxu0
      %v2986 = vadd.f32 %v2897, %v2985
      %v2987 = vpop.f32.mrf.mxu0
      %v2988 = vadd.f32 %v2899, %v2987
      %2989 = vmatmul.bf16.gmra.mxu0 %v1609
      %v2990 = vpop.f32.mrf.mxu0
      %v2991 = vadd.f32 %v2902, %v2990
      %v2992 = vpop.f32.mrf.mxu0
      %v2993 = vadd.f32 %v2904, %v2992
      %2994 = vmatmul.bf16.gmra.mxu0 %v1618
      %v2995 = vpop.f32.mrf.mxu0
      %v2996 = vadd.f32 %v2907, %v2995
      %v2997 = vpop.f32.mrf.mxu0
      %v2998 = vadd.f32 %v2909, %v2997
      %2999 = vmatmul.bf16.gmra.mxu0 %v1627
      %v3000 = vpop.f32.mrf.mxu0
      %v3001 = vadd.f32 %v2912, %v3000
      %v3002 = vpop.f32.mrf.mxu0
      %v3003 = vadd.f32 %v2914, %v3002
      %3004 = vdwg.mxu0
      %v3005 = vadd.f32 %v2926, %v2928
      %v3006 = vadd.f32 %v3005, %v2931
      %v3007 = vadd.f32 %v3006, %v2933
      %v3008 = vadd.f32 %v3007, %v2936
      %v3009 = vadd.f32 %v3008, %v2938
      %v3010 = vadd.f32 %v3009, %v2941
      %v3011 = vadd.f32 %v3010, %v2943
      %v3012 = vadd.f32 %v3011, %v2946
      %v3013 = vadd.f32 %v3012, %v2948
      %v3014 = vadd.f32 %v3013, %v2951
      %v3015 = vadd.f32 %v3014, %v2953
      %v3016 = vadd.f32 %v3015, %v2956
      %v3017 = vadd.f32 %v3016, %v2958
      %v3018 = vadd.f32 %v3017, %v2961
      %v3019 = vadd.f32 %v3018, %v2963
      %v3020 = vadd.f32 %v3019, %v2966
      %v3021 = vadd.f32 %v3020, %v2968
      %v3022 = vadd.f32 %v3021, %v2971
      %v3023 = vadd.f32 %v3022, %v2973
      %v3024 = vadd.f32 %v3023, %v2976
      %v3025 = vadd.f32 %v3024, %v2978
      %v3026 = vadd.f32 %v3025, %v2981
      %v3027 = vadd.f32 %v3026, %v2983
      %v3028 = vadd.f32 %v3027, %v2986
      %v3029 = vadd.f32 %v3028, %v2988
      %v3030 = vadd.f32 %v3029, %v2991
      %v3031 = vadd.f32 %v3030, %v2993
      %v3032 = vadd.f32 %v3031, %v2996
      %v3033 = vadd.f32 %v3032, %v2998
      %v3034 = vadd.f32 %v3033, %v3001
      %v3035 = vadd.f32 %v3034, %v3003
      %v3036 = vrot.slane %v3035, 4
      %v3037 = vadd.f32 %v3035, %v3036
      %v3038 = vrot.slane %v3037, 2
      %v3039 = vadd.f32 %v3037, %v3038
      %v3040 = vrot.slane %v3039, 1
      %v3041 = vadd.f32 %v3039, %v3040
      %3042 = vst [vmem:[%s208] sm:$0x1] %v3041
      %v3043 = vmul.f32 %v2926, %v2926
      %v3044 = vmul.f32 %v2928, %v2928
      %v3045 = vmul.f32 %v2931, %v2931
      %v3046 = vmul.f32 %v2933, %v2933
      %v3047 = vmul.f32 %v2936, %v2936
      %v3048 = vmul.f32 %v2938, %v2938
      %v3049 = vmul.f32 %v2941, %v2941
      %v3050 = vmul.f32 %v2943, %v2943
      %v3051 = vmul.f32 %v2946, %v2946
      %v3052 = vmul.f32 %v2948, %v2948
      %v3053 = vmul.f32 %v2951, %v2951
      %v3054 = vmul.f32 %v2953, %v2953
      %v3055 = vmul.f32 %v2956, %v2956
      %v3056 = vmul.f32 %v2958, %v2958
      %v3057 = vmul.f32 %v2961, %v2961
      %v3058 = vmul.f32 %v2963, %v2963
      %v3059 = vmul.f32 %v2966, %v2966
      %v3060 = vmul.f32 %v2968, %v2968
      %v3061 = vmul.f32 %v2971, %v2971
      %v3062 = vmul.f32 %v2973, %v2973
      %v3063 = vmul.f32 %v2976, %v2976
      %v3064 = vmul.f32 %v2978, %v2978
      %v3065 = vmul.f32 %v2981, %v2981
      %v3066 = vmul.f32 %v2983, %v2983
      %v3067 = vmul.f32 %v2986, %v2986
      %v3068 = vmul.f32 %v2988, %v2988
      %v3069 = vmul.f32 %v2991, %v2991
      %v3070 = vmul.f32 %v2993, %v2993
      %v3071 = vmul.f32 %v2996, %v2996
      %v3072 = vmul.f32 %v2998, %v2998
      %v3073 = vmul.f32 %v3001, %v3001
      %v3074 = vmul.f32 %v3003, %v3003
      %v3075 = vadd.f32 %v3043, %v3044
      %v3076 = vadd.f32 %v3075, %v3045
      %v3077 = vadd.f32 %v3076, %v3046
      %v3078 = vadd.f32 %v3077, %v3047
      %v3079 = vadd.f32 %v3078, %v3048
      %v3080 = vadd.f32 %v3079, %v3049
      %v3081 = vadd.f32 %v3080, %v3050
      %v3082 = vadd.f32 %v3081, %v3051
      %v3083 = vadd.f32 %v3082, %v3052
      %v3084 = vadd.f32 %v3083, %v3053
      %v3085 = vadd.f32 %v3084, %v3054
      %v3086 = vadd.f32 %v3085, %v3055
      %v3087 = vadd.f32 %v3086, %v3056
      %v3088 = vadd.f32 %v3087, %v3057
      %v3089 = vadd.f32 %v3088, %v3058
      %v3090 = vadd.f32 %v3089, %v3059
      %v3091 = vadd.f32 %v3090, %v3060
      %v3092 = vadd.f32 %v3091, %v3061
      %v3093 = vadd.f32 %v3092, %v3062
      %v3094 = vadd.f32 %v3093, %v3063
      %v3095 = vadd.f32 %v3094, %v3064
      %v3096 = vadd.f32 %v3095, %v3065
      %v3097 = vadd.f32 %v3096, %v3066
      %v3098 = vadd.f32 %v3097, %v3067
      %v3099 = vadd.f32 %v3098, %v3068
      %v3100 = vadd.f32 %v3099, %v3069
      %v3101 = vadd.f32 %v3100, %v3070
      %v3102 = vadd.f32 %v3101, %v3071
      %v3103 = vadd.f32 %v3102, %v3072
      %v3104 = vadd.f32 %v3103, %v3073
      %v3105 = vadd.f32 %v3104, %v3074
      %v3106 = vrot.slane %v3105, 4
      %v3107 = vadd.f32 %v3105, %v3106
      %v3108 = vrot.slane %v3107, 2
      %v3109 = vadd.f32 %v3107, %v3108
      %v3110 = vrot.slane %v3109, 1
      %v3111 = vadd.f32 %v3109, %v3110
      %3112 = vst [vmem:[%s208 + $0x1] sm:$0x1] %v3111
      %v3113 = vpack.c.bf16 %v2926, %v2926
      %v3114 = vpack.c.bf16 %v2928, %v2928
      %v3115 = vpack.c.bf16 %v2931, %v2931
      %v3116 = vpack.c.bf16 %v2933, %v2933
      %v3117 = vpack.c.bf16 %v2936, %v2936
      %v3118 = vpack.c.bf16 %v2938, %v2938
      %v3119 = vpack.c.bf16 %v2941, %v2941
      %v3120 = vpack.c.bf16 %v2943, %v2943
      %v3121 = vpack.c.bf16 %v2946, %v2946
      %v3122 = vpack.c.bf16 %v2948, %v2948
      %v3123 = vpack.c.bf16 %v2951, %v2951
      %v3124 = vpack.c.bf16 %v2953, %v2953
      %v3125 = vpack.c.bf16 %v2956, %v2956
      %v3126 = vpack.c.bf16 %v2958, %v2958
      %v3127 = vpack.c.bf16 %v2961, %v2961
      %v3128 = vpack.c.bf16 %v2963, %v2963
      %v3129 = vpack.c.bf16 %v2966, %v2966
      %v3130 = vpack.c.bf16 %v2968, %v2968
      %v3131 = vpack.c.bf16 %v2971, %v2971
      %v3132 = vpack.c.bf16 %v2973, %v2973
      %v3133 = vpack.c.bf16 %v2976, %v2976
      %v3134 = vpack.c.bf16 %v2978, %v2978
      %v3135 = vpack.c.bf16 %v2981, %v2981
      %v3136 = vpack.c.bf16 %v2983, %v2983
      %v3137 = vpack.c.bf16 %v2986, %v2986
      %v3138 = vpack.c.bf16 %v2988, %v2988
      %v3139 = vpack.c.bf16 %v2991, %v2991
      %v3140 = vpack.c.bf16 %v2993, %v2993
      %v3141 = vpack.c.bf16 %v2996, %v2996
      %v3142 = vpack.c.bf16 %v2998, %v2998
      %v3143 = vpack.c.bf16 %v3001, %v3001
      %v3144 = vpack.c.bf16 %v3003, %v3003
      %3145 = vst [vmem:[%s204] sm:$0xf] %v3113
      %3146 = vst [vmem:[%s204 + $0x4] sm:$0xf] %v3114
      %3147 = vst [vmem:[%s204 + $0x8] sm:$0xf] %v3115
      %3148 = vst [vmem:[%s204 + $0xc] sm:$0xf] %v3116
      %3149 = vst [vmem:[%s204 + $0x10] sm:$0xf] %v3117
      %3150 = vst [vmem:[%s204 + $0x14] sm:$0xf] %v3118
      %3151 = vst [vmem:[%s204 + $0x18] sm:$0xf] %v3119
      %3152 = vst [vmem:[%s204 + $0x1c] sm:$0xf] %v3120
      %3153 = vst [vmem:[%s204 + $0x20] sm:$0xf] %v3121
      %3154 = vst [vmem:[%s204 + $0x24] sm:$0xf] %v3122
      %3155 = vst [vmem:[%s204 + $0x28] sm:$0xf] %v3123
      %3156 = vst [vmem:[%s204 + $0x2c] sm:$0xf] %v3124
      %3157 = vst [vmem:[%s204 + $0x30] sm:$0xf] %v3125
      %3158 = vst [vmem:[%s204 + $0x34] sm:$0xf] %v3126
      %3159 = vst [vmem:[%s204 + $0x38] sm:$0xf] %v3127
      %3160 = vst [vmem:[%s204 + $0x3c] sm:$0xf] %v3128
      %3161 = vst [vmem:[%s204 + $0x40] sm:$0xf] %v3129
      %3162 = vst [vmem:[%s204 + $0x44] sm:$0xf] %v3130
      %3163 = vst [vmem:[%s204 + $0x48] sm:$0xf] %v3131
      %3164 = vst [vmem:[%s204 + $0x4c] sm:$0xf] %v3132
      %3165 = vst [vmem:[%s204 + $0x50] sm:$0xf] %v3133
      %3166 = vst [vmem:[%s204 + $0x54] sm:$0xf] %v3134
      %3167 = vst [vmem:[%s204 + $0x58] sm:$0xf] %v3135
      %3168 = vst [vmem:[%s204 + $0x5c] sm:$0xf] %v3136
      %3169 = vst [vmem:[%s204 + $0x60] sm:$0xf] %v3137
      %3170 = vst [vmem:[%s204 + $0x64] sm:$0xf] %v3138
      %3171 = vst [vmem:[%s204 + $0x68] sm:$0xf] %v3139
      %3172 = vst [vmem:[%s204 + $0x6c] sm:$0xf] %v3140
      %3173 = vst [vmem:[%s204 + $0x70] sm:$0xf] %v3141
      %3174 = vst [vmem:[%s204 + $0x74] sm:$0xf] %v3142
      %3175 = vst [vmem:[%s204 + $0x78] sm:$0xf] %v3143
      %3176 = vst [vmem:[%s204 + $0x7c] sm:$0xf] %v3144
      %p3177 = scmp.lt.s32.totalorder %s16, 1
      %s3178 = scalar_select %p3177, %s16, 1
      %s3179 = smul.addr %s3178, 32
      %s3180 = smul.addr %s3179, 4
      %s3181 = scalar_lea.vmem %s3, %s3180
      %p3182 = scmp.lt.s32.totalorder %s16, 1
      %s3183 = scalar_select %p3182, %s16, 1
      %s3184 = smul.addr %s3183, 2
      %s3185 = scalar_lea.vmem %s4, %s3184
      // Predicated region
      $region33: #{stacked_conv_layers_forward.4} parent=31 // pred_check
        %p3186 = pneg %p102
      $region34: #{stacked_conv_layers_forward.4} parent=31 // pred_check_branch
        %3188 = sbr.rel (%p3186) target = $region36
      $region35: #{stacked_conv_layers_forward.4} parent=31 // pred_region
        _
      $region36: #{stacked_conv_layers_forward.4} parent=31 // pred_fallthru
        _
      // Predicated region
      $region37: #{stacked_conv_layers_forward.4} parent=31 // pred_check
        %p3189 = pneg %p128
      $region38: #{stacked_conv_layers_forward.4} parent=31 // pred_check_branch
        %3191 = sbr.rel (%p3189) target = $region40
      $region39: #{stacked_conv_layers_forward.4} parent=31 // pred_region
        _
      $region40: #{stacked_conv_layers_forward.4} parent=31 // pred_fallthru
        _
    $region32: #{stacked_conv_layers_forward.4} parent=5 // pred_fallthru
      _
    %p3192 = scmp.le.s32.totalorder 2, %s11
    // Predicated region
    $region41: #{stacked_conv_layers_forward.4} parent=5 // pred_check
      %p3193 = pneg %p3192
    $region42: #{stacked_conv_layers_forward.4} parent=5 // pred_check_branch
      %3195 = sbr.rel (%p3193) target = $region44
    $region43: #{stacked_conv_layers_forward.4} parent=5 // pred_region
      %s3196 = ssub.s32 %s11, 2
      // Predicated region
      $region45: #{stacked_conv_layers_forward.4} parent=43 // pred_check
        %p3197 = pneg %p108
      $region46: #{stacked_conv_layers_forward.4} parent=43 // pred_check_branch
        %3199 = sbr.rel (%p3197) target = $region48
      $region47: #{stacked_conv_layers_forward.4} parent=43 // pred_region
        %p3200 = scmp.lt.s32.totalorder %s17, 1
        %s3201 = scalar_select %p3200, %s17, 1
        %s3202 = smul.addr %s3201, 32
        %s3203 = smul.addr %s3202, 4
        %s3204 = scalar_lea.vmem %s3, %s3203
      $region48: #{stacked_conv_layers_forward.4} parent=43 // pred_fallthru
        _
      // Predicated region
      $region49: #{stacked_conv_layers_forward.4} parent=43 // pred_check
        %p3205 = pneg %p134
      $region50: #{stacked_conv_layers_forward.4} parent=43 // pred_check_branch
        %3207 = sbr.rel (%p3205) target = $region52
      $region51: #{stacked_conv_layers_forward.4} parent=43 // pred_region
        %p3208 = scmp.lt.s32.totalorder %s17, 1
        %s3209 = scalar_select %p3208, %s17, 1
        %s3210 = smul.addr %s3209, 2
        %s3211 = scalar_lea.vmem %s4, %s3210
      $region52: #{stacked_conv_layers_forward.4} parent=43 // pred_fallthru
        _
    $region44: #{stacked_conv_layers_forward.4} parent=5 // pred_fallthru
      _
  $region6: #{stacked_conv_layers_forward.4} parent=0 // loop_footer
    %s15 = sadd.s32 1, %s11
  $region7: #{stacked_conv_layers_forward.4} parent=0 // loop_footer_branch
    %10 = sbr.rel target = $region3
  $region8: #{stacked_conv_layers_forward.4} parent=0 // loop_exit
    _

</llo_original>
